<compile_context>
chip_gen: v6e
topology: v6e:2x2x1
jax: 0.10.0
libtpu: 0.0.40
codegen_flags: <defaults>
</compile_context>

<pallas_src>
import functools

import numpy as np
import jax
import jax.numpy as jnp
from jax import lax
from jax.experimental import pallas as pl
from jax.experimental.pallas import tpu as pltpu

ATOM_NUM_MAX = 23        # RNA_CONSTANTS.ATOM_NUM_MAX
PLDDT_BINS = 50
TM_BINS = 64
TM_MAX_BIN = 31.0
LDDT_CUTOFF = 15.0
W_BACKBONE = 1.0         # config.fape.backbone.weight (synthetic config)

_HI = lax.Precision.HIGHEST
_VMEM_LIMIT = 32 * 1024 * 1024


def _round_up(x, m):
    return ((x + m - 1) // m) * m


def _pad_axis(x, axis, target):
    pad = target - x.shape[axis]
    if pad <= 0:
        return x
    cfg = [(0, 0)] * x.ndim
    cfg[axis] = (0, pad)
    return jnp.pad(x, cfg)


# -----------------------------------------------------------------------------
# Quaternion helpers (OpenFold/RhoFold rigid_utils semantics, UNnormalized quats)
# -----------------------------------------------------------------------------
def quat_to_rot(q):
    w, x, y, z = q[..., 0], q[..., 1], q[..., 2], q[..., 3]
    flat = jnp.stack([
        w * w + x * x - y * y - z * z, 2 * (x * y - w * z), 2 * (x * z + w * y),
        2 * (x * y + w * z), w * w - x * x + y * y - z * z, 2 * (y * z - w * x),
        2 * (x * z - w * y), 2 * (y * z + w * x), w * w - x * x - y * y + z * z,
    ], axis=-1)
    return flat.reshape(q.shape[:-1] + (3, 3))


def invert_quat(q):
    qc = q * jnp.asarray([1.0, -1.0, -1.0, -1.0], q.dtype)
    return qc / jnp.sum(q * q, axis=-1, keepdims=True)


def _aug_frames(Minv, t):
    """Augmented frame operand [Minv_i | -(Minv_i . t)], component-major (B,3,L,4)."""
    mt = jnp.einsum('blij,blj->bli', Minv, t, precision=_HI)        # (B, L, 3)
    A = jnp.concatenate([Minv, -mt[..., None]], axis=-1)            # (B, L, 3, 4)
    return jnp.transpose(A, (0, 2, 1, 3))                           # (B, 3, L, 4)


# -----------------------------------------------------------------------------
# Kernel 1: fused FAPE + RMSD masked, clamped local-frame error sums.
#   err[l, p] = clip(|| Mp[l](Pp[p]-tp[l]) - Mg[l](Pg[p]-tg[l]) ||, 0, clamp)
#   out_f     = sum_{l,p} frame_mask[l] * fape_point_mask[p] * err[l, p]
#   out_r     = sum_{l,p} frame_mask[l] * rmsd_point_mask[p] * err[l, p]
# Grid: (B, Np/TN); reduction over point tiles accumulated in the out block.
# -----------------------------------------------------------------------------
def _frame_err_kernel(w_ref, p_ref, fm_ref, pmf_ref, pmr_ref, of_ref, or_ref,
                      *, clamp, eps):
    @pl.when(pl.program_id(1) == 0)
    def _():
        of_ref[...] = jnp.zeros_like(of_ref)
        or_ref[...] = jnp.zeros_like(or_ref)

    p = p_ref[0]                                             # (8, TN)
    sq = None
    for i in range(3):
        # combined (pred - gt) local coordinate difference on the MXU
        d = jnp.dot(w_ref[0, i], p, preferred_element_type=jnp.float32,
                    precision=_HI)                           # (L, TN)
        sq = d * d if sq is None else sq + d * d

    err = jnp.minimum(jnp.sqrt(sq + eps), clamp)             # (L, TN), err >= 0

    # masks applied after the lane reduction
    fm = fm_ref[0]                                           # (L, 1)
    row_f = jnp.sum(err * pmf_ref[0], axis=-1, keepdims=True)   # (L, 1)
    row_r = jnp.sum(err * pmr_ref[0], axis=-1, keepdims=True)   # (L, 1)
    of_ref[...] += jnp.sum(row_f * fm, axis=0, keepdims=True)[None]
    or_ref[...] += jnp.sum(row_r * fm, axis=0, keepdims=True)[None]


def _frame_err_fused(W, P_aug, fm, pm_f, pm_r, *, clamp, eps, tn):
    B, _, Lp, _ = W.shape
    Np = P_aug.shape[-1]
    kernel = functools.partial(_frame_err_kernel, clamp=clamp, eps=eps)
    out_f, out_r = pl.pallas_call(
        kernel,
        out_shape=(jax.ShapeDtypeStruct((B, 1, 1), jnp.float32),
                   jax.ShapeDtypeStruct((B, 1, 1), jnp.float32)),
        grid=(B, Np // tn),
        in_specs=[
            pl.BlockSpec((1, 3, Lp, 8), lambda b, n: (b, 0, 0, 0)),
            pl.BlockSpec((1, 8, tn), lambda b, n: (b, 0, n)),
            pl.BlockSpec((1, Lp, 1), lambda b, n: (b, 0, 0)),
            pl.BlockSpec((1, 1, tn), lambda b, n: (b, 0, n)),
            pl.BlockSpec((1, 1, tn), lambda b, n: (b, 0, n)),
        ],
        out_specs=(pl.BlockSpec((1, 1, 1), lambda b, n: (b, 0, 0)),
                   pl.BlockSpec((1, 1, 1), lambda b, n: (b, 0, 0))),
        compiler_params=pltpu.CompilerParams(
            dimension_semantics=("parallel", "arbitrary"),
            vmem_limit_bytes=_VMEM_LIMIT),
    )(W, P_aug, fm, pm_f, pm_r)
    return out_f[:, 0, 0], out_r[:, 0, 0]


# -----------------------------------------------------------------------------
# Kernel 2: per-residue lddt score + plddt cross-entropy + predicted plddt.
# Row-tiled over residues; distance matrices via an MXU Gram matrix.
# -----------------------------------------------------------------------------
def _lddt_kernel(xpr_ref, xpc_ref, xtr_ref, xtc_ref, mcol_ref, mrow_ref,
                 logits_ref, score_ref, err_ref, plddt_ref,
                 *, cutoff, no_bins, eps, tl):
    f32 = jnp.float32
    xp_rows = xpr_ref[0]       # (TL, 3) pred CA (tile rows)
    xt_rows = xtr_ref[0]       # (TL, 3) true CA
    xp_cols = xpc_ref[0]       # (3, Lp) pred CA (all columns)
    xt_cols = xtc_ref[0]       # (3, Lp)
    mcol = mcol_ref[0]         # (TL, 1)
    mrow = mrow_ref[0]         # (1, Lp)
    logits = logits_ref[0]     # (TL, no_bins)
    Lp = mrow.shape[-1]

    def pair_dist(rows, cols):
        g = jnp.dot(rows, cols, preferred_element_type=jnp.float32, precision=_HI)
        rn = jnp.sum(rows * rows, axis=-1, keepdims=True)    # (TL, 1)
        cn = jnp.sum(cols * cols, axis=0, keepdims=True)     # (1, Lp)
        return jnp.sqrt(eps + jnp.maximum(rn + cn - 2.0 * g, 0.0))

    dmat_true = pair_dist(xt_rows, xt_cols)                  # (TL, Lp)
    dmat_pred = pair_dist(xp_rows, xp_cols)

    row0 = pl.program_id(1) * tl
    ii = row0 + lax.broadcasted_iota(jnp.int32, (tl, Lp), 0)
    jj = lax.broadcasted_iota(jnp.int32, (tl, Lp), 1)
    not_diag = (ii != jj).astype(f32)

    dists_to_score = (dmat_true < cutoff).astype(f32) * mcol * mrow * not_diag
    dist_l1 = jnp.abs(dmat_true - dmat_pred)
    sc = ((dist_l1 < 0.5).astype(f32) + (dist_l1 < 1.0).astype(f32)
          + (dist_l1 < 2.0).astype(f32) + (dist_l1 < 4.0).astype(f32)) * 0.25

    norm = 1.0 / (eps + jnp.sum(dists_to_score, axis=-1, keepdims=True))   # (TL,1)
    score = norm * jnp.sum(dists_to_score * sc, axis=-1, keepdims=True)    # (TL,1)

    # softmax cross entropy of the plddt head against the binned lddt score
    bins = jnp.minimum(jnp.floor(score * no_bins), float(no_bins - 1)).astype(jnp.int32)
    mx = jnp.max(logits, axis=-1, keepdims=True)
    lse = mx + jnp.log(jnp.sum(jnp.exp(logits - mx), axis=-1, keepdims=True))
    cidx = lax.broadcasted_iota(jnp.int32, logits.shape, 1)
    picked = jnp.sum(jnp.where(cidx == bins, logits, 0.0), axis=-1, keepdims=True)
    errs = lse - picked                                                    # (TL,1)

    # per-residue predicted lddt (compute_plddt integrand)
    bounds = (lax.broadcasted_iota(jnp.int32, (1, no_bins), 1).astype(f32)
              + 0.5) / no_bins
    probs = jnp.exp(logits - lse)
    plddt_res = jnp.sum(probs * bounds, axis=-1, keepdims=True)            # (TL,1)

    score_ref[...] = score[None]
    err_ref[...] = errs[None]
    plddt_ref[...] = plddt_res[None]


def _lddt_call(xp_rows, xp_cols, xt_rows, xt_cols, mcol, mrow, logits, *, tl):
    B, Lp, _ = xp_rows.shape
    nb = logits.shape[-1]
    kernel = functools.partial(_lddt_kernel, cutoff=LDDT_CUTOFF, no_bins=nb,
                               eps=1e-10, tl=tl)
    score, errs, plddt = pl.pallas_call(
        kernel,
        out_shape=(jax.ShapeDtypeStruct((B, Lp, 1), jnp.float32),
                   jax.ShapeDtypeStruct((B, Lp, 1), jnp.float32),
                   jax.ShapeDtypeStruct((B, Lp, 1), jnp.float32)),
        grid=(B, Lp // tl),
        in_specs=[
            pl.BlockSpec((1, tl, 3), lambda b, r: (b, r, 0)),
            pl.BlockSpec((1, 3, Lp), lambda b, r: (b, 0, 0)),
            pl.BlockSpec((1, tl, 3), lambda b, r: (b, r, 0)),
            pl.BlockSpec((1, 3, Lp), lambda b, r: (b, 0, 0)),
            pl.BlockSpec((1, tl, 1), lambda b, r: (b, r, 0)),
            pl.BlockSpec((1, 1, Lp), lambda b, r: (b, 0, 0)),
            pl.BlockSpec((1, tl, nb), lambda b, r: (b, r, 0)),
        ],
        out_specs=(pl.BlockSpec((1, tl, 1), lambda b, r: (b, r, 0)),
                   pl.BlockSpec((1, tl, 1), lambda b, r: (b, r, 0)),
                   pl.BlockSpec((1, tl, 1), lambda b, r: (b, r, 0))),
        compiler_params=pltpu.CompilerParams(
            dimension_semantics=("parallel", "parallel"),
            vmem_limit_bytes=_VMEM_LIMIT),
    )(xp_rows, xp_cols, xt_rows, xt_cols, mcol, mrow, logits)
    return score[..., 0], errs[..., 0], plddt[..., 0]        # each (B, Lp)


# -----------------------------------------------------------------------------
# Kernel 3: TM-score head cross-entropy numerator, row-tiled over the pair grid.
# -----------------------------------------------------------------------------
def _tm_kernel(w_ref, p_ref, mcol_ref, mrow_ref, logits_ref, out_ref,
               *, max_bin, no_bins, tl):
    r = pl.program_id(1)

    @pl.when(r == 0)
    def _():
        out_ref[...] = jnp.zeros_like(out_ref)

    p = p_ref[0]                                             # (8, Lp)
    sq = None
    for i in range(3):
        d = jnp.dot(w_ref[0, i], p, preferred_element_type=jnp.float32,
                    precision=_HI)                           # (TL, Lp)
        sq = d * d if sq is None else sq + d * d

    # the diagonal is exactly zero in the reference formulation; force it so the
    # analytic bin index reproduces the strict-'>' boundary convention there.
    ii = r * tl + lax.broadcasted_iota(jnp.int32, sq.shape, 0)
    jj = lax.broadcasted_iota(jnp.int32, sq.shape, 1)
    sq = jnp.where(ii == jj, 0.0, sq)

    step = max_bin / float(no_bins - 2)
    true_bins = jnp.minimum(jnp.ceil(jnp.sqrt(sq) / step),
                            float(no_bins - 1)).astype(jnp.int32)   # (TL, Lp)

    logits = logits_ref[0]                                   # (TL, Lp, nb)
    mx = jnp.max(logits, axis=-1, keepdims=True)
    lse = mx + jnp.log(jnp.sum(jnp.exp(logits - mx), axis=-1, keepdims=True))
    cidx = lax.broadcasted_iota(jnp.int32, logits.shape, 2)
    picked = jnp.sum(jnp.where(cidx == true_bins[:, :, None], logits, 0.0),
                     axis=-1, keepdims=True)
    errors = (lse - picked)[..., 0]                          # (TL, Lp)

    rowsum = jnp.sum(errors * mrow_ref[0], axis=-1, keepdims=True)   # (TL, 1)
    out_ref[...] += jnp.sum(rowsum * mcol_ref[0], axis=0, keepdims=True)[None]


def _tm_call(W, P, mcol, mrow, logits, *, tl):
    B, _, Lp, _ = W.shape
    nb = logits.shape[-1]
    kernel = functools.partial(_tm_kernel, max_bin=TM_MAX_BIN, no_bins=nb, tl=tl)
    out = pl.pallas_call(
        kernel,
        out_shape=jax.ShapeDtypeStruct((B, 1, 1), jnp.float32),
        grid=(B, Lp // tl),
        in_specs=[
            pl.BlockSpec((1, 3, tl, 8), lambda b, r: (b, 0, r, 0)),
            pl.BlockSpec((1, 8, Lp), lambda b, r: (b, 0, 0)),
            pl.BlockSpec((1, tl, 1), lambda b, r: (b, r, 0)),
            pl.BlockSpec((1, 1, Lp), lambda b, r: (b, 0, 0)),
            pl.BlockSpec((1, tl, Lp, nb), lambda b, r: (b, r, 0, 0)),
        ],
        out_specs=pl.BlockSpec((1, 1, 1), lambda b, r: (b, 0, 0)),
        compiler_params=pltpu.CompilerParams(
            dimension_semantics=("parallel", "arbitrary"),
            vmem_limit_bytes=_VMEM_LIMIT),
    )(W, P, mcol, mrow, logits)
    return out[:, 0, 0]


# -----------------------------------------------------------------------------
# Full RhoFoldLoss forward (glue in plain JAX, hot paths in the kernels above)
# -----------------------------------------------------------------------------
def rhofold_loss(out, gt_tensor_7, gt_mask, all_atom_positions, all_atom_mask, seq):
    del seq  # seq is only consumed by the dead 'binding_loss' branch
    f32 = jnp.float32
    traj = out['frames'][-1]                      # (B, L, 7)
    B, L = traj.shape[0], traj.shape[1]
    A = all_atom_mask.shape[-1]

    q_pred, t_pred = traj[..., :4], traj[..., 4:]
    q_gt, t_gt = gt_tensor_7[..., :4], gt_tensor_7[..., 4:]

    # inverse rotations, applied as  M @ (x - t):
    #   fape/rmsd path: rot-mat Rigid -> inverse is matrix transpose
    #   tm path:        quat Rigid    -> inverse is quat inverse (conj / |q|^2)
    Minv_pred = jnp.swapaxes(quat_to_rot(q_pred), -1, -2)
    Minv_gt = jnp.swapaxes(quat_to_rot(q_gt), -1, -2)
    Mtm_pred = quat_to_rot(invert_quat(q_pred))
    Mtm_gt = quat_to_rot(invert_quat(q_gt))

    gm = gt_mask.astype(f32)                      # (B, L)
    msum = jnp.sum(gm, axis=-1)                   # (B,)
    eps_f = 1e-4
    Lp = _round_up(L, 8)

    # ------------------------- fused FAPE + RMSD ------------------------------
    W_fr = jnp.concatenate([_aug_frames(Minv_pred, t_pred),
                            -_aug_frames(Minv_gt, t_gt)], axis=-1)   # (B, 3, L, 8)
    W_fr = _pad_axis(W_fr, 2, Lp)
    fm = _pad_axis(gm[..., None], 1, Lp)                             # (B, Lp, 1)

    pred_atoms = out['all_atom_pred_pos'].reshape(B, L * A, 3)
    true_atoms = all_atom_positions.reshape(B, L * A, 3)
    atom_mask = all_atom_mask.reshape(B, L * A).astype(f32)

    pts_pred = jnp.concatenate([jnp.swapaxes(t_pred, -1, -2),
                                jnp.swapaxes(pred_atoms, -1, -2)], axis=-1)
    pts_gt = jnp.concatenate([jnp.swapaxes(t_gt, -1, -2),
                              jnp.swapaxes(true_atoms, -1, -2)], axis=-1)
    pm_fape = jnp.concatenate([gm, jnp.zeros((B, L * A), f32)], axis=-1)
    pm_rmsd = jnp.concatenate([jnp.zeros((B, L), f32), atom_mask], axis=-1)

    Np0 = L * (A + 1)
    tn = min(512, _round_up(Np0, 128))
    Np = _round_up(Np0, tn)
    pts_pred = _pad_axis(pts_pred, 2, Np)
    pts_gt = _pad_axis(pts_gt, 2, Np)
    pm_fape = _pad_axis(pm_fape, 1, Np)[:, None, :]
    pm_rmsd = _pad_axis(pm_rmsd, 1, Np)[:, None, :]
    ones = jnp.ones((B, 1, Np), f32)
    P_aug = jnp.concatenate([pts_pred, ones, pts_gt, ones], axis=1)  # (B, 8, Np)

    fape_num, rmsd_num = _frame_err_fused(W_fr, P_aug, fm, pm_fape, pm_rmsd,
                                          clamp=10.0, eps=eps_f, tn=tn)
    fape_b = (fape_num / 10.0) / ((eps_f + msum) * (eps_f + msum))
    fape = W_BACKBONE * jnp.mean(fape_b)
    rmsd_b = rmsd_num / ((eps_f + msum) * (eps_f + jnp.sum(atom_mask, axis=-1)))
    rmsd = jnp.mean(jnp.sqrt(rmsd_b))

    # ------------------------- pLDDT loss -------------------------------------
    if L > 128:
        tl_l = 128
        Lp_l = _round_up(L, 128)
    else:
        Lp_l = _round_up(L, 8)
        tl_l = Lp_l
    ca = 1
    pred_ca = _pad_axis(out['all_atom_pred_pos'][..., ca, :], 1, Lp_l)  # (B,Lp_l,3)
    true_ca = _pad_axis(all_atom_positions[..., ca, :], 1, Lp_l)
    ca_mask = all_atom_mask[..., ca].astype(f32)                        # (B, L)
    ca_mask_p = _pad_axis(ca_mask, 1, Lp_l)
    logits_plddt = _pad_axis(out['plddt'][2], 1, Lp_l)                  # (B,Lp_l,50)

    score_res, err_res, plddt_res = _lddt_call(
        pred_ca, jnp.swapaxes(pred_ca, -1, -2),
        true_ca, jnp.swapaxes(true_ca, -1, -2),
        ca_mask_p[..., None], ca_mask_p[:, None, :], logits_plddt, tl=tl_l)
    score_res = score_res[:, :L]
    err_res = err_res[:, :L]
    plddt_res = plddt_res[:, :L]

    eps_l = 1e-10
    cm_sum = jnp.sum(ca_mask, axis=-1)
    res_ok = 1.0          # resolution = 1 is within [0.1, 3.0]
    plddt_loss_val = jnp.mean(
        (jnp.sum(err_res * ca_mask, axis=-1) / (eps_l + cm_sum)) * res_ok)
    lddt_val = jnp.mean(jnp.sum(score_res * ca_mask, axis=-1) / (eps_l + cm_sum))
    plddt_val = jnp.mean(plddt_res) * 100.0

    # ------------------------- TM loss ----------------------------------------
    tl_t = 8
    Lp_t = _round_up(L, tl_t)
    W_tm = jnp.concatenate([_aug_frames(Mtm_pred, t_pred),
                            -_aug_frames(Mtm_gt, t_gt)], axis=-1)    # (B, 3, L, 8)
    W_tm = _pad_axis(W_tm, 2, Lp_t)
    tpred_T = _pad_axis(jnp.swapaxes(t_pred, -1, -2), 2, Lp_t)       # (B, 3, Lp_t)
    tgt_T = _pad_axis(jnp.swapaxes(t_gt, -1, -2), 2, Lp_t)
    ones_t = jnp.ones((B, 1, Lp_t), f32)
    P_tm = jnp.concatenate([tpred_T, ones_t, tgt_T, ones_t], axis=1)  # (B, 8, Lp_t)
    gm_p = _pad_axis(gm, 1, Lp_t)
    # TODO(synk): padding the (B, L, L, 64) TM logits is a full copy; avoid it
    # when L is already a multiple of the row tile.
    logits_tm = _pad_axis(_pad_axis(out['tm'], 1, Lp_t), 2, Lp_t)

    tm_num = _tm_call(W_tm, P_tm, gm_p[..., None], gm_p[:, None, :],
                      logits_tm, tl=tl_t)
    eps_tm = 1e-8
    sm_sum = msum * msum
    tm = jnp.mean((tm_num / (eps_tm + 0.5 * sm_sum)) * 0.5 * res_ok)

    # ------------------------- aggregation ------------------------------------
    def _guard(x):   # replicate the "NaN/Inf -> 0" skip of the PyTorch forward
        return jnp.where(jnp.isnan(x) | jnp.isinf(x), 0.0, x)

    fape, rmsd, plddt_loss_val, tm = map(_guard, (fape, rmsd, plddt_loss_val, tm))
    cum_loss = 1.0 * fape + 0.1 * rmsd + (0.1 * 0.01) * plddt_loss_val + 0.1 * tm
    losses = {'fape': fape, 'rmsd': rmsd, 'plddt_loss': plddt_loss_val,
              'tm_loss': tm, 'loss': cum_loss}
    measures = {'plddt': plddt_val, 'lddt': lddt_val}
    return cum_loss, losses, measures


# -----------------------------------------------------------------------------
# Pure-JAX reference (mirrors the PyTorch ops) for a correctness sanity check
# -----------------------------------------------------------------------------
def _reference_cum_loss(out, gt_tensor_7, gt_mask, all_atom_positions, all_atom_mask):
    f32 = jnp.float32
    hp = lax.Precision.HIGHEST
    traj = out['frames'][-1]
    B, L = traj.shape[:2]
    A = all_atom_mask.shape[-1]
    qp, tp = traj[..., :4], traj[..., 4:]
    qg, tg = gt_tensor_7[..., :4], gt_tensor_7[..., 4:]
    Rp, Rg = quat_to_rot(qp), quat_to_rot(qg)
    gm = gt_mask.astype(f32)

    def inv_apply(R, t, pts):  # R^T (pts - t)
        d = pts[:, None, :, :] - t[:, :, None, :]
        return jnp.einsum('blki,blnk->blni', R, d, precision=hp)

    def fape_like(pts_p, pts_g, fmask, pmask, clamp, scale, eps):
        err = jnp.sqrt(jnp.sum((inv_apply(Rp, tp, pts_p) - inv_apply(Rg, tg, pts_g)) ** 2,
                               axis=-1) + eps)
        err = jnp.clip(err, 0.0, clamp) / scale
        err = err * fmask[:, :, None] * pmask[:, None, :]
        ne = jnp.sum(err, -1) / (eps + jnp.sum(fmask, -1))[:, None]
        return jnp.sum(ne, -1) / (eps + jnp.sum(pmask, -1))

    fape = W_BACKBONE * jnp.mean(fape_like(tp, tg, gm, gm, 10.0, 10.0, 1e-4))
    atom_mask = all_atom_mask.reshape(B, L * A).astype(f32)
    rmsd = jnp.mean(fape_like(out['all_atom_pred_pos'].reshape(B, L * A, 3),
                              all_atom_positions.reshape(B, L * A, 3),
                              gm, atom_mask, 10.0, 1.0, 1e-4) ** 0.5)

    eps = 1e-10
    pred_ca = out['all_atom_pred_pos'][..., 1, :]
    true_ca = all_atom_positions[..., 1, :]
    m = all_atom_mask[..., 1:2].astype(f32)
    dmt = jnp.sqrt(eps + jnp.sum((true_ca[..., None, :] - true_ca[..., None, :, :]) ** 2, -1))
    dmp = jnp.sqrt(eps + jnp.sum((pred_ca[..., None, :] - pred_ca[..., None, :, :]) ** 2, -1))
    dts = (dmt < LDDT_CUTOFF).astype(f32) * m * jnp.swapaxes(m, -1, -2) * (1.0 - jnp.eye(L))
    dl1 = jnp.abs(dmt - dmp)
    sc = ((dl1 < 0.5).astype(f32) + (dl1 < 1.0).astype(f32)
          + (dl1 < 2.0).astype(f32) + (dl1 < 4.0).astype(f32)) * 0.25
    score = jnp.sum(dts * sc, -1) / (eps + jnp.sum(dts, -1))
    logits = out['plddt'][2]
    bins = jnp.minimum(jnp.floor(score * PLDDT_BINS), PLDDT_BINS - 1).astype(jnp.int32)
    errors = -jnp.sum(jax.nn.one_hot(bins, PLDDT_BINS) * jax.nn.log_softmax(logits, -1), -1)
    mm = m[..., 0]
    plddt_l = jnp.mean(jnp.sum(errors * mm, -1) / (eps + jnp.sum(mm, -1)))

    eps_tm = 1e-8

    def pts_local(q, t):
        Rinv = quat_to_rot(invert_quat(q))
        d = t[:, None, :, :] - t[:, :, None, :]
        return jnp.einsum('blik,blpk->blpi', Rinv, d, precision=hp)

    sq_diff = jnp.sum((pts_local(qp, tp) - pts_local(qg, tg)) ** 2, -1)
    bnd = (jnp.arange(TM_BINS - 1, dtype=f32) * (TM_MAX_BIN / (TM_BINS - 2))) ** 2
    true_bins = jnp.sum((sq_diff[..., None] > bnd).astype(jnp.int32), -1)
    errs_tm = -jnp.sum(jax.nn.one_hot(true_bins, TM_BINS)
                       * jax.nn.log_softmax(out['tm'], -1), -1)
    smask = gm[..., None] * gm[..., None, :]
    denom = eps_tm + jnp.sum(0.5 * smask, axis=(-1, -2))
    tm = jnp.mean(jnp.sum(jnp.sum(errs_tm * smask, -1) / denom[..., None], -1) * 0.5)

    return fape + 0.1 * rmsd + (0.1 * 0.01) * plddt_l + 0.1 * tm


# -----------------------------------------------------------------------------
if __name__ == "__main__":
    key = jax.random.PRNGKey(0)
    B, L, A = 2, 8, ATOM_NUM_MAX
    ks = jax.random.split(key, 8)

    frames = jax.random.normal(ks[0], (2, B, L, 7), jnp.float32)        # 2 SM iterations
    gt_tensor_7 = jax.random.normal(ks[1], (B, L, 7), jnp.float32)
    gt_mask = jnp.ones((B, L), jnp.float32).at[:, -1].set(0.0)
    all_atom_pred_pos = 3.0 * jax.random.normal(ks[2], (B, L, A, 3), jnp.float32)
    all_atom_positions = 3.0 * jax.random.normal(ks[3], (B, L, A, 3), jnp.float32)
    all_atom_mask = jnp.ones((B, L, A), jnp.float32).at[:, -1, :].set(0.0)
    plddt_logits = jax.random.normal(ks[4], (B, L, PLDDT_BINS), jnp.float32)
    tm_logits = jax.random.normal(ks[5], (B, L, L, TM_BINS), jnp.float32)
    seq = jax.random.randint(ks[6], (B, L), 0, 4)

    out = {
        'frames': frames,
        'all_atom_pred_pos': all_atom_pred_pos,
        'plddt': (None, None, plddt_logits),
        'tm': tm_logits,
    }

    loss_fn = jax.jit(rhofold_loss)
    cum_loss, losses, measures = loss_fn(out, gt_tensor_7, gt_mask,
                                         all_atom_positions, all_atom_mask, seq)
    jax.block_until_ready((cum_loss, losses, measures))

    ref = _reference_cum_loss(out, gt_tensor_7, gt_mask,
                              all_atom_positions, all_atom_mask)
    np.testing.assert_allclose(np.asarray(cum_loss), np.asarray(ref),
                               rtol=1e-2, atol=1e-3)
    assert np.isfinite(float(cum_loss))
    print("KERNEL_OK")
</pallas_src>

<mosaic_0001>
module attributes {stable_mosaic.version = 11 : i64} {
  func.func @_tm_kernel(%arg0: i32, %arg1: i32, %arg2: memref<1x3x8x8xf32, #tpu.memory_space<vmem>>, %arg3: memref<1x8x8xf32, #tpu.memory_space<vmem>>, %arg4: memref<1x8x1xf32, #tpu.memory_space<vmem>>, %arg5: memref<1x1x8xf32, #tpu.memory_space<vmem>>, %arg6: memref<1x8x8x64xf32, #tpu.memory_space<vmem>>, %arg7: memref<1x1x1xf32, #tpu.memory_space<vmem>>) attributes {dimension_semantics = [#tpu.dimension_semantics<parallel>, #tpu.dimension_semantics<arbitrary>], iteration_bounds = array<i64: 2, 1>, scalar_prefetch = 0 : i64, scratch_operands = 0 : i64, tpu.core_type = #tpu.core_type<tc>, window_params = [{transform_indices = @transform_0, window_bounds = array<i64: 1, 3, 8, 8>}, {transform_indices = @transform_1, window_bounds = array<i64: 1, 8, 8>}, {transform_indices = @transform_2, window_bounds = array<i64: 1, 8, 1>}, {transform_indices = @transform_3, window_bounds = array<i64: 1, 1, 8>}, {transform_indices = @transform_4, window_bounds = array<i64: 1, 8, 8, 64>}, {transform_indices = @transform_5, window_bounds = array<i64: 1, 1, 1>}]} {
    %c0_i32 = arith.constant 0 : i32
    %0 = arith.cmpi eq, %arg1, %c0_i32 : i32
    %1 = arith.extui %0 : i1 to i32
    %c0_i32_0 = arith.constant 0 : i32
    %2 = arith.cmpi ne, %1, %c0_i32_0 : i32
    scf.if %2 {
      %cst_40 = arith.constant 0.000000e+00 : f32
      %70 = vector.broadcast %cst_40 : f32 to vector<1x1x1xf32>
      %c0_41 = arith.constant 0 : index
      %c0_42 = arith.constant 0 : index
      %c0_43 = arith.constant 0 : index
      %71 = vector.load %arg7[%c0_41, %c0_42, %c0_43] : memref<1x1x1xf32, #tpu.memory_space<vmem>>, vector<1x1x1xf32>
      tpu.vector_store %arg7[%c0_41, %c0_42, %c0_43], %70 {strides = array<i32>} : memref<1x1x1xf32, #tpu.memory_space<vmem>>, vector<1x1x1xf32>,
    } else {
    }
    %c0 = arith.constant 0 : index
    %c0_1 = arith.constant 0 : index
    %c0_2 = arith.constant 0 : index
    %3 = vector.load %arg3[%c0, %c0_1, %c0_2] : memref<1x8x8xf32, #tpu.memory_space<vmem>>, vector<1x8x8xf32>
    %4 = vector.shape_cast %3 : vector<1x8x8xf32> to vector<8x8xf32>
    %c0_3 = arith.constant 0 : index
    %c0_4 = arith.constant 0 : index
    %c0_5 = arith.constant 0 : index
    %c0_6 = arith.constant 0 : index
    %5 = vector.load %arg2[%c0_3, %c0_4, %c0_5, %c0_6] : memref<1x3x8x8xf32, #tpu.memory_space<vmem>>, vector<1x1x8x8xf32>
    %6 = vector.shape_cast %5 : vector<1x1x8x8xf32> to vector<8x8xf32>
    %cst = arith.constant dense<0.000000e+00> : vector<8x8xf32>
    %7 = tpu.matmul %6, %4, %cst {dimension_numbers = #tpu.dot_dimension_numbers<[1], [0], [0], [1], [0, 0, 1, 1], [], []>, precision = #tpu.contract_precision<fp32>} : vector<8x8xf32>, vector<8x8xf32>, vector<8x8xf32> -> vector<8x8xf32>
    %8 = arith.mulf %7, %7 : vector<8x8xf32>
    %c0_7 = arith.constant 0 : index
    %c1 = arith.constant 1 : index
    %c0_8 = arith.constant 0 : index
    %c0_9 = arith.constant 0 : index
    %9 = vector.load %arg2[%c0_7, %c1, %c0_8, %c0_9] : memref<1x3x8x8xf32, #tpu.memory_space<vmem>>, vector<1x1x8x8xf32>
    %10 = vector.shape_cast %9 : vector<1x1x8x8xf32> to vector<8x8xf32>
    %cst_10 = arith.constant dense<0.000000e+00> : vector<8x8xf32>
    %11 = tpu.matmul %10, %4, %cst_10 {dimension_numbers = #tpu.dot_dimension_numbers<[1], [0], [0], [1], [0, 0, 1, 1], [], []>, precision = #tpu.contract_precision<fp32>} : vector<8x8xf32>, vector<8x8xf32>, vector<8x8xf32> -> vector<8x8xf32>
    %12 = arith.mulf %11, %11 : vector<8x8xf32>
    %13 = arith.addf %8, %12 : vector<8x8xf32>
    %c0_11 = arith.constant 0 : index
    %c2 = arith.constant 2 : index
    %c0_12 = arith.constant 0 : index
    %c0_13 = arith.constant 0 : index
    %14 = vector.load %arg2[%c0_11, %c2, %c0_12, %c0_13] : memref<1x3x8x8xf32, #tpu.memory_space<vmem>>, vector<1x1x8x8xf32>
    %15 = vector.shape_cast %14 : vector<1x1x8x8xf32> to vector<8x8xf32>
    %cst_14 = arith.constant dense<0.000000e+00> : vector<8x8xf32>
    %16 = tpu.matmul %15, %4, %cst_14 {dimension_numbers = #tpu.dot_dimension_numbers<[1], [0], [0], [1], [0, 0, 1, 1], [], []>, precision = #tpu.contract_precision<fp32>} : vector<8x8xf32>, vector<8x8xf32>, vector<8x8xf32> -> vector<8x8xf32>
    %17 = arith.mulf %16, %16 : vector<8x8xf32>
    %18 = arith.addf %13, %17 : vector<8x8xf32>
    %c8_i32 = arith.constant 8 : i32
    %19 = arith.muli %arg1, %c8_i32 : i32
    %20 = tpu.iota {dimensions = array<i32: 0>} : vector<8x8xi32>
    %21 = vector.broadcast %19 : i32 to vector<8x8xi32>
    %22 = arith.addi %21, %20 : vector<8x8xi32>
    %23 = tpu.iota {dimensions = array<i32: 1>} : vector<8x8xi32>
    %24 = arith.cmpi eq, %22, %23 : vector<8x8xi32>
    %cst_15 = arith.constant 0.000000e+00 : f32
    %25 = vector.broadcast %cst_15 : f32 to vector<8x8xf32>
    %26 = arith.select %24, %25, %18 : vector<8x8xi1>, vector<8x8xf32>
    %27 = math.sqrt %26 : vector<8x8xf32>
    %cst_16 = arith.constant 5.000000e-01 : f32
    %28 = vector.broadcast %cst_16 : f32 to vector<8x8xf32>
    %29 = arith.divf %27, %28 : vector<8x8xf32>
    %30 = math.ceil %29 : vector<8x8xf32>
    %cst_17 = arith.constant 6.300000e+01 : f32
    %31 = vector.broadcast %cst_17 : f32 to vector<8x8xf32>
    %32 = arith.minimumf %30, %31 : vector<8x8xf32>
    %33 = arith.fptosi %32 : vector<8x8xf32> to vector<8x8xi32>
    %c0_18 = arith.constant 0 : index
    %c0_19 = arith.constant 0 : index
    %c0_20 = arith.constant 0 : index
    %c0_21 = arith.constant 0 : index
    %34 = vector.load %arg6[%c0_18, %c0_19, %c0_20, %c0_21] : memref<1x8x8x64xf32, #tpu.memory_space<vmem>>, vector<1x8x8x64xf32>
    %35 = vector.shape_cast %34 : vector<1x8x8x64xf32> to vector<8x8x64xf32>
    %cst_22 = arith.constant dense<0xFF800000> : vector<8x8xf32>
    %36 = vector.multi_reduction <maximumf>, %35, %cst_22 [2] : vector<8x8x64xf32> to vector<8x8xf32>
    %37 = vector.shape_cast %36 : vector<8x8xf32> to vector<8x8x1xf32>
    %38 = vector.broadcast %37 : vector<8x8x1xf32> to vector<8x8x64xf32>
    %39 = arith.subf %35, %38 : vector<8x8x64xf32>
    %40 = math.exp %39 : vector<8x8x64xf32>
    %cst_23 = arith.constant dense<0.000000e+00> : vector<8x8xf32>
    %41 = vector.multi_reduction <add>, %40, %cst_23 [2] : vector<8x8x64xf32> to vector<8x8xf32>
    %42 = vector.shape_cast %41 : vector<8x8xf32> to vector<8x8x1xf32>
    %43 = math.log %42 : vector<8x8x1xf32>
    %44 = arith.addf %37, %43 : vector<8x8x1xf32>
    %45 = tpu.iota {dimensions = array<i32: 2>} : vector<8x8x64xi32>
    %46 = vector.shape_cast %33 : vector<8x8xi32> to vector<8x8x1xi32>
    %47 = vector.broadcast %46 : vector<8x8x1xi32> to vector<8x8x64xi32>
    %48 = arith.cmpi eq, %45, %47 : vector<8x8x64xi32>
    %cst_24 = arith.constant 0.000000e+00 : f32
    %49 = vector.broadcast %cst_24 : f32 to vector<8x8x64xf32>
    %50 = arith.select %48, %35, %49 : vector<8x8x64xi1>, vector<8x8x64xf32>
    %cst_25 = arith.constant dense<0.000000e+00> : vector<8x8xf32>
    %51 = vector.multi_reduction <add>, %50, %cst_25 [2] : vector<8x8x64xf32> to vector<8x8xf32>
    %52 = vector.shape_cast %51 : vector<8x8xf32> to vector<8x8x1xf32>
    %53 = arith.subf %44, %52 : vector<8x8x1xf32>
    %54 = vector.shape_cast %53 : vector<8x8x1xf32> to vector<8x8xf32>
    %c0_26 = arith.constant 0 : index
    %c0_27 = arith.constant 0 : index
    %c0_28 = arith.constant 0 : index
    %55 = vector.load %arg5[%c0_26, %c0_27, %c0_28] : memref<1x1x8xf32, #tpu.memory_space<vmem>>, vector<1x1x8xf32>
    %56 = vector.shape_cast %55 : vector<1x1x8xf32> to vector<1x8xf32>
    %57 = vector.broadcast %56 : vector<1x8xf32> to vector<8x8xf32>
    %58 = arith.mulf %54, %57 : vector<8x8xf32>
    %cst_29 = arith.constant dense<0.000000e+00> : vector<8xf32>
    %59 = vector.multi_reduction <add>, %58, %cst_29 [1] : vector<8x8xf32> to vector<8xf32>
    %60 = vector.shape_cast %59 : vector<8xf32> to vector<8x1xf32>
    %c0_30 = arith.constant 0 : index
    %c0_31 = arith.constant 0 : index
    %c0_32 = arith.constant 0 : index
    %61 = vector.load %arg7[%c0_30, %c0_31, %c0_32] : memref<1x1x1xf32, #tpu.memory_space<vmem>>, vector<1x1x1xf32>
    %c0_33 = arith.constant 0 : index
    %c0_34 = arith.constant 0 : index
    %c0_35 = arith.constant 0 : index
    %62 = vector.load %arg4[%c0_33, %c0_34, %c0_35] : memref<1x8x1xf32, #tpu.memory_space<vmem>>, vector<1x8x1xf32>
    %63 = vector.shape_cast %62 : vector<1x8x1xf32> to vector<8x1xf32>
    %64 = arith.mulf %60, %63 : vector<8x1xf32>
    %cst_36 = arith.constant dense<0.000000e+00> : vector<1xf32>
    %65 = vector.multi_reduction <add>, %64, %cst_36 [0] : vector<8x1xf32> to vector<1xf32>
    %66 = vector.shape_cast %65 : vector<1xf32> to vector<1x1xf32>
    %67 = vector.shape_cast %66 : vector<1x1xf32> to vector<1x1x1xf32>
    %68 = arith.addf %61, %67 : vector<1x1x1xf32>
    %c0_37 = arith.constant 0 : index
    %c0_38 = arith.constant 0 : index
    %c0_39 = arith.constant 0 : index
    %69 = vector.load %arg7[%c0_37, %c0_38, %c0_39] : memref<1x1x1xf32, #tpu.memory_space<vmem>>, vector<1x1x1xf32>
    tpu.vector_store %arg7[%c0_37, %c0_38, %c0_39], %68 {strides = array<i32>} : memref<1x1x1xf32, #tpu.memory_space<vmem>>, vector<1x1x1xf32>,
    return
  }
  func.func @transform_0(%arg0: i32, %arg1: i32) -> (i32, i32, i32, i32) {
    %c0_i32 = arith.constant 0 : i32
    %c0_i32_0 = arith.constant 0 : i32
    %c0_i32_1 = arith.constant 0 : i32
    return %arg0, %c0_i32, %arg1, %c0_i32_0 : i32, i32, i32, i32
  }
  func.func @transform_1(%arg0: i32, %arg1: i32) -> (i32, i32, i32) {
    %c0_i32 = arith.constant 0 : i32
    %c0_i32_0 = arith.constant 0 : i32
    %c0_i32_1 = arith.constant 0 : i32
    return %arg0, %c0_i32, %c0_i32_0 : i32, i32, i32
  }
  func.func @transform_2(%arg0: i32, %arg1: i32) -> (i32, i32, i32) {
    %c0_i32 = arith.constant 0 : i32
    %c0_i32_0 = arith.constant 0 : i32
    return %arg0, %arg1, %c0_i32 : i32, i32, i32
  }
  func.func @transform_3(%arg0: i32, %arg1: i32) -> (i32, i32, i32) {
    %c0_i32 = arith.constant 0 : i32
    %c0_i32_0 = arith.constant 0 : i32
    %c0_i32_1 = arith.constant 0 : i32
    return %arg0, %c0_i32, %c0_i32_0 : i32, i32, i32
  }
  func.func @transform_4(%arg0: i32, %arg1: i32) -> (i32, i32, i32, i32) {
    %c0_i32 = arith.constant 0 : i32
    %c0_i32_0 = arith.constant 0 : i32
    %c0_i32_1 = arith.constant 0 : i32
    return %arg0, %arg1, %c0_i32, %c0_i32_0 : i32, i32, i32, i32
  }
  func.func @transform_5(%arg0: i32, %arg1: i32) -> (i32, i32, i32) {
    %c0_i32 = arith.constant 0 : i32
    %c0_i32_0 = arith.constant 0 : i32
    %c0_i32_1 = arith.constant 0 : i32
    return %arg0, %c0_i32, %c0_i32_0 : i32, i32, i32
  }
}

module attributes {stable_mosaic.version = 11 : i64} {
  func.func @_frame_err_kernel(%arg0: i32, %arg1: i32, %arg2: memref<1x3x8x8xf32, #tpu.memory_space<vmem>>, %arg3: memref<1x8x256xf32, #tpu.memory_space<vmem>>, %arg4: memref<1x8x1xf32, #tpu.memory_space<vmem>>, %arg5: memref<1x1x256xf32, #tpu.memory_space<vmem>>, %arg6: memref<1x1x256xf32, #tpu.memory_space<vmem>>, %arg7: memref<1x1x1xf32, #tpu.memory_space<vmem>>, %arg8: memref<1x1x1xf32, #tpu.memory_space<vmem>>) attributes {dimension_semantics = [#tpu.dimension_semantics<parallel>, #tpu.dimension_semantics<arbitrary>], iteration_bounds = array<i64: 2, 1>, scalar_prefetch = 0 : i64, scratch_operands = 0 : i64, tpu.core_type = #tpu.core_type<tc>, window_params = [{transform_indices = @transform_0, window_bounds = array<i64: 1, 3, 8, 8>}, {transform_indices = @transform_1, window_bounds = array<i64: 1, 8, 256>}, {transform_indices = @transform_2, window_bounds = array<i64: 1, 8, 1>}, {transform_indices = @transform_3, window_bounds = array<i64: 1, 1, 256>}, {transform_indices = @transform_4, window_bounds = array<i64: 1, 1, 256>}, {transform_indices = @transform_5, window_bounds = array<i64: 1, 1, 1>}, {transform_indices = @transform_6, window_bounds = array<i64: 1, 1, 1>}]} {
    %c0_i32 = arith.constant 0 : i32
    %0 = arith.cmpi eq, %arg1, %c0_i32 : i32
    %1 = arith.extui %0 : i1 to i32
    %c0_i32_0 = arith.constant 0 : i32
    %2 = arith.cmpi ne, %1, %c0_i32_0 : i32
    scf.if %2 {
      %cst_42 = arith.constant 0.000000e+00 : f32
      %52 = vector.broadcast %cst_42 : f32 to vector<1x1x1xf32>
      %c0_43 = arith.constant 0 : index
      %c0_44 = arith.constant 0 : index
      %c0_45 = arith.constant 0 : index
      %53 = vector.load %arg7[%c0_43, %c0_44, %c0_45] : memref<1x1x1xf32, #tpu.memory_space<vmem>>, vector<1x1x1xf32>
      tpu.vector_store %arg7[%c0_43, %c0_44, %c0_45], %52 {strides = array<i32>} : memref<1x1x1xf32, #tpu.memory_space<vmem>>, vector<1x1x1xf32>,
      %cst_46 = arith.constant 0.000000e+00 : f32
      %54 = vector.broadcast %cst_46 : f32 to vector<1x1x1xf32>
      %c0_47 = arith.constant 0 : index
      %c0_48 = arith.constant 0 : index
      %c0_49 = arith.constant 0 : index
      %55 = vector.load %arg8[%c0_47, %c0_48, %c0_49] : memref<1x1x1xf32, #tpu.memory_space<vmem>>, vector<1x1x1xf32>
      tpu.vector_store %arg8[%c0_47, %c0_48, %c0_49], %54 {strides = array<i32>} : memref<1x1x1xf32, #tpu.memory_space<vmem>>, vector<1x1x1xf32>,
    } else {
    }
    %c0 = arith.constant 0 : index
    %c0_1 = arith.constant 0 : index
    %c0_2 = arith.constant 0 : index
    %3 = vector.load %arg3[%c0, %c0_1, %c0_2] : memref<1x8x256xf32, #tpu.memory_space<vmem>>, vector<1x8x256xf32>
    %4 = vector.shape_cast %3 : vector<1x8x256xf32> to vector<8x256xf32>
    %c0_3 = arith.constant 0 : index
    %c0_4 = arith.constant 0 : index
    %c0_5 = arith.constant 0 : index
    %c0_6 = arith.constant 0 : index
    %5 = vector.load %arg2[%c0_3, %c0_4, %c0_5, %c0_6] : memref<1x3x8x8xf32, #tpu.memory_space<vmem>>, vector<1x1x8x8xf32>
    %6 = vector.shape_cast %5 : vector<1x1x8x8xf32> to vector<8x8xf32>
    %cst = arith.constant dense<0.000000e+00> : vector<8x256xf32>
    %7 = tpu.matmul %6, %4, %cst {dimension_numbers = #tpu.dot_dimension_numbers<[1], [0], [0], [1], [0, 0, 1, 1], [], []>, precision = #tpu.contract_precision<fp32>} : vector<8x8xf32>, vector<8x256xf32>, vector<8x256xf32> -> vector<8x256xf32>
    %8 = arith.mulf %7, %7 : vector<8x256xf32>
    %c0_7 = arith.constant 0 : index
    %c1 = arith.constant 1 : index
    %c0_8 = arith.constant 0 : index
    %c0_9 = arith.constant 0 : index
    %9 = vector.load %arg2[%c0_7, %c1, %c0_8, %c0_9] : memref<1x3x8x8xf32, #tpu.memory_space<vmem>>, vector<1x1x8x8xf32>
    %10 = vector.shape_cast %9 : vector<1x1x8x8xf32> to vector<8x8xf32>
    %cst_10 = arith.constant dense<0.000000e+00> : vector<8x256xf32>
    %11 = tpu.matmul %10, %4, %cst_10 {dimension_numbers = #tpu.dot_dimension_numbers<[1], [0], [0], [1], [0, 0, 1, 1], [], []>, precision = #tpu.contract_precision<fp32>} : vector<8x8xf32>, vector<8x256xf32>, vector<8x256xf32> -> vector<8x256xf32>
    %12 = arith.mulf %11, %11 : vector<8x256xf32>
    %13 = arith.addf %8, %12 : vector<8x256xf32>
    %c0_11 = arith.constant 0 : index
    %c2 = arith.constant 2 : index
    %c0_12 = arith.constant 0 : index
    %c0_13 = arith.constant 0 : index
    %14 = vector.load %arg2[%c0_11, %c2, %c0_12, %c0_13] : memref<1x3x8x8xf32, #tpu.memory_space<vmem>>, vector<1x1x8x8xf32>
    %15 = vector.shape_cast %14 : vector<1x1x8x8xf32> to vector<8x8xf32>
    %cst_14 = arith.constant dense<0.000000e+00> : vector<8x256xf32>
    %16 = tpu.matmul %15, %4, %cst_14 {dimension_numbers = #tpu.dot_dimension_numbers<[1], [0], [0], [1], [0, 0, 1, 1], [], []>, precision = #tpu.contract_precision<fp32>} : vector<8x8xf32>, vector<8x256xf32>, vector<8x256xf32> -> vector<8x256xf32>
    %17 = arith.mulf %16, %16 : vector<8x256xf32>
    %18 = arith.addf %13, %17 : vector<8x256xf32>
    %cst_15 = arith.constant 9.99999974E-5 : f32
    %19 = vector.broadcast %cst_15 : f32 to vector<8x256xf32>
    %20 = arith.addf %18, %19 : vector<8x256xf32>
    %21 = math.sqrt %20 : vector<8x256xf32>
    %cst_16 = arith.constant 1.000000e+01 : f32
    %22 = vector.broadcast %cst_16 : f32 to vector<8x256xf32>
    %23 = arith.minimumf %21, %22 : vector<8x256xf32>
    %c0_17 = arith.constant 0 : index
    %c0_18 = arith.constant 0 : index
    %c0_19 = arith.constant 0 : index
    %24 = vector.load %arg4[%c0_17, %c0_18, %c0_19] : memref<1x8x1xf32, #tpu.memory_space<vmem>>, vector<1x8x1xf32>
    %25 = vector.shape_cast %24 : vector<1x8x1xf32> to vector<8x1xf32>
    %c0_20 = arith.constant 0 : index
    %c0_21 = arith.constant 0 : index
    %c0_22 = arith.constant 0 : index
    %26 = vector.load %arg5[%c0_20, %c0_21, %c0_22] : memref<1x1x256xf32, #tpu.memory_space<vmem>>, vector<1x1x256xf32>
    %27 = vector.shape_cast %26 : vector<1x1x256xf32> to vector<1x256xf32>
    %28 = vector.broadcast %27 : vector<1x256xf32> to vector<8x256xf32>
    %29 = arith.mulf %23, %28 : vector<8x256xf32>
    %cst_23 = arith.constant dense<0.000000e+00> : vector<8xf32>
    %30 = vector.multi_reduction <add>, %29, %cst_23 [1] : vector<8x256xf32> to vector<8xf32>
    %31 = vector.shape_cast %30 : vector<8xf32> to vector<8x1xf32>
    %c0_24 = arith.constant 0 : index
    %c0_25 = arith.constant 0 : index
    %c0_26 = arith.constant 0 : index
    %32 = vector.load %arg6[%c0_24, %c0_25, %c0_26] : memref<1x1x256xf32, #tpu.memory_space<vmem>>, vector<1x1x256xf32>
    %33 = vector.shape_cast %32 : vector<1x1x256xf32> to vector<1x256xf32>
    %34 = vector.broadcast %33 : vector<1x256xf32> to vector<8x256xf32>
    %35 = arith.mulf %23, %34 : vector<8x256xf32>
    %cst_27 = arith.constant dense<0.000000e+00> : vector<8xf32>
    %36 = vector.multi_reduction <add>, %35, %cst_27 [1] : vector<8x256xf32> to vector<8xf32>
    %37 = vector.shape_cast %36 : vector<8xf32> to vector<8x1xf32>
    %c0_28 = arith.constant 0 : index
    %c0_29 = arith.constant 0 : index
    %c0_30 = arith.constant 0 : index
    %38 = vector.load %arg7[%c0_28, %c0_29, %c0_30] : memref<1x1x1xf32, #tpu.memory_space<vmem>>, vector<1x1x1xf32>
    %39 = arith.mulf %31, %25 : vector<8x1xf32>
    %cst_31 = arith.constant dense<0.000000e+00> : vector<1xf32>
    %40 = vector.multi_reduction <add>, %39, %cst_31 [0] : vector<8x1xf32> to vector<1xf32>
    %41 = vector.shape_cast %40 : vector<1xf32> to vector<1x1xf32>
    %42 = vector.shape_cast %41 : vector<1x1xf32> to vector<1x1x1xf32>
    %43 = arith.addf %38, %42 : vector<1x1x1xf32>
    %c0_32 = arith.constant 0 : index
    %c0_33 = arith.constant 0 : index
    %c0_34 = arith.constant 0 : index
    %44 = vector.load %arg7[%c0_32, %c0_33, %c0_34] : memref<1x1x1xf32, #tpu.memory_space<vmem>>, vector<1x1x1xf32>
    tpu.vector_store %arg7[%c0_32, %c0_33, %c0_34], %43 {strides = array<i32>} : memref<1x1x1xf32, #tpu.memory_space<vmem>>, vector<1x1x1xf32>,
    %c0_35 = arith.constant 0 : index
    %c0_36 = arith.constant 0 : index
    %c0_37 = arith.constant 0 : index
    %45 = vector.load %arg8[%c0_35, %c0_36, %c0_37] : memref<1x1x1xf32, #tpu.memory_space<vmem>>, vector<1x1x1xf32>
    %46 = arith.mulf %37, %25 : vector<8x1xf32>
    %cst_38 = arith.constant dense<0.000000e+00> : vector<1xf32>
    %47 = vector.multi_reduction <add>, %46, %cst_38 [0] : vector<8x1xf32> to vector<1xf32>
    %48 = vector.shape_cast %47 : vector<1xf32> to vector<1x1xf32>
    %49 = vector.shape_cast %48 : vector<1x1xf32> to vector<1x1x1xf32>
    %50 = arith.addf %45, %49 : vector<1x1x1xf32>
    %c0_39 = arith.constant 0 : index
    %c0_40 = arith.constant 0 : index
    %c0_41 = arith.constant 0 : index
    %51 = vector.load %arg8[%c0_39, %c0_40, %c0_41] : memref<1x1x1xf32, #tpu.memory_space<vmem>>, vector<1x1x1xf32>
    tpu.vector_store %arg8[%c0_39, %c0_40, %c0_41], %50 {strides = array<i32>} : memref<1x1x1xf32, #tpu.memory_space<vmem>>, vector<1x1x1xf32>,
    return
  }
  func.func @transform_0(%arg0: i32, %arg1: i32) -> (i32, i32, i32, i32) {
    %c0_i32 = arith.constant 0 : i32
    %c0_i32_0 = arith.constant 0 : i32
    %c0_i32_1 = arith.constant 0 : i32
    %c0_i32_2 = arith.constant 0 : i32
    return %arg0, %c0_i32, %c0_i32_0, %c0_i32_1 : i32, i32, i32, i32
  }
  func.func @transform_1(%arg0: i32, %arg1: i32) -> (i32, i32, i32) {
    %c0_i32 = arith.constant 0 : i32
    %c0_i32_0 = arith.constant 0 : i32
    return %arg0, %c0_i32, %arg1 : i32, i32, i32
  }
  func.func @transform_2(%arg0: i32, %arg1: i32) -> (i32, i32, i32) {
    %c0_i32 = arith.constant 0 : i32
    %c0_i32_0 = arith.constant 0 : i32
    %c0_i32_1 = arith.constant 0 : i32
    return %arg0, %c0_i32, %c0_i32_0 : i32, i32, i32
  }
  func.func @transform_3(%arg0: i32, %arg1: i32) -> (i32, i32, i32) {
    %c0_i32 = arith.constant 0 : i32
    %c0_i32_0 = arith.constant 0 : i32
    return %arg0, %c0_i32, %arg1 : i32, i32, i32
  }
  func.func @transform_4(%arg0: i32, %arg1: i32) -> (i32, i32, i32) {
    %c0_i32 = arith.constant 0 : i32
    %c0_i32_0 = arith.constant 0 : i32
    return %arg0, %c0_i32, %arg1 : i32, i32, i32
  }
  func.func @transform_5(%arg0: i32, %arg1: i32) -> (i32, i32, i32) {
    %c0_i32 = arith.constant 0 : i32
    %c0_i32_0 = arith.constant 0 : i32
    %c0_i32_1 = arith.constant 0 : i32
    return %arg0, %c0_i32, %c0_i32_0 : i32, i32, i32
  }
  func.func @transform_6(%arg0: i32, %arg1: i32) -> (i32, i32, i32) {
    %c0_i32 = arith.constant 0 : i32
    %c0_i32_0 = arith.constant 0 : i32
    %c0_i32_1 = arith.constant 0 : i32
    return %arg0, %c0_i32, %c0_i32_0 : i32, i32, i32
  }
}

module attributes {stable_mosaic.version = 11 : i64} {
  func.func @_lddt_kernel(%arg0: i32, %arg1: i32, %arg2: memref<1x8x3xf32, #tpu.memory_space<vmem>>, %arg3: memref<1x3x8xf32, #tpu.memory_space<vmem>>, %arg4: memref<1x8x3xf32, #tpu.memory_space<vmem>>, %arg5: memref<1x3x8xf32, #tpu.memory_space<vmem>>, %arg6: memref<1x8x1xf32, #tpu.memory_space<vmem>>, %arg7: memref<1x1x8xf32, #tpu.memory_space<vmem>>, %arg8: memref<1x8x50xf32, #tpu.memory_space<vmem>>, %arg9: memref<1x8x1xf32, #tpu.memory_space<vmem>>, %arg10: memref<1x8x1xf32, #tpu.memory_space<vmem>>, %arg11: memref<1x8x1xf32, #tpu.memory_space<vmem>>) attributes {dimension_semantics = [#tpu.dimension_semantics<parallel>, #tpu.dimension_semantics<parallel>], iteration_bounds = array<i64: 2, 1>, scalar_prefetch = 0 : i64, scratch_operands = 0 : i64, tpu.core_type = #tpu.core_type<tc>, window_params = [{transform_indices = @transform_0, window_bounds = array<i64: 1, 8, 3>}, {transform_indices = @transform_1, window_bounds = array<i64: 1, 3, 8>}, {transform_indices = @transform_2, window_bounds = array<i64: 1, 8, 3>}, {transform_indices = @transform_3, window_bounds = array<i64: 1, 3, 8>}, {transform_indices = @transform_4, window_bounds = array<i64: 1, 8, 1>}, {transform_indices = @transform_5, window_bounds = array<i64: 1, 1, 8>}, {transform_indices = @transform_6, window_bounds = array<i64: 1, 8, 50>}, {transform_indices = @transform_7, window_bounds = array<i64: 1, 8, 1>}, {transform_indices = @transform_8, window_bounds = array<i64: 1, 8, 1>}, {transform_indices = @transform_9, window_bounds = array<i64: 1, 8, 1>}]} {
    %c0 = arith.constant 0 : index
    %c0_0 = arith.constant 0 : index
    %c0_1 = arith.constant 0 : index
    %0 = vector.load %arg2[%c0, %c0_0, %c0_1] : memref<1x8x3xf32, #tpu.memory_space<vmem>>, vector<1x8x3xf32>
    %1 = vector.shape_cast %0 : vector<1x8x3xf32> to vector<8x3xf32>
    %c0_2 = arith.constant 0 : index
    %c0_3 = arith.constant 0 : index
    %c0_4 = arith.constant 0 : index
    %2 = vector.load %arg4[%c0_2, %c0_3, %c0_4] : memref<1x8x3xf32, #tpu.memory_space<vmem>>, vector<1x8x3xf32>
    %3 = vector.shape_cast %2 : vector<1x8x3xf32> to vector<8x3xf32>
    %c0_5 = arith.constant 0 : index
    %c0_6 = arith.constant 0 : index
    %c0_7 = arith.constant 0 : index
    %4 = vector.load %arg3[%c0_5, %c0_6, %c0_7] : memref<1x3x8xf32, #tpu.memory_space<vmem>>, vector<1x3x8xf32>
    %5 = vector.shape_cast %4 : vector<1x3x8xf32> to vector<3x8xf32>
    %c0_8 = arith.constant 0 : index
    %c0_9 = arith.constant 0 : index
    %c0_10 = arith.constant 0 : index
    %6 = vector.load %arg5[%c0_8, %c0_9, %c0_10] : memref<1x3x8xf32, #tpu.memory_space<vmem>>, vector<1x3x8xf32>
    %7 = vector.shape_cast %6 : vector<1x3x8xf32> to vector<3x8xf32>
    %c0_11 = arith.constant 0 : index
    %c0_12 = arith.constant 0 : index
    %c0_13 = arith.constant 0 : index
    %8 = vector.load %arg6[%c0_11, %c0_12, %c0_13] : memref<1x8x1xf32, #tpu.memory_space<vmem>>, vector<1x8x1xf32>
    %9 = vector.shape_cast %8 : vector<1x8x1xf32> to vector<8x1xf32>
    %c0_14 = arith.constant 0 : index
    %c0_15 = arith.constant 0 : index
    %c0_16 = arith.constant 0 : index
    %10 = vector.load %arg7[%c0_14, %c0_15, %c0_16] : memref<1x1x8xf32, #tpu.memory_space<vmem>>, vector<1x1x8xf32>
    %11 = vector.shape_cast %10 : vector<1x1x8xf32> to vector<1x8xf32>
    %c0_17 = arith.constant 0 : index
    %c0_18 = arith.constant 0 : index
    %c0_19 = arith.constant 0 : index
    %12 = vector.load %arg8[%c0_17, %c0_18, %c0_19] : memref<1x8x50xf32, #tpu.memory_space<vmem>>, vector<1x8x50xf32>
    %13 = vector.shape_cast %12 : vector<1x8x50xf32> to vector<8x50xf32>
    %cst = arith.constant dense<0.000000e+00> : vector<8x8xf32>
    %14 = tpu.matmul %3, %7, %cst {dimension_numbers = #tpu.dot_dimension_numbers<[1], [0], [0], [1], [0, 0, 1, 1], [], []>, precision = #tpu.contract_precision<fp32>} : vector<8x3xf32>, vector<3x8xf32>, vector<8x8xf32> -> vector<8x8xf32>
    %15 = arith.mulf %3, %3 : vector<8x3xf32>
    %cst_20 = arith.constant dense<0.000000e+00> : vector<8xf32>
    %16 = vector.multi_reduction <add>, %15, %cst_20 [1] : vector<8x3xf32> to vector<8xf32>
    %17 = vector.shape_cast %16 : vector<8xf32> to vector<8x1xf32>
    %18 = arith.mulf %7, %7 : vector<3x8xf32>
    %cst_21 = arith.constant dense<0.000000e+00> : vector<8xf32>
    %19 = vector.multi_reduction <add>, %18, %cst_21 [0] : vector<3x8xf32> to vector<8xf32>
    %20 = vector.shape_cast %19 : vector<8xf32> to vector<1x8xf32>
    %21 = vector.broadcast %17 : vector<8x1xf32> to vector<8x8xf32>
    %22 = vector.broadcast %20 : vector<1x8xf32> to vector<8x8xf32>
    %23 = arith.addf %21, %22 : vector<8x8xf32>
    %cst_22 = arith.constant 2.000000e+00 : f32
    %24 = vector.broadcast %cst_22 : f32 to vector<8x8xf32>
    %25 = arith.mulf %24, %14 : vector<8x8xf32>
    %26 = arith.subf %23, %25 : vector<8x8xf32>
    %cst_23 = arith.constant 0.000000e+00 : f32
    %27 = vector.broadcast %cst_23 : f32 to vector<8x8xf32>
    %28 = arith.maximumf %26, %27 : vector<8x8xf32>
    %cst_24 = arith.constant 1.000000e-10 : f32
    %29 = vector.broadcast %cst_24 : f32 to vector<8x8xf32>
    %30 = arith.addf %29, %28 : vector<8x8xf32>
    %31 = math.sqrt %30 : vector<8x8xf32>
    %cst_25 = arith.constant dense<0.000000e+00> : vector<8x8xf32>
    %32 = tpu.matmul %1, %5, %cst_25 {dimension_numbers = #tpu.dot_dimension_numbers<[1], [0], [0], [1], [0, 0, 1, 1], [], []>, precision = #tpu.contract_precision<fp32>} : vector<8x3xf32>, vector<3x8xf32>, vector<8x8xf32> -> vector<8x8xf32>
    %33 = arith.mulf %1, %1 : vector<8x3xf32>
    %cst_26 = arith.constant dense<0.000000e+00> : vector<8xf32>
    %34 = vector.multi_reduction <add>, %33, %cst_26 [1] : vector<8x3xf32> to vector<8xf32>
    %35 = vector.shape_cast %34 : vector<8xf32> to vector<8x1xf32>
    %36 = arith.mulf %5, %5 : vector<3x8xf32>
    %cst_27 = arith.constant dense<0.000000e+00> : vector<8xf32>
    %37 = vector.multi_reduction <add>, %36, %cst_27 [0] : vector<3x8xf32> to vector<8xf32>
    %38 = vector.shape_cast %37 : vector<8xf32> to vector<1x8xf32>
    %39 = vector.broadcast %35 : vector<8x1xf32> to vector<8x8xf32>
    %40 = vector.broadcast %38 : vector<1x8xf32> to vector<8x8xf32>
    %41 = arith.addf %39, %40 : vector<8x8xf32>
    %cst_28 = arith.constant 2.000000e+00 : f32
    %42 = vector.broadcast %cst_28 : f32 to vector<8x8xf32>
    %43 = arith.mulf %42, %32 : vector<8x8xf32>
    %44 = arith.subf %41, %43 : vector<8x8xf32>
    %cst_29 = arith.constant 0.000000e+00 : f32
    %45 = vector.broadcast %cst_29 : f32 to vector<8x8xf32>
    %46 = arith.maximumf %44, %45 : vector<8x8xf32>
    %cst_30 = arith.constant 1.000000e-10 : f32
    %47 = vector.broadcast %cst_30 : f32 to vector<8x8xf32>
    %48 = arith.addf %47, %46 : vector<8x8xf32>
    %49 = math.sqrt %48 : vector<8x8xf32>
    %c8_i32 = arith.constant 8 : i32
    %50 = arith.muli %arg1, %c8_i32 : i32
    %51 = tpu.iota {dimensions = array<i32: 0>} : vector<8x8xi32>
    %52 = vector.broadcast %50 : i32 to vector<8x8xi32>
    %53 = arith.addi %52, %51 : vector<8x8xi32>
    %54 = tpu.iota {dimensions = array<i32: 1>} : vector<8x8xi32>
    %55 = arith.cmpi ne, %53, %54 : vector<8x8xi32>
    %56 = arith.extui %55 : vector<8x8xi1> to vector<8x8xi32>
    %57 = arith.sitofp %56 : vector<8x8xi32> to vector<8x8xf32>
    %cst_31 = arith.constant 1.500000e+01 : f32
    %58 = vector.broadcast %cst_31 : f32 to vector<8x8xf32>
    %59 = arith.cmpf olt, %31, %58 : vector<8x8xf32>
    %60 = arith.extui %59 : vector<8x8xi1> to vector<8x8xi32>
    %61 = arith.sitofp %60 : vector<8x8xi32> to vector<8x8xf32>
    %62 = vector.broadcast %9 : vector<8x1xf32> to vector<8x8xf32>
    %63 = arith.mulf %61, %62 : vector<8x8xf32>
    %64 = vector.broadcast %11 : vector<1x8xf32> to vector<8x8xf32>
    %65 = arith.mulf %63, %64 : vector<8x8xf32>
    %66 = arith.mulf %65, %57 : vector<8x8xf32>
    %67 = arith.subf %31, %49 : vector<8x8xf32>
    %68 = math.absf %67 : vector<8x8xf32>
    %cst_32 = arith.constant 5.000000e-01 : f32
    %69 = vector.broadcast %cst_32 : f32 to vector<8x8xf32>
    %70 = arith.cmpf olt, %68, %69 : vector<8x8xf32>
    %71 = arith.extui %70 : vector<8x8xi1> to vector<8x8xi32>
    %72 = arith.sitofp %71 : vector<8x8xi32> to vector<8x8xf32>
    %cst_33 = arith.constant 1.000000e+00 : f32
    %73 = vector.broadcast %cst_33 : f32 to vector<8x8xf32>
    %74 = arith.cmpf olt, %68, %73 : vector<8x8xf32>
    %75 = arith.extui %74 : vector<8x8xi1> to vector<8x8xi32>
    %76 = arith.sitofp %75 : vector<8x8xi32> to vector<8x8xf32>
    %77 = arith.addf %72, %76 : vector<8x8xf32>
    %cst_34 = arith.constant 2.000000e+00 : f32
    %78 = vector.broadcast %cst_34 : f32 to vector<8x8xf32>
    %79 = arith.cmpf olt, %68, %78 : vector<8x8xf32>
    %80 = arith.extui %79 : vector<8x8xi1> to vector<8x8xi32>
    %81 = arith.sitofp %80 : vector<8x8xi32> to vector<8x8xf32>
    %82 = arith.addf %77, %81 : vector<8x8xf32>
    %cst_35 = arith.constant 4.000000e+00 : f32
    %83 = vector.broadcast %cst_35 : f32 to vector<8x8xf32>
    %84 = arith.cmpf olt, %68, %83 : vector<8x8xf32>
    %85 = arith.extui %84 : vector<8x8xi1> to vector<8x8xi32>
    %86 = arith.sitofp %85 : vector<8x8xi32> to vector<8x8xf32>
    %87 = arith.addf %82, %86 : vector<8x8xf32>
    %cst_36 = arith.constant 2.500000e-01 : f32
    %88 = vector.broadcast %cst_36 : f32 to vector<8x8xf32>
    %89 = arith.mulf %87, %88 : vector<8x8xf32>
    %cst_37 = arith.constant dense<0.000000e+00> : vector<8xf32>
    %90 = vector.multi_reduction <add>, %66, %cst_37 [1] : vector<8x8xf32> to vector<8xf32>
    %91 = vector.shape_cast %90 : vector<8xf32> to vector<8x1xf32>
    %cst_38 = arith.constant 1.000000e-10 : f32
    %92 = vector.broadcast %cst_38 : f32 to vector<8x1xf32>
    %93 = arith.addf %92, %91 : vector<8x1xf32>
    %cst_39 = arith.constant 1.000000e+00 : f32
    %94 = vector.broadcast %cst_39 : f32 to vector<8x1xf32>
    %95 = arith.divf %94, %93 : vector<8x1xf32>
    %96 = arith.mulf %66, %89 : vector<8x8xf32>
    %cst_40 = arith.constant dense<0.000000e+00> : vector<8xf32>
    %97 = vector.multi_reduction <add>, %96, %cst_40 [1] : vector<8x8xf32> to vector<8xf32>
    %98 = vector.shape_cast %97 : vector<8xf32> to vector<8x1xf32>
    %99 = arith.mulf %95, %98 : vector<8x1xf32>
    %cst_41 = arith.constant 5.000000e+01 : f32
    %100 = vector.broadcast %cst_41 : f32 to vector<8x1xf32>
    %101 = arith.mulf %99, %100 : vector<8x1xf32>
    %102 = math.floor %101 : vector<8x1xf32>
    %cst_42 = arith.constant 4.900000e+01 : f32
    %103 = vector.broadcast %cst_42 : f32 to vector<8x1xf32>
    %104 = arith.minimumf %102, %103 : vector<8x1xf32>
    %105 = arith.fptosi %104 : vector<8x1xf32> to vector<8x1xi32>
    %cst_43 = arith.constant dense<0xFF800000> : vector<8xf32>
    %106 = vector.multi_reduction <maximumf>, %13, %cst_43 [1] : vector<8x50xf32> to vector<8xf32>
    %107 = vector.shape_cast %106 : vector<8xf32> to vector<8x1xf32>
    %108 = vector.broadcast %107 : vector<8x1xf32> to vector<8x50xf32>
    %109 = arith.subf %13, %108 : vector<8x50xf32>
    %110 = math.exp %109 : vector<8x50xf32>
    %cst_44 = arith.constant dense<0.000000e+00> : vector<8xf32>
    %111 = vector.multi_reduction <add>, %110, %cst_44 [1] : vector<8x50xf32> to vector<8xf32>
    %112 = vector.shape_cast %111 : vector<8xf32> to vector<8x1xf32>
    %113 = math.log %112 : vector<8x1xf32>
    %114 = arith.addf %107, %113 : vector<8x1xf32>
    %115 = tpu.iota {dimensions = array<i32: 1>} : vector<8x50xi32>
    %116 = vector.broadcast %105 : vector<8x1xi32> to vector<8x50xi32>
    %117 = arith.cmpi eq, %115, %116 : vector<8x50xi32>
    %cst_45 = arith.constant 0.000000e+00 : f32
    %118 = vector.broadcast %cst_45 : f32 to vector<8x50xf32>
    %119 = arith.select %117, %13, %118 : vector<8x50xi1>, vector<8x50xf32>
    %cst_46 = arith.constant dense<0.000000e+00> : vector<8xf32>
    %120 = vector.multi_reduction <add>, %119, %cst_46 [1] : vector<8x50xf32> to vector<8xf32>
    %121 = vector.shape_cast %120 : vector<8xf32> to vector<8x1xf32>
    %122 = arith.subf %114, %121 : vector<8x1xf32>
    %123 = tpu.iota {dimensions = array<i32: 1>} : vector<1x50xi32>
    %124 = arith.sitofp %123 : vector<1x50xi32> to vector<1x50xf32>
    %cst_47 = arith.constant 5.000000e-01 : f32
    %125 = vector.broadcast %cst_47 : f32 to vector<1x50xf32>
    %126 = arith.addf %124, %125 : vector<1x50xf32>
    %cst_48 = arith.constant 5.000000e+01 : f32
    %127 = vector.broadcast %cst_48 : f32 to vector<1x50xf32>
    %128 = arith.divf %126, %127 : vector<1x50xf32>
    %129 = vector.broadcast %114 : vector<8x1xf32> to vector<8x50xf32>
    %130 = arith.subf %13, %129 : vector<8x50xf32>
    %131 = math.exp %130 : vector<8x50xf32>
    %132 = vector.broadcast %128 : vector<1x50xf32> to vector<8x50xf32>
    %133 = arith.mulf %131, %132 : vector<8x50xf32>
    %cst_49 = arith.constant dense<0.000000e+00> : vector<8xf32>
    %134 = vector.multi_reduction <add>, %133, %cst_49 [1] : vector<8x50xf32> to vector<8xf32>
    %135 = vector.shape_cast %134 : vector<8xf32> to vector<8x1xf32>
    %136 = vector.shape_cast %99 : vector<8x1xf32> to vector<1x8x1xf32>
    %c0_50 = arith.constant 0 : index
    %c0_51 = arith.constant 0 : index
    %c0_52 = arith.constant 0 : index
    %137 = vector.load %arg9[%c0_50, %c0_51, %c0_52] : memref<1x8x1xf32, #tpu.memory_space<vmem>>, vector<1x8x1xf32>
    tpu.vector_store %arg9[%c0_50, %c0_51, %c0_52], %136 {strides = array<i32>} : memref<1x8x1xf32, #tpu.memory_space<vmem>>, vector<1x8x1xf32>,
    %138 = vector.shape_cast %122 : vector<8x1xf32> to vector<1x8x1xf32>
    %c0_53 = arith.constant 0 : index
    %c0_54 = arith.constant 0 : index
    %c0_55 = arith.constant 0 : index
    %139 = vector.load %arg10[%c0_53, %c0_54, %c0_55] : memref<1x8x1xf32, #tpu.memory_space<vmem>>, vector<1x8x1xf32>
    tpu.vector_store %arg10[%c0_53, %c0_54, %c0_55], %138 {strides = array<i32>} : memref<1x8x1xf32, #tpu.memory_space<vmem>>, vector<1x8x1xf32>,
    %140 = vector.shape_cast %135 : vector<8x1xf32> to vector<1x8x1xf32>
    %c0_56 = arith.constant 0 : index
    %c0_57 = arith.constant 0 : index
    %c0_58 = arith.constant 0 : index
    %141 = vector.load %arg11[%c0_56, %c0_57, %c0_58] : memref<1x8x1xf32, #tpu.memory_space<vmem>>, vector<1x8x1xf32>
    tpu.vector_store %arg11[%c0_56, %c0_57, %c0_58], %140 {strides = array<i32>} : memref<1x8x1xf32, #tpu.memory_space<vmem>>, vector<1x8x1xf32>,
    return
  }
  func.func @transform_0(%arg0: i32, %arg1: i32) -> (i32, i32, i32) {
    %c0_i32 = arith.constant 0 : i32
    %c0_i32_0 = arith.constant 0 : i32
    return %arg0, %arg1, %c0_i32 : i32, i32, i32
  }
  func.func @transform_1(%arg0: i32, %arg1: i32) -> (i32, i32, i32) {
    %c0_i32 = arith.constant 0 : i32
    %c0_i32_0 = arith.constant 0 : i32
    %c0_i32_1 = arith.constant 0 : i32
    return %arg0, %c0_i32, %c0_i32_0 : i32, i32, i32
  }
  func.func @transform_2(%arg0: i32, %arg1: i32) -> (i32, i32, i32) {
    %c0_i32 = arith.constant 0 : i32
    %c0_i32_0 = arith.constant 0 : i32
    return %arg0, %arg1, %c0_i32 : i32, i32, i32
  }
  func.func @transform_3(%arg0: i32, %arg1: i32) -> (i32, i32, i32) {
    %c0_i32 = arith.constant 0 : i32
    %c0_i32_0 = arith.constant 0 : i32
    %c0_i32_1 = arith.constant 0 : i32
    return %arg0, %c0_i32, %c0_i32_0 : i32, i32, i32
  }
  func.func @transform_4(%arg0: i32, %arg1: i32) -> (i32, i32, i32) {
    %c0_i32 = arith.constant 0 : i32
    %c0_i32_0 = arith.constant 0 : i32
    return %arg0, %arg1, %c0_i32 : i32, i32, i32
  }
  func.func @transform_5(%arg0: i32, %arg1: i32) -> (i32, i32, i32) {
    %c0_i32 = arith.constant 0 : i32
    %c0_i32_0 = arith.constant 0 : i32
    %c0_i32_1 = arith.constant 0 : i32
    return %arg0, %c0_i32, %c0_i32_0 : i32, i32, i32
  }
  func.func @transform_6(%arg0: i32, %arg1: i32) -> (i32, i32, i32) {
    %c0_i32 = arith.constant 0 : i32
    %c0_i32_0 = arith.constant 0 : i32
    return %arg0, %arg1, %c0_i32 : i32, i32, i32
  }
  func.func @transform_7(%arg0: i32, %arg1: i32) -> (i32, i32, i32) {
    %c0_i32 = arith.constant 0 : i32
    %c0_i32_0 = arith.constant 0 : i32
    return %arg0, %arg1, %c0_i32 : i32, i32, i32
  }
  func.func @transform_8(%arg0: i32, %arg1: i32) -> (i32, i32, i32) {
    %c0_i32 = arith.constant 0 : i32
    %c0_i32_0 = arith.constant 0 : i32
    return %arg0, %arg1, %c0_i32 : i32, i32, i32
  }
  func.func @transform_9(%arg0: i32, %arg1: i32) -> (i32, i32, i32) {
    %c0_i32 = arith.constant 0 : i32
    %c0_i32_0 = arith.constant 0 : i32
    return %arg0, %arg1, %c0_i32 : i32, i32, i32
  }
}

</mosaic_0001>

<llo_original>
// kernel: rhofold_loss.3
$region0: #{rhofold_loss.3}
  #allocation0 [shape = 'u32[]', space=smem, size = 0x4, offset = 0x4, fixed_abs, tag = 'smem constant byte address 0x4 - core index']
  #allocation1 [shape = 'u32[144,128]{1,0:T(1,128)}', space=vmem, size = 0x12000, scoped, tag = 'internal scratch']
  %s0 = inlined_call_operand.vmem [shape: f32[2,3,8,8], index: 0, kind: input, shape index: {}]
  %s1 = inlined_call_operand.vmem [shape: f32[2,8,256], index: 1, kind: input, shape index: {}]
  %s2 = inlined_call_operand.vmem [shape: f32[2,8,1], index: 2, kind: input, shape index: {}]
  %s3 = inlined_call_operand.vmem [shape: f32[2,1,256], index: 3, kind: input, shape index: {}]
  %s4 = inlined_call_operand.vmem [shape: f32[2,1,256], index: 4, kind: input, shape index: {}]
  %s5 = inlined_call_operand.vmem [shape: f32[2,1,1], index: 5, kind: output, shape index: {0}]
  %s6 = inlined_call_operand.vmem [shape: f32[2,1,1], index: 6, kind: output, shape index: {1}]
  %7 = xla_tuple %s5, %s6
  %s8 = sld [smem:[#allocation0]]
  $region65: #{rhofold_loss.3} parent=0
    _
  %s10 = ssub.s32 1, %s8
  %s11 = scalar_select 0, %s10, %s8
  loop: start=0, step=1, limit=4
  $region2: #{rhofold_loss.3} parent=0 // loop_pre_header
    _
  $region3: #{rhofold_loss.3} parent=0 // loop_header
    %s13 = sphi 0, %s17
    %p14 = scmp.ge.s32.totalorder %s13, 4
    %s20 = sphi 0, %s32
    %s21 = sphi 0, %s28
    %s22 = sphi 0, %s20
    %s23 = sphi 0, %s21
    %s24 = sphi 0, %s22
    %s25 = sphi 0, %s23
    %s35 = sphi 0, %s37
    %s38 = sphi 0, %s35
    %s39 = sphi 0, %s38
    %s55 = sphi 0, %s39
    %s63 = sphi 0, %s65
    %s66 = sphi 0, %s63
    %s67 = sphi 0, %s66
    %s83 = sphi 0, %s67
    %s89 = sphi 0, %s91
    %s92 = sphi 0, %s89
    %s93 = sphi 0, %s92
    %s109 = sphi 0, %s93
    %s117 = sphi 0, %s119
    %s120 = sphi 0, %s117
    %s121 = sphi 0, %s120
    %s137 = sphi 0, %s121
    %s145 = sphi 0, %s147
    %s148 = sphi 0, %s145
    %s149 = sphi 0, %s148
    %s165 = sphi 0, %s149
    %s171 = sphi 0, %s173
    %s174 = sphi 0, %s171
    %s175 = sphi 0, %s174
    %s191 = sphi 0, %s175
    %s197 = sphi 0, %s199
    %s200 = sphi 0, %s197
    %s201 = sphi 0, %s200
    %s217 = sphi 0, %s201
  $region4: #{rhofold_loss.3} parent=0 // loop_header_branch
    %16 = sbr.rel (%p14) target = $region8
  $region5: #{rhofold_loss.3} parent=0 // loop_body
    %s18 = ssub.s32 %s13, 1
    %s19 = ssub.s32 %s13, 2
    %s26 = sadd.s32 1, %s21
    %p27 = scmp.ge.s32.totalorder %s26, 1
    %s28 = scalar_select %p27, 0, %s26
    %s29 = sadd.s32 1, %s20
    %s30 = scalar_select %p27, %s29, %s20
    %p31 = scmp.ge.s32.totalorder %s30, 2
    %s32 = scalar_select %p31, 0, %s30
    %s33 = ssub.s32 %s20, %s32
    %p34 = scmp.eq.s32.totalorder %s33, 0
    %s36 = sadd.s32 %s35, 1
    %s37 = scalar_select %p34, %s35, %s36
    %p40 = pneg %p34
    %p41 = scmp.eq.s32.totalorder %s13, 1
    %p42 = por %p40, %p41
    %p43 = scmp.ne.s32.totalorder %s35, %s38
    %p44 = scmp.eq.s32.totalorder %s13, 0
    %p45 = por %p43, %p44
    %p46 = scmp.ne.s32.totalorder %s35, %s38
    %p47 = scmp.eq.s32.totalorder %s18, 1
    %p48 = por %p46, %p47
    %p49 = scmp.ne.s32.totalorder %s38, %s39
    %p50 = scmp.eq.s32.totalorder %s18, 0
    %p51 = por %p49, %p50
    %p52 = scmp.ne.s32.totalorder %s38, %s39
    %p53 = scmp.eq.s32.totalorder %s19, 1
    %p54 = por %p52, %p53
    %p56 = scmp.ne.s32.totalorder %s39, %s55
    %p57 = scmp.eq.s32.totalorder %s19, 0
    %p58 = por %p56, %p57
    %s59 = ssub.s32 %s20, %s32
    %s60 = ssub.s32 %s21, %s28
    %s61 = sor.u32 %s59, %s60
    %p62 = scmp.eq.s32.totalorder %s61, 0
    %s64 = sadd.s32 %s63, 1
    %s65 = scalar_select %p62, %s63, %s64
    %p68 = pneg %p62
    %p69 = scmp.eq.s32.totalorder %s13, 1
    %p70 = por %p68, %p69
    %p71 = scmp.ne.s32.totalorder %s63, %s66
    %p72 = scmp.eq.s32.totalorder %s13, 0
    %p73 = por %p71, %p72
    %p74 = scmp.ne.s32.totalorder %s63, %s66
    %p75 = scmp.eq.s32.totalorder %s18, 1
    %p76 = por %p74, %p75
    %p77 = scmp.ne.s32.totalorder %s66, %s67
    %p78 = scmp.eq.s32.totalorder %s18, 0
    %p79 = por %p77, %p78
    %p80 = scmp.ne.s32.totalorder %s66, %s67
    %p81 = scmp.eq.s32.totalorder %s19, 1
    %p82 = por %p80, %p81
    %p84 = scmp.ne.s32.totalorder %s67, %s83
    %p85 = scmp.eq.s32.totalorder %s19, 0
    %p86 = por %p84, %p85
    %s87 = ssub.s32 %s20, %s32
    %p88 = scmp.eq.s32.totalorder %s87, 0
    %s90 = sadd.s32 %s89, 1
    %s91 = scalar_select %p88, %s89, %s90
    %p94 = pneg %p88
    %p95 = scmp.eq.s32.totalorder %s13, 1
    %p96 = por %p94, %p95
    %p97 = scmp.ne.s32.totalorder %s89, %s92
    %p98 = scmp.eq.s32.totalorder %s13, 0
    %p99 = por %p97, %p98
    %p100 = scmp.ne.s32.totalorder %s89, %s92
    %p101 = scmp.eq.s32.totalorder %s18, 1
    %p102 = por %p100, %p101
    %p103 = scmp.ne.s32.totalorder %s92, %s93
    %p104 = scmp.eq.s32.totalorder %s18, 0
    %p105 = por %p103, %p104
    %p106 = scmp.ne.s32.totalorder %s92, %s93
    %p107 = scmp.eq.s32.totalorder %s19, 1
    %p108 = por %p106, %p107
    %p110 = scmp.ne.s32.totalorder %s93, %s109
    %p111 = scmp.eq.s32.totalorder %s19, 0
    %p112 = por %p110, %p111
    %s113 = ssub.s32 %s20, %s32
    %s114 = ssub.s32 %s21, %s28
    %s115 = sor.u32 %s113, %s114
    %p116 = scmp.eq.s32.totalorder %s115, 0
    %s118 = sadd.s32 %s117, 1
    %s119 = scalar_select %p116, %s117, %s118
    %p122 = pneg %p116
    %p123 = scmp.eq.s32.totalorder %s13, 1
    %p124 = por %p122, %p123
    %p125 = scmp.ne.s32.totalorder %s117, %s120
    %p126 = scmp.eq.s32.totalorder %s13, 0
    %p127 = por %p125, %p126
    %p128 = scmp.ne.s32.totalorder %s117, %s120
    %p129 = scmp.eq.s32.totalorder %s18, 1
    %p130 = por %p128, %p129
    %p131 = scmp.ne.s32.totalorder %s120, %s121
    %p132 = scmp.eq.s32.totalorder %s18, 0
    %p133 = por %p131, %p132
    %p134 = scmp.ne.s32.totalorder %s120, %s121
    %p135 = scmp.eq.s32.totalorder %s19, 1
    %p136 = por %p134, %p135
    %p138 = scmp.ne.s32.totalorder %s121, %s137
    %p139 = scmp.eq.s32.totalorder %s19, 0
    %p140 = por %p138, %p139
    %s141 = ssub.s32 %s20, %s32
    %s142 = ssub.s32 %s21, %s28
    %s143 = sor.u32 %s141, %s142
    %p144 = scmp.eq.s32.totalorder %s143, 0
    %s146 = sadd.s32 %s145, 1
    %s147 = scalar_select %p144, %s145, %s146
    %p150 = pneg %p144
    %p151 = scmp.eq.s32.totalorder %s13, 1
    %p152 = por %p150, %p151
    %p153 = scmp.ne.s32.totalorder %s145, %s148
    %p154 = scmp.eq.s32.totalorder %s13, 0
    %p155 = por %p153, %p154
    %p156 = scmp.ne.s32.totalorder %s145, %s148
    %p157 = scmp.eq.s32.totalorder %s18, 1
    %p158 = por %p156, %p157
    %p159 = scmp.ne.s32.totalorder %s148, %s149
    %p160 = scmp.eq.s32.totalorder %s18, 0
    %p161 = por %p159, %p160
    %p162 = scmp.ne.s32.totalorder %s148, %s149
    %p163 = scmp.eq.s32.totalorder %s19, 1
    %p164 = por %p162, %p163
    %p166 = scmp.ne.s32.totalorder %s149, %s165
    %p167 = scmp.eq.s32.totalorder %s19, 0
    %p168 = por %p166, %p167
    %s169 = ssub.s32 %s20, %s32
    %p170 = scmp.eq.s32.totalorder %s169, 0
    %s172 = sadd.s32 %s171, 1
    %s173 = scalar_select %p170, %s171, %s172
    %p176 = pneg %p170
    %p177 = scmp.eq.s32.totalorder %s13, 1
    %p178 = por %p176, %p177
    %p179 = scmp.ne.s32.totalorder %s171, %s174
    %p180 = scmp.eq.s32.totalorder %s13, 0
    %p181 = por %p179, %p180
    %p182 = scmp.ne.s32.totalorder %s171, %s174
    %p183 = scmp.eq.s32.totalorder %s18, 1
    %p184 = por %p182, %p183
    %p185 = scmp.ne.s32.totalorder %s174, %s175
    %p186 = scmp.eq.s32.totalorder %s18, 0
    %p187 = por %p185, %p186
    %p188 = scmp.ne.s32.totalorder %s174, %s175
    %p189 = scmp.eq.s32.totalorder %s19, 1
    %p190 = por %p188, %p189
    %p192 = scmp.ne.s32.totalorder %s175, %s191
    %p193 = scmp.eq.s32.totalorder %s19, 0
    %p194 = por %p192, %p193
    %s195 = ssub.s32 %s20, %s32
    %p196 = scmp.eq.s32.totalorder %s195, 0
    %s198 = sadd.s32 %s197, 1
    %s199 = scalar_select %p196, %s197, %s198
    %p202 = pneg %p196
    %p203 = scmp.eq.s32.totalorder %s13, 1
    %p204 = por %p202, %p203
    %p205 = scmp.ne.s32.totalorder %s197, %s200
    %p206 = scmp.eq.s32.totalorder %s13, 0
    %p207 = por %p205, %p206
    %p208 = scmp.ne.s32.totalorder %s197, %s200
    %p209 = scmp.eq.s32.totalorder %s18, 1
    %p210 = por %p208, %p209
    %p211 = scmp.ne.s32.totalorder %s200, %s201
    %p212 = scmp.eq.s32.totalorder %s18, 0
    %p213 = por %p211, %p212
    %p214 = scmp.ne.s32.totalorder %s200, %s201
    %p215 = scmp.eq.s32.totalorder %s19, 1
    %p216 = por %p214, %p215
    %p218 = scmp.ne.s32.totalorder %s201, %s217
    %p219 = scmp.eq.s32.totalorder %s19, 0
    %p220 = por %p218, %p219
    %p221 = scmp.le.s32.totalorder 1, %s13
    %p222 = scmp.lt.s32.totalorder %s13, 3
    %p223 = pnand %p221, %p222
    %p224 = pneg %p223
    // Predicated region
    $region9: #{rhofold_loss.3} parent=5 // pred_check
      _
    $region10: #{rhofold_loss.3} parent=5 // pred_check_branch
      %226 = sbr.rel (%p223) target = $region12
    $region11: #{rhofold_loss.3} parent=5 // pred_region
      %s227 = ssub.s32 %s13, 1
    $region12: #{rhofold_loss.3} parent=5 // pred_fallthru
      _
    %p228 = scmp.lt.s32.totalorder %s13, 2
    // Predicated region
    $region13: #{rhofold_loss.3} parent=5 // pred_check
      %p229 = pneg %p228
    $region14: #{rhofold_loss.3} parent=5 // pred_check_branch
      %231 = sbr.rel (%p229) target = $region16
    $region15: #{rhofold_loss.3} parent=5 // pred_region
      // Predicated region
      $region17: #{rhofold_loss.3} parent=15 // pred_check
        %p232 = pneg %p45
      $region18: #{rhofold_loss.3} parent=15 // pred_check_branch
        %234 = sbr.rel (%p232) target = $region20
      $region19: #{rhofold_loss.3} parent=15 // pred_region
        %p235 = scmp.lt.s32.totalorder %s20, 1
        %s236 = scalar_select %p235, %s20, 1
        %s237 = smul.addr %s236, 3
        %s238 = smul.addr %s237, 8
        %s239 = scalar_lea.vmem %s0, %s238
      $region20: #{rhofold_loss.3} parent=15 // pred_fallthru
        _
      // Predicated region
      $region21: #{rhofold_loss.3} parent=15 // pred_check
        %p240 = pneg %p73
      $region22: #{rhofold_loss.3} parent=15 // pred_check_branch
        %242 = sbr.rel (%p240) target = $region24
      $region23: #{rhofold_loss.3} parent=15 // pred_region
        %s243 = smul.u32 2, %s21
        %p244 = scmp.lt.s32.totalorder %s20, 1
        %s245 = scalar_select %p244, %s20, 1
        %p246 = scmp.lt.s32.totalorder %s243, 1
        %s247 = scalar_select %p246, %s243, 1
        %s248 = smul.addr %s245, 2
        %s249 = sadd.s32 %s247, %s248
        %s250 = smul.addr %s249, 8
        %s251 = scalar_lea.vmem %s1, %s250
        %s252 = smul.u32 2, %s21
      $region24: #{rhofold_loss.3} parent=15 // pred_fallthru
        _
      // Predicated region
      $region25: #{rhofold_loss.3} parent=15 // pred_check
        %p253 = pneg %p99
      $region26: #{rhofold_loss.3} parent=15 // pred_check_branch
        %255 = sbr.rel (%p253) target = $region28
      $region27: #{rhofold_loss.3} parent=15 // pred_region
        %p256 = scmp.lt.s32.totalorder %s20, 1
        %s257 = scalar_select %p256, %s20, 1
        %s258 = smul.addr %s257, 8
        %s259 = scalar_lea.vmem %s2, %s258
      $region28: #{rhofold_loss.3} parent=15 // pred_fallthru
        _
      // Predicated region
      $region29: #{rhofold_loss.3} parent=15 // pred_check
        %p260 = pneg %p127
      $region30: #{rhofold_loss.3} parent=15 // pred_check_branch
        %262 = sbr.rel (%p260) target = $region32
      $region31: #{rhofold_loss.3} parent=15 // pred_region
        %s263 = smul.u32 2, %s21
        %p264 = scmp.lt.s32.totalorder %s20, 1
        %s265 = scalar_select %p264, %s20, 1
        %p266 = scmp.lt.s32.totalorder %s263, 1
        %s267 = scalar_select %p266, %s263, 1
        %s268 = smul.addr %s265, 2
        %s269 = sadd.s32 %s267, %s268
        %s270 = scalar_lea.vmem %s3, %s269
        %s271 = smul.u32 2, %s21
      $region32: #{rhofold_loss.3} parent=15 // pred_fallthru
        _
      // Predicated region
      $region33: #{rhofold_loss.3} parent=15 // pred_check
        %p272 = pneg %p155
      $region34: #{rhofold_loss.3} parent=15 // pred_check_branch
        %274 = sbr.rel (%p272) target = $region36
      $region35: #{rhofold_loss.3} parent=15 // pred_region
        %s275 = smul.u32 2, %s21
        %p276 = scmp.lt.s32.totalorder %s20, 1
        %s277 = scalar_select %p276, %s20, 1
        %p278 = scmp.lt.s32.totalorder %s275, 1
        %s279 = scalar_select %p278, %s275, 1
        %s280 = smul.addr %s277, 2
        %s281 = sadd.s32 %s279, %s280
        %s282 = scalar_lea.vmem %s4, %s281
        %s283 = smul.u32 2, %s21
      $region36: #{rhofold_loss.3} parent=15 // pred_fallthru
        _
    $region16: #{rhofold_loss.3} parent=5 // pred_fallthru
      _
    %p284 = scmp.le.s32.totalorder 1, %s13
    %p285 = scmp.lt.s32.totalorder %s13, 3
    %p286 = pnand %p284, %p285
    %p287 = pneg %p286
    // Predicated region
    $region37: #{rhofold_loss.3} parent=5 // pred_check
      _
    $region38: #{rhofold_loss.3} parent=5 // pred_check_branch
      %289 = sbr.rel (%p286) target = $region40
    $region39: #{rhofold_loss.3} parent=5 // pred_region
      %s290 = ssub.s32 %s13, 1
      %p291 = scmp.lt.s32.totalorder %s22, 1
      %s292 = scalar_select %p291, %s22, 1
      %s293 = smul.addr %s292, 3
      %s294 = smul.addr %s293, 8
      %s295 = scalar_lea.vmem %s0, %s294
      %p296 = pneg %p51
      %p297 = pneg %p48
      %s298 = smul.u32 2, %s23
      %p299 = scmp.lt.s32.totalorder %s22, 1
      %s300 = scalar_select %p299, %s22, 1
      %p301 = scmp.lt.s32.totalorder %s298, 1
      %s302 = scalar_select %p301, %s298, 1
      %s303 = smul.addr %s300, 2
      %s304 = sadd.s32 %s302, %s303
      %s305 = smul.addr %s304, 8
      %s306 = scalar_lea.vmem %s1, %s305
      %p307 = pneg %p79
      %p308 = pneg %p76
      %p309 = scmp.lt.s32.totalorder %s22, 1
      %s310 = scalar_select %p309, %s22, 1
      %s311 = smul.addr %s310, 8
      %s312 = scalar_lea.vmem %s2, %s311
      %p313 = pneg %p105
      %p314 = pneg %p102
      %s315 = smul.u32 2, %s23
      %p316 = scmp.lt.s32.totalorder %s22, 1
      %s317 = scalar_select %p316, %s22, 1
      %p318 = scmp.lt.s32.totalorder %s315, 1
      %s319 = scalar_select %p318, %s315, 1
      %s320 = smul.addr %s317, 2
      %s321 = sadd.s32 %s319, %s320
      %s322 = scalar_lea.vmem %s3, %s321
      %p323 = pneg %p133
      %p324 = pneg %p130
      %s325 = smul.u32 2, %s23
      %p326 = scmp.lt.s32.totalorder %s22, 1
      %s327 = scalar_select %p326, %s22, 1
      %p328 = scmp.lt.s32.totalorder %s325, 1
      %s329 = scalar_select %p328, %s325, 1
      %s330 = smul.addr %s327, 2
      %s331 = sadd.s32 %s329, %s330
      %s332 = scalar_lea.vmem %s4, %s331
      %p333 = pneg %p161
      %p334 = pneg %p158
      %p335 = pneg %p187
      %p336 = pneg %p184
      %p337 = scmp.lt.s32.totalorder %s22, 1
      %s338 = scalar_select %p337, %s22, 1
      %s339 = scalar_lea.vmem %s5, %s338
      %p340 = pneg %p213
      %p341 = pneg %p210
      %p342 = scmp.lt.s32.totalorder %s22, 1
      %s343 = scalar_select %p342, %s22, 1
      %s344 = scalar_lea.vmem %s6, %s343
      %p345 = scmp.lt.s32.totalorder %s22, 1
      %s346 = scalar_select %p345, %s22, 1
      %s347 = smul.addr %s346, 3
      %s348 = smul.addr %s347, 8
      %s349 = scalar_lea.vmem %s0, %s348
      %s350 = smul.u32 2, %s23
      %p351 = scmp.lt.s32.totalorder %s22, 1
      %s352 = scalar_select %p351, %s22, 1
      %p353 = scmp.lt.s32.totalorder %s350, 1
      %s354 = scalar_select %p353, %s350, 1
      %s355 = smul.addr %s352, 2
      %s356 = sadd.s32 %s354, %s355
      %s357 = smul.addr %s356, 8
      %s358 = scalar_lea.vmem %s1, %s357
      %s359 = smul.u32 2, %s23
      %p360 = scmp.lt.s32.totalorder %s22, 1
      %s361 = scalar_select %p360, %s22, 1
      %s362 = smul.addr %s361, 8
      %s363 = scalar_lea.vmem %s2, %s362
      %s364 = smul.u32 2, %s23
      %p365 = scmp.lt.s32.totalorder %s22, 1
      %s366 = scalar_select %p365, %s22, 1
      %p367 = scmp.lt.s32.totalorder %s364, 1
      %s368 = scalar_select %p367, %s364, 1
      %s369 = smul.addr %s366, 2
      %s370 = sadd.s32 %s368, %s369
      %s371 = scalar_lea.vmem %s3, %s370
      %s372 = smul.u32 2, %s23
      %s373 = smul.u32 2, %s23
      %p374 = scmp.lt.s32.totalorder %s22, 1
      %s375 = scalar_select %p374, %s22, 1
      %p376 = scmp.lt.s32.totalorder %s373, 1
      %s377 = scalar_select %p376, %s373, 1
      %s378 = smul.addr %s375, 2
      %s379 = sadd.s32 %s377, %s378
      %s380 = scalar_lea.vmem %s4, %s379
      %s381 = smul.u32 2, %s23
      %p382 = scmp.lt.s32.totalorder %s22, 1
      %s383 = scalar_select %p382, %s22, 1
      %s384 = scalar_lea.vmem %s5, %s383
      %p385 = scmp.lt.s32.totalorder %s22, 1
      %s386 = scalar_select %p385, %s22, 1
      %s387 = scalar_lea.vmem %s6, %s386
      %p388 = scmp.eq.s32.totalorder %s23, 0
      // Predicated region
      $region41: #{rhofold_loss.3} parent=39 // pred_check
        %p389 = pneg %p388
      $region42: #{rhofold_loss.3} parent=39 // pred_check_branch
        %391 = sbr.rel (%p389) target = $region44
      $region43: #{rhofold_loss.3} parent=39 // pred_region
        %vm392 = vcmask 0
        %393 = vst.msk [vmem:[%s384] sm:$0x1] %vm392, 0.0
        %394 = vst.msk [vmem:[%s387] sm:$0x1] %vm392, 0.0
      $region44: #{rhofold_loss.3} parent=39 // pred_fallthru
        _
      %v395 = vld [vmem:[%s358] sm:$0xff]
      %v396 = vld [vmem:[%s358 + $0x8] sm:$0xff]
      %v397 = vld [vmem:[%s349] sm:$0xff]
      %vm398 = vcmask 64512
      %v400 = vsel %vm398, %v397, 0
      %402 = vmatprep.subr.mxu0 0.0
      %403 = vmatpush1.msra.mxu0 0.0
      %404 = vmatprep.subr.mxu0 0.0
      %405 = vmatpush1.msra.mxu0 0.0
      %406 = vmatprep.subr.mxu0 0.0
      %407 = vmatpush1.msra.mxu0 0.0
      %408 = vmatprep.subr.mxu0 0.0
      %409 = vmatpush1.msra.mxu0 0.0
      %410 = vmatprep.subr.mxu0 0.0
      %411 = vmatpush1.msra.mxu0 0.0
      %412 = vmatprep.subr.mxu0 0.0
      %413 = vmatpush1.msra.mxu0 0.0
      %414 = vmatprep.subr.mxu0 0.0
      %415 = vmatpush1.msra.mxu0 0.0
      %416 = vmatprep.subr.mxu0 0.0
      %417 = vmatpush1.msra.mxu0 0.0
      %418 = vmatprep.subr.mxu0 0.0
      %419 = vmatpush1.msra.mxu0 0.0
      %420 = vmatprep.subr.mxu0 0.0
      %421 = vmatpush1.msra.mxu0 0.0
      %422 = vmatprep.subr.mxu0 0.0
      %423 = vmatpush1.msra.mxu0 0.0
      %424 = vmatprep.subr.mxu0 0.0
      %425 = vmatpush1.msra.mxu0 0.0
      %426 = vmatprep.subr.mxu0 0.0
      %427 = vmatpush1.msra.mxu0 0.0
      %428 = vmatprep.subr.mxu0 0.0
      %429 = vmatpush1.msra.mxu0 0.0
      %430 = vmatprep.subr.mxu0 0.0
      %431 = vmatpush1.msra.mxu0 0.0
      %v432 = vand.u32 %v396, 4294901760
      %433 = vmatprep.subr.mxu0 %v432
      %v434 = vand.u32 %v395, 4294901760
      %435 = vmatpush1.msra.mxu0 %v434
      %436 = vmatprep.subr.mxu0 0.0
      %437 = vmatpush2.msra.mxu0 0.0
      %438 = vmatprep.subr.mxu0 0.0
      %439 = vmatpush2.msra.mxu0 0.0
      %440 = vmatprep.subr.mxu0 0.0
      %441 = vmatpush2.msra.mxu0 0.0
      %442 = vmatprep.subr.mxu0 0.0
      %443 = vmatpush2.msra.mxu0 0.0
      %444 = vmatprep.subr.mxu0 0.0
      %445 = vmatpush2.msra.mxu0 0.0
      %446 = vmatprep.subr.mxu0 0.0
      %447 = vmatpush2.msra.mxu0 0.0
      %448 = vmatprep.subr.mxu0 0.0
      %449 = vmatpush2.msra.mxu0 0.0
      %450 = vmatprep.subr.mxu0 0.0
      %451 = vmatpush2.msra.mxu0 0.0
      %452 = vmatprep.subr.mxu0 0.0
      %453 = vmatpush2.msra.mxu0 0.0
      %454 = vmatprep.subr.mxu0 0.0
      %455 = vmatpush2.msra.mxu0 0.0
      %456 = vmatprep.subr.mxu0 0.0
      %457 = vmatpush2.msra.mxu0 0.0
      %458 = vmatprep.subr.mxu0 0.0
      %459 = vmatpush2.msra.mxu0 0.0
      %460 = vmatprep.subr.mxu0 0.0
      %461 = vmatpush2.msra.mxu0 0.0
      %462 = vmatprep.subr.mxu0 0.0
      %463 = vmatpush2.msra.mxu0 0.0
      %464 = vmatprep.subr.mxu0 0.0
      %465 = vmatpush2.msra.mxu0 0.0
      %466 = vmatprep.subr.mxu0 0.0
      %467 = vmatpush2.msra.mxu0 0.0
      %468 = vmatprep.mubr.f32.mxu0 0.0
      %v469 = vand.u32 %v400, 4294901760
      %v470 = vsub.f32 %v400, %v469
      %v471 = vand.u32 %v470, 4294901760
      %v472 = vsub.f32 %v470, %v471
      %v473 = vand.u32 %v472, 4294901760
      %474 = vmatmul.mubr.f32.gmra.mxu0 %v473
      %v475 = vpop.f32.mrf.mxu0
      %v476 = vadd.f32 0.0, %v475
      %v477 = vpop.f32.mrf.mxu0
      %v478 = vadd.f32 0.0, %v477
      %479 = vdwg.mxu0
      %480 = vmatprep.subr.mxu0 0.0
      %481 = vmatpush1.msra.mxu0 0.0
      %482 = vmatprep.subr.mxu0 0.0
      %483 = vmatpush1.msra.mxu0 0.0
      %484 = vmatprep.subr.mxu0 0.0
      %485 = vmatpush1.msra.mxu0 0.0
      %486 = vmatprep.subr.mxu0 0.0
      %487 = vmatpush1.msra.mxu0 0.0
      %488 = vmatprep.subr.mxu0 0.0
      %489 = vmatpush1.msra.mxu0 0.0
      %490 = vmatprep.subr.mxu0 0.0
      %491 = vmatpush1.msra.mxu0 0.0
      %492 = vmatprep.subr.mxu0 0.0
      %493 = vmatpush1.msra.mxu0 0.0
      %494 = vmatprep.subr.mxu0 0.0
      %495 = vmatpush1.msra.mxu0 0.0
      %496 = vmatprep.subr.mxu0 0.0
      %497 = vmatpush1.msra.mxu0 0.0
      %498 = vmatprep.subr.mxu0 0.0
      %499 = vmatpush1.msra.mxu0 0.0
      %500 = vmatprep.subr.mxu0 0.0
      %501 = vmatpush1.msra.mxu0 0.0
      %502 = vmatprep.subr.mxu0 0.0
      %503 = vmatpush1.msra.mxu0 0.0
      %504 = vmatprep.subr.mxu0 0.0
      %505 = vmatpush1.msra.mxu0 0.0
      %506 = vmatprep.subr.mxu0 0.0
      %507 = vmatpush1.msra.mxu0 0.0
      %508 = vmatprep.subr.mxu0 0.0
      %509 = vmatpush1.msra.mxu0 0.0
      %v510 = vand.u32 %v396, 4294901760
      %v511 = vsub.f32 %v396, %v510
      %v512 = vand.u32 %v511, 4294901760
      %v513 = vsub.f32 %v511, %v512
      %v514 = vand.u32 %v513, 4294901760
      %515 = vmatprep.subr.mxu0 %v514
      %v516 = vand.u32 %v395, 4294901760
      %v517 = vsub.f32 %v395, %v516
      %v518 = vand.u32 %v517, 4294901760
      %v519 = vsub.f32 %v517, %v518
      %v520 = vand.u32 %v519, 4294901760
      %521 = vmatpush1.msra.mxu0 %v520
      %522 = vmatprep.subr.mxu0 0.0
      %523 = vmatpush2.msra.mxu0 0.0
      %524 = vmatprep.subr.mxu0 0.0
      %525 = vmatpush2.msra.mxu0 0.0
      %526 = vmatprep.subr.mxu0 0.0
      %527 = vmatpush2.msra.mxu0 0.0
      %528 = vmatprep.subr.mxu0 0.0
      %529 = vmatpush2.msra.mxu0 0.0
      %530 = vmatprep.subr.mxu0 0.0
      %531 = vmatpush2.msra.mxu0 0.0
      %532 = vmatprep.subr.mxu0 0.0
      %533 = vmatpush2.msra.mxu0 0.0
      %534 = vmatprep.subr.mxu0 0.0
      %535 = vmatpush2.msra.mxu0 0.0
      %536 = vmatprep.subr.mxu0 0.0
      %537 = vmatpush2.msra.mxu0 0.0
      %538 = vmatprep.subr.mxu0 0.0
      %539 = vmatpush2.msra.mxu0 0.0
      %540 = vmatprep.subr.mxu0 0.0
      %541 = vmatpush2.msra.mxu0 0.0
      %542 = vmatprep.subr.mxu0 0.0
      %543 = vmatpush2.msra.mxu0 0.0
      %544 = vmatprep.subr.mxu0 0.0
      %545 = vmatpush2.msra.mxu0 0.0
      %546 = vmatprep.subr.mxu0 0.0
      %547 = vmatpush2.msra.mxu0 0.0
      %548 = vmatprep.subr.mxu0 0.0
      %549 = vmatpush2.msra.mxu0 0.0
      %550 = vmatprep.subr.mxu0 0.0
      %551 = vmatpush2.msra.mxu0 0.0
      %552 = vmatprep.subr.mxu0 0.0
      %553 = vmatpush2.msra.mxu0 0.0
      %554 = vmatprep.mubr.f32.mxu0 0.0
      %v555 = vand.u32 %v400, 4294901760
      %556 = vmatmul.mubr.f32.gmra.mxu0 %v555
      %v557 = vpop.f32.mrf.mxu0
      %v558 = vadd.f32 %v476, %v557
      %v559 = vpop.f32.mrf.mxu0
      %v560 = vadd.f32 %v478, %v559
      %561 = vdwg.mxu0
      %562 = vmatprep.subr.mxu0 0.0
      %563 = vmatpush1.msra.mxu0 0.0
      %564 = vmatprep.subr.mxu0 0.0
      %565 = vmatpush1.msra.mxu0 0.0
      %566 = vmatprep.subr.mxu0 0.0
      %567 = vmatpush1.msra.mxu0 0.0
      %568 = vmatprep.subr.mxu0 0.0
      %569 = vmatpush1.msra.mxu0 0.0
      %570 = vmatprep.subr.mxu0 0.0
      %571 = vmatpush1.msra.mxu0 0.0
      %572 = vmatprep.subr.mxu0 0.0
      %573 = vmatpush1.msra.mxu0 0.0
      %574 = vmatprep.subr.mxu0 0.0
      %575 = vmatpush1.msra.mxu0 0.0
      %576 = vmatprep.subr.mxu0 0.0
      %577 = vmatpush1.msra.mxu0 0.0
      %578 = vmatprep.subr.mxu0 0.0
      %579 = vmatpush1.msra.mxu0 0.0
      %580 = vmatprep.subr.mxu0 0.0
      %581 = vmatpush1.msra.mxu0 0.0
      %582 = vmatprep.subr.mxu0 0.0
      %583 = vmatpush1.msra.mxu0 0.0
      %584 = vmatprep.subr.mxu0 0.0
      %585 = vmatpush1.msra.mxu0 0.0
      %586 = vmatprep.subr.mxu0 0.0
      %587 = vmatpush1.msra.mxu0 0.0
      %588 = vmatprep.subr.mxu0 0.0
      %589 = vmatpush1.msra.mxu0 0.0
      %590 = vmatprep.subr.mxu0 0.0
      %591 = vmatpush1.msra.mxu0 0.0
      %v592 = vand.u32 %v396, 4294901760
      %v593 = vsub.f32 %v396, %v592
      %594 = vmatprep.subr.mxu0 %v593
      %v595 = vand.u32 %v395, 4294901760
      %v596 = vsub.f32 %v395, %v595
      %597 = vmatpush1.msra.mxu0 %v596
      %598 = vmatprep.subr.mxu0 0.0
      %599 = vmatpush2.msra.mxu0 0.0
      %600 = vmatprep.subr.mxu0 0.0
      %601 = vmatpush2.msra.mxu0 0.0
      %602 = vmatprep.subr.mxu0 0.0
      %603 = vmatpush2.msra.mxu0 0.0
      %604 = vmatprep.subr.mxu0 0.0
      %605 = vmatpush2.msra.mxu0 0.0
      %606 = vmatprep.subr.mxu0 0.0
      %607 = vmatpush2.msra.mxu0 0.0
      %608 = vmatprep.subr.mxu0 0.0
      %609 = vmatpush2.msra.mxu0 0.0
      %610 = vmatprep.subr.mxu0 0.0
      %611 = vmatpush2.msra.mxu0 0.0
      %612 = vmatprep.subr.mxu0 0.0
      %613 = vmatpush2.msra.mxu0 0.0
      %614 = vmatprep.subr.mxu0 0.0
      %615 = vmatpush2.msra.mxu0 0.0
      %616 = vmatprep.subr.mxu0 0.0
      %617 = vmatpush2.msra.mxu0 0.0
      %618 = vmatprep.subr.mxu0 0.0
      %619 = vmatpush2.msra.mxu0 0.0
      %620 = vmatprep.subr.mxu0 0.0
      %621 = vmatpush2.msra.mxu0 0.0
      %622 = vmatprep.subr.mxu0 0.0
      %623 = vmatpush2.msra.mxu0 0.0
      %624 = vmatprep.subr.mxu0 0.0
      %625 = vmatpush2.msra.mxu0 0.0
      %626 = vmatprep.subr.mxu0 0.0
      %627 = vmatpush2.msra.mxu0 0.0
      %628 = vmatprep.subr.mxu0 0.0
      %629 = vmatpush2.msra.mxu0 0.0
      %630 = vmatprep.mubr.f32.mxu0 0.0
      %v631 = vand.u32 %v400, 4294901760
      %v632 = vsub.f32 %v400, %v631
      %633 = vmatmul.mubr.f32.gmra.mxu0 %v632
      %v634 = vpop.f32.mrf.mxu0
      %v635 = vadd.f32 %v558, %v634
      %v636 = vpop.f32.mrf.mxu0
      %v637 = vadd.f32 %v560, %v636
      %638 = vdwg.mxu0
      %639 = vmatprep.subr.mxu0 0.0
      %640 = vmatpush1.msra.mxu0 0.0
      %641 = vmatprep.subr.mxu0 0.0
      %642 = vmatpush1.msra.mxu0 0.0
      %643 = vmatprep.subr.mxu0 0.0
      %644 = vmatpush1.msra.mxu0 0.0
      %645 = vmatprep.subr.mxu0 0.0
      %646 = vmatpush1.msra.mxu0 0.0
      %647 = vmatprep.subr.mxu0 0.0
      %648 = vmatpush1.msra.mxu0 0.0
      %649 = vmatprep.subr.mxu0 0.0
      %650 = vmatpush1.msra.mxu0 0.0
      %651 = vmatprep.subr.mxu0 0.0
      %652 = vmatpush1.msra.mxu0 0.0
      %653 = vmatprep.subr.mxu0 0.0
      %654 = vmatpush1.msra.mxu0 0.0
      %655 = vmatprep.subr.mxu0 0.0
      %656 = vmatpush1.msra.mxu0 0.0
      %657 = vmatprep.subr.mxu0 0.0
      %658 = vmatpush1.msra.mxu0 0.0
      %659 = vmatprep.subr.mxu0 0.0
      %660 = vmatpush1.msra.mxu0 0.0
      %661 = vmatprep.subr.mxu0 0.0
      %662 = vmatpush1.msra.mxu0 0.0
      %663 = vmatprep.subr.mxu0 0.0
      %664 = vmatpush1.msra.mxu0 0.0
      %665 = vmatprep.subr.mxu0 0.0
      %666 = vmatpush1.msra.mxu0 0.0
      %667 = vmatprep.subr.mxu0 0.0
      %668 = vmatpush1.msra.mxu0 0.0
      %v669 = vand.u32 %v396, 4294901760
      %670 = vmatprep.subr.mxu0 %v669
      %v671 = vand.u32 %v395, 4294901760
      %672 = vmatpush1.msra.mxu0 %v671
      %673 = vmatprep.subr.mxu0 0.0
      %674 = vmatpush2.msra.mxu0 0.0
      %675 = vmatprep.subr.mxu0 0.0
      %676 = vmatpush2.msra.mxu0 0.0
      %677 = vmatprep.subr.mxu0 0.0
      %678 = vmatpush2.msra.mxu0 0.0
      %679 = vmatprep.subr.mxu0 0.0
      %680 = vmatpush2.msra.mxu0 0.0
      %681 = vmatprep.subr.mxu0 0.0
      %682 = vmatpush2.msra.mxu0 0.0
      %683 = vmatprep.subr.mxu0 0.0
      %684 = vmatpush2.msra.mxu0 0.0
      %685 = vmatprep.subr.mxu0 0.0
      %686 = vmatpush2.msra.mxu0 0.0
      %687 = vmatprep.subr.mxu0 0.0
      %688 = vmatpush2.msra.mxu0 0.0
      %689 = vmatprep.subr.mxu0 0.0
      %690 = vmatpush2.msra.mxu0 0.0
      %691 = vmatprep.subr.mxu0 0.0
      %692 = vmatpush2.msra.mxu0 0.0
      %693 = vmatprep.subr.mxu0 0.0
      %694 = vmatpush2.msra.mxu0 0.0
      %695 = vmatprep.subr.mxu0 0.0
      %696 = vmatpush2.msra.mxu0 0.0
      %697 = vmatprep.subr.mxu0 0.0
      %698 = vmatpush2.msra.mxu0 0.0
      %699 = vmatprep.subr.mxu0 0.0
      %700 = vmatpush2.msra.mxu0 0.0
      %701 = vmatprep.subr.mxu0 0.0
      %702 = vmatpush2.msra.mxu0 0.0
      %703 = vmatprep.subr.mxu0 0.0
      %704 = vmatpush2.msra.mxu0 0.0
      %705 = vmatprep.mubr.f32.mxu0 0.0
      %v706 = vand.u32 %v400, 4294901760
      %v707 = vsub.f32 %v400, %v706
      %v708 = vand.u32 %v707, 4294901760
      %709 = vmatmul.mubr.f32.gmra.mxu0 %v708
      %v710 = vpop.f32.mrf.mxu0
      %v711 = vadd.f32 %v635, %v710
      %v712 = vpop.f32.mrf.mxu0
      %v713 = vadd.f32 %v637, %v712
      %714 = vdwg.mxu0
      %715 = vmatprep.subr.mxu0 0.0
      %716 = vmatpush1.msra.mxu0 0.0
      %717 = vmatprep.subr.mxu0 0.0
      %718 = vmatpush1.msra.mxu0 0.0
      %719 = vmatprep.subr.mxu0 0.0
      %720 = vmatpush1.msra.mxu0 0.0
      %721 = vmatprep.subr.mxu0 0.0
      %722 = vmatpush1.msra.mxu0 0.0
      %723 = vmatprep.subr.mxu0 0.0
      %724 = vmatpush1.msra.mxu0 0.0
      %725 = vmatprep.subr.mxu0 0.0
      %726 = vmatpush1.msra.mxu0 0.0
      %727 = vmatprep.subr.mxu0 0.0
      %728 = vmatpush1.msra.mxu0 0.0
      %729 = vmatprep.subr.mxu0 0.0
      %730 = vmatpush1.msra.mxu0 0.0
      %731 = vmatprep.subr.mxu0 0.0
      %732 = vmatpush1.msra.mxu0 0.0
      %733 = vmatprep.subr.mxu0 0.0
      %734 = vmatpush1.msra.mxu0 0.0
      %735 = vmatprep.subr.mxu0 0.0
      %736 = vmatpush1.msra.mxu0 0.0
      %737 = vmatprep.subr.mxu0 0.0
      %738 = vmatpush1.msra.mxu0 0.0
      %739 = vmatprep.subr.mxu0 0.0
      %740 = vmatpush1.msra.mxu0 0.0
      %741 = vmatprep.subr.mxu0 0.0
      %742 = vmatpush1.msra.mxu0 0.0
      %743 = vmatprep.subr.mxu0 0.0
      %744 = vmatpush1.msra.mxu0 0.0
      %v745 = vand.u32 %v396, 4294901760
      %v746 = vsub.f32 %v396, %v745
      %v747 = vand.u32 %v746, 4294901760
      %748 = vmatprep.subr.mxu0 %v747
      %v749 = vand.u32 %v395, 4294901760
      %v750 = vsub.f32 %v395, %v749
      %v751 = vand.u32 %v750, 4294901760
      %752 = vmatpush1.msra.mxu0 %v751
      %753 = vmatprep.subr.mxu0 0.0
      %754 = vmatpush2.msra.mxu0 0.0
      %755 = vmatprep.subr.mxu0 0.0
      %756 = vmatpush2.msra.mxu0 0.0
      %757 = vmatprep.subr.mxu0 0.0
      %758 = vmatpush2.msra.mxu0 0.0
      %759 = vmatprep.subr.mxu0 0.0
      %760 = vmatpush2.msra.mxu0 0.0
      %761 = vmatprep.subr.mxu0 0.0
      %762 = vmatpush2.msra.mxu0 0.0
      %763 = vmatprep.subr.mxu0 0.0
      %764 = vmatpush2.msra.mxu0 0.0
      %765 = vmatprep.subr.mxu0 0.0
      %766 = vmatpush2.msra.mxu0 0.0
      %767 = vmatprep.subr.mxu0 0.0
      %768 = vmatpush2.msra.mxu0 0.0
      %769 = vmatprep.subr.mxu0 0.0
      %770 = vmatpush2.msra.mxu0 0.0
      %771 = vmatprep.subr.mxu0 0.0
      %772 = vmatpush2.msra.mxu0 0.0
      %773 = vmatprep.subr.mxu0 0.0
      %774 = vmatpush2.msra.mxu0 0.0
      %775 = vmatprep.subr.mxu0 0.0
      %776 = vmatpush2.msra.mxu0 0.0
      %777 = vmatprep.subr.mxu0 0.0
      %778 = vmatpush2.msra.mxu0 0.0
      %779 = vmatprep.subr.mxu0 0.0
      %780 = vmatpush2.msra.mxu0 0.0
      %781 = vmatprep.subr.mxu0 0.0
      %782 = vmatpush2.msra.mxu0 0.0
      %783 = vmatprep.subr.mxu0 0.0
      %784 = vmatpush2.msra.mxu0 0.0
      %785 = vmatprep.mubr.f32.mxu0 0.0
      %v786 = vand.u32 %v400, 4294901760
      %787 = vmatmul.mubr.f32.gmra.mxu0 %v786
      %v788 = vpop.f32.mrf.mxu0
      %v789 = vadd.f32 %v711, %v788
      %v790 = vpop.f32.mrf.mxu0
      %v791 = vadd.f32 %v713, %v790
      %792 = vdwg.mxu0
      %793 = vmatprep.subr.mxu0 0.0
      %794 = vmatpush1.msra.mxu0 0.0
      %795 = vmatprep.subr.mxu0 0.0
      %796 = vmatpush1.msra.mxu0 0.0
      %797 = vmatprep.subr.mxu0 0.0
      %798 = vmatpush1.msra.mxu0 0.0
      %799 = vmatprep.subr.mxu0 0.0
      %800 = vmatpush1.msra.mxu0 0.0
      %801 = vmatprep.subr.mxu0 0.0
      %802 = vmatpush1.msra.mxu0 0.0
      %803 = vmatprep.subr.mxu0 0.0
      %804 = vmatpush1.msra.mxu0 0.0
      %805 = vmatprep.subr.mxu0 0.0
      %806 = vmatpush1.msra.mxu0 0.0
      %807 = vmatprep.subr.mxu0 0.0
      %808 = vmatpush1.msra.mxu0 0.0
      %809 = vmatprep.subr.mxu0 0.0
      %810 = vmatpush1.msra.mxu0 0.0
      %811 = vmatprep.subr.mxu0 0.0
      %812 = vmatpush1.msra.mxu0 0.0
      %813 = vmatprep.subr.mxu0 0.0
      %814 = vmatpush1.msra.mxu0 0.0
      %815 = vmatprep.subr.mxu0 0.0
      %816 = vmatpush1.msra.mxu0 0.0
      %817 = vmatprep.subr.mxu0 0.0
      %818 = vmatpush1.msra.mxu0 0.0
      %819 = vmatprep.subr.mxu0 0.0
      %820 = vmatpush1.msra.mxu0 0.0
      %821 = vmatprep.subr.mxu0 0.0
      %822 = vmatpush1.msra.mxu0 0.0
      %v823 = vand.u32 %v396, 4294901760
      %824 = vmatprep.subr.mxu0 %v823
      %v825 = vand.u32 %v395, 4294901760
      %826 = vmatpush1.msra.mxu0 %v825
      %827 = vmatprep.subr.mxu0 0.0
      %828 = vmatpush2.msra.mxu0 0.0
      %829 = vmatprep.subr.mxu0 0.0
      %830 = vmatpush2.msra.mxu0 0.0
      %831 = vmatprep.subr.mxu0 0.0
      %832 = vmatpush2.msra.mxu0 0.0
      %833 = vmatprep.subr.mxu0 0.0
      %834 = vmatpush2.msra.mxu0 0.0
      %835 = vmatprep.subr.mxu0 0.0
      %836 = vmatpush2.msra.mxu0 0.0
      %837 = vmatprep.subr.mxu0 0.0
      %838 = vmatpush2.msra.mxu0 0.0
      %839 = vmatprep.subr.mxu0 0.0
      %840 = vmatpush2.msra.mxu0 0.0
      %841 = vmatprep.subr.mxu0 0.0
      %842 = vmatpush2.msra.mxu0 0.0
      %843 = vmatprep.subr.mxu0 0.0
      %844 = vmatpush2.msra.mxu0 0.0
      %845 = vmatprep.subr.mxu0 0.0
      %846 = vmatpush2.msra.mxu0 0.0
      %847 = vmatprep.subr.mxu0 0.0
      %848 = vmatpush2.msra.mxu0 0.0
      %849 = vmatprep.subr.mxu0 0.0
      %850 = vmatpush2.msra.mxu0 0.0
      %851 = vmatprep.subr.mxu0 0.0
      %852 = vmatpush2.msra.mxu0 0.0
      %853 = vmatprep.subr.mxu0 0.0
      %854 = vmatpush2.msra.mxu0 0.0
      %855 = vmatprep.subr.mxu0 0.0
      %856 = vmatpush2.msra.mxu0 0.0
      %857 = vmatprep.subr.mxu0 0.0
      %858 = vmatpush2.msra.mxu0 0.0
      %859 = vmatprep.mubr.f32.mxu0 0.0
      %v860 = vand.u32 %v400, 4294901760
      %861 = vmatmul.mubr.f32.gmra.mxu0 %v860
      %v862 = vpop.f32.mrf.mxu0
      %v863 = vadd.f32 %v789, %v862
      %v864 = vpop.f32.mrf.mxu0
      %v865 = vadd.f32 %v791, %v864
      %866 = vdwg.mxu0
      %v867 = vmul.f32 %v863, %v863
      %v868 = vmul.f32 %v865, %v865
      %s869 = scalar_lea.vmem %s349, 8
      %v870 = vld [vmem:[%s869] sm:$0xff]
      %v872 = vsel %vm398, %v870, 0
      %874 = vmatprep.subr.mxu0 0.0
      %875 = vmatpush1.msra.mxu0 0.0
      %876 = vmatprep.subr.mxu0 0.0
      %877 = vmatpush1.msra.mxu0 0.0
      %878 = vmatprep.subr.mxu0 0.0
      %879 = vmatpush1.msra.mxu0 0.0
      %880 = vmatprep.subr.mxu0 0.0
      %881 = vmatpush1.msra.mxu0 0.0
      %882 = vmatprep.subr.mxu0 0.0
      %883 = vmatpush1.msra.mxu0 0.0
      %884 = vmatprep.subr.mxu0 0.0
      %885 = vmatpush1.msra.mxu0 0.0
      %886 = vmatprep.subr.mxu0 0.0
      %887 = vmatpush1.msra.mxu0 0.0
      %888 = vmatprep.subr.mxu0 0.0
      %889 = vmatpush1.msra.mxu0 0.0
      %890 = vmatprep.subr.mxu0 0.0
      %891 = vmatpush1.msra.mxu0 0.0
      %892 = vmatprep.subr.mxu0 0.0
      %893 = vmatpush1.msra.mxu0 0.0
      %894 = vmatprep.subr.mxu0 0.0
      %895 = vmatpush1.msra.mxu0 0.0
      %896 = vmatprep.subr.mxu0 0.0
      %897 = vmatpush1.msra.mxu0 0.0
      %898 = vmatprep.subr.mxu0 0.0
      %899 = vmatpush1.msra.mxu0 0.0
      %900 = vmatprep.subr.mxu0 0.0
      %901 = vmatpush1.msra.mxu0 0.0
      %902 = vmatprep.subr.mxu0 0.0
      %903 = vmatpush1.msra.mxu0 0.0
      %v904 = vand.u32 %v396, 4294901760
      %905 = vmatprep.subr.mxu0 %v904
      %v906 = vand.u32 %v395, 4294901760
      %907 = vmatpush1.msra.mxu0 %v906
      %908 = vmatprep.subr.mxu0 0.0
      %909 = vmatpush2.msra.mxu0 0.0
      %910 = vmatprep.subr.mxu0 0.0
      %911 = vmatpush2.msra.mxu0 0.0
      %912 = vmatprep.subr.mxu0 0.0
      %913 = vmatpush2.msra.mxu0 0.0
      %914 = vmatprep.subr.mxu0 0.0
      %915 = vmatpush2.msra.mxu0 0.0
      %916 = vmatprep.subr.mxu0 0.0
      %917 = vmatpush2.msra.mxu0 0.0
      %918 = vmatprep.subr.mxu0 0.0
      %919 = vmatpush2.msra.mxu0 0.0
      %920 = vmatprep.subr.mxu0 0.0
      %921 = vmatpush2.msra.mxu0 0.0
      %922 = vmatprep.subr.mxu0 0.0
      %923 = vmatpush2.msra.mxu0 0.0
      %924 = vmatprep.subr.mxu0 0.0
      %925 = vmatpush2.msra.mxu0 0.0
      %926 = vmatprep.subr.mxu0 0.0
      %927 = vmatpush2.msra.mxu0 0.0
      %928 = vmatprep.subr.mxu0 0.0
      %929 = vmatpush2.msra.mxu0 0.0
      %930 = vmatprep.subr.mxu0 0.0
      %931 = vmatpush2.msra.mxu0 0.0
      %932 = vmatprep.subr.mxu0 0.0
      %933 = vmatpush2.msra.mxu0 0.0
      %934 = vmatprep.subr.mxu0 0.0
      %935 = vmatpush2.msra.mxu0 0.0
      %936 = vmatprep.subr.mxu0 0.0
      %937 = vmatpush2.msra.mxu0 0.0
      %938 = vmatprep.subr.mxu0 0.0
      %939 = vmatpush2.msra.mxu0 0.0
      %940 = vmatprep.mubr.f32.mxu0 0.0
      %v941 = vand.u32 %v872, 4294901760
      %v942 = vsub.f32 %v872, %v941
      %v943 = vand.u32 %v942, 4294901760
      %v944 = vsub.f32 %v942, %v943
      %v945 = vand.u32 %v944, 4294901760
      %946 = vmatmul.mubr.f32.gmra.mxu0 %v945
      %v947 = vpop.f32.mrf.mxu0
      %v948 = vadd.f32 0.0, %v947
      %v949 = vpop.f32.mrf.mxu0
      %v950 = vadd.f32 0.0, %v949
      %951 = vdwg.mxu0
      %952 = vmatprep.subr.mxu0 0.0
      %953 = vmatpush1.msra.mxu0 0.0
      %954 = vmatprep.subr.mxu0 0.0
      %955 = vmatpush1.msra.mxu0 0.0
      %956 = vmatprep.subr.mxu0 0.0
      %957 = vmatpush1.msra.mxu0 0.0
      %958 = vmatprep.subr.mxu0 0.0
      %959 = vmatpush1.msra.mxu0 0.0
      %960 = vmatprep.subr.mxu0 0.0
      %961 = vmatpush1.msra.mxu0 0.0
      %962 = vmatprep.subr.mxu0 0.0
      %963 = vmatpush1.msra.mxu0 0.0
      %964 = vmatprep.subr.mxu0 0.0
      %965 = vmatpush1.msra.mxu0 0.0
      %966 = vmatprep.subr.mxu0 0.0
      %967 = vmatpush1.msra.mxu0 0.0
      %968 = vmatprep.subr.mxu0 0.0
      %969 = vmatpush1.msra.mxu0 0.0
      %970 = vmatprep.subr.mxu0 0.0
      %971 = vmatpush1.msra.mxu0 0.0
      %972 = vmatprep.subr.mxu0 0.0
      %973 = vmatpush1.msra.mxu0 0.0
      %974 = vmatprep.subr.mxu0 0.0
      %975 = vmatpush1.msra.mxu0 0.0
      %976 = vmatprep.subr.mxu0 0.0
      %977 = vmatpush1.msra.mxu0 0.0
      %978 = vmatprep.subr.mxu0 0.0
      %979 = vmatpush1.msra.mxu0 0.0
      %980 = vmatprep.subr.mxu0 0.0
      %981 = vmatpush1.msra.mxu0 0.0
      %v982 = vand.u32 %v396, 4294901760
      %v983 = vsub.f32 %v396, %v982
      %v984 = vand.u32 %v983, 4294901760
      %v985 = vsub.f32 %v983, %v984
      %v986 = vand.u32 %v985, 4294901760
      %987 = vmatprep.subr.mxu0 %v986
      %v988 = vand.u32 %v395, 4294901760
      %v989 = vsub.f32 %v395, %v988
      %v990 = vand.u32 %v989, 4294901760
      %v991 = vsub.f32 %v989, %v990
      %v992 = vand.u32 %v991, 4294901760
      %993 = vmatpush1.msra.mxu0 %v992
      %994 = vmatprep.subr.mxu0 0.0
      %995 = vmatpush2.msra.mxu0 0.0
      %996 = vmatprep.subr.mxu0 0.0
      %997 = vmatpush2.msra.mxu0 0.0
      %998 = vmatprep.subr.mxu0 0.0
      %999 = vmatpush2.msra.mxu0 0.0
      %1000 = vmatprep.subr.mxu0 0.0
      %1001 = vmatpush2.msra.mxu0 0.0
      %1002 = vmatprep.subr.mxu0 0.0
      %1003 = vmatpush2.msra.mxu0 0.0
      %1004 = vmatprep.subr.mxu0 0.0
      %1005 = vmatpush2.msra.mxu0 0.0
      %1006 = vmatprep.subr.mxu0 0.0
      %1007 = vmatpush2.msra.mxu0 0.0
      %1008 = vmatprep.subr.mxu0 0.0
      %1009 = vmatpush2.msra.mxu0 0.0
      %1010 = vmatprep.subr.mxu0 0.0
      %1011 = vmatpush2.msra.mxu0 0.0
      %1012 = vmatprep.subr.mxu0 0.0
      %1013 = vmatpush2.msra.mxu0 0.0
      %1014 = vmatprep.subr.mxu0 0.0
      %1015 = vmatpush2.msra.mxu0 0.0
      %1016 = vmatprep.subr.mxu0 0.0
      %1017 = vmatpush2.msra.mxu0 0.0
      %1018 = vmatprep.subr.mxu0 0.0
      %1019 = vmatpush2.msra.mxu0 0.0
      %1020 = vmatprep.subr.mxu0 0.0
      %1021 = vmatpush2.msra.mxu0 0.0
      %1022 = vmatprep.subr.mxu0 0.0
      %1023 = vmatpush2.msra.mxu0 0.0
      %1024 = vmatprep.subr.mxu0 0.0
      %1025 = vmatpush2.msra.mxu0 0.0
      %1026 = vmatprep.mubr.f32.mxu0 0.0
      %v1027 = vand.u32 %v872, 4294901760
      %1028 = vmatmul.mubr.f32.gmra.mxu0 %v1027
      %v1029 = vpop.f32.mrf.mxu0
      %v1030 = vadd.f32 %v948, %v1029
      %v1031 = vpop.f32.mrf.mxu0
      %v1032 = vadd.f32 %v950, %v1031
      %1033 = vdwg.mxu0
      %1034 = vmatprep.subr.mxu0 0.0
      %1035 = vmatpush1.msra.mxu0 0.0
      %1036 = vmatprep.subr.mxu0 0.0
      %1037 = vmatpush1.msra.mxu0 0.0
      %1038 = vmatprep.subr.mxu0 0.0
      %1039 = vmatpush1.msra.mxu0 0.0
      %1040 = vmatprep.subr.mxu0 0.0
      %1041 = vmatpush1.msra.mxu0 0.0
      %1042 = vmatprep.subr.mxu0 0.0
      %1043 = vmatpush1.msra.mxu0 0.0
      %1044 = vmatprep.subr.mxu0 0.0
      %1045 = vmatpush1.msra.mxu0 0.0
      %1046 = vmatprep.subr.mxu0 0.0
      %1047 = vmatpush1.msra.mxu0 0.0
      %1048 = vmatprep.subr.mxu0 0.0
      %1049 = vmatpush1.msra.mxu0 0.0
      %1050 = vmatprep.subr.mxu0 0.0
      %1051 = vmatpush1.msra.mxu0 0.0
      %1052 = vmatprep.subr.mxu0 0.0
      %1053 = vmatpush1.msra.mxu0 0.0
      %1054 = vmatprep.subr.mxu0 0.0
      %1055 = vmatpush1.msra.mxu0 0.0
      %1056 = vmatprep.subr.mxu0 0.0
      %1057 = vmatpush1.msra.mxu0 0.0
      %1058 = vmatprep.subr.mxu0 0.0
      %1059 = vmatpush1.msra.mxu0 0.0
      %1060 = vmatprep.subr.mxu0 0.0
      %1061 = vmatpush1.msra.mxu0 0.0
      %1062 = vmatprep.subr.mxu0 0.0
      %1063 = vmatpush1.msra.mxu0 0.0
      %v1064 = vand.u32 %v396, 4294901760
      %v1065 = vsub.f32 %v396, %v1064
      %1066 = vmatprep.subr.mxu0 %v1065
      %v1067 = vand.u32 %v395, 4294901760
      %v1068 = vsub.f32 %v395, %v1067
      %1069 = vmatpush1.msra.mxu0 %v1068
      %1070 = vmatprep.subr.mxu0 0.0
      %1071 = vmatpush2.msra.mxu0 0.0
      %1072 = vmatprep.subr.mxu0 0.0
      %1073 = vmatpush2.msra.mxu0 0.0
      %1074 = vmatprep.subr.mxu0 0.0
      %1075 = vmatpush2.msra.mxu0 0.0
      %1076 = vmatprep.subr.mxu0 0.0
      %1077 = vmatpush2.msra.mxu0 0.0
      %1078 = vmatprep.subr.mxu0 0.0
      %1079 = vmatpush2.msra.mxu0 0.0
      %1080 = vmatprep.subr.mxu0 0.0
      %1081 = vmatpush2.msra.mxu0 0.0
      %1082 = vmatprep.subr.mxu0 0.0
      %1083 = vmatpush2.msra.mxu0 0.0
      %1084 = vmatprep.subr.mxu0 0.0
      %1085 = vmatpush2.msra.mxu0 0.0
      %1086 = vmatprep.subr.mxu0 0.0
      %1087 = vmatpush2.msra.mxu0 0.0
      %1088 = vmatprep.subr.mxu0 0.0
      %1089 = vmatpush2.msra.mxu0 0.0
      %1090 = vmatprep.subr.mxu0 0.0
      %1091 = vmatpush2.msra.mxu0 0.0
      %1092 = vmatprep.subr.mxu0 0.0
      %1093 = vmatpush2.msra.mxu0 0.0
      %1094 = vmatprep.subr.mxu0 0.0
      %1095 = vmatpush2.msra.mxu0 0.0
      %1096 = vmatprep.subr.mxu0 0.0
      %1097 = vmatpush2.msra.mxu0 0.0
      %1098 = vmatprep.subr.mxu0 0.0
      %1099 = vmatpush2.msra.mxu0 0.0
      %1100 = vmatprep.subr.mxu0 0.0
      %1101 = vmatpush2.msra.mxu0 0.0
      %1102 = vmatprep.mubr.f32.mxu0 0.0
      %v1103 = vand.u32 %v872, 4294901760
      %v1104 = vsub.f32 %v872, %v1103
      %1105 = vmatmul.mubr.f32.gmra.mxu0 %v1104
      %v1106 = vpop.f32.mrf.mxu0
      %v1107 = vadd.f32 %v1030, %v1106
      %v1108 = vpop.f32.mrf.mxu0
      %v1109 = vadd.f32 %v1032, %v1108
      %1110 = vdwg.mxu0
      %1111 = vmatprep.subr.mxu0 0.0
      %1112 = vmatpush1.msra.mxu0 0.0
      %1113 = vmatprep.subr.mxu0 0.0
      %1114 = vmatpush1.msra.mxu0 0.0
      %1115 = vmatprep.subr.mxu0 0.0
      %1116 = vmatpush1.msra.mxu0 0.0
      %1117 = vmatprep.subr.mxu0 0.0
      %1118 = vmatpush1.msra.mxu0 0.0
      %1119 = vmatprep.subr.mxu0 0.0
      %1120 = vmatpush1.msra.mxu0 0.0
      %1121 = vmatprep.subr.mxu0 0.0
      %1122 = vmatpush1.msra.mxu0 0.0
      %1123 = vmatprep.subr.mxu0 0.0
      %1124 = vmatpush1.msra.mxu0 0.0
      %1125 = vmatprep.subr.mxu0 0.0
      %1126 = vmatpush1.msra.mxu0 0.0
      %1127 = vmatprep.subr.mxu0 0.0
      %1128 = vmatpush1.msra.mxu0 0.0
      %1129 = vmatprep.subr.mxu0 0.0
      %1130 = vmatpush1.msra.mxu0 0.0
      %1131 = vmatprep.subr.mxu0 0.0
      %1132 = vmatpush1.msra.mxu0 0.0
      %1133 = vmatprep.subr.mxu0 0.0
      %1134 = vmatpush1.msra.mxu0 0.0
      %1135 = vmatprep.subr.mxu0 0.0
      %1136 = vmatpush1.msra.mxu0 0.0
      %1137 = vmatprep.subr.mxu0 0.0
      %1138 = vmatpush1.msra.mxu0 0.0
      %1139 = vmatprep.subr.mxu0 0.0
      %1140 = vmatpush1.msra.mxu0 0.0
      %v1141 = vand.u32 %v396, 4294901760
      %1142 = vmatprep.subr.mxu0 %v1141
      %v1143 = vand.u32 %v395, 4294901760
      %1144 = vmatpush1.msra.mxu0 %v1143
      %1145 = vmatprep.subr.mxu0 0.0
      %1146 = vmatpush2.msra.mxu0 0.0
      %1147 = vmatprep.subr.mxu0 0.0
      %1148 = vmatpush2.msra.mxu0 0.0
      %1149 = vmatprep.subr.mxu0 0.0
      %1150 = vmatpush2.msra.mxu0 0.0
      %1151 = vmatprep.subr.mxu0 0.0
      %1152 = vmatpush2.msra.mxu0 0.0
      %1153 = vmatprep.subr.mxu0 0.0
      %1154 = vmatpush2.msra.mxu0 0.0
      %1155 = vmatprep.subr.mxu0 0.0
      %1156 = vmatpush2.msra.mxu0 0.0
      %1157 = vmatprep.subr.mxu0 0.0
      %1158 = vmatpush2.msra.mxu0 0.0
      %1159 = vmatprep.subr.mxu0 0.0
      %1160 = vmatpush2.msra.mxu0 0.0
      %1161 = vmatprep.subr.mxu0 0.0
      %1162 = vmatpush2.msra.mxu0 0.0
      %1163 = vmatprep.subr.mxu0 0.0
      %1164 = vmatpush2.msra.mxu0 0.0
      %1165 = vmatprep.subr.mxu0 0.0
      %1166 = vmatpush2.msra.mxu0 0.0
      %1167 = vmatprep.subr.mxu0 0.0
      %1168 = vmatpush2.msra.mxu0 0.0
      %1169 = vmatprep.subr.mxu0 0.0
      %1170 = vmatpush2.msra.mxu0 0.0
      %1171 = vmatprep.subr.mxu0 0.0
      %1172 = vmatpush2.msra.mxu0 0.0
      %1173 = vmatprep.subr.mxu0 0.0
      %1174 = vmatpush2.msra.mxu0 0.0
      %1175 = vmatprep.subr.mxu0 0.0
      %1176 = vmatpush2.msra.mxu0 0.0
      %1177 = vmatprep.mubr.f32.mxu0 0.0
      %v1178 = vand.u32 %v872, 4294901760
      %v1179 = vsub.f32 %v872, %v1178
      %v1180 = vand.u32 %v1179, 4294901760
      %1181 = vmatmul.mubr.f32.gmra.mxu0 %v1180
      %v1182 = vpop.f32.mrf.mxu0
      %v1183 = vadd.f32 %v1107, %v1182
      %v1184 = vpop.f32.mrf.mxu0
      %v1185 = vadd.f32 %v1109, %v1184
      %1186 = vdwg.mxu0
      %1187 = vmatprep.subr.mxu0 0.0
      %1188 = vmatpush1.msra.mxu0 0.0
      %1189 = vmatprep.subr.mxu0 0.0
      %1190 = vmatpush1.msra.mxu0 0.0
      %1191 = vmatprep.subr.mxu0 0.0
      %1192 = vmatpush1.msra.mxu0 0.0
      %1193 = vmatprep.subr.mxu0 0.0
      %1194 = vmatpush1.msra.mxu0 0.0
      %1195 = vmatprep.subr.mxu0 0.0
      %1196 = vmatpush1.msra.mxu0 0.0
      %1197 = vmatprep.subr.mxu0 0.0
      %1198 = vmatpush1.msra.mxu0 0.0
      %1199 = vmatprep.subr.mxu0 0.0
      %1200 = vmatpush1.msra.mxu0 0.0
      %1201 = vmatprep.subr.mxu0 0.0
      %1202 = vmatpush1.msra.mxu0 0.0
      %1203 = vmatprep.subr.mxu0 0.0
      %1204 = vmatpush1.msra.mxu0 0.0
      %1205 = vmatprep.subr.mxu0 0.0
      %1206 = vmatpush1.msra.mxu0 0.0
      %1207 = vmatprep.subr.mxu0 0.0
      %1208 = vmatpush1.msra.mxu0 0.0
      %1209 = vmatprep.subr.mxu0 0.0
      %1210 = vmatpush1.msra.mxu0 0.0
      %1211 = vmatprep.subr.mxu0 0.0
      %1212 = vmatpush1.msra.mxu0 0.0
      %1213 = vmatprep.subr.mxu0 0.0
      %1214 = vmatpush1.msra.mxu0 0.0
      %1215 = vmatprep.subr.mxu0 0.0
      %1216 = vmatpush1.msra.mxu0 0.0
      %v1217 = vand.u32 %v396, 4294901760
      %v1218 = vsub.f32 %v396, %v1217
      %v1219 = vand.u32 %v1218, 4294901760
      %1220 = vmatprep.subr.mxu0 %v1219
      %v1221 = vand.u32 %v395, 4294901760
      %v1222 = vsub.f32 %v395, %v1221
      %v1223 = vand.u32 %v1222, 4294901760
      %1224 = vmatpush1.msra.mxu0 %v1223
      %1225 = vmatprep.subr.mxu0 0.0
      %1226 = vmatpush2.msra.mxu0 0.0
      %1227 = vmatprep.subr.mxu0 0.0
      %1228 = vmatpush2.msra.mxu0 0.0
      %1229 = vmatprep.subr.mxu0 0.0
      %1230 = vmatpush2.msra.mxu0 0.0
      %1231 = vmatprep.subr.mxu0 0.0
      %1232 = vmatpush2.msra.mxu0 0.0
      %1233 = vmatprep.subr.mxu0 0.0
      %1234 = vmatpush2.msra.mxu0 0.0
      %1235 = vmatprep.subr.mxu0 0.0
      %1236 = vmatpush2.msra.mxu0 0.0
      %1237 = vmatprep.subr.mxu0 0.0
      %1238 = vmatpush2.msra.mxu0 0.0
      %1239 = vmatprep.subr.mxu0 0.0
      %1240 = vmatpush2.msra.mxu0 0.0
      %1241 = vmatprep.subr.mxu0 0.0
      %1242 = vmatpush2.msra.mxu0 0.0
      %1243 = vmatprep.subr.mxu0 0.0
      %1244 = vmatpush2.msra.mxu0 0.0
      %1245 = vmatprep.subr.mxu0 0.0
      %1246 = vmatpush2.msra.mxu0 0.0
      %1247 = vmatprep.subr.mxu0 0.0
      %1248 = vmatpush2.msra.mxu0 0.0
      %1249 = vmatprep.subr.mxu0 0.0
      %1250 = vmatpush2.msra.mxu0 0.0
      %1251 = vmatprep.subr.mxu0 0.0
      %1252 = vmatpush2.msra.mxu0 0.0
      %1253 = vmatprep.subr.mxu0 0.0
      %1254 = vmatpush2.msra.mxu0 0.0
      %1255 = vmatprep.subr.mxu0 0.0
      %1256 = vmatpush2.msra.mxu0 0.0
      %1257 = vmatprep.mubr.f32.mxu0 0.0
      %v1258 = vand.u32 %v872, 4294901760
      %1259 = vmatmul.mubr.f32.gmra.mxu0 %v1258
      %v1260 = vpop.f32.mrf.mxu0
      %v1261 = vadd.f32 %v1183, %v1260
      %v1262 = vpop.f32.mrf.mxu0
      %v1263 = vadd.f32 %v1185, %v1262
      %1264 = vdwg.mxu0
      %1265 = vmatprep.subr.mxu0 0.0
      %1266 = vmatpush1.msra.mxu0 0.0
      %1267 = vmatprep.subr.mxu0 0.0
      %1268 = vmatpush1.msra.mxu0 0.0
      %1269 = vmatprep.subr.mxu0 0.0
      %1270 = vmatpush1.msra.mxu0 0.0
      %1271 = vmatprep.subr.mxu0 0.0
      %1272 = vmatpush1.msra.mxu0 0.0
      %1273 = vmatprep.subr.mxu0 0.0
      %1274 = vmatpush1.msra.mxu0 0.0
      %1275 = vmatprep.subr.mxu0 0.0
      %1276 = vmatpush1.msra.mxu0 0.0
      %1277 = vmatprep.subr.mxu0 0.0
      %1278 = vmatpush1.msra.mxu0 0.0
      %1279 = vmatprep.subr.mxu0 0.0
      %1280 = vmatpush1.msra.mxu0 0.0
      %1281 = vmatprep.subr.mxu0 0.0
      %1282 = vmatpush1.msra.mxu0 0.0
      %1283 = vmatprep.subr.mxu0 0.0
      %1284 = vmatpush1.msra.mxu0 0.0
      %1285 = vmatprep.subr.mxu0 0.0
      %1286 = vmatpush1.msra.mxu0 0.0
      %1287 = vmatprep.subr.mxu0 0.0
      %1288 = vmatpush1.msra.mxu0 0.0
      %1289 = vmatprep.subr.mxu0 0.0
      %1290 = vmatpush1.msra.mxu0 0.0
      %1291 = vmatprep.subr.mxu0 0.0
      %1292 = vmatpush1.msra.mxu0 0.0
      %1293 = vmatprep.subr.mxu0 0.0
      %1294 = vmatpush1.msra.mxu0 0.0
      %v1295 = vand.u32 %v396, 4294901760
      %1296 = vmatprep.subr.mxu0 %v1295
      %v1297 = vand.u32 %v395, 4294901760
      %1298 = vmatpush1.msra.mxu0 %v1297
      %1299 = vmatprep.subr.mxu0 0.0
      %1300 = vmatpush2.msra.mxu0 0.0
      %1301 = vmatprep.subr.mxu0 0.0
      %1302 = vmatpush2.msra.mxu0 0.0
      %1303 = vmatprep.subr.mxu0 0.0
      %1304 = vmatpush2.msra.mxu0 0.0
      %1305 = vmatprep.subr.mxu0 0.0
      %1306 = vmatpush2.msra.mxu0 0.0
      %1307 = vmatprep.subr.mxu0 0.0
      %1308 = vmatpush2.msra.mxu0 0.0
      %1309 = vmatprep.subr.mxu0 0.0
      %1310 = vmatpush2.msra.mxu0 0.0
      %1311 = vmatprep.subr.mxu0 0.0
      %1312 = vmatpush2.msra.mxu0 0.0
      %1313 = vmatprep.subr.mxu0 0.0
      %1314 = vmatpush2.msra.mxu0 0.0
      %1315 = vmatprep.subr.mxu0 0.0
      %1316 = vmatpush2.msra.mxu0 0.0
      %1317 = vmatprep.subr.mxu0 0.0
      %1318 = vmatpush2.msra.mxu0 0.0
      %1319 = vmatprep.subr.mxu0 0.0
      %1320 = vmatpush2.msra.mxu0 0.0
      %1321 = vmatprep.subr.mxu0 0.0
      %1322 = vmatpush2.msra.mxu0 0.0
      %1323 = vmatprep.subr.mxu0 0.0
      %1324 = vmatpush2.msra.mxu0 0.0
      %1325 = vmatprep.subr.mxu0 0.0
      %1326 = vmatpush2.msra.mxu0 0.0
      %1327 = vmatprep.subr.mxu0 0.0
      %1328 = vmatpush2.msra.mxu0 0.0
      %1329 = vmatprep.subr.mxu0 0.0
      %1330 = vmatpush2.msra.mxu0 0.0
      %1331 = vmatprep.mubr.f32.mxu0 0.0
      %v1332 = vand.u32 %v872, 4294901760
      %1333 = vmatmul.mubr.f32.gmra.mxu0 %v1332
      %v1334 = vpop.f32.mrf.mxu0
      %v1335 = vadd.f32 %v1261, %v1334
      %v1336 = vpop.f32.mrf.mxu0
      %v1337 = vadd.f32 %v1263, %v1336
      %1338 = vdwg.mxu0
      %v1339 = vmul.f32 %v1335, %v1335
      %v1340 = vmul.f32 %v1337, %v1337
      %v1341 = vadd.f32 %v867, %v1339
      %v1342 = vadd.f32 %v868, %v1340
      %s1343 = scalar_lea.vmem %s349, 16
      %v1344 = vld [vmem:[%s1343] sm:$0xff]
      %v1346 = vsel %vm398, %v1344, 0
      %1348 = vmatprep.subr.mxu0 0.0
      %1349 = vmatpush1.msra.mxu0 0.0
      %1350 = vmatprep.subr.mxu0 0.0
      %1351 = vmatpush1.msra.mxu0 0.0
      %1352 = vmatprep.subr.mxu0 0.0
      %1353 = vmatpush1.msra.mxu0 0.0
      %1354 = vmatprep.subr.mxu0 0.0
      %1355 = vmatpush1.msra.mxu0 0.0
      %1356 = vmatprep.subr.mxu0 0.0
      %1357 = vmatpush1.msra.mxu0 0.0
      %1358 = vmatprep.subr.mxu0 0.0
      %1359 = vmatpush1.msra.mxu0 0.0
      %1360 = vmatprep.subr.mxu0 0.0
      %1361 = vmatpush1.msra.mxu0 0.0
      %1362 = vmatprep.subr.mxu0 0.0
      %1363 = vmatpush1.msra.mxu0 0.0
      %1364 = vmatprep.subr.mxu0 0.0
      %1365 = vmatpush1.msra.mxu0 0.0
      %1366 = vmatprep.subr.mxu0 0.0
      %1367 = vmatpush1.msra.mxu0 0.0
      %1368 = vmatprep.subr.mxu0 0.0
      %1369 = vmatpush1.msra.mxu0 0.0
      %1370 = vmatprep.subr.mxu0 0.0
      %1371 = vmatpush1.msra.mxu0 0.0
      %1372 = vmatprep.subr.mxu0 0.0
      %1373 = vmatpush1.msra.mxu0 0.0
      %1374 = vmatprep.subr.mxu0 0.0
      %1375 = vmatpush1.msra.mxu0 0.0
      %1376 = vmatprep.subr.mxu0 0.0
      %1377 = vmatpush1.msra.mxu0 0.0
      %v1378 = vand.u32 %v396, 4294901760
      %1379 = vmatprep.subr.mxu0 %v1378
      %v1380 = vand.u32 %v395, 4294901760
      %1381 = vmatpush1.msra.mxu0 %v1380
      %1382 = vmatprep.subr.mxu0 0.0
      %1383 = vmatpush2.msra.mxu0 0.0
      %1384 = vmatprep.subr.mxu0 0.0
      %1385 = vmatpush2.msra.mxu0 0.0
      %1386 = vmatprep.subr.mxu0 0.0
      %1387 = vmatpush2.msra.mxu0 0.0
      %1388 = vmatprep.subr.mxu0 0.0
      %1389 = vmatpush2.msra.mxu0 0.0
      %1390 = vmatprep.subr.mxu0 0.0
      %1391 = vmatpush2.msra.mxu0 0.0
      %1392 = vmatprep.subr.mxu0 0.0
      %1393 = vmatpush2.msra.mxu0 0.0
      %1394 = vmatprep.subr.mxu0 0.0
      %1395 = vmatpush2.msra.mxu0 0.0
      %1396 = vmatprep.subr.mxu0 0.0
      %1397 = vmatpush2.msra.mxu0 0.0
      %1398 = vmatprep.subr.mxu0 0.0
      %1399 = vmatpush2.msra.mxu0 0.0
      %1400 = vmatprep.subr.mxu0 0.0
      %1401 = vmatpush2.msra.mxu0 0.0
      %1402 = vmatprep.subr.mxu0 0.0
      %1403 = vmatpush2.msra.mxu0 0.0
      %1404 = vmatprep.subr.mxu0 0.0
      %1405 = vmatpush2.msra.mxu0 0.0
      %1406 = vmatprep.subr.mxu0 0.0
      %1407 = vmatpush2.msra.mxu0 0.0
      %1408 = vmatprep.subr.mxu0 0.0
      %1409 = vmatpush2.msra.mxu0 0.0
      %1410 = vmatprep.subr.mxu0 0.0
      %1411 = vmatpush2.msra.mxu0 0.0
      %1412 = vmatprep.subr.mxu0 0.0
      %1413 = vmatpush2.msra.mxu0 0.0
      %1414 = vmatprep.mubr.f32.mxu0 0.0
      %v1415 = vand.u32 %v1346, 4294901760
      %v1416 = vsub.f32 %v1346, %v1415
      %v1417 = vand.u32 %v1416, 4294901760
      %v1418 = vsub.f32 %v1416, %v1417
      %v1419 = vand.u32 %v1418, 4294901760
      %1420 = vmatmul.mubr.f32.gmra.mxu0 %v1419
      %v1421 = vpop.f32.mrf.mxu0
      %v1422 = vadd.f32 0.0, %v1421
      %v1423 = vpop.f32.mrf.mxu0
      %v1424 = vadd.f32 0.0, %v1423
      %1425 = vdwg.mxu0
      %1426 = vmatprep.subr.mxu0 0.0
      %1427 = vmatpush1.msra.mxu0 0.0
      %1428 = vmatprep.subr.mxu0 0.0
      %1429 = vmatpush1.msra.mxu0 0.0
      %1430 = vmatprep.subr.mxu0 0.0
      %1431 = vmatpush1.msra.mxu0 0.0
      %1432 = vmatprep.subr.mxu0 0.0
      %1433 = vmatpush1.msra.mxu0 0.0
      %1434 = vmatprep.subr.mxu0 0.0
      %1435 = vmatpush1.msra.mxu0 0.0
      %1436 = vmatprep.subr.mxu0 0.0
      %1437 = vmatpush1.msra.mxu0 0.0
      %1438 = vmatprep.subr.mxu0 0.0
      %1439 = vmatpush1.msra.mxu0 0.0
      %1440 = vmatprep.subr.mxu0 0.0
      %1441 = vmatpush1.msra.mxu0 0.0
      %1442 = vmatprep.subr.mxu0 0.0
      %1443 = vmatpush1.msra.mxu0 0.0
      %1444 = vmatprep.subr.mxu0 0.0
      %1445 = vmatpush1.msra.mxu0 0.0
      %1446 = vmatprep.subr.mxu0 0.0
      %1447 = vmatpush1.msra.mxu0 0.0
      %1448 = vmatprep.subr.mxu0 0.0
      %1449 = vmatpush1.msra.mxu0 0.0
      %1450 = vmatprep.subr.mxu0 0.0
      %1451 = vmatpush1.msra.mxu0 0.0
      %1452 = vmatprep.subr.mxu0 0.0
      %1453 = vmatpush1.msra.mxu0 0.0
      %1454 = vmatprep.subr.mxu0 0.0
      %1455 = vmatpush1.msra.mxu0 0.0
      %v1456 = vand.u32 %v396, 4294901760
      %v1457 = vsub.f32 %v396, %v1456
      %v1458 = vand.u32 %v1457, 4294901760
      %v1459 = vsub.f32 %v1457, %v1458
      %v1460 = vand.u32 %v1459, 4294901760
      %1461 = vmatprep.subr.mxu0 %v1460
      %v1462 = vand.u32 %v395, 4294901760
      %v1463 = vsub.f32 %v395, %v1462
      %v1464 = vand.u32 %v1463, 4294901760
      %v1465 = vsub.f32 %v1463, %v1464
      %v1466 = vand.u32 %v1465, 4294901760
      %1467 = vmatpush1.msra.mxu0 %v1466
      %1468 = vmatprep.subr.mxu0 0.0
      %1469 = vmatpush2.msra.mxu0 0.0
      %1470 = vmatprep.subr.mxu0 0.0
      %1471 = vmatpush2.msra.mxu0 0.0
      %1472 = vmatprep.subr.mxu0 0.0
      %1473 = vmatpush2.msra.mxu0 0.0
      %1474 = vmatprep.subr.mxu0 0.0
      %1475 = vmatpush2.msra.mxu0 0.0
      %1476 = vmatprep.subr.mxu0 0.0
      %1477 = vmatpush2.msra.mxu0 0.0
      %1478 = vmatprep.subr.mxu0 0.0
      %1479 = vmatpush2.msra.mxu0 0.0
      %1480 = vmatprep.subr.mxu0 0.0
      %1481 = vmatpush2.msra.mxu0 0.0
      %1482 = vmatprep.subr.mxu0 0.0
      %1483 = vmatpush2.msra.mxu0 0.0
      %1484 = vmatprep.subr.mxu0 0.0
      %1485 = vmatpush2.msra.mxu0 0.0
      %1486 = vmatprep.subr.mxu0 0.0
      %1487 = vmatpush2.msra.mxu0 0.0
      %1488 = vmatprep.subr.mxu0 0.0
      %1489 = vmatpush2.msra.mxu0 0.0
      %1490 = vmatprep.subr.mxu0 0.0
      %1491 = vmatpush2.msra.mxu0 0.0
      %1492 = vmatprep.subr.mxu0 0.0
      %1493 = vmatpush2.msra.mxu0 0.0
      %1494 = vmatprep.subr.mxu0 0.0
      %1495 = vmatpush2.msra.mxu0 0.0
      %1496 = vmatprep.subr.mxu0 0.0
      %1497 = vmatpush2.msra.mxu0 0.0
      %1498 = vmatprep.subr.mxu0 0.0
      %1499 = vmatpush2.msra.mxu0 0.0
      %1500 = vmatprep.mubr.f32.mxu0 0.0
      %v1501 = vand.u32 %v1346, 4294901760
      %1502 = vmatmul.mubr.f32.gmra.mxu0 %v1501
      %v1503 = vpop.f32.mrf.mxu0
      %v1504 = vadd.f32 %v1422, %v1503
      %v1505 = vpop.f32.mrf.mxu0
      %v1506 = vadd.f32 %v1424, %v1505
      %1507 = vdwg.mxu0
      %1508 = vmatprep.subr.mxu0 0.0
      %1509 = vmatpush1.msra.mxu0 0.0
      %1510 = vmatprep.subr.mxu0 0.0
      %1511 = vmatpush1.msra.mxu0 0.0
      %1512 = vmatprep.subr.mxu0 0.0
      %1513 = vmatpush1.msra.mxu0 0.0
      %1514 = vmatprep.subr.mxu0 0.0
      %1515 = vmatpush1.msra.mxu0 0.0
      %1516 = vmatprep.subr.mxu0 0.0
      %1517 = vmatpush1.msra.mxu0 0.0
      %1518 = vmatprep.subr.mxu0 0.0
      %1519 = vmatpush1.msra.mxu0 0.0
      %1520 = vmatprep.subr.mxu0 0.0
      %1521 = vmatpush1.msra.mxu0 0.0
      %1522 = vmatprep.subr.mxu0 0.0
      %1523 = vmatpush1.msra.mxu0 0.0
      %1524 = vmatprep.subr.mxu0 0.0
      %1525 = vmatpush1.msra.mxu0 0.0
      %1526 = vmatprep.subr.mxu0 0.0
      %1527 = vmatpush1.msra.mxu0 0.0
      %1528 = vmatprep.subr.mxu0 0.0
      %1529 = vmatpush1.msra.mxu0 0.0
      %1530 = vmatprep.subr.mxu0 0.0
      %1531 = vmatpush1.msra.mxu0 0.0
      %1532 = vmatprep.subr.mxu0 0.0
      %1533 = vmatpush1.msra.mxu0 0.0
      %1534 = vmatprep.subr.mxu0 0.0
      %1535 = vmatpush1.msra.mxu0 0.0
      %1536 = vmatprep.subr.mxu0 0.0
      %1537 = vmatpush1.msra.mxu0 0.0
      %v1538 = vand.u32 %v396, 4294901760
      %v1539 = vsub.f32 %v396, %v1538
      %1540 = vmatprep.subr.mxu0 %v1539
      %v1541 = vand.u32 %v395, 4294901760
      %v1542 = vsub.f32 %v395, %v1541
      %1543 = vmatpush1.msra.mxu0 %v1542
      %1544 = vmatprep.subr.mxu0 0.0
      %1545 = vmatpush2.msra.mxu0 0.0
      %1546 = vmatprep.subr.mxu0 0.0
      %1547 = vmatpush2.msra.mxu0 0.0
      %1548 = vmatprep.subr.mxu0 0.0
      %1549 = vmatpush2.msra.mxu0 0.0
      %1550 = vmatprep.subr.mxu0 0.0
      %1551 = vmatpush2.msra.mxu0 0.0
      %1552 = vmatprep.subr.mxu0 0.0
      %1553 = vmatpush2.msra.mxu0 0.0
      %1554 = vmatprep.subr.mxu0 0.0
      %1555 = vmatpush2.msra.mxu0 0.0
      %1556 = vmatprep.subr.mxu0 0.0
      %1557 = vmatpush2.msra.mxu0 0.0
      %1558 = vmatprep.subr.mxu0 0.0
      %1559 = vmatpush2.msra.mxu0 0.0
      %1560 = vmatprep.subr.mxu0 0.0
      %1561 = vmatpush2.msra.mxu0 0.0
      %1562 = vmatprep.subr.mxu0 0.0
      %1563 = vmatpush2.msra.mxu0 0.0
      %1564 = vmatprep.subr.mxu0 0.0
      %1565 = vmatpush2.msra.mxu0 0.0
      %1566 = vmatprep.subr.mxu0 0.0
      %1567 = vmatpush2.msra.mxu0 0.0
      %1568 = vmatprep.subr.mxu0 0.0
      %1569 = vmatpush2.msra.mxu0 0.0
      %1570 = vmatprep.subr.mxu0 0.0
      %1571 = vmatpush2.msra.mxu0 0.0
      %1572 = vmatprep.subr.mxu0 0.0
      %1573 = vmatpush2.msra.mxu0 0.0
      %1574 = vmatprep.subr.mxu0 0.0
      %1575 = vmatpush2.msra.mxu0 0.0
      %1576 = vmatprep.mubr.f32.mxu0 0.0
      %v1577 = vand.u32 %v1346, 4294901760
      %v1578 = vsub.f32 %v1346, %v1577
      %1579 = vmatmul.mubr.f32.gmra.mxu0 %v1578
      %v1580 = vpop.f32.mrf.mxu0
      %v1581 = vadd.f32 %v1504, %v1580
      %v1582 = vpop.f32.mrf.mxu0
      %v1583 = vadd.f32 %v1506, %v1582
      %1584 = vdwg.mxu0
      %1585 = vmatprep.subr.mxu0 0.0
      %1586 = vmatpush1.msra.mxu0 0.0
      %1587 = vmatprep.subr.mxu0 0.0
      %1588 = vmatpush1.msra.mxu0 0.0
      %1589 = vmatprep.subr.mxu0 0.0
      %1590 = vmatpush1.msra.mxu0 0.0
      %1591 = vmatprep.subr.mxu0 0.0
      %1592 = vmatpush1.msra.mxu0 0.0
      %1593 = vmatprep.subr.mxu0 0.0
      %1594 = vmatpush1.msra.mxu0 0.0
      %1595 = vmatprep.subr.mxu0 0.0
      %1596 = vmatpush1.msra.mxu0 0.0
      %1597 = vmatprep.subr.mxu0 0.0
      %1598 = vmatpush1.msra.mxu0 0.0
      %1599 = vmatprep.subr.mxu0 0.0
      %1600 = vmatpush1.msra.mxu0 0.0
      %1601 = vmatprep.subr.mxu0 0.0
      %1602 = vmatpush1.msra.mxu0 0.0
      %1603 = vmatprep.subr.mxu0 0.0
      %1604 = vmatpush1.msra.mxu0 0.0
      %1605 = vmatprep.subr.mxu0 0.0
      %1606 = vmatpush1.msra.mxu0 0.0
      %1607 = vmatprep.subr.mxu0 0.0
      %1608 = vmatpush1.msra.mxu0 0.0
      %1609 = vmatprep.subr.mxu0 0.0
      %1610 = vmatpush1.msra.mxu0 0.0
      %1611 = vmatprep.subr.mxu0 0.0
      %1612 = vmatpush1.msra.mxu0 0.0
      %1613 = vmatprep.subr.mxu0 0.0
      %1614 = vmatpush1.msra.mxu0 0.0
      %v1615 = vand.u32 %v396, 4294901760
      %1616 = vmatprep.subr.mxu0 %v1615
      %v1617 = vand.u32 %v395, 4294901760
      %1618 = vmatpush1.msra.mxu0 %v1617
      %1619 = vmatprep.subr.mxu0 0.0
      %1620 = vmatpush2.msra.mxu0 0.0
      %1621 = vmatprep.subr.mxu0 0.0
      %1622 = vmatpush2.msra.mxu0 0.0
      %1623 = vmatprep.subr.mxu0 0.0
      %1624 = vmatpush2.msra.mxu0 0.0
      %1625 = vmatprep.subr.mxu0 0.0
      %1626 = vmatpush2.msra.mxu0 0.0
      %1627 = vmatprep.subr.mxu0 0.0
      %1628 = vmatpush2.msra.mxu0 0.0
      %1629 = vmatprep.subr.mxu0 0.0
      %1630 = vmatpush2.msra.mxu0 0.0
      %1631 = vmatprep.subr.mxu0 0.0
      %1632 = vmatpush2.msra.mxu0 0.0
      %1633 = vmatprep.subr.mxu0 0.0
      %1634 = vmatpush2.msra.mxu0 0.0
      %1635 = vmatprep.subr.mxu0 0.0
      %1636 = vmatpush2.msra.mxu0 0.0
      %1637 = vmatprep.subr.mxu0 0.0
      %1638 = vmatpush2.msra.mxu0 0.0
      %1639 = vmatprep.subr.mxu0 0.0
      %1640 = vmatpush2.msra.mxu0 0.0
      %1641 = vmatprep.subr.mxu0 0.0
      %1642 = vmatpush2.msra.mxu0 0.0
      %1643 = vmatprep.subr.mxu0 0.0
      %1644 = vmatpush2.msra.mxu0 0.0
      %1645 = vmatprep.subr.mxu0 0.0
      %1646 = vmatpush2.msra.mxu0 0.0
      %1647 = vmatprep.subr.mxu0 0.0
      %1648 = vmatpush2.msra.mxu0 0.0
      %1649 = vmatprep.subr.mxu0 0.0
      %1650 = vmatpush2.msra.mxu0 0.0
      %1651 = vmatprep.mubr.f32.mxu0 0.0
      %v1652 = vand.u32 %v1346, 4294901760
      %v1653 = vsub.f32 %v1346, %v1652
      %v1654 = vand.u32 %v1653, 4294901760
      %1655 = vmatmul.mubr.f32.gmra.mxu0 %v1654
      %v1656 = vpop.f32.mrf.mxu0
      %v1657 = vadd.f32 %v1581, %v1656
      %v1658 = vpop.f32.mrf.mxu0
      %v1659 = vadd.f32 %v1583, %v1658
      %1660 = vdwg.mxu0
      %1661 = vmatprep.subr.mxu0 0.0
      %1662 = vmatpush1.msra.mxu0 0.0
      %1663 = vmatprep.subr.mxu0 0.0
      %1664 = vmatpush1.msra.mxu0 0.0
      %1665 = vmatprep.subr.mxu0 0.0
      %1666 = vmatpush1.msra.mxu0 0.0
      %1667 = vmatprep.subr.mxu0 0.0
      %1668 = vmatpush1.msra.mxu0 0.0
      %1669 = vmatprep.subr.mxu0 0.0
      %1670 = vmatpush1.msra.mxu0 0.0
      %1671 = vmatprep.subr.mxu0 0.0
      %1672 = vmatpush1.msra.mxu0 0.0
      %1673 = vmatprep.subr.mxu0 0.0
      %1674 = vmatpush1.msra.mxu0 0.0
      %1675 = vmatprep.subr.mxu0 0.0
      %1676 = vmatpush1.msra.mxu0 0.0
      %1677 = vmatprep.subr.mxu0 0.0
      %1678 = vmatpush1.msra.mxu0 0.0
      %1679 = vmatprep.subr.mxu0 0.0
      %1680 = vmatpush1.msra.mxu0 0.0
      %1681 = vmatprep.subr.mxu0 0.0
      %1682 = vmatpush1.msra.mxu0 0.0
      %1683 = vmatprep.subr.mxu0 0.0
      %1684 = vmatpush1.msra.mxu0 0.0
      %1685 = vmatprep.subr.mxu0 0.0
      %1686 = vmatpush1.msra.mxu0 0.0
      %1687 = vmatprep.subr.mxu0 0.0
      %1688 = vmatpush1.msra.mxu0 0.0
      %1689 = vmatprep.subr.mxu0 0.0
      %1690 = vmatpush1.msra.mxu0 0.0
      %v1691 = vand.u32 %v396, 4294901760
      %v1692 = vsub.f32 %v396, %v1691
      %v1693 = vand.u32 %v1692, 4294901760
      %1694 = vmatprep.subr.mxu0 %v1693
      %v1695 = vand.u32 %v395, 4294901760
      %v1696 = vsub.f32 %v395, %v1695
      %v1697 = vand.u32 %v1696, 4294901760
      %1698 = vmatpush1.msra.mxu0 %v1697
      %1699 = vmatprep.subr.mxu0 0.0
      %1700 = vmatpush2.msra.mxu0 0.0
      %1701 = vmatprep.subr.mxu0 0.0
      %1702 = vmatpush2.msra.mxu0 0.0
      %1703 = vmatprep.subr.mxu0 0.0
      %1704 = vmatpush2.msra.mxu0 0.0
      %1705 = vmatprep.subr.mxu0 0.0
      %1706 = vmatpush2.msra.mxu0 0.0
      %1707 = vmatprep.subr.mxu0 0.0
      %1708 = vmatpush2.msra.mxu0 0.0
      %1709 = vmatprep.subr.mxu0 0.0
      %1710 = vmatpush2.msra.mxu0 0.0
      %1711 = vmatprep.subr.mxu0 0.0
      %1712 = vmatpush2.msra.mxu0 0.0
      %1713 = vmatprep.subr.mxu0 0.0
      %1714 = vmatpush2.msra.mxu0 0.0
      %1715 = vmatprep.subr.mxu0 0.0
      %1716 = vmatpush2.msra.mxu0 0.0
      %1717 = vmatprep.subr.mxu0 0.0
      %1718 = vmatpush2.msra.mxu0 0.0
      %1719 = vmatprep.subr.mxu0 0.0
      %1720 = vmatpush2.msra.mxu0 0.0
      %1721 = vmatprep.subr.mxu0 0.0
      %1722 = vmatpush2.msra.mxu0 0.0
      %1723 = vmatprep.subr.mxu0 0.0
      %1724 = vmatpush2.msra.mxu0 0.0
      %1725 = vmatprep.subr.mxu0 0.0
      %1726 = vmatpush2.msra.mxu0 0.0
      %1727 = vmatprep.subr.mxu0 0.0
      %1728 = vmatpush2.msra.mxu0 0.0
      %1729 = vmatprep.subr.mxu0 0.0
      %1730 = vmatpush2.msra.mxu0 0.0
      %1731 = vmatprep.mubr.f32.mxu0 0.0
      %v1732 = vand.u32 %v1346, 4294901760
      %1733 = vmatmul.mubr.f32.gmra.mxu0 %v1732
      %v1734 = vpop.f32.mrf.mxu0
      %v1735 = vadd.f32 %v1657, %v1734
      %v1736 = vpop.f32.mrf.mxu0
      %v1737 = vadd.f32 %v1659, %v1736
      %1738 = vdwg.mxu0
      %1739 = vmatprep.subr.mxu0 0.0
      %1740 = vmatpush1.msra.mxu0 0.0
      %1741 = vmatprep.subr.mxu0 0.0
      %1742 = vmatpush1.msra.mxu0 0.0
      %1743 = vmatprep.subr.mxu0 0.0
      %1744 = vmatpush1.msra.mxu0 0.0
      %1745 = vmatprep.subr.mxu0 0.0
      %1746 = vmatpush1.msra.mxu0 0.0
      %1747 = vmatprep.subr.mxu0 0.0
      %1748 = vmatpush1.msra.mxu0 0.0
      %1749 = vmatprep.subr.mxu0 0.0
      %1750 = vmatpush1.msra.mxu0 0.0
      %1751 = vmatprep.subr.mxu0 0.0
      %1752 = vmatpush1.msra.mxu0 0.0
      %1753 = vmatprep.subr.mxu0 0.0
      %1754 = vmatpush1.msra.mxu0 0.0
      %1755 = vmatprep.subr.mxu0 0.0
      %1756 = vmatpush1.msra.mxu0 0.0
      %1757 = vmatprep.subr.mxu0 0.0
      %1758 = vmatpush1.msra.mxu0 0.0
      %1759 = vmatprep.subr.mxu0 0.0
      %1760 = vmatpush1.msra.mxu0 0.0
      %1761 = vmatprep.subr.mxu0 0.0
      %1762 = vmatpush1.msra.mxu0 0.0
      %1763 = vmatprep.subr.mxu0 0.0
      %1764 = vmatpush1.msra.mxu0 0.0
      %1765 = vmatprep.subr.mxu0 0.0
      %1766 = vmatpush1.msra.mxu0 0.0
      %1767 = vmatprep.subr.mxu0 0.0
      %1768 = vmatpush1.msra.mxu0 0.0
      %v1769 = vand.u32 %v396, 4294901760
      %1770 = vmatprep.subr.mxu0 %v1769
      %v1771 = vand.u32 %v395, 4294901760
      %1772 = vmatpush1.msra.mxu0 %v1771
      %1773 = vmatprep.subr.mxu0 0.0
      %1774 = vmatpush2.msra.mxu0 0.0
      %1775 = vmatprep.subr.mxu0 0.0
      %1776 = vmatpush2.msra.mxu0 0.0
      %1777 = vmatprep.subr.mxu0 0.0
      %1778 = vmatpush2.msra.mxu0 0.0
      %1779 = vmatprep.subr.mxu0 0.0
      %1780 = vmatpush2.msra.mxu0 0.0
      %1781 = vmatprep.subr.mxu0 0.0
      %1782 = vmatpush2.msra.mxu0 0.0
      %1783 = vmatprep.subr.mxu0 0.0
      %1784 = vmatpush2.msra.mxu0 0.0
      %1785 = vmatprep.subr.mxu0 0.0
      %1786 = vmatpush2.msra.mxu0 0.0
      %1787 = vmatprep.subr.mxu0 0.0
      %1788 = vmatpush2.msra.mxu0 0.0
      %1789 = vmatprep.subr.mxu0 0.0
      %1790 = vmatpush2.msra.mxu0 0.0
      %1791 = vmatprep.subr.mxu0 0.0
      %1792 = vmatpush2.msra.mxu0 0.0
      %1793 = vmatprep.subr.mxu0 0.0
      %1794 = vmatpush2.msra.mxu0 0.0
      %1795 = vmatprep.subr.mxu0 0.0
      %1796 = vmatpush2.msra.mxu0 0.0
      %1797 = vmatprep.subr.mxu0 0.0
      %1798 = vmatpush2.msra.mxu0 0.0
      %1799 = vmatprep.subr.mxu0 0.0
      %1800 = vmatpush2.msra.mxu0 0.0
      %1801 = vmatprep.subr.mxu0 0.0
      %1802 = vmatpush2.msra.mxu0 0.0
      %1803 = vmatprep.subr.mxu0 0.0
      %1804 = vmatpush2.msra.mxu0 0.0
      %1805 = vmatprep.mubr.f32.mxu0 0.0
      %v1806 = vand.u32 %v1346, 4294901760
      %1807 = vmatmul.mubr.f32.gmra.mxu0 %v1806
      %v1808 = vpop.f32.mrf.mxu0
      %v1809 = vadd.f32 %v1735, %v1808
      %v1810 = vpop.f32.mrf.mxu0
      %v1811 = vadd.f32 %v1737, %v1810
      %1812 = vdwg.mxu0
      %v1813 = vmul.f32 %v1809, %v1809
      %v1814 = vmul.f32 %v1811, %v1811
      %v1815 = vadd.f32 %v1341, %v1813
      %v1816 = vadd.f32 %v1342, %v1814
      %v1817 = vadd.f32 %v1815, 0.0001
      %v1818 = vadd.f32 %v1816, 0.0001
      %v1819 = vrsqrt.pop %v1817
      %v1820 = vmul.f32 %v1817, %v1819
      %vm1821 = vcmp.eq.f32.partialorder %v1817, inf
      %v1822 = vsel %vm1821, %v1817, %v1820
      %vm1823 = vcmp.eq.f32.partialorder %v1817, 0.0
      %v1824 = vand.u32 %v1817, 2147483648
      %v1825 = vsel %vm1823, %v1824, %v1822
      %v1826 = vrsqrt.pop %v1818
      %v1827 = vmul.f32 %v1818, %v1826
      %vm1828 = vcmp.eq.f32.partialorder %v1818, inf
      %v1829 = vsel %vm1828, %v1818, %v1827
      %vm1830 = vcmp.eq.f32.partialorder %v1818, 0.0
      %v1831 = vand.u32 %v1818, 2147483648
      %v1832 = vsel %vm1830, %v1831, %v1829
      %v1833 = vmin.f32 %v1825, 10.0
      %v1834 = vmin.f32 %v1832, 10.0
      %v1835 = vld [vmem:[%s363] sm:$0xff]
      %v1836 = vld [vmem:[%s371] sm:$0x3]
      %v1838 = vlaneseq
      %v1839 = vshrl.u32 %v1838, 7
      %v1840 = vsub.s32 0, %v1839
      %v1841 = vrot.slane %v1836, %v1840
      %v1842 = vlaneseq
      %v1843 = vshrl.u32 %v1842, 7
      %v1844 = vsub.s32 1, %v1843
      %v1845 = vrot.slane %v1836, %v1844
      %v1848 = vmul.f32 %v1833, %v1841
      %v1849 = vmul.f32 %v1834, %v1845
      %v1850 = vadd.f32 %v1848, %v1849
      %1851 = vadd.xlane.f32.xlu0 %v1850
      %v1852 = vpop.xlane.xlu0 %1851
      %v1853 = vld [vmem:[%s380] sm:$0x3]
      %v1855 = vlaneseq
      %v1856 = vshrl.u32 %v1855, 7
      %v1857 = vsub.s32 0, %v1856
      %v1858 = vrot.slane %v1853, %v1857
      %v1859 = vlaneseq
      %v1860 = vshrl.u32 %v1859, 7
      %v1861 = vsub.s32 1, %v1860
      %v1862 = vrot.slane %v1853, %v1861
      %v1865 = vmul.f32 %v1833, %v1858
      %v1866 = vmul.f32 %v1834, %v1862
      %v1867 = vadd.f32 %v1865, %v1866
      %1868 = vadd.xlane.f32.xlu0 %v1867
      %v1869 = vpop.xlane.xlu0 %1868
      %v1870 = vld [vmem:[%s384] sm:$0x1]
      %v1871 = vmul.f32 %v1852, %v1835
      %vm1872 = vcmask 7168
      %v1873 = vsel %vm1872, %v1871, 0.0
      %v1874 = vrot.slane %v1873, 4
      %v1875 = vadd.f32 %v1873, %v1874
      %v1876 = vrot.slane %v1875, 2
      %v1877 = vadd.f32 %v1875, %v1876
      %v1878 = vrot.slane %v1877, 1
      %v1879 = vadd.f32 %v1877, %v1878
      %v1880 = vadd.f32 %v1870, %v1879
      %vm1881 = vcmask 0
      %1882 = vst.msk [vmem:[%s384] sm:$0x1] %vm1881, %v1880
      %v1883 = vld [vmem:[%s387] sm:$0x1]
      %v1884 = vmul.f32 %v1869, %v1835
      %v1885 = vsel %vm1872, %v1884, 0.0
      %v1886 = vrot.slane %v1885, 4
      %v1887 = vadd.f32 %v1885, %v1886
      %v1888 = vrot.slane %v1887, 2
      %v1889 = vadd.f32 %v1887, %v1888
      %v1890 = vrot.slane %v1889, 1
      %v1891 = vadd.f32 %v1889, %v1890
      %v1892 = vadd.f32 %v1883, %v1891
      %1893 = vst.msk [vmem:[%s387] sm:$0x1] %vm1881, %v1892
      %p1894 = scmp.lt.s32.totalorder %s22, 1
      %s1895 = scalar_select %p1894, %s22, 1
      %s1896 = scalar_lea.vmem %s5, %s1895
      %p1897 = scmp.lt.s32.totalorder %s22, 1
      %s1898 = scalar_select %p1897, %s22, 1
      %s1899 = scalar_lea.vmem %s6, %s1898
      // Predicated region
      $region45: #{rhofold_loss.3} parent=39 // pred_check
        %p1900 = pneg %p184
      $region46: #{rhofold_loss.3} parent=39 // pred_check_branch
        %1902 = sbr.rel (%p1900) target = $region48
      $region47: #{rhofold_loss.3} parent=39 // pred_region
        _
      $region48: #{rhofold_loss.3} parent=39 // pred_fallthru
        _
      // Predicated region
      $region49: #{rhofold_loss.3} parent=39 // pred_check
        %p1903 = pneg %p210
      $region50: #{rhofold_loss.3} parent=39 // pred_check_branch
        %1905 = sbr.rel (%p1903) target = $region52
      $region51: #{rhofold_loss.3} parent=39 // pred_region
        _
      $region52: #{rhofold_loss.3} parent=39 // pred_fallthru
        _
    $region40: #{rhofold_loss.3} parent=5 // pred_fallthru
      _
    %p1906 = scmp.le.s32.totalorder 2, %s13
    // Predicated region
    $region53: #{rhofold_loss.3} parent=5 // pred_check
      %p1907 = pneg %p1906
    $region54: #{rhofold_loss.3} parent=5 // pred_check_branch
      %1909 = sbr.rel (%p1907) target = $region56
    $region55: #{rhofold_loss.3} parent=5 // pred_region
      %s1910 = ssub.s32 %s13, 2
      // Predicated region
      $region57: #{rhofold_loss.3} parent=55 // pred_check
        %p1911 = pneg %p190
      $region58: #{rhofold_loss.3} parent=55 // pred_check_branch
        %1913 = sbr.rel (%p1911) target = $region60
      $region59: #{rhofold_loss.3} parent=55 // pred_region
        %p1914 = scmp.lt.s32.totalorder %s24, 1
        %s1915 = scalar_select %p1914, %s24, 1
        %s1916 = scalar_lea.vmem %s5, %s1915
      $region60: #{rhofold_loss.3} parent=55 // pred_fallthru
        _
      // Predicated region
      $region61: #{rhofold_loss.3} parent=55 // pred_check
        %p1917 = pneg %p216
      $region62: #{rhofold_loss.3} parent=55 // pred_check_branch
        %1919 = sbr.rel (%p1917) target = $region64
      $region63: #{rhofold_loss.3} parent=55 // pred_region
        %p1920 = scmp.lt.s32.totalorder %s24, 1
        %s1921 = scalar_select %p1920, %s24, 1
        %s1922 = scalar_lea.vmem %s6, %s1921
      $region64: #{rhofold_loss.3} parent=55 // pred_fallthru
        _
    $region56: #{rhofold_loss.3} parent=5 // pred_fallthru
      _
  $region6: #{rhofold_loss.3} parent=0 // loop_footer
    %s17 = sadd.s32 1, %s13
  $region7: #{rhofold_loss.3} parent=0 // loop_footer_branch
    %12 = sbr.rel target = $region3
  $region8: #{rhofold_loss.3} parent=0 // loop_exit
    _

// kernel: rhofold_loss.5
$region0: #{rhofold_loss.5}
  #allocation0 [shape = 'u32[]', space=smem, size = 0x4, offset = 0x4, fixed_abs, tag = 'smem constant byte address 0x4 - core index']
  #allocation1 [shape = 'u32[144,128]{1,0:T(1,128)}', space=vmem, size = 0x12000, scoped, tag = 'internal scratch']
  %s0 = inlined_call_operand.vmem [shape: f32[2,3,8,8], index: 0, kind: input, shape index: {}]
  %s1 = inlined_call_operand.vmem [shape: f32[2,8,8], index: 1, kind: input, shape index: {}]
  %s2 = inlined_call_operand.vmem [shape: f32[2,8,1], index: 2, kind: input, shape index: {}]
  %s3 = inlined_call_operand.vmem [shape: f32[2,1,8], index: 3, kind: input, shape index: {}]
  %s4 = inlined_call_operand.vmem [shape: f32[2,8,8,64], index: 4, kind: input, shape index: {}]
  %s5 = inlined_call_operand.vmem [shape: f32[2,1,1], index: 5, kind: output, shape index: {}]
  %s6 = sld [smem:[#allocation0]]
  $region57: #{rhofold_loss.5} parent=0
    _
  %s8 = ssub.s32 1, %s6
  %s9 = scalar_select 0, %s8, %s6
  loop: start=0, step=1, limit=4
  $region2: #{rhofold_loss.5} parent=0 // loop_pre_header
    _
  $region3: #{rhofold_loss.5} parent=0 // loop_header
    %s11 = sphi 0, %s15
    %p12 = scmp.ge.s32.totalorder %s11, 4
    %s18 = sphi 0, %s30
    %s19 = sphi 0, %s26
    %s20 = sphi 0, %s18
    %s21 = sphi 0, %s19
    %s22 = sphi 0, %s20
    %s23 = sphi 0, %s21
    %s35 = sphi 0, %s37
    %s38 = sphi 0, %s35
    %s39 = sphi 0, %s38
    %s55 = sphi 0, %s39
    %s61 = sphi 0, %s63
    %s64 = sphi 0, %s61
    %s65 = sphi 0, %s64
    %s81 = sphi 0, %s65
    %s89 = sphi 0, %s91
    %s92 = sphi 0, %s89
    %s93 = sphi 0, %s92
    %s109 = sphi 0, %s93
    %s115 = sphi 0, %s117
    %s118 = sphi 0, %s115
    %s119 = sphi 0, %s118
    %s135 = sphi 0, %s119
    %s143 = sphi 0, %s145
    %s146 = sphi 0, %s143
    %s147 = sphi 0, %s146
    %s163 = sphi 0, %s147
    %s169 = sphi 0, %s171
    %s172 = sphi 0, %s169
    %s173 = sphi 0, %s172
    %s189 = sphi 0, %s173
  $region4: #{rhofold_loss.5} parent=0 // loop_header_branch
    %14 = sbr.rel (%p12) target = $region8
  $region5: #{rhofold_loss.5} parent=0 // loop_body
    %s16 = ssub.s32 %s11, 1
    %s17 = ssub.s32 %s11, 2
    %s24 = sadd.s32 1, %s19
    %p25 = scmp.ge.s32.totalorder %s24, 1
    %s26 = scalar_select %p25, 0, %s24
    %s27 = sadd.s32 1, %s18
    %s28 = scalar_select %p25, %s27, %s18
    %p29 = scmp.ge.s32.totalorder %s28, 2
    %s30 = scalar_select %p29, 0, %s28
    %s31 = ssub.s32 %s18, %s30
    %s32 = ssub.s32 %s19, %s26
    %s33 = sor.u32 %s31, %s32
    %p34 = scmp.eq.s32.totalorder %s33, 0
    %s36 = sadd.s32 %s35, 1
    %s37 = scalar_select %p34, %s35, %s36
    %p40 = pneg %p34
    %p41 = scmp.eq.s32.totalorder %s11, 1
    %p42 = por %p40, %p41
    %p43 = scmp.ne.s32.totalorder %s35, %s38
    %p44 = scmp.eq.s32.totalorder %s11, 0
    %p45 = por %p43, %p44
    %p46 = scmp.ne.s32.totalorder %s35, %s38
    %p47 = scmp.eq.s32.totalorder %s16, 1
    %p48 = por %p46, %p47
    %p49 = scmp.ne.s32.totalorder %s38, %s39
    %p50 = scmp.eq.s32.totalorder %s16, 0
    %p51 = por %p49, %p50
    %p52 = scmp.ne.s32.totalorder %s38, %s39
    %p53 = scmp.eq.s32.totalorder %s17, 1
    %p54 = por %p52, %p53
    %p56 = scmp.ne.s32.totalorder %s39, %s55
    %p57 = scmp.eq.s32.totalorder %s17, 0
    %p58 = por %p56, %p57
    %s59 = ssub.s32 %s18, %s30
    %p60 = scmp.eq.s32.totalorder %s59, 0
    %s62 = sadd.s32 %s61, 1
    %s63 = scalar_select %p60, %s61, %s62
    %p66 = pneg %p60
    %p67 = scmp.eq.s32.totalorder %s11, 1
    %p68 = por %p66, %p67
    %p69 = scmp.ne.s32.totalorder %s61, %s64
    %p70 = scmp.eq.s32.totalorder %s11, 0
    %p71 = por %p69, %p70
    %p72 = scmp.ne.s32.totalorder %s61, %s64
    %p73 = scmp.eq.s32.totalorder %s16, 1
    %p74 = por %p72, %p73
    %p75 = scmp.ne.s32.totalorder %s64, %s65
    %p76 = scmp.eq.s32.totalorder %s16, 0
    %p77 = por %p75, %p76
    %p78 = scmp.ne.s32.totalorder %s64, %s65
    %p79 = scmp.eq.s32.totalorder %s17, 1
    %p80 = por %p78, %p79
    %p82 = scmp.ne.s32.totalorder %s65, %s81
    %p83 = scmp.eq.s32.totalorder %s17, 0
    %p84 = por %p82, %p83
    %s85 = ssub.s32 %s18, %s30
    %s86 = ssub.s32 %s19, %s26
    %s87 = sor.u32 %s85, %s86
    %p88 = scmp.eq.s32.totalorder %s87, 0
    %s90 = sadd.s32 %s89, 1
    %s91 = scalar_select %p88, %s89, %s90
    %p94 = pneg %p88
    %p95 = scmp.eq.s32.totalorder %s11, 1
    %p96 = por %p94, %p95
    %p97 = scmp.ne.s32.totalorder %s89, %s92
    %p98 = scmp.eq.s32.totalorder %s11, 0
    %p99 = por %p97, %p98
    %p100 = scmp.ne.s32.totalorder %s89, %s92
    %p101 = scmp.eq.s32.totalorder %s16, 1
    %p102 = por %p100, %p101
    %p103 = scmp.ne.s32.totalorder %s92, %s93
    %p104 = scmp.eq.s32.totalorder %s16, 0
    %p105 = por %p103, %p104
    %p106 = scmp.ne.s32.totalorder %s92, %s93
    %p107 = scmp.eq.s32.totalorder %s17, 1
    %p108 = por %p106, %p107
    %p110 = scmp.ne.s32.totalorder %s93, %s109
    %p111 = scmp.eq.s32.totalorder %s17, 0
    %p112 = por %p110, %p111
    %s113 = ssub.s32 %s18, %s30
    %p114 = scmp.eq.s32.totalorder %s113, 0
    %s116 = sadd.s32 %s115, 1
    %s117 = scalar_select %p114, %s115, %s116
    %p120 = pneg %p114
    %p121 = scmp.eq.s32.totalorder %s11, 1
    %p122 = por %p120, %p121
    %p123 = scmp.ne.s32.totalorder %s115, %s118
    %p124 = scmp.eq.s32.totalorder %s11, 0
    %p125 = por %p123, %p124
    %p126 = scmp.ne.s32.totalorder %s115, %s118
    %p127 = scmp.eq.s32.totalorder %s16, 1
    %p128 = por %p126, %p127
    %p129 = scmp.ne.s32.totalorder %s118, %s119
    %p130 = scmp.eq.s32.totalorder %s16, 0
    %p131 = por %p129, %p130
    %p132 = scmp.ne.s32.totalorder %s118, %s119
    %p133 = scmp.eq.s32.totalorder %s17, 1
    %p134 = por %p132, %p133
    %p136 = scmp.ne.s32.totalorder %s119, %s135
    %p137 = scmp.eq.s32.totalorder %s17, 0
    %p138 = por %p136, %p137
    %s139 = ssub.s32 %s18, %s30
    %s140 = ssub.s32 %s19, %s26
    %s141 = sor.u32 %s139, %s140
    %p142 = scmp.eq.s32.totalorder %s141, 0
    %s144 = sadd.s32 %s143, 1
    %s145 = scalar_select %p142, %s143, %s144
    %p148 = pneg %p142
    %p149 = scmp.eq.s32.totalorder %s11, 1
    %p150 = por %p148, %p149
    %p151 = scmp.ne.s32.totalorder %s143, %s146
    %p152 = scmp.eq.s32.totalorder %s11, 0
    %p153 = por %p151, %p152
    %p154 = scmp.ne.s32.totalorder %s143, %s146
    %p155 = scmp.eq.s32.totalorder %s16, 1
    %p156 = por %p154, %p155
    %p157 = scmp.ne.s32.totalorder %s146, %s147
    %p158 = scmp.eq.s32.totalorder %s16, 0
    %p159 = por %p157, %p158
    %p160 = scmp.ne.s32.totalorder %s146, %s147
    %p161 = scmp.eq.s32.totalorder %s17, 1
    %p162 = por %p160, %p161
    %p164 = scmp.ne.s32.totalorder %s147, %s163
    %p165 = scmp.eq.s32.totalorder %s17, 0
    %p166 = por %p164, %p165
    %s167 = ssub.s32 %s18, %s30
    %p168 = scmp.eq.s32.totalorder %s167, 0
    %s170 = sadd.s32 %s169, 1
    %s171 = scalar_select %p168, %s169, %s170
    %p174 = pneg %p168
    %p175 = scmp.eq.s32.totalorder %s11, 1
    %p176 = por %p174, %p175
    %p177 = scmp.ne.s32.totalorder %s169, %s172
    %p178 = scmp.eq.s32.totalorder %s11, 0
    %p179 = por %p177, %p178
    %p180 = scmp.ne.s32.totalorder %s169, %s172
    %p181 = scmp.eq.s32.totalorder %s16, 1
    %p182 = por %p180, %p181
    %p183 = scmp.ne.s32.totalorder %s172, %s173
    %p184 = scmp.eq.s32.totalorder %s16, 0
    %p185 = por %p183, %p184
    %p186 = scmp.ne.s32.totalorder %s172, %s173
    %p187 = scmp.eq.s32.totalorder %s17, 1
    %p188 = por %p186, %p187
    %p190 = scmp.ne.s32.totalorder %s173, %s189
    %p191 = scmp.eq.s32.totalorder %s17, 0
    %p192 = por %p190, %p191
    %p193 = scmp.le.s32.totalorder 1, %s11
    %p194 = scmp.lt.s32.totalorder %s11, 3
    %p195 = pnand %p193, %p194
    %p196 = pneg %p195
    // Predicated region
    $region9: #{rhofold_loss.5} parent=5 // pred_check
      _
    $region10: #{rhofold_loss.5} parent=5 // pred_check_branch
      %198 = sbr.rel (%p195) target = $region12
    $region11: #{rhofold_loss.5} parent=5 // pred_region
      %s199 = ssub.s32 %s11, 1
    $region12: #{rhofold_loss.5} parent=5 // pred_fallthru
      _
    %p200 = scmp.lt.s32.totalorder %s11, 2
    // Predicated region
    $region13: #{rhofold_loss.5} parent=5 // pred_check
      %p201 = pneg %p200
    $region14: #{rhofold_loss.5} parent=5 // pred_check_branch
      %203 = sbr.rel (%p201) target = $region16
    $region15: #{rhofold_loss.5} parent=5 // pred_region
      // Predicated region
      $region17: #{rhofold_loss.5} parent=15 // pred_check
        %p204 = pneg %p45
      $region18: #{rhofold_loss.5} parent=15 // pred_check_branch
        %206 = sbr.rel (%p204) target = $region20
      $region19: #{rhofold_loss.5} parent=15 // pred_region
        %p207 = scmp.lt.s32.totalorder %s18, 1
        %s208 = scalar_select %p207, %s18, 1
        %p209 = scmp.lt.s32.totalorder %s19, 0
        %s210 = scalar_select %p209, %s19, 0
        %s211 = smul.addr %s208, 3
        %s212 = sadd.s32 %s210, %s211
        %s213 = smul.addr %s212, 8
        %s214 = scalar_lea.vmem %s0, %s213
      $region20: #{rhofold_loss.5} parent=15 // pred_fallthru
        _
      // Predicated region
      $region21: #{rhofold_loss.5} parent=15 // pred_check
        %p215 = pneg %p71
      $region22: #{rhofold_loss.5} parent=15 // pred_check_branch
        %217 = sbr.rel (%p215) target = $region24
      $region23: #{rhofold_loss.5} parent=15 // pred_region
        %p218 = scmp.lt.s32.totalorder %s18, 1
        %s219 = scalar_select %p218, %s18, 1
        %s220 = smul.addr %s219, 8
        %s221 = scalar_lea.vmem %s1, %s220
      $region24: #{rhofold_loss.5} parent=15 // pred_fallthru
        _
      // Predicated region
      $region25: #{rhofold_loss.5} parent=15 // pred_check
        %p222 = pneg %p99
      $region26: #{rhofold_loss.5} parent=15 // pred_check_branch
        %224 = sbr.rel (%p222) target = $region28
      $region27: #{rhofold_loss.5} parent=15 // pred_region
        %p225 = scmp.lt.s32.totalorder %s18, 1
        %s226 = scalar_select %p225, %s18, 1
        %p227 = scmp.lt.s32.totalorder %s19, 0
        %s228 = scalar_select %p227, %s19, 0
        %s229 = sadd.s32 %s228, %s226
        %s230 = smul.addr %s229, 8
        %s231 = scalar_lea.vmem %s2, %s230
      $region28: #{rhofold_loss.5} parent=15 // pred_fallthru
        _
      // Predicated region
      $region29: #{rhofold_loss.5} parent=15 // pred_check
        %p232 = pneg %p125
      $region30: #{rhofold_loss.5} parent=15 // pred_check_branch
        %234 = sbr.rel (%p232) target = $region32
      $region31: #{rhofold_loss.5} parent=15 // pred_region
        %p235 = scmp.lt.s32.totalorder %s18, 1
        %s236 = scalar_select %p235, %s18, 1
        %s237 = scalar_lea.vmem %s3, %s236
      $region32: #{rhofold_loss.5} parent=15 // pred_fallthru
        _
      // Predicated region
      $region33: #{rhofold_loss.5} parent=15 // pred_check
        %p238 = pneg %p153
      $region34: #{rhofold_loss.5} parent=15 // pred_check_branch
        %240 = sbr.rel (%p238) target = $region36
      $region35: #{rhofold_loss.5} parent=15 // pred_region
        %s241 = smul.u32 8, %s19
        %p242 = scmp.lt.s32.totalorder %s18, 1
        %s243 = scalar_select %p242, %s18, 1
        %p244 = scmp.lt.s32.totalorder %s241, 7
        %s245 = scalar_select %p244, %s241, 7
        %s246 = smul.addr %s243, 8
        %s247 = sadd.s32 %s245, %s246
        %s248 = smul.addr %s247, 8
        %s249 = scalar_lea.vmem %s4, %s248
        %s250 = smul.u32 8, %s19
      $region36: #{rhofold_loss.5} parent=15 // pred_fallthru
        _
    $region16: #{rhofold_loss.5} parent=5 // pred_fallthru
      _
    %p251 = scmp.le.s32.totalorder 1, %s11
    %p252 = scmp.lt.s32.totalorder %s11, 3
    %p253 = pnand %p251, %p252
    %p254 = pneg %p253
    // Predicated region
    $region37: #{rhofold_loss.5} parent=5 // pred_check
      _
    $region38: #{rhofold_loss.5} parent=5 // pred_check_branch
      %256 = sbr.rel (%p253) target = $region40
    $region39: #{rhofold_loss.5} parent=5 // pred_region
      %s257 = ssub.s32 %s11, 1
      %p258 = scmp.lt.s32.totalorder %s20, 1
      %s259 = scalar_select %p258, %s20, 1
      %p260 = scmp.lt.s32.totalorder %s21, 0
      %s261 = scalar_select %p260, %s21, 0
      %s262 = smul.addr %s259, 3
      %s263 = sadd.s32 %s261, %s262
      %s264 = smul.addr %s263, 8
      %s265 = scalar_lea.vmem %s0, %s264
      %p266 = pneg %p51
      %p267 = pneg %p48
      %p268 = scmp.lt.s32.totalorder %s20, 1
      %s269 = scalar_select %p268, %s20, 1
      %s270 = smul.addr %s269, 8
      %s271 = scalar_lea.vmem %s1, %s270
      %p272 = pneg %p77
      %p273 = pneg %p74
      %p274 = scmp.lt.s32.totalorder %s20, 1
      %s275 = scalar_select %p274, %s20, 1
      %p276 = scmp.lt.s32.totalorder %s21, 0
      %s277 = scalar_select %p276, %s21, 0
      %s278 = sadd.s32 %s277, %s275
      %s279 = smul.addr %s278, 8
      %s280 = scalar_lea.vmem %s2, %s279
      %p281 = pneg %p105
      %p282 = pneg %p102
      %p283 = scmp.lt.s32.totalorder %s20, 1
      %s284 = scalar_select %p283, %s20, 1
      %s285 = scalar_lea.vmem %s3, %s284
      %p286 = pneg %p131
      %p287 = pneg %p128
      %s288 = smul.u32 8, %s21
      %p289 = scmp.lt.s32.totalorder %s20, 1
      %s290 = scalar_select %p289, %s20, 1
      %p291 = scmp.lt.s32.totalorder %s288, 7
      %s292 = scalar_select %p291, %s288, 7
      %s293 = smul.addr %s290, 8
      %s294 = sadd.s32 %s292, %s293
      %s295 = smul.addr %s294, 8
      %s296 = scalar_lea.vmem %s4, %s295
      %p297 = pneg %p159
      %p298 = pneg %p156
      %p299 = pneg %p185
      %p300 = pneg %p182
      %p301 = scmp.lt.s32.totalorder %s20, 1
      %s302 = scalar_select %p301, %s20, 1
      %s303 = scalar_lea.vmem %s5, %s302
      %p304 = scmp.lt.s32.totalorder %s20, 1
      %s305 = scalar_select %p304, %s20, 1
      %p306 = scmp.lt.s32.totalorder %s21, 0
      %s307 = scalar_select %p306, %s21, 0
      %s308 = smul.addr %s305, 3
      %s309 = sadd.s32 %s307, %s308
      %s310 = smul.addr %s309, 8
      %s311 = scalar_lea.vmem %s0, %s310
      %p312 = scmp.lt.s32.totalorder %s20, 1
      %s313 = scalar_select %p312, %s20, 1
      %s314 = smul.addr %s313, 8
      %s315 = scalar_lea.vmem %s1, %s314
      %p316 = scmp.lt.s32.totalorder %s20, 1
      %s317 = scalar_select %p316, %s20, 1
      %p318 = scmp.lt.s32.totalorder %s21, 0
      %s319 = scalar_select %p318, %s21, 0
      %s320 = sadd.s32 %s319, %s317
      %s321 = smul.addr %s320, 8
      %s322 = scalar_lea.vmem %s2, %s321
      %p323 = scmp.lt.s32.totalorder %s20, 1
      %s324 = scalar_select %p323, %s20, 1
      %s325 = scalar_lea.vmem %s3, %s324
      %s326 = smul.u32 8, %s21
      %p327 = scmp.lt.s32.totalorder %s20, 1
      %s328 = scalar_select %p327, %s20, 1
      %p329 = scmp.lt.s32.totalorder %s326, 7
      %s330 = scalar_select %p329, %s326, 7
      %s331 = smul.addr %s328, 8
      %s332 = sadd.s32 %s330, %s331
      %s333 = smul.addr %s332, 8
      %s334 = scalar_lea.vmem %s4, %s333
      %s335 = smul.u32 8, %s21
      %p336 = scmp.lt.s32.totalorder %s20, 1
      %s337 = scalar_select %p336, %s20, 1
      %s338 = scalar_lea.vmem %s5, %s337
      %p339 = scmp.eq.s32.totalorder %s21, 0
      // Predicated region
      $region41: #{rhofold_loss.5} parent=39 // pred_check
        %p340 = pneg %p339
      $region42: #{rhofold_loss.5} parent=39 // pred_check_branch
        %342 = sbr.rel (%p340) target = $region44
      $region43: #{rhofold_loss.5} parent=39 // pred_region
        %vm343 = vcmask 0
        %344 = vst.msk [vmem:[%s338] sm:$0x1] %vm343, 0.0
      $region44: #{rhofold_loss.5} parent=39 // pred_fallthru
        _
      %v345 = vld [vmem:[%s315] sm:$0xff]
      %v346 = vld [vmem:[%s311] sm:$0xff]
      %vm347 = vcmask 64512
      %v349 = vsel %vm347, %v346, 0
      %351 = vmatprep.subr.mxu0 0.0
      %352 = vmatpush1.msra.mxu0 0.0
      %353 = vmatprep.subr.mxu0 0.0
      %354 = vmatpush1.msra.mxu0 0.0
      %355 = vmatprep.subr.mxu0 0.0
      %356 = vmatpush1.msra.mxu0 0.0
      %357 = vmatprep.subr.mxu0 0.0
      %358 = vmatpush1.msra.mxu0 0.0
      %359 = vmatprep.subr.mxu0 0.0
      %360 = vmatpush1.msra.mxu0 0.0
      %361 = vmatprep.subr.mxu0 0.0
      %362 = vmatpush1.msra.mxu0 0.0
      %363 = vmatprep.subr.mxu0 0.0
      %364 = vmatpush1.msra.mxu0 0.0
      %365 = vmatprep.subr.mxu0 0.0
      %366 = vmatpush1.msra.mxu0 0.0
      %367 = vmatprep.subr.mxu0 0.0
      %368 = vmatpush1.msra.mxu0 0.0
      %369 = vmatprep.subr.mxu0 0.0
      %370 = vmatpush1.msra.mxu0 0.0
      %371 = vmatprep.subr.mxu0 0.0
      %372 = vmatpush1.msra.mxu0 0.0
      %373 = vmatprep.subr.mxu0 0.0
      %374 = vmatpush1.msra.mxu0 0.0
      %375 = vmatprep.subr.mxu0 0.0
      %376 = vmatpush1.msra.mxu0 0.0
      %377 = vmatprep.subr.mxu0 0.0
      %378 = vmatpush1.msra.mxu0 0.0
      %379 = vmatprep.subr.mxu0 0.0
      %380 = vmatpush1.msra.mxu0 0.0
      %381 = vmatprep.subr.mxu0 0.0
      %v382 = vand.u32 %v345, 4294901760
      %383 = vmatpush1.msra.mxu0 %v382
      %384 = vmatprep.subr.mxu0 0.0
      %385 = vmatpush2.msra.mxu0 0.0
      %386 = vmatprep.subr.mxu0 0.0
      %387 = vmatpush2.msra.mxu0 0.0
      %388 = vmatprep.subr.mxu0 0.0
      %389 = vmatpush2.msra.mxu0 0.0
      %390 = vmatprep.subr.mxu0 0.0
      %391 = vmatpush2.msra.mxu0 0.0
      %392 = vmatprep.subr.mxu0 0.0
      %393 = vmatpush2.msra.mxu0 0.0
      %394 = vmatprep.subr.mxu0 0.0
      %395 = vmatpush2.msra.mxu0 0.0
      %396 = vmatprep.subr.mxu0 0.0
      %397 = vmatpush2.msra.mxu0 0.0
      %398 = vmatprep.subr.mxu0 0.0
      %399 = vmatpush2.msra.mxu0 0.0
      %400 = vmatprep.subr.mxu0 0.0
      %401 = vmatpush2.msra.mxu0 0.0
      %402 = vmatprep.subr.mxu0 0.0
      %403 = vmatpush2.msra.mxu0 0.0
      %404 = vmatprep.subr.mxu0 0.0
      %405 = vmatpush2.msra.mxu0 0.0
      %406 = vmatprep.subr.mxu0 0.0
      %407 = vmatpush2.msra.mxu0 0.0
      %408 = vmatprep.subr.mxu0 0.0
      %409 = vmatpush2.msra.mxu0 0.0
      %410 = vmatprep.subr.mxu0 0.0
      %411 = vmatpush2.msra.mxu0 0.0
      %412 = vmatprep.subr.mxu0 0.0
      %413 = vmatpush2.msra.mxu0 0.0
      %414 = vmatprep.subr.mxu0 0.0
      %415 = vmatpush2.msra.mxu0 0.0
      %416 = vmatprep.mubr.f32.mxu0 0.0
      %v417 = vand.u32 %v349, 4294901760
      %v418 = vsub.f32 %v349, %v417
      %v419 = vand.u32 %v418, 4294901760
      %v420 = vsub.f32 %v418, %v419
      %v421 = vand.u32 %v420, 4294901760
      %422 = vmatmul.mubr.f32.gmra.mxu0 %v421
      %v423 = vpop.f32.mrf.mxu0
      %v424 = vadd.f32 0.0, %v423
      %v425 = vpop.f32.mrf.mxu0
      %426 = vdwg.mxu0
      %427 = vmatprep.subr.mxu0 0.0
      %428 = vmatpush1.msra.mxu0 0.0
      %429 = vmatprep.subr.mxu0 0.0
      %430 = vmatpush1.msra.mxu0 0.0
      %431 = vmatprep.subr.mxu0 0.0
      %432 = vmatpush1.msra.mxu0 0.0
      %433 = vmatprep.subr.mxu0 0.0
      %434 = vmatpush1.msra.mxu0 0.0
      %435 = vmatprep.subr.mxu0 0.0
      %436 = vmatpush1.msra.mxu0 0.0
      %437 = vmatprep.subr.mxu0 0.0
      %438 = vmatpush1.msra.mxu0 0.0
      %439 = vmatprep.subr.mxu0 0.0
      %440 = vmatpush1.msra.mxu0 0.0
      %441 = vmatprep.subr.mxu0 0.0
      %442 = vmatpush1.msra.mxu0 0.0
      %443 = vmatprep.subr.mxu0 0.0
      %444 = vmatpush1.msra.mxu0 0.0
      %445 = vmatprep.subr.mxu0 0.0
      %446 = vmatpush1.msra.mxu0 0.0
      %447 = vmatprep.subr.mxu0 0.0
      %448 = vmatpush1.msra.mxu0 0.0
      %449 = vmatprep.subr.mxu0 0.0
      %450 = vmatpush1.msra.mxu0 0.0
      %451 = vmatprep.subr.mxu0 0.0
      %452 = vmatpush1.msra.mxu0 0.0
      %453 = vmatprep.subr.mxu0 0.0
      %454 = vmatpush1.msra.mxu0 0.0
      %455 = vmatprep.subr.mxu0 0.0
      %456 = vmatpush1.msra.mxu0 0.0
      %457 = vmatprep.subr.mxu0 0.0
      %v458 = vand.u32 %v345, 4294901760
      %v459 = vsub.f32 %v345, %v458
      %v460 = vand.u32 %v459, 4294901760
      %v461 = vsub.f32 %v459, %v460
      %v462 = vand.u32 %v461, 4294901760
      %463 = vmatpush1.msra.mxu0 %v462
      %464 = vmatprep.subr.mxu0 0.0
      %465 = vmatpush2.msra.mxu0 0.0
      %466 = vmatprep.subr.mxu0 0.0
      %467 = vmatpush2.msra.mxu0 0.0
      %468 = vmatprep.subr.mxu0 0.0
      %469 = vmatpush2.msra.mxu0 0.0
      %470 = vmatprep.subr.mxu0 0.0
      %471 = vmatpush2.msra.mxu0 0.0
      %472 = vmatprep.subr.mxu0 0.0
      %473 = vmatpush2.msra.mxu0 0.0
      %474 = vmatprep.subr.mxu0 0.0
      %475 = vmatpush2.msra.mxu0 0.0
      %476 = vmatprep.subr.mxu0 0.0
      %477 = vmatpush2.msra.mxu0 0.0
      %478 = vmatprep.subr.mxu0 0.0
      %479 = vmatpush2.msra.mxu0 0.0
      %480 = vmatprep.subr.mxu0 0.0
      %481 = vmatpush2.msra.mxu0 0.0
      %482 = vmatprep.subr.mxu0 0.0
      %483 = vmatpush2.msra.mxu0 0.0
      %484 = vmatprep.subr.mxu0 0.0
      %485 = vmatpush2.msra.mxu0 0.0
      %486 = vmatprep.subr.mxu0 0.0
      %487 = vmatpush2.msra.mxu0 0.0
      %488 = vmatprep.subr.mxu0 0.0
      %489 = vmatpush2.msra.mxu0 0.0
      %490 = vmatprep.subr.mxu0 0.0
      %491 = vmatpush2.msra.mxu0 0.0
      %492 = vmatprep.subr.mxu0 0.0
      %493 = vmatpush2.msra.mxu0 0.0
      %494 = vmatprep.subr.mxu0 0.0
      %495 = vmatpush2.msra.mxu0 0.0
      %496 = vmatprep.mubr.f32.mxu0 0.0
      %v497 = vand.u32 %v349, 4294901760
      %498 = vmatmul.mubr.f32.gmra.mxu0 %v497
      %v499 = vpop.f32.mrf.mxu0
      %v500 = vadd.f32 %v424, %v499
      %v501 = vpop.f32.mrf.mxu0
      %502 = vdwg.mxu0
      %503 = vmatprep.subr.mxu0 0.0
      %504 = vmatpush1.msra.mxu0 0.0
      %505 = vmatprep.subr.mxu0 0.0
      %506 = vmatpush1.msra.mxu0 0.0
      %507 = vmatprep.subr.mxu0 0.0
      %508 = vmatpush1.msra.mxu0 0.0
      %509 = vmatprep.subr.mxu0 0.0
      %510 = vmatpush1.msra.mxu0 0.0
      %511 = vmatprep.subr.mxu0 0.0
      %512 = vmatpush1.msra.mxu0 0.0
      %513 = vmatprep.subr.mxu0 0.0
      %514 = vmatpush1.msra.mxu0 0.0
      %515 = vmatprep.subr.mxu0 0.0
      %516 = vmatpush1.msra.mxu0 0.0
      %517 = vmatprep.subr.mxu0 0.0
      %518 = vmatpush1.msra.mxu0 0.0
      %519 = vmatprep.subr.mxu0 0.0
      %520 = vmatpush1.msra.mxu0 0.0
      %521 = vmatprep.subr.mxu0 0.0
      %522 = vmatpush1.msra.mxu0 0.0
      %523 = vmatprep.subr.mxu0 0.0
      %524 = vmatpush1.msra.mxu0 0.0
      %525 = vmatprep.subr.mxu0 0.0
      %526 = vmatpush1.msra.mxu0 0.0
      %527 = vmatprep.subr.mxu0 0.0
      %528 = vmatpush1.msra.mxu0 0.0
      %529 = vmatprep.subr.mxu0 0.0
      %530 = vmatpush1.msra.mxu0 0.0
      %531 = vmatprep.subr.mxu0 0.0
      %532 = vmatpush1.msra.mxu0 0.0
      %533 = vmatprep.subr.mxu0 0.0
      %v534 = vand.u32 %v345, 4294901760
      %v535 = vsub.f32 %v345, %v534
      %536 = vmatpush1.msra.mxu0 %v535
      %537 = vmatprep.subr.mxu0 0.0
      %538 = vmatpush2.msra.mxu0 0.0
      %539 = vmatprep.subr.mxu0 0.0
      %540 = vmatpush2.msra.mxu0 0.0
      %541 = vmatprep.subr.mxu0 0.0
      %542 = vmatpush2.msra.mxu0 0.0
      %543 = vmatprep.subr.mxu0 0.0
      %544 = vmatpush2.msra.mxu0 0.0
      %545 = vmatprep.subr.mxu0 0.0
      %546 = vmatpush2.msra.mxu0 0.0
      %547 = vmatprep.subr.mxu0 0.0
      %548 = vmatpush2.msra.mxu0 0.0
      %549 = vmatprep.subr.mxu0 0.0
      %550 = vmatpush2.msra.mxu0 0.0
      %551 = vmatprep.subr.mxu0 0.0
      %552 = vmatpush2.msra.mxu0 0.0
      %553 = vmatprep.subr.mxu0 0.0
      %554 = vmatpush2.msra.mxu0 0.0
      %555 = vmatprep.subr.mxu0 0.0
      %556 = vmatpush2.msra.mxu0 0.0
      %557 = vmatprep.subr.mxu0 0.0
      %558 = vmatpush2.msra.mxu0 0.0
      %559 = vmatprep.subr.mxu0 0.0
      %560 = vmatpush2.msra.mxu0 0.0
      %561 = vmatprep.subr.mxu0 0.0
      %562 = vmatpush2.msra.mxu0 0.0
      %563 = vmatprep.subr.mxu0 0.0
      %564 = vmatpush2.msra.mxu0 0.0
      %565 = vmatprep.subr.mxu0 0.0
      %566 = vmatpush2.msra.mxu0 0.0
      %567 = vmatprep.subr.mxu0 0.0
      %568 = vmatpush2.msra.mxu0 0.0
      %569 = vmatprep.mubr.f32.mxu0 0.0
      %v570 = vand.u32 %v349, 4294901760
      %v571 = vsub.f32 %v349, %v570
      %572 = vmatmul.mubr.f32.gmra.mxu0 %v571
      %v573 = vpop.f32.mrf.mxu0
      %v574 = vadd.f32 %v500, %v573
      %v575 = vpop.f32.mrf.mxu0
      %576 = vdwg.mxu0
      %577 = vmatprep.subr.mxu0 0.0
      %578 = vmatpush1.msra.mxu0 0.0
      %579 = vmatprep.subr.mxu0 0.0
      %580 = vmatpush1.msra.mxu0 0.0
      %581 = vmatprep.subr.mxu0 0.0
      %582 = vmatpush1.msra.mxu0 0.0
      %583 = vmatprep.subr.mxu0 0.0
      %584 = vmatpush1.msra.mxu0 0.0
      %585 = vmatprep.subr.mxu0 0.0
      %586 = vmatpush1.msra.mxu0 0.0
      %587 = vmatprep.subr.mxu0 0.0
      %588 = vmatpush1.msra.mxu0 0.0
      %589 = vmatprep.subr.mxu0 0.0
      %590 = vmatpush1.msra.mxu0 0.0
      %591 = vmatprep.subr.mxu0 0.0
      %592 = vmatpush1.msra.mxu0 0.0
      %593 = vmatprep.subr.mxu0 0.0
      %594 = vmatpush1.msra.mxu0 0.0
      %595 = vmatprep.subr.mxu0 0.0
      %596 = vmatpush1.msra.mxu0 0.0
      %597 = vmatprep.subr.mxu0 0.0
      %598 = vmatpush1.msra.mxu0 0.0
      %599 = vmatprep.subr.mxu0 0.0
      %600 = vmatpush1.msra.mxu0 0.0
      %601 = vmatprep.subr.mxu0 0.0
      %602 = vmatpush1.msra.mxu0 0.0
      %603 = vmatprep.subr.mxu0 0.0
      %604 = vmatpush1.msra.mxu0 0.0
      %605 = vmatprep.subr.mxu0 0.0
      %606 = vmatpush1.msra.mxu0 0.0
      %607 = vmatprep.subr.mxu0 0.0
      %v608 = vand.u32 %v345, 4294901760
      %609 = vmatpush1.msra.mxu0 %v608
      %610 = vmatprep.subr.mxu0 0.0
      %611 = vmatpush2.msra.mxu0 0.0
      %612 = vmatprep.subr.mxu0 0.0
      %613 = vmatpush2.msra.mxu0 0.0
      %614 = vmatprep.subr.mxu0 0.0
      %615 = vmatpush2.msra.mxu0 0.0
      %616 = vmatprep.subr.mxu0 0.0
      %617 = vmatpush2.msra.mxu0 0.0
      %618 = vmatprep.subr.mxu0 0.0
      %619 = vmatpush2.msra.mxu0 0.0
      %620 = vmatprep.subr.mxu0 0.0
      %621 = vmatpush2.msra.mxu0 0.0
      %622 = vmatprep.subr.mxu0 0.0
      %623 = vmatpush2.msra.mxu0 0.0
      %624 = vmatprep.subr.mxu0 0.0
      %625 = vmatpush2.msra.mxu0 0.0
      %626 = vmatprep.subr.mxu0 0.0
      %627 = vmatpush2.msra.mxu0 0.0
      %628 = vmatprep.subr.mxu0 0.0
      %629 = vmatpush2.msra.mxu0 0.0
      %630 = vmatprep.subr.mxu0 0.0
      %631 = vmatpush2.msra.mxu0 0.0
      %632 = vmatprep.subr.mxu0 0.0
      %633 = vmatpush2.msra.mxu0 0.0
      %634 = vmatprep.subr.mxu0 0.0
      %635 = vmatpush2.msra.mxu0 0.0
      %636 = vmatprep.subr.mxu0 0.0
      %637 = vmatpush2.msra.mxu0 0.0
      %638 = vmatprep.subr.mxu0 0.0
      %639 = vmatpush2.msra.mxu0 0.0
      %640 = vmatprep.subr.mxu0 0.0
      %641 = vmatpush2.msra.mxu0 0.0
      %642 = vmatprep.mubr.f32.mxu0 0.0
      %v643 = vand.u32 %v349, 4294901760
      %v644 = vsub.f32 %v349, %v643
      %v645 = vand.u32 %v644, 4294901760
      %646 = vmatmul.mubr.f32.gmra.mxu0 %v645
      %v647 = vpop.f32.mrf.mxu0
      %v648 = vadd.f32 %v574, %v647
      %v649 = vpop.f32.mrf.mxu0
      %650 = vdwg.mxu0
      %651 = vmatprep.subr.mxu0 0.0
      %652 = vmatpush1.msra.mxu0 0.0
      %653 = vmatprep.subr.mxu0 0.0
      %654 = vmatpush1.msra.mxu0 0.0
      %655 = vmatprep.subr.mxu0 0.0
      %656 = vmatpush1.msra.mxu0 0.0
      %657 = vmatprep.subr.mxu0 0.0
      %658 = vmatpush1.msra.mxu0 0.0
      %659 = vmatprep.subr.mxu0 0.0
      %660 = vmatpush1.msra.mxu0 0.0
      %661 = vmatprep.subr.mxu0 0.0
      %662 = vmatpush1.msra.mxu0 0.0
      %663 = vmatprep.subr.mxu0 0.0
      %664 = vmatpush1.msra.mxu0 0.0
      %665 = vmatprep.subr.mxu0 0.0
      %666 = vmatpush1.msra.mxu0 0.0
      %667 = vmatprep.subr.mxu0 0.0
      %668 = vmatpush1.msra.mxu0 0.0
      %669 = vmatprep.subr.mxu0 0.0
      %670 = vmatpush1.msra.mxu0 0.0
      %671 = vmatprep.subr.mxu0 0.0
      %672 = vmatpush1.msra.mxu0 0.0
      %673 = vmatprep.subr.mxu0 0.0
      %674 = vmatpush1.msra.mxu0 0.0
      %675 = vmatprep.subr.mxu0 0.0
      %676 = vmatpush1.msra.mxu0 0.0
      %677 = vmatprep.subr.mxu0 0.0
      %678 = vmatpush1.msra.mxu0 0.0
      %679 = vmatprep.subr.mxu0 0.0
      %680 = vmatpush1.msra.mxu0 0.0
      %681 = vmatprep.subr.mxu0 0.0
      %v682 = vand.u32 %v345, 4294901760
      %v683 = vsub.f32 %v345, %v682
      %v684 = vand.u32 %v683, 4294901760
      %685 = vmatpush1.msra.mxu0 %v684
      %686 = vmatprep.subr.mxu0 0.0
      %687 = vmatpush2.msra.mxu0 0.0
      %688 = vmatprep.subr.mxu0 0.0
      %689 = vmatpush2.msra.mxu0 0.0
      %690 = vmatprep.subr.mxu0 0.0
      %691 = vmatpush2.msra.mxu0 0.0
      %692 = vmatprep.subr.mxu0 0.0
      %693 = vmatpush2.msra.mxu0 0.0
      %694 = vmatprep.subr.mxu0 0.0
      %695 = vmatpush2.msra.mxu0 0.0
      %696 = vmatprep.subr.mxu0 0.0
      %697 = vmatpush2.msra.mxu0 0.0
      %698 = vmatprep.subr.mxu0 0.0
      %699 = vmatpush2.msra.mxu0 0.0
      %700 = vmatprep.subr.mxu0 0.0
      %701 = vmatpush2.msra.mxu0 0.0
      %702 = vmatprep.subr.mxu0 0.0
      %703 = vmatpush2.msra.mxu0 0.0
      %704 = vmatprep.subr.mxu0 0.0
      %705 = vmatpush2.msra.mxu0 0.0
      %706 = vmatprep.subr.mxu0 0.0
      %707 = vmatpush2.msra.mxu0 0.0
      %708 = vmatprep.subr.mxu0 0.0
      %709 = vmatpush2.msra.mxu0 0.0
      %710 = vmatprep.subr.mxu0 0.0
      %711 = vmatpush2.msra.mxu0 0.0
      %712 = vmatprep.subr.mxu0 0.0
      %713 = vmatpush2.msra.mxu0 0.0
      %714 = vmatprep.subr.mxu0 0.0
      %715 = vmatpush2.msra.mxu0 0.0
      %716 = vmatprep.subr.mxu0 0.0
      %717 = vmatpush2.msra.mxu0 0.0
      %718 = vmatprep.mubr.f32.mxu0 0.0
      %v719 = vand.u32 %v349, 4294901760
      %720 = vmatmul.mubr.f32.gmra.mxu0 %v719
      %v721 = vpop.f32.mrf.mxu0
      %v722 = vadd.f32 %v648, %v721
      %v723 = vpop.f32.mrf.mxu0
      %724 = vdwg.mxu0
      %725 = vmatprep.subr.mxu0 0.0
      %726 = vmatpush1.msra.mxu0 0.0
      %727 = vmatprep.subr.mxu0 0.0
      %728 = vmatpush1.msra.mxu0 0.0
      %729 = vmatprep.subr.mxu0 0.0
      %730 = vmatpush1.msra.mxu0 0.0
      %731 = vmatprep.subr.mxu0 0.0
      %732 = vmatpush1.msra.mxu0 0.0
      %733 = vmatprep.subr.mxu0 0.0
      %734 = vmatpush1.msra.mxu0 0.0
      %735 = vmatprep.subr.mxu0 0.0
      %736 = vmatpush1.msra.mxu0 0.0
      %737 = vmatprep.subr.mxu0 0.0
      %738 = vmatpush1.msra.mxu0 0.0
      %739 = vmatprep.subr.mxu0 0.0
      %740 = vmatpush1.msra.mxu0 0.0
      %741 = vmatprep.subr.mxu0 0.0
      %742 = vmatpush1.msra.mxu0 0.0
      %743 = vmatprep.subr.mxu0 0.0
      %744 = vmatpush1.msra.mxu0 0.0
      %745 = vmatprep.subr.mxu0 0.0
      %746 = vmatpush1.msra.mxu0 0.0
      %747 = vmatprep.subr.mxu0 0.0
      %748 = vmatpush1.msra.mxu0 0.0
      %749 = vmatprep.subr.mxu0 0.0
      %750 = vmatpush1.msra.mxu0 0.0
      %751 = vmatprep.subr.mxu0 0.0
      %752 = vmatpush1.msra.mxu0 0.0
      %753 = vmatprep.subr.mxu0 0.0
      %754 = vmatpush1.msra.mxu0 0.0
      %755 = vmatprep.subr.mxu0 0.0
      %v756 = vand.u32 %v345, 4294901760
      %757 = vmatpush1.msra.mxu0 %v756
      %758 = vmatprep.subr.mxu0 0.0
      %759 = vmatpush2.msra.mxu0 0.0
      %760 = vmatprep.subr.mxu0 0.0
      %761 = vmatpush2.msra.mxu0 0.0
      %762 = vmatprep.subr.mxu0 0.0
      %763 = vmatpush2.msra.mxu0 0.0
      %764 = vmatprep.subr.mxu0 0.0
      %765 = vmatpush2.msra.mxu0 0.0
      %766 = vmatprep.subr.mxu0 0.0
      %767 = vmatpush2.msra.mxu0 0.0
      %768 = vmatprep.subr.mxu0 0.0
      %769 = vmatpush2.msra.mxu0 0.0
      %770 = vmatprep.subr.mxu0 0.0
      %771 = vmatpush2.msra.mxu0 0.0
      %772 = vmatprep.subr.mxu0 0.0
      %773 = vmatpush2.msra.mxu0 0.0
      %774 = vmatprep.subr.mxu0 0.0
      %775 = vmatpush2.msra.mxu0 0.0
      %776 = vmatprep.subr.mxu0 0.0
      %777 = vmatpush2.msra.mxu0 0.0
      %778 = vmatprep.subr.mxu0 0.0
      %779 = vmatpush2.msra.mxu0 0.0
      %780 = vmatprep.subr.mxu0 0.0
      %781 = vmatpush2.msra.mxu0 0.0
      %782 = vmatprep.subr.mxu0 0.0
      %783 = vmatpush2.msra.mxu0 0.0
      %784 = vmatprep.subr.mxu0 0.0
      %785 = vmatpush2.msra.mxu0 0.0
      %786 = vmatprep.subr.mxu0 0.0
      %787 = vmatpush2.msra.mxu0 0.0
      %788 = vmatprep.subr.mxu0 0.0
      %789 = vmatpush2.msra.mxu0 0.0
      %790 = vmatprep.mubr.f32.mxu0 0.0
      %v791 = vand.u32 %v349, 4294901760
      %792 = vmatmul.mubr.f32.gmra.mxu0 %v791
      %v793 = vpop.f32.mrf.mxu0
      %v794 = vadd.f32 %v722, %v793
      %v795 = vpop.f32.mrf.mxu0
      %796 = vdwg.mxu0
      %v797 = vmul.f32 %v794, %v794
      %s798 = scalar_lea.vmem %s311, 8
      %v799 = vld [vmem:[%s798] sm:$0xff]
      %v801 = vsel %vm347, %v799, 0
      %803 = vmatprep.subr.mxu0 0.0
      %804 = vmatpush1.msra.mxu0 0.0
      %805 = vmatprep.subr.mxu0 0.0
      %806 = vmatpush1.msra.mxu0 0.0
      %807 = vmatprep.subr.mxu0 0.0
      %808 = vmatpush1.msra.mxu0 0.0
      %809 = vmatprep.subr.mxu0 0.0
      %810 = vmatpush1.msra.mxu0 0.0
      %811 = vmatprep.subr.mxu0 0.0
      %812 = vmatpush1.msra.mxu0 0.0
      %813 = vmatprep.subr.mxu0 0.0
      %814 = vmatpush1.msra.mxu0 0.0
      %815 = vmatprep.subr.mxu0 0.0
      %816 = vmatpush1.msra.mxu0 0.0
      %817 = vmatprep.subr.mxu0 0.0
      %818 = vmatpush1.msra.mxu0 0.0
      %819 = vmatprep.subr.mxu0 0.0
      %820 = vmatpush1.msra.mxu0 0.0
      %821 = vmatprep.subr.mxu0 0.0
      %822 = vmatpush1.msra.mxu0 0.0
      %823 = vmatprep.subr.mxu0 0.0
      %824 = vmatpush1.msra.mxu0 0.0
      %825 = vmatprep.subr.mxu0 0.0
      %826 = vmatpush1.msra.mxu0 0.0
      %827 = vmatprep.subr.mxu0 0.0
      %828 = vmatpush1.msra.mxu0 0.0
      %829 = vmatprep.subr.mxu0 0.0
      %830 = vmatpush1.msra.mxu0 0.0
      %831 = vmatprep.subr.mxu0 0.0
      %832 = vmatpush1.msra.mxu0 0.0
      %833 = vmatprep.subr.mxu0 0.0
      %v834 = vand.u32 %v345, 4294901760
      %835 = vmatpush1.msra.mxu0 %v834
      %836 = vmatprep.subr.mxu0 0.0
      %837 = vmatpush2.msra.mxu0 0.0
      %838 = vmatprep.subr.mxu0 0.0
      %839 = vmatpush2.msra.mxu0 0.0
      %840 = vmatprep.subr.mxu0 0.0
      %841 = vmatpush2.msra.mxu0 0.0
      %842 = vmatprep.subr.mxu0 0.0
      %843 = vmatpush2.msra.mxu0 0.0
      %844 = vmatprep.subr.mxu0 0.0
      %845 = vmatpush2.msra.mxu0 0.0
      %846 = vmatprep.subr.mxu0 0.0
      %847 = vmatpush2.msra.mxu0 0.0
      %848 = vmatprep.subr.mxu0 0.0
      %849 = vmatpush2.msra.mxu0 0.0
      %850 = vmatprep.subr.mxu0 0.0
      %851 = vmatpush2.msra.mxu0 0.0
      %852 = vmatprep.subr.mxu0 0.0
      %853 = vmatpush2.msra.mxu0 0.0
      %854 = vmatprep.subr.mxu0 0.0
      %855 = vmatpush2.msra.mxu0 0.0
      %856 = vmatprep.subr.mxu0 0.0
      %857 = vmatpush2.msra.mxu0 0.0
      %858 = vmatprep.subr.mxu0 0.0
      %859 = vmatpush2.msra.mxu0 0.0
      %860 = vmatprep.subr.mxu0 0.0
      %861 = vmatpush2.msra.mxu0 0.0
      %862 = vmatprep.subr.mxu0 0.0
      %863 = vmatpush2.msra.mxu0 0.0
      %864 = vmatprep.subr.mxu0 0.0
      %865 = vmatpush2.msra.mxu0 0.0
      %866 = vmatprep.subr.mxu0 0.0
      %867 = vmatpush2.msra.mxu0 0.0
      %868 = vmatprep.mubr.f32.mxu0 0.0
      %v869 = vand.u32 %v801, 4294901760
      %v870 = vsub.f32 %v801, %v869
      %v871 = vand.u32 %v870, 4294901760
      %v872 = vsub.f32 %v870, %v871
      %v873 = vand.u32 %v872, 4294901760
      %874 = vmatmul.mubr.f32.gmra.mxu0 %v873
      %v875 = vpop.f32.mrf.mxu0
      %v876 = vadd.f32 0.0, %v875
      %v877 = vpop.f32.mrf.mxu0
      %878 = vdwg.mxu0
      %879 = vmatprep.subr.mxu0 0.0
      %880 = vmatpush1.msra.mxu0 0.0
      %881 = vmatprep.subr.mxu0 0.0
      %882 = vmatpush1.msra.mxu0 0.0
      %883 = vmatprep.subr.mxu0 0.0
      %884 = vmatpush1.msra.mxu0 0.0
      %885 = vmatprep.subr.mxu0 0.0
      %886 = vmatpush1.msra.mxu0 0.0
      %887 = vmatprep.subr.mxu0 0.0
      %888 = vmatpush1.msra.mxu0 0.0
      %889 = vmatprep.subr.mxu0 0.0
      %890 = vmatpush1.msra.mxu0 0.0
      %891 = vmatprep.subr.mxu0 0.0
      %892 = vmatpush1.msra.mxu0 0.0
      %893 = vmatprep.subr.mxu0 0.0
      %894 = vmatpush1.msra.mxu0 0.0
      %895 = vmatprep.subr.mxu0 0.0
      %896 = vmatpush1.msra.mxu0 0.0
      %897 = vmatprep.subr.mxu0 0.0
      %898 = vmatpush1.msra.mxu0 0.0
      %899 = vmatprep.subr.mxu0 0.0
      %900 = vmatpush1.msra.mxu0 0.0
      %901 = vmatprep.subr.mxu0 0.0
      %902 = vmatpush1.msra.mxu0 0.0
      %903 = vmatprep.subr.mxu0 0.0
      %904 = vmatpush1.msra.mxu0 0.0
      %905 = vmatprep.subr.mxu0 0.0
      %906 = vmatpush1.msra.mxu0 0.0
      %907 = vmatprep.subr.mxu0 0.0
      %908 = vmatpush1.msra.mxu0 0.0
      %909 = vmatprep.subr.mxu0 0.0
      %v910 = vand.u32 %v345, 4294901760
      %v911 = vsub.f32 %v345, %v910
      %v912 = vand.u32 %v911, 4294901760
      %v913 = vsub.f32 %v911, %v912
      %v914 = vand.u32 %v913, 4294901760
      %915 = vmatpush1.msra.mxu0 %v914
      %916 = vmatprep.subr.mxu0 0.0
      %917 = vmatpush2.msra.mxu0 0.0
      %918 = vmatprep.subr.mxu0 0.0
      %919 = vmatpush2.msra.mxu0 0.0
      %920 = vmatprep.subr.mxu0 0.0
      %921 = vmatpush2.msra.mxu0 0.0
      %922 = vmatprep.subr.mxu0 0.0
      %923 = vmatpush2.msra.mxu0 0.0
      %924 = vmatprep.subr.mxu0 0.0
      %925 = vmatpush2.msra.mxu0 0.0
      %926 = vmatprep.subr.mxu0 0.0
      %927 = vmatpush2.msra.mxu0 0.0
      %928 = vmatprep.subr.mxu0 0.0
      %929 = vmatpush2.msra.mxu0 0.0
      %930 = vmatprep.subr.mxu0 0.0
      %931 = vmatpush2.msra.mxu0 0.0
      %932 = vmatprep.subr.mxu0 0.0
      %933 = vmatpush2.msra.mxu0 0.0
      %934 = vmatprep.subr.mxu0 0.0
      %935 = vmatpush2.msra.mxu0 0.0
      %936 = vmatprep.subr.mxu0 0.0
      %937 = vmatpush2.msra.mxu0 0.0
      %938 = vmatprep.subr.mxu0 0.0
      %939 = vmatpush2.msra.mxu0 0.0
      %940 = vmatprep.subr.mxu0 0.0
      %941 = vmatpush2.msra.mxu0 0.0
      %942 = vmatprep.subr.mxu0 0.0
      %943 = vmatpush2.msra.mxu0 0.0
      %944 = vmatprep.subr.mxu0 0.0
      %945 = vmatpush2.msra.mxu0 0.0
      %946 = vmatprep.subr.mxu0 0.0
      %947 = vmatpush2.msra.mxu0 0.0
      %948 = vmatprep.mubr.f32.mxu0 0.0
      %v949 = vand.u32 %v801, 4294901760
      %950 = vmatmul.mubr.f32.gmra.mxu0 %v949
      %v951 = vpop.f32.mrf.mxu0
      %v952 = vadd.f32 %v876, %v951
      %v953 = vpop.f32.mrf.mxu0
      %954 = vdwg.mxu0
      %955 = vmatprep.subr.mxu0 0.0
      %956 = vmatpush1.msra.mxu0 0.0
      %957 = vmatprep.subr.mxu0 0.0
      %958 = vmatpush1.msra.mxu0 0.0
      %959 = vmatprep.subr.mxu0 0.0
      %960 = vmatpush1.msra.mxu0 0.0
      %961 = vmatprep.subr.mxu0 0.0
      %962 = vmatpush1.msra.mxu0 0.0
      %963 = vmatprep.subr.mxu0 0.0
      %964 = vmatpush1.msra.mxu0 0.0
      %965 = vmatprep.subr.mxu0 0.0
      %966 = vmatpush1.msra.mxu0 0.0
      %967 = vmatprep.subr.mxu0 0.0
      %968 = vmatpush1.msra.mxu0 0.0
      %969 = vmatprep.subr.mxu0 0.0
      %970 = vmatpush1.msra.mxu0 0.0
      %971 = vmatprep.subr.mxu0 0.0
      %972 = vmatpush1.msra.mxu0 0.0
      %973 = vmatprep.subr.mxu0 0.0
      %974 = vmatpush1.msra.mxu0 0.0
      %975 = vmatprep.subr.mxu0 0.0
      %976 = vmatpush1.msra.mxu0 0.0
      %977 = vmatprep.subr.mxu0 0.0
      %978 = vmatpush1.msra.mxu0 0.0
      %979 = vmatprep.subr.mxu0 0.0
      %980 = vmatpush1.msra.mxu0 0.0
      %981 = vmatprep.subr.mxu0 0.0
      %982 = vmatpush1.msra.mxu0 0.0
      %983 = vmatprep.subr.mxu0 0.0
      %984 = vmatpush1.msra.mxu0 0.0
      %985 = vmatprep.subr.mxu0 0.0
      %v986 = vand.u32 %v345, 4294901760
      %v987 = vsub.f32 %v345, %v986
      %988 = vmatpush1.msra.mxu0 %v987
      %989 = vmatprep.subr.mxu0 0.0
      %990 = vmatpush2.msra.mxu0 0.0
      %991 = vmatprep.subr.mxu0 0.0
      %992 = vmatpush2.msra.mxu0 0.0
      %993 = vmatprep.subr.mxu0 0.0
      %994 = vmatpush2.msra.mxu0 0.0
      %995 = vmatprep.subr.mxu0 0.0
      %996 = vmatpush2.msra.mxu0 0.0
      %997 = vmatprep.subr.mxu0 0.0
      %998 = vmatpush2.msra.mxu0 0.0
      %999 = vmatprep.subr.mxu0 0.0
      %1000 = vmatpush2.msra.mxu0 0.0
      %1001 = vmatprep.subr.mxu0 0.0
      %1002 = vmatpush2.msra.mxu0 0.0
      %1003 = vmatprep.subr.mxu0 0.0
      %1004 = vmatpush2.msra.mxu0 0.0
      %1005 = vmatprep.subr.mxu0 0.0
      %1006 = vmatpush2.msra.mxu0 0.0
      %1007 = vmatprep.subr.mxu0 0.0
      %1008 = vmatpush2.msra.mxu0 0.0
      %1009 = vmatprep.subr.mxu0 0.0
      %1010 = vmatpush2.msra.mxu0 0.0
      %1011 = vmatprep.subr.mxu0 0.0
      %1012 = vmatpush2.msra.mxu0 0.0
      %1013 = vmatprep.subr.mxu0 0.0
      %1014 = vmatpush2.msra.mxu0 0.0
      %1015 = vmatprep.subr.mxu0 0.0
      %1016 = vmatpush2.msra.mxu0 0.0
      %1017 = vmatprep.subr.mxu0 0.0
      %1018 = vmatpush2.msra.mxu0 0.0
      %1019 = vmatprep.subr.mxu0 0.0
      %1020 = vmatpush2.msra.mxu0 0.0
      %1021 = vmatprep.mubr.f32.mxu0 0.0
      %v1022 = vand.u32 %v801, 4294901760
      %v1023 = vsub.f32 %v801, %v1022
      %1024 = vmatmul.mubr.f32.gmra.mxu0 %v1023
      %v1025 = vpop.f32.mrf.mxu0
      %v1026 = vadd.f32 %v952, %v1025
      %v1027 = vpop.f32.mrf.mxu0
      %1028 = vdwg.mxu0
      %1029 = vmatprep.subr.mxu0 0.0
      %1030 = vmatpush1.msra.mxu0 0.0
      %1031 = vmatprep.subr.mxu0 0.0
      %1032 = vmatpush1.msra.mxu0 0.0
      %1033 = vmatprep.subr.mxu0 0.0
      %1034 = vmatpush1.msra.mxu0 0.0
      %1035 = vmatprep.subr.mxu0 0.0
      %1036 = vmatpush1.msra.mxu0 0.0
      %1037 = vmatprep.subr.mxu0 0.0
      %1038 = vmatpush1.msra.mxu0 0.0
      %1039 = vmatprep.subr.mxu0 0.0
      %1040 = vmatpush1.msra.mxu0 0.0
      %1041 = vmatprep.subr.mxu0 0.0
      %1042 = vmatpush1.msra.mxu0 0.0
      %1043 = vmatprep.subr.mxu0 0.0
      %1044 = vmatpush1.msra.mxu0 0.0
      %1045 = vmatprep.subr.mxu0 0.0
      %1046 = vmatpush1.msra.mxu0 0.0
      %1047 = vmatprep.subr.mxu0 0.0
      %1048 = vmatpush1.msra.mxu0 0.0
      %1049 = vmatprep.subr.mxu0 0.0
      %1050 = vmatpush1.msra.mxu0 0.0
      %1051 = vmatprep.subr.mxu0 0.0
      %1052 = vmatpush1.msra.mxu0 0.0
      %1053 = vmatprep.subr.mxu0 0.0
      %1054 = vmatpush1.msra.mxu0 0.0
      %1055 = vmatprep.subr.mxu0 0.0
      %1056 = vmatpush1.msra.mxu0 0.0
      %1057 = vmatprep.subr.mxu0 0.0
      %1058 = vmatpush1.msra.mxu0 0.0
      %1059 = vmatprep.subr.mxu0 0.0
      %v1060 = vand.u32 %v345, 4294901760
      %1061 = vmatpush1.msra.mxu0 %v1060
      %1062 = vmatprep.subr.mxu0 0.0
      %1063 = vmatpush2.msra.mxu0 0.0
      %1064 = vmatprep.subr.mxu0 0.0
      %1065 = vmatpush2.msra.mxu0 0.0
      %1066 = vmatprep.subr.mxu0 0.0
      %1067 = vmatpush2.msra.mxu0 0.0
      %1068 = vmatprep.subr.mxu0 0.0
      %1069 = vmatpush2.msra.mxu0 0.0
      %1070 = vmatprep.subr.mxu0 0.0
      %1071 = vmatpush2.msra.mxu0 0.0
      %1072 = vmatprep.subr.mxu0 0.0
      %1073 = vmatpush2.msra.mxu0 0.0
      %1074 = vmatprep.subr.mxu0 0.0
      %1075 = vmatpush2.msra.mxu0 0.0
      %1076 = vmatprep.subr.mxu0 0.0
      %1077 = vmatpush2.msra.mxu0 0.0
      %1078 = vmatprep.subr.mxu0 0.0
      %1079 = vmatpush2.msra.mxu0 0.0
      %1080 = vmatprep.subr.mxu0 0.0
      %1081 = vmatpush2.msra.mxu0 0.0
      %1082 = vmatprep.subr.mxu0 0.0
      %1083 = vmatpush2.msra.mxu0 0.0
      %1084 = vmatprep.subr.mxu0 0.0
      %1085 = vmatpush2.msra.mxu0 0.0
      %1086 = vmatprep.subr.mxu0 0.0
      %1087 = vmatpush2.msra.mxu0 0.0
      %1088 = vmatprep.subr.mxu0 0.0
      %1089 = vmatpush2.msra.mxu0 0.0
      %1090 = vmatprep.subr.mxu0 0.0
      %1091 = vmatpush2.msra.mxu0 0.0
      %1092 = vmatprep.subr.mxu0 0.0
      %1093 = vmatpush2.msra.mxu0 0.0
      %1094 = vmatprep.mubr.f32.mxu0 0.0
      %v1095 = vand.u32 %v801, 4294901760
      %v1096 = vsub.f32 %v801, %v1095
      %v1097 = vand.u32 %v1096, 4294901760
      %1098 = vmatmul.mubr.f32.gmra.mxu0 %v1097
      %v1099 = vpop.f32.mrf.mxu0
      %v1100 = vadd.f32 %v1026, %v1099
      %v1101 = vpop.f32.mrf.mxu0
      %1102 = vdwg.mxu0
      %1103 = vmatprep.subr.mxu0 0.0
      %1104 = vmatpush1.msra.mxu0 0.0
      %1105 = vmatprep.subr.mxu0 0.0
      %1106 = vmatpush1.msra.mxu0 0.0
      %1107 = vmatprep.subr.mxu0 0.0
      %1108 = vmatpush1.msra.mxu0 0.0
      %1109 = vmatprep.subr.mxu0 0.0
      %1110 = vmatpush1.msra.mxu0 0.0
      %1111 = vmatprep.subr.mxu0 0.0
      %1112 = vmatpush1.msra.mxu0 0.0
      %1113 = vmatprep.subr.mxu0 0.0
      %1114 = vmatpush1.msra.mxu0 0.0
      %1115 = vmatprep.subr.mxu0 0.0
      %1116 = vmatpush1.msra.mxu0 0.0
      %1117 = vmatprep.subr.mxu0 0.0
      %1118 = vmatpush1.msra.mxu0 0.0
      %1119 = vmatprep.subr.mxu0 0.0
      %1120 = vmatpush1.msra.mxu0 0.0
      %1121 = vmatprep.subr.mxu0 0.0
      %1122 = vmatpush1.msra.mxu0 0.0
      %1123 = vmatprep.subr.mxu0 0.0
      %1124 = vmatpush1.msra.mxu0 0.0
      %1125 = vmatprep.subr.mxu0 0.0
      %1126 = vmatpush1.msra.mxu0 0.0
      %1127 = vmatprep.subr.mxu0 0.0
      %1128 = vmatpush1.msra.mxu0 0.0
      %1129 = vmatprep.subr.mxu0 0.0
      %1130 = vmatpush1.msra.mxu0 0.0
      %1131 = vmatprep.subr.mxu0 0.0
      %1132 = vmatpush1.msra.mxu0 0.0
      %1133 = vmatprep.subr.mxu0 0.0
      %v1134 = vand.u32 %v345, 4294901760
      %v1135 = vsub.f32 %v345, %v1134
      %v1136 = vand.u32 %v1135, 4294901760
      %1137 = vmatpush1.msra.mxu0 %v1136
      %1138 = vmatprep.subr.mxu0 0.0
      %1139 = vmatpush2.msra.mxu0 0.0
      %1140 = vmatprep.subr.mxu0 0.0
      %1141 = vmatpush2.msra.mxu0 0.0
      %1142 = vmatprep.subr.mxu0 0.0
      %1143 = vmatpush2.msra.mxu0 0.0
      %1144 = vmatprep.subr.mxu0 0.0
      %1145 = vmatpush2.msra.mxu0 0.0
      %1146 = vmatprep.subr.mxu0 0.0
      %1147 = vmatpush2.msra.mxu0 0.0
      %1148 = vmatprep.subr.mxu0 0.0
      %1149 = vmatpush2.msra.mxu0 0.0
      %1150 = vmatprep.subr.mxu0 0.0
      %1151 = vmatpush2.msra.mxu0 0.0
      %1152 = vmatprep.subr.mxu0 0.0
      %1153 = vmatpush2.msra.mxu0 0.0
      %1154 = vmatprep.subr.mxu0 0.0
      %1155 = vmatpush2.msra.mxu0 0.0
      %1156 = vmatprep.subr.mxu0 0.0
      %1157 = vmatpush2.msra.mxu0 0.0
      %1158 = vmatprep.subr.mxu0 0.0
      %1159 = vmatpush2.msra.mxu0 0.0
      %1160 = vmatprep.subr.mxu0 0.0
      %1161 = vmatpush2.msra.mxu0 0.0
      %1162 = vmatprep.subr.mxu0 0.0
      %1163 = vmatpush2.msra.mxu0 0.0
      %1164 = vmatprep.subr.mxu0 0.0
      %1165 = vmatpush2.msra.mxu0 0.0
      %1166 = vmatprep.subr.mxu0 0.0
      %1167 = vmatpush2.msra.mxu0 0.0
      %1168 = vmatprep.subr.mxu0 0.0
      %1169 = vmatpush2.msra.mxu0 0.0
      %1170 = vmatprep.mubr.f32.mxu0 0.0
      %v1171 = vand.u32 %v801, 4294901760
      %1172 = vmatmul.mubr.f32.gmra.mxu0 %v1171
      %v1173 = vpop.f32.mrf.mxu0
      %v1174 = vadd.f32 %v1100, %v1173
      %v1175 = vpop.f32.mrf.mxu0
      %1176 = vdwg.mxu0
      %1177 = vmatprep.subr.mxu0 0.0
      %1178 = vmatpush1.msra.mxu0 0.0
      %1179 = vmatprep.subr.mxu0 0.0
      %1180 = vmatpush1.msra.mxu0 0.0
      %1181 = vmatprep.subr.mxu0 0.0
      %1182 = vmatpush1.msra.mxu0 0.0
      %1183 = vmatprep.subr.mxu0 0.0
      %1184 = vmatpush1.msra.mxu0 0.0
      %1185 = vmatprep.subr.mxu0 0.0
      %1186 = vmatpush1.msra.mxu0 0.0
      %1187 = vmatprep.subr.mxu0 0.0
      %1188 = vmatpush1.msra.mxu0 0.0
      %1189 = vmatprep.subr.mxu0 0.0
      %1190 = vmatpush1.msra.mxu0 0.0
      %1191 = vmatprep.subr.mxu0 0.0
      %1192 = vmatpush1.msra.mxu0 0.0
      %1193 = vmatprep.subr.mxu0 0.0
      %1194 = vmatpush1.msra.mxu0 0.0
      %1195 = vmatprep.subr.mxu0 0.0
      %1196 = vmatpush1.msra.mxu0 0.0
      %1197 = vmatprep.subr.mxu0 0.0
      %1198 = vmatpush1.msra.mxu0 0.0
      %1199 = vmatprep.subr.mxu0 0.0
      %1200 = vmatpush1.msra.mxu0 0.0
      %1201 = vmatprep.subr.mxu0 0.0
      %1202 = vmatpush1.msra.mxu0 0.0
      %1203 = vmatprep.subr.mxu0 0.0
      %1204 = vmatpush1.msra.mxu0 0.0
      %1205 = vmatprep.subr.mxu0 0.0
      %1206 = vmatpush1.msra.mxu0 0.0
      %1207 = vmatprep.subr.mxu0 0.0
      %v1208 = vand.u32 %v345, 4294901760
      %1209 = vmatpush1.msra.mxu0 %v1208
      %1210 = vmatprep.subr.mxu0 0.0
      %1211 = vmatpush2.msra.mxu0 0.0
      %1212 = vmatprep.subr.mxu0 0.0
      %1213 = vmatpush2.msra.mxu0 0.0
      %1214 = vmatprep.subr.mxu0 0.0
      %1215 = vmatpush2.msra.mxu0 0.0
      %1216 = vmatprep.subr.mxu0 0.0
      %1217 = vmatpush2.msra.mxu0 0.0
      %1218 = vmatprep.subr.mxu0 0.0
      %1219 = vmatpush2.msra.mxu0 0.0
      %1220 = vmatprep.subr.mxu0 0.0
      %1221 = vmatpush2.msra.mxu0 0.0
      %1222 = vmatprep.subr.mxu0 0.0
      %1223 = vmatpush2.msra.mxu0 0.0
      %1224 = vmatprep.subr.mxu0 0.0
      %1225 = vmatpush2.msra.mxu0 0.0
      %1226 = vmatprep.subr.mxu0 0.0
      %1227 = vmatpush2.msra.mxu0 0.0
      %1228 = vmatprep.subr.mxu0 0.0
      %1229 = vmatpush2.msra.mxu0 0.0
      %1230 = vmatprep.subr.mxu0 0.0
      %1231 = vmatpush2.msra.mxu0 0.0
      %1232 = vmatprep.subr.mxu0 0.0
      %1233 = vmatpush2.msra.mxu0 0.0
      %1234 = vmatprep.subr.mxu0 0.0
      %1235 = vmatpush2.msra.mxu0 0.0
      %1236 = vmatprep.subr.mxu0 0.0
      %1237 = vmatpush2.msra.mxu0 0.0
      %1238 = vmatprep.subr.mxu0 0.0
      %1239 = vmatpush2.msra.mxu0 0.0
      %1240 = vmatprep.subr.mxu0 0.0
      %1241 = vmatpush2.msra.mxu0 0.0
      %1242 = vmatprep.mubr.f32.mxu0 0.0
      %v1243 = vand.u32 %v801, 4294901760
      %1244 = vmatmul.mubr.f32.gmra.mxu0 %v1243
      %v1245 = vpop.f32.mrf.mxu0
      %v1246 = vadd.f32 %v1174, %v1245
      %v1247 = vpop.f32.mrf.mxu0
      %1248 = vdwg.mxu0
      %v1249 = vmul.f32 %v1246, %v1246
      %v1250 = vadd.f32 %v797, %v1249
      %s1251 = scalar_lea.vmem %s311, 16
      %v1252 = vld [vmem:[%s1251] sm:$0xff]
      %v1254 = vsel %vm347, %v1252, 0
      %1256 = vmatprep.subr.mxu0 0.0
      %1257 = vmatpush1.msra.mxu0 0.0
      %1258 = vmatprep.subr.mxu0 0.0
      %1259 = vmatpush1.msra.mxu0 0.0
      %1260 = vmatprep.subr.mxu0 0.0
      %1261 = vmatpush1.msra.mxu0 0.0
      %1262 = vmatprep.subr.mxu0 0.0
      %1263 = vmatpush1.msra.mxu0 0.0
      %1264 = vmatprep.subr.mxu0 0.0
      %1265 = vmatpush1.msra.mxu0 0.0
      %1266 = vmatprep.subr.mxu0 0.0
      %1267 = vmatpush1.msra.mxu0 0.0
      %1268 = vmatprep.subr.mxu0 0.0
      %1269 = vmatpush1.msra.mxu0 0.0
      %1270 = vmatprep.subr.mxu0 0.0
      %1271 = vmatpush1.msra.mxu0 0.0
      %1272 = vmatprep.subr.mxu0 0.0
      %1273 = vmatpush1.msra.mxu0 0.0
      %1274 = vmatprep.subr.mxu0 0.0
      %1275 = vmatpush1.msra.mxu0 0.0
      %1276 = vmatprep.subr.mxu0 0.0
      %1277 = vmatpush1.msra.mxu0 0.0
      %1278 = vmatprep.subr.mxu0 0.0
      %1279 = vmatpush1.msra.mxu0 0.0
      %1280 = vmatprep.subr.mxu0 0.0
      %1281 = vmatpush1.msra.mxu0 0.0
      %1282 = vmatprep.subr.mxu0 0.0
      %1283 = vmatpush1.msra.mxu0 0.0
      %1284 = vmatprep.subr.mxu0 0.0
      %1285 = vmatpush1.msra.mxu0 0.0
      %1286 = vmatprep.subr.mxu0 0.0
      %v1287 = vand.u32 %v345, 4294901760
      %1288 = vmatpush1.msra.mxu0 %v1287
      %1289 = vmatprep.subr.mxu0 0.0
      %1290 = vmatpush2.msra.mxu0 0.0
      %1291 = vmatprep.subr.mxu0 0.0
      %1292 = vmatpush2.msra.mxu0 0.0
      %1293 = vmatprep.subr.mxu0 0.0
      %1294 = vmatpush2.msra.mxu0 0.0
      %1295 = vmatprep.subr.mxu0 0.0
      %1296 = vmatpush2.msra.mxu0 0.0
      %1297 = vmatprep.subr.mxu0 0.0
      %1298 = vmatpush2.msra.mxu0 0.0
      %1299 = vmatprep.subr.mxu0 0.0
      %1300 = vmatpush2.msra.mxu0 0.0
      %1301 = vmatprep.subr.mxu0 0.0
      %1302 = vmatpush2.msra.mxu0 0.0
      %1303 = vmatprep.subr.mxu0 0.0
      %1304 = vmatpush2.msra.mxu0 0.0
      %1305 = vmatprep.subr.mxu0 0.0
      %1306 = vmatpush2.msra.mxu0 0.0
      %1307 = vmatprep.subr.mxu0 0.0
      %1308 = vmatpush2.msra.mxu0 0.0
      %1309 = vmatprep.subr.mxu0 0.0
      %1310 = vmatpush2.msra.mxu0 0.0
      %1311 = vmatprep.subr.mxu0 0.0
      %1312 = vmatpush2.msra.mxu0 0.0
      %1313 = vmatprep.subr.mxu0 0.0
      %1314 = vmatpush2.msra.mxu0 0.0
      %1315 = vmatprep.subr.mxu0 0.0
      %1316 = vmatpush2.msra.mxu0 0.0
      %1317 = vmatprep.subr.mxu0 0.0
      %1318 = vmatpush2.msra.mxu0 0.0
      %1319 = vmatprep.subr.mxu0 0.0
      %1320 = vmatpush2.msra.mxu0 0.0
      %1321 = vmatprep.mubr.f32.mxu0 0.0
      %v1322 = vand.u32 %v1254, 4294901760
      %v1323 = vsub.f32 %v1254, %v1322
      %v1324 = vand.u32 %v1323, 4294901760
      %v1325 = vsub.f32 %v1323, %v1324
      %v1326 = vand.u32 %v1325, 4294901760
      %1327 = vmatmul.mubr.f32.gmra.mxu0 %v1326
      %v1328 = vpop.f32.mrf.mxu0
      %v1329 = vadd.f32 0.0, %v1328
      %v1330 = vpop.f32.mrf.mxu0
      %1331 = vdwg.mxu0
      %1332 = vmatprep.subr.mxu0 0.0
      %1333 = vmatpush1.msra.mxu0 0.0
      %1334 = vmatprep.subr.mxu0 0.0
      %1335 = vmatpush1.msra.mxu0 0.0
      %1336 = vmatprep.subr.mxu0 0.0
      %1337 = vmatpush1.msra.mxu0 0.0
      %1338 = vmatprep.subr.mxu0 0.0
      %1339 = vmatpush1.msra.mxu0 0.0
      %1340 = vmatprep.subr.mxu0 0.0
      %1341 = vmatpush1.msra.mxu0 0.0
      %1342 = vmatprep.subr.mxu0 0.0
      %1343 = vmatpush1.msra.mxu0 0.0
      %1344 = vmatprep.subr.mxu0 0.0
      %1345 = vmatpush1.msra.mxu0 0.0
      %1346 = vmatprep.subr.mxu0 0.0
      %1347 = vmatpush1.msra.mxu0 0.0
      %1348 = vmatprep.subr.mxu0 0.0
      %1349 = vmatpush1.msra.mxu0 0.0
      %1350 = vmatprep.subr.mxu0 0.0
      %1351 = vmatpush1.msra.mxu0 0.0
      %1352 = vmatprep.subr.mxu0 0.0
      %1353 = vmatpush1.msra.mxu0 0.0
      %1354 = vmatprep.subr.mxu0 0.0
      %1355 = vmatpush1.msra.mxu0 0.0
      %1356 = vmatprep.subr.mxu0 0.0
      %1357 = vmatpush1.msra.mxu0 0.0
      %1358 = vmatprep.subr.mxu0 0.0
      %1359 = vmatpush1.msra.mxu0 0.0
      %1360 = vmatprep.subr.mxu0 0.0
      %1361 = vmatpush1.msra.mxu0 0.0
      %1362 = vmatprep.subr.mxu0 0.0
      %v1363 = vand.u32 %v345, 4294901760
      %v1364 = vsub.f32 %v345, %v1363
      %v1365 = vand.u32 %v1364, 4294901760
      %v1366 = vsub.f32 %v1364, %v1365
      %v1367 = vand.u32 %v1366, 4294901760
      %1368 = vmatpush1.msra.mxu0 %v1367
      %1369 = vmatprep.subr.mxu0 0.0
      %1370 = vmatpush2.msra.mxu0 0.0
      %1371 = vmatprep.subr.mxu0 0.0
      %1372 = vmatpush2.msra.mxu0 0.0
      %1373 = vmatprep.subr.mxu0 0.0
      %1374 = vmatpush2.msra.mxu0 0.0
      %1375 = vmatprep.subr.mxu0 0.0
      %1376 = vmatpush2.msra.mxu0 0.0
      %1377 = vmatprep.subr.mxu0 0.0
      %1378 = vmatpush2.msra.mxu0 0.0
      %1379 = vmatprep.subr.mxu0 0.0
      %1380 = vmatpush2.msra.mxu0 0.0
      %1381 = vmatprep.subr.mxu0 0.0
      %1382 = vmatpush2.msra.mxu0 0.0
      %1383 = vmatprep.subr.mxu0 0.0
      %1384 = vmatpush2.msra.mxu0 0.0
      %1385 = vmatprep.subr.mxu0 0.0
      %1386 = vmatpush2.msra.mxu0 0.0
      %1387 = vmatprep.subr.mxu0 0.0
      %1388 = vmatpush2.msra.mxu0 0.0
      %1389 = vmatprep.subr.mxu0 0.0
      %1390 = vmatpush2.msra.mxu0 0.0
      %1391 = vmatprep.subr.mxu0 0.0
      %1392 = vmatpush2.msra.mxu0 0.0
      %1393 = vmatprep.subr.mxu0 0.0
      %1394 = vmatpush2.msra.mxu0 0.0
      %1395 = vmatprep.subr.mxu0 0.0
      %1396 = vmatpush2.msra.mxu0 0.0
      %1397 = vmatprep.subr.mxu0 0.0
      %1398 = vmatpush2.msra.mxu0 0.0
      %1399 = vmatprep.subr.mxu0 0.0
      %1400 = vmatpush2.msra.mxu0 0.0
      %1401 = vmatprep.mubr.f32.mxu0 0.0
      %v1402 = vand.u32 %v1254, 4294901760
      %1403 = vmatmul.mubr.f32.gmra.mxu0 %v1402
      %v1404 = vpop.f32.mrf.mxu0
      %v1405 = vadd.f32 %v1329, %v1404
      %v1406 = vpop.f32.mrf.mxu0
      %1407 = vdwg.mxu0
      %1408 = vmatprep.subr.mxu0 0.0
      %1409 = vmatpush1.msra.mxu0 0.0
      %1410 = vmatprep.subr.mxu0 0.0
      %1411 = vmatpush1.msra.mxu0 0.0
      %1412 = vmatprep.subr.mxu0 0.0
      %1413 = vmatpush1.msra.mxu0 0.0
      %1414 = vmatprep.subr.mxu0 0.0
      %1415 = vmatpush1.msra.mxu0 0.0
      %1416 = vmatprep.subr.mxu0 0.0
      %1417 = vmatpush1.msra.mxu0 0.0
      %1418 = vmatprep.subr.mxu0 0.0
      %1419 = vmatpush1.msra.mxu0 0.0
      %1420 = vmatprep.subr.mxu0 0.0
      %1421 = vmatpush1.msra.mxu0 0.0
      %1422 = vmatprep.subr.mxu0 0.0
      %1423 = vmatpush1.msra.mxu0 0.0
      %1424 = vmatprep.subr.mxu0 0.0
      %1425 = vmatpush1.msra.mxu0 0.0
      %1426 = vmatprep.subr.mxu0 0.0
      %1427 = vmatpush1.msra.mxu0 0.0
      %1428 = vmatprep.subr.mxu0 0.0
      %1429 = vmatpush1.msra.mxu0 0.0
      %1430 = vmatprep.subr.mxu0 0.0
      %1431 = vmatpush1.msra.mxu0 0.0
      %1432 = vmatprep.subr.mxu0 0.0
      %1433 = vmatpush1.msra.mxu0 0.0
      %1434 = vmatprep.subr.mxu0 0.0
      %1435 = vmatpush1.msra.mxu0 0.0
      %1436 = vmatprep.subr.mxu0 0.0
      %1437 = vmatpush1.msra.mxu0 0.0
      %1438 = vmatprep.subr.mxu0 0.0
      %v1439 = vand.u32 %v345, 4294901760
      %v1440 = vsub.f32 %v345, %v1439
      %1441 = vmatpush1.msra.mxu0 %v1440
      %1442 = vmatprep.subr.mxu0 0.0
      %1443 = vmatpush2.msra.mxu0 0.0
      %1444 = vmatprep.subr.mxu0 0.0
      %1445 = vmatpush2.msra.mxu0 0.0
      %1446 = vmatprep.subr.mxu0 0.0
      %1447 = vmatpush2.msra.mxu0 0.0
      %1448 = vmatprep.subr.mxu0 0.0
      %1449 = vmatpush2.msra.mxu0 0.0
      %1450 = vmatprep.subr.mxu0 0.0
      %1451 = vmatpush2.msra.mxu0 0.0
      %1452 = vmatprep.subr.mxu0 0.0
      %1453 = vmatpush2.msra.mxu0 0.0
      %1454 = vmatprep.subr.mxu0 0.0
      %1455 = vmatpush2.msra.mxu0 0.0
      %1456 = vmatprep.subr.mxu0 0.0
      %1457 = vmatpush2.msra.mxu0 0.0
      %1458 = vmatprep.subr.mxu0 0.0
      %1459 = vmatpush2.msra.mxu0 0.0
      %1460 = vmatprep.subr.mxu0 0.0
      %1461 = vmatpush2.msra.mxu0 0.0
      %1462 = vmatprep.subr.mxu0 0.0
      %1463 = vmatpush2.msra.mxu0 0.0
      %1464 = vmatprep.subr.mxu0 0.0
      %1465 = vmatpush2.msra.mxu0 0.0
      %1466 = vmatprep.subr.mxu0 0.0
      %1467 = vmatpush2.msra.mxu0 0.0
      %1468 = vmatprep.subr.mxu0 0.0
      %1469 = vmatpush2.msra.mxu0 0.0
      %1470 = vmatprep.subr.mxu0 0.0
      %1471 = vmatpush2.msra.mxu0 0.0
      %1472 = vmatprep.subr.mxu0 0.0
      %1473 = vmatpush2.msra.mxu0 0.0
      %1474 = vmatprep.mubr.f32.mxu0 0.0
      %v1475 = vand.u32 %v1254, 4294901760
      %v1476 = vsub.f32 %v1254, %v1475
      %1477 = vmatmul.mubr.f32.gmra.mxu0 %v1476
      %v1478 = vpop.f32.mrf.mxu0
      %v1479 = vadd.f32 %v1405, %v1478
      %v1480 = vpop.f32.mrf.mxu0
      %1481 = vdwg.mxu0
      %1482 = vmatprep.subr.mxu0 0.0
      %1483 = vmatpush1.msra.mxu0 0.0
      %1484 = vmatprep.subr.mxu0 0.0
      %1485 = vmatpush1.msra.mxu0 0.0
      %1486 = vmatprep.subr.mxu0 0.0
      %1487 = vmatpush1.msra.mxu0 0.0
      %1488 = vmatprep.subr.mxu0 0.0
      %1489 = vmatpush1.msra.mxu0 0.0
      %1490 = vmatprep.subr.mxu0 0.0
      %1491 = vmatpush1.msra.mxu0 0.0
      %1492 = vmatprep.subr.mxu0 0.0
      %1493 = vmatpush1.msra.mxu0 0.0
      %1494 = vmatprep.subr.mxu0 0.0
      %1495 = vmatpush1.msra.mxu0 0.0
      %1496 = vmatprep.subr.mxu0 0.0
      %1497 = vmatpush1.msra.mxu0 0.0
      %1498 = vmatprep.subr.mxu0 0.0
      %1499 = vmatpush1.msra.mxu0 0.0
      %1500 = vmatprep.subr.mxu0 0.0
      %1501 = vmatpush1.msra.mxu0 0.0
      %1502 = vmatprep.subr.mxu0 0.0
      %1503 = vmatpush1.msra.mxu0 0.0
      %1504 = vmatprep.subr.mxu0 0.0
      %1505 = vmatpush1.msra.mxu0 0.0
      %1506 = vmatprep.subr.mxu0 0.0
      %1507 = vmatpush1.msra.mxu0 0.0
      %1508 = vmatprep.subr.mxu0 0.0
      %1509 = vmatpush1.msra.mxu0 0.0
      %1510 = vmatprep.subr.mxu0 0.0
      %1511 = vmatpush1.msra.mxu0 0.0
      %1512 = vmatprep.subr.mxu0 0.0
      %v1513 = vand.u32 %v345, 4294901760
      %1514 = vmatpush1.msra.mxu0 %v1513
      %1515 = vmatprep.subr.mxu0 0.0
      %1516 = vmatpush2.msra.mxu0 0.0
      %1517 = vmatprep.subr.mxu0 0.0
      %1518 = vmatpush2.msra.mxu0 0.0
      %1519 = vmatprep.subr.mxu0 0.0
      %1520 = vmatpush2.msra.mxu0 0.0
      %1521 = vmatprep.subr.mxu0 0.0
      %1522 = vmatpush2.msra.mxu0 0.0
      %1523 = vmatprep.subr.mxu0 0.0
      %1524 = vmatpush2.msra.mxu0 0.0
      %1525 = vmatprep.subr.mxu0 0.0
      %1526 = vmatpush2.msra.mxu0 0.0
      %1527 = vmatprep.subr.mxu0 0.0
      %1528 = vmatpush2.msra.mxu0 0.0
      %1529 = vmatprep.subr.mxu0 0.0
      %1530 = vmatpush2.msra.mxu0 0.0
      %1531 = vmatprep.subr.mxu0 0.0
      %1532 = vmatpush2.msra.mxu0 0.0
      %1533 = vmatprep.subr.mxu0 0.0
      %1534 = vmatpush2.msra.mxu0 0.0
      %1535 = vmatprep.subr.mxu0 0.0
      %1536 = vmatpush2.msra.mxu0 0.0
      %1537 = vmatprep.subr.mxu0 0.0
      %1538 = vmatpush2.msra.mxu0 0.0
      %1539 = vmatprep.subr.mxu0 0.0
      %1540 = vmatpush2.msra.mxu0 0.0
      %1541 = vmatprep.subr.mxu0 0.0
      %1542 = vmatpush2.msra.mxu0 0.0
      %1543 = vmatprep.subr.mxu0 0.0
      %1544 = vmatpush2.msra.mxu0 0.0
      %1545 = vmatprep.subr.mxu0 0.0
      %1546 = vmatpush2.msra.mxu0 0.0
      %1547 = vmatprep.mubr.f32.mxu0 0.0
      %v1548 = vand.u32 %v1254, 4294901760
      %v1549 = vsub.f32 %v1254, %v1548
      %v1550 = vand.u32 %v1549, 4294901760
      %1551 = vmatmul.mubr.f32.gmra.mxu0 %v1550
      %v1552 = vpop.f32.mrf.mxu0
      %v1553 = vadd.f32 %v1479, %v1552
      %v1554 = vpop.f32.mrf.mxu0
      %1555 = vdwg.mxu0
      %1556 = vmatprep.subr.mxu0 0.0
      %1557 = vmatpush1.msra.mxu0 0.0
      %1558 = vmatprep.subr.mxu0 0.0
      %1559 = vmatpush1.msra.mxu0 0.0
      %1560 = vmatprep.subr.mxu0 0.0
      %1561 = vmatpush1.msra.mxu0 0.0
      %1562 = vmatprep.subr.mxu0 0.0
      %1563 = vmatpush1.msra.mxu0 0.0
      %1564 = vmatprep.subr.mxu0 0.0
      %1565 = vmatpush1.msra.mxu0 0.0
      %1566 = vmatprep.subr.mxu0 0.0
      %1567 = vmatpush1.msra.mxu0 0.0
      %1568 = vmatprep.subr.mxu0 0.0
      %1569 = vmatpush1.msra.mxu0 0.0
      %1570 = vmatprep.subr.mxu0 0.0
      %1571 = vmatpush1.msra.mxu0 0.0
      %1572 = vmatprep.subr.mxu0 0.0
      %1573 = vmatpush1.msra.mxu0 0.0
      %1574 = vmatprep.subr.mxu0 0.0
      %1575 = vmatpush1.msra.mxu0 0.0
      %1576 = vmatprep.subr.mxu0 0.0
      %1577 = vmatpush1.msra.mxu0 0.0
      %1578 = vmatprep.subr.mxu0 0.0
      %1579 = vmatpush1.msra.mxu0 0.0
      %1580 = vmatprep.subr.mxu0 0.0
      %1581 = vmatpush1.msra.mxu0 0.0
      %1582 = vmatprep.subr.mxu0 0.0
      %1583 = vmatpush1.msra.mxu0 0.0
      %1584 = vmatprep.subr.mxu0 0.0
      %1585 = vmatpush1.msra.mxu0 0.0
      %1586 = vmatprep.subr.mxu0 0.0
      %v1587 = vand.u32 %v345, 4294901760
      %v1588 = vsub.f32 %v345, %v1587
      %v1589 = vand.u32 %v1588, 4294901760
      %1590 = vmatpush1.msra.mxu0 %v1589
      %1591 = vmatprep.subr.mxu0 0.0
      %1592 = vmatpush2.msra.mxu0 0.0
      %1593 = vmatprep.subr.mxu0 0.0
      %1594 = vmatpush2.msra.mxu0 0.0
      %1595 = vmatprep.subr.mxu0 0.0
      %1596 = vmatpush2.msra.mxu0 0.0
      %1597 = vmatprep.subr.mxu0 0.0
      %1598 = vmatpush2.msra.mxu0 0.0
      %1599 = vmatprep.subr.mxu0 0.0
      %1600 = vmatpush2.msra.mxu0 0.0
      %1601 = vmatprep.subr.mxu0 0.0
      %1602 = vmatpush2.msra.mxu0 0.0
      %1603 = vmatprep.subr.mxu0 0.0
      %1604 = vmatpush2.msra.mxu0 0.0
      %1605 = vmatprep.subr.mxu0 0.0
      %1606 = vmatpush2.msra.mxu0 0.0
      %1607 = vmatprep.subr.mxu0 0.0
      %1608 = vmatpush2.msra.mxu0 0.0
      %1609 = vmatprep.subr.mxu0 0.0
      %1610 = vmatpush2.msra.mxu0 0.0
      %1611 = vmatprep.subr.mxu0 0.0
      %1612 = vmatpush2.msra.mxu0 0.0
      %1613 = vmatprep.subr.mxu0 0.0
      %1614 = vmatpush2.msra.mxu0 0.0
      %1615 = vmatprep.subr.mxu0 0.0
      %1616 = vmatpush2.msra.mxu0 0.0
      %1617 = vmatprep.subr.mxu0 0.0
      %1618 = vmatpush2.msra.mxu0 0.0
      %1619 = vmatprep.subr.mxu0 0.0
      %1620 = vmatpush2.msra.mxu0 0.0
      %1621 = vmatprep.subr.mxu0 0.0
      %1622 = vmatpush2.msra.mxu0 0.0
      %1623 = vmatprep.mubr.f32.mxu0 0.0
      %v1624 = vand.u32 %v1254, 4294901760
      %1625 = vmatmul.mubr.f32.gmra.mxu0 %v1624
      %v1626 = vpop.f32.mrf.mxu0
      %v1627 = vadd.f32 %v1553, %v1626
      %v1628 = vpop.f32.mrf.mxu0
      %1629 = vdwg.mxu0
      %1630 = vmatprep.subr.mxu0 0.0
      %1631 = vmatpush1.msra.mxu0 0.0
      %1632 = vmatprep.subr.mxu0 0.0
      %1633 = vmatpush1.msra.mxu0 0.0
      %1634 = vmatprep.subr.mxu0 0.0
      %1635 = vmatpush1.msra.mxu0 0.0
      %1636 = vmatprep.subr.mxu0 0.0
      %1637 = vmatpush1.msra.mxu0 0.0
      %1638 = vmatprep.subr.mxu0 0.0
      %1639 = vmatpush1.msra.mxu0 0.0
      %1640 = vmatprep.subr.mxu0 0.0
      %1641 = vmatpush1.msra.mxu0 0.0
      %1642 = vmatprep.subr.mxu0 0.0
      %1643 = vmatpush1.msra.mxu0 0.0
      %1644 = vmatprep.subr.mxu0 0.0
      %1645 = vmatpush1.msra.mxu0 0.0
      %1646 = vmatprep.subr.mxu0 0.0
      %1647 = vmatpush1.msra.mxu0 0.0
      %1648 = vmatprep.subr.mxu0 0.0
      %1649 = vmatpush1.msra.mxu0 0.0
      %1650 = vmatprep.subr.mxu0 0.0
      %1651 = vmatpush1.msra.mxu0 0.0
      %1652 = vmatprep.subr.mxu0 0.0
      %1653 = vmatpush1.msra.mxu0 0.0
      %1654 = vmatprep.subr.mxu0 0.0
      %1655 = vmatpush1.msra.mxu0 0.0
      %1656 = vmatprep.subr.mxu0 0.0
      %1657 = vmatpush1.msra.mxu0 0.0
      %1658 = vmatprep.subr.mxu0 0.0
      %1659 = vmatpush1.msra.mxu0 0.0
      %1660 = vmatprep.subr.mxu0 0.0
      %v1661 = vand.u32 %v345, 4294901760
      %1662 = vmatpush1.msra.mxu0 %v1661
      %1663 = vmatprep.subr.mxu0 0.0
      %1664 = vmatpush2.msra.mxu0 0.0
      %1665 = vmatprep.subr.mxu0 0.0
      %1666 = vmatpush2.msra.mxu0 0.0
      %1667 = vmatprep.subr.mxu0 0.0
      %1668 = vmatpush2.msra.mxu0 0.0
      %1669 = vmatprep.subr.mxu0 0.0
      %1670 = vmatpush2.msra.mxu0 0.0
      %1671 = vmatprep.subr.mxu0 0.0
      %1672 = vmatpush2.msra.mxu0 0.0
      %1673 = vmatprep.subr.mxu0 0.0
      %1674 = vmatpush2.msra.mxu0 0.0
      %1675 = vmatprep.subr.mxu0 0.0
      %1676 = vmatpush2.msra.mxu0 0.0
      %1677 = vmatprep.subr.mxu0 0.0
      %1678 = vmatpush2.msra.mxu0 0.0
      %1679 = vmatprep.subr.mxu0 0.0
      %1680 = vmatpush2.msra.mxu0 0.0
      %1681 = vmatprep.subr.mxu0 0.0
      %1682 = vmatpush2.msra.mxu0 0.0
      %1683 = vmatprep.subr.mxu0 0.0
      %1684 = vmatpush2.msra.mxu0 0.0
      %1685 = vmatprep.subr.mxu0 0.0
      %1686 = vmatpush2.msra.mxu0 0.0
      %1687 = vmatprep.subr.mxu0 0.0
      %1688 = vmatpush2.msra.mxu0 0.0
      %1689 = vmatprep.subr.mxu0 0.0
      %1690 = vmatpush2.msra.mxu0 0.0
      %1691 = vmatprep.subr.mxu0 0.0
      %1692 = vmatpush2.msra.mxu0 0.0
      %1693 = vmatprep.subr.mxu0 0.0
      %1694 = vmatpush2.msra.mxu0 0.0
      %1695 = vmatprep.mubr.f32.mxu0 0.0
      %v1696 = vand.u32 %v1254, 4294901760
      %1697 = vmatmul.mubr.f32.gmra.mxu0 %v1696
      %v1698 = vpop.f32.mrf.mxu0
      %v1699 = vadd.f32 %v1627, %v1698
      %v1700 = vpop.f32.mrf.mxu0
      %1701 = vdwg.mxu0
      %v1702 = vmul.f32 %v1699, %v1699
      %v1703 = vadd.f32 %v1250, %v1702
      %s1704 = smul.u32 %s21, 8
      %v1705 = vlaneseq
      %v1706 = vshrl.u32 %v1705, 7
      %v1707 = vstv %s1704
      %v1708 = vadd.s32 %v1707, %v1706
      %v1709 = vlaneseq
      %v1710 = vand.u32 %v1709, 127
      %vm1711 = vcmp.eq.s32.totalorder %v1708, %v1710
      %v1712 = vsel %vm1711, 0.0, %v1703
      %v1713 = vrsqrt.pop %v1712
      %v1714 = vmul.f32 %v1712, %v1713
      %vm1715 = vcmp.eq.f32.partialorder %v1712, inf
      %v1716 = vsel %vm1715, %v1712, %v1714
      %vm1717 = vcmp.eq.f32.partialorder %v1712, 0.0
      %v1718 = vand.u32 %v1712, 2147483648
      %v1719 = vsel %vm1717, %v1718, %v1716
      %v1720 = vrcp.pop 0.5
      %v1721 = vmul.f32 %v1719, %v1720
      %v1722 = vceil.f32 %v1721
      %v1723 = vmin.f32 %v1722, 63.0
      %v1724 = vcvt.f32.s32.to.zero.pseudo %v1723
      %v1725 = vld [vmem:[%s334] sm:$0xff]
      %v1726 = vld [vmem:[%s334 + $0x8] sm:$0xff]
      %v1727 = vld [vmem:[%s334 + $0x10] sm:$0xff]
      %v1728 = vld [vmem:[%s334 + $0x18] sm:$0xff]
      %v1729 = vld [vmem:[%s334 + $0x20] sm:$0xff]
      %v1730 = vld [vmem:[%s334 + $0x28] sm:$0xff]
      %v1731 = vld [vmem:[%s334 + $0x30] sm:$0xff]
      %v1732 = vld [vmem:[%s334 + $0x38] sm:$0xff]
      %vm1733 = vcmask 523264
      %v1734 = vsel %vm1733, %v1725, -inf
      %1735 = vmax.xlane.f32.xlu0 %v1734
      %v1736 = vpop.xlane.xlu0 %1735
      %v1737 = vsel %vm1733, %v1726, -inf
      %1738 = vmax.xlane.f32.xlu0 %v1737
      %v1739 = vpop.xlane.xlu0 %1738
      %v1740 = vsel %vm1733, %v1727, -inf
      %1741 = vmax.xlane.f32.xlu0 %v1740
      %v1742 = vpop.xlane.xlu0 %1741
      %v1743 = vsel %vm1733, %v1728, -inf
      %1744 = vmax.xlane.f32.xlu0 %v1743
      %v1745 = vpop.xlane.xlu0 %1744
      %v1746 = vsel %vm1733, %v1729, -inf
      %1747 = vmax.xlane.f32.xlu0 %v1746
      %v1748 = vpop.xlane.xlu0 %1747
      %v1749 = vsel %vm1733, %v1730, -inf
      %1750 = vmax.xlane.f32.xlu0 %v1749
      %v1751 = vpop.xlane.xlu0 %1750
      %v1752 = vsel %vm1733, %v1731, -inf
      %1753 = vmax.xlane.f32.xlu0 %v1752
      %v1754 = vpop.xlane.xlu0 %1753
      %v1755 = vsel %vm1733, %v1732, -inf
      %1756 = vmax.xlane.f32.xlu0 %v1755
      %v1757 = vpop.xlane.xlu0 %1756
      %v1758 = vsub.f32 %v1725, %v1736
      %v1759 = vsub.f32 %v1726, %v1739
      %v1760 = vsub.f32 %v1727, %v1742
      %v1761 = vsub.f32 %v1728, %v1745
      %v1762 = vsub.f32 %v1729, %v1748
      %v1763 = vsub.f32 %v1730, %v1751
      %v1764 = vsub.f32 %v1731, %v1754
      %v1765 = vsub.f32 %v1732, %v1757
      %v1766 = vmul.f32 %v1758, 1.442695
      %v1767 = vpow.pop %v1766
      %v1768 = vmul.f32 %v1759, 1.442695
      %v1769 = vpow.pop %v1768
      %v1770 = vmul.f32 %v1760, 1.442695
      %v1771 = vpow.pop %v1770
      %v1772 = vmul.f32 %v1761, 1.442695
      %v1773 = vpow.pop %v1772
      %v1774 = vmul.f32 %v1762, 1.442695
      %v1775 = vpow.pop %v1774
      %v1776 = vmul.f32 %v1763, 1.442695
      %v1777 = vpow.pop %v1776
      %v1778 = vmul.f32 %v1764, 1.442695
      %v1779 = vpow.pop %v1778
      %v1780 = vmul.f32 %v1765, 1.442695
      %v1781 = vpow.pop %v1780
      %v1782 = vsel %vm1733, %v1767, 0.0
      %1783 = vadd.xlane.f32.xlu0 %v1782
      %v1784 = vpop.xlane.xlu0 %1783
      %v1785 = vsel %vm1733, %v1769, 0.0
      %1786 = vadd.xlane.f32.xlu0 %v1785
      %v1787 = vpop.xlane.xlu0 %1786
      %v1788 = vsel %vm1733, %v1771, 0.0
      %1789 = vadd.xlane.f32.xlu0 %v1788
      %v1790 = vpop.xlane.xlu0 %1789
      %v1791 = vsel %vm1733, %v1773, 0.0
      %1792 = vadd.xlane.f32.xlu0 %v1791
      %v1793 = vpop.xlane.xlu0 %1792
      %v1794 = vsel %vm1733, %v1775, 0.0
      %1795 = vadd.xlane.f32.xlu0 %v1794
      %v1796 = vpop.xlane.xlu0 %1795
      %v1797 = vsel %vm1733, %v1777, 0.0
      %1798 = vadd.xlane.f32.xlu0 %v1797
      %v1799 = vpop.xlane.xlu0 %1798
      %v1800 = vsel %vm1733, %v1779, 0.0
      %1801 = vadd.xlane.f32.xlu0 %v1800
      %v1802 = vpop.xlane.xlu0 %1801
      %v1803 = vsel %vm1733, %v1781, 0.0
      %1804 = vadd.xlane.f32.xlu0 %v1803
      %v1805 = vpop.xlane.xlu0 %1804
      %v1806 = vlog2.pop %v1784
      %v1807 = vmul.f32 %v1806, 0.6931472
      %v1808 = vlog2.pop %v1787
      %v1809 = vmul.f32 %v1808, 0.6931472
      %v1810 = vlog2.pop %v1790
      %v1811 = vmul.f32 %v1810, 0.6931472
      %v1812 = vlog2.pop %v1793
      %v1813 = vmul.f32 %v1812, 0.6931472
      %v1814 = vlog2.pop %v1796
      %v1815 = vmul.f32 %v1814, 0.6931472
      %v1816 = vlog2.pop %v1799
      %v1817 = vmul.f32 %v1816, 0.6931472
      %v1818 = vlog2.pop %v1802
      %v1819 = vmul.f32 %v1818, 0.6931472
      %v1820 = vlog2.pop %v1805
      %v1821 = vmul.f32 %v1820, 0.6931472
      %v1822 = vadd.f32 %v1736, %v1807
      %v1823 = vadd.f32 %v1739, %v1809
      %v1824 = vadd.f32 %v1742, %v1811
      %v1825 = vadd.f32 %v1745, %v1813
      %v1826 = vadd.f32 %v1748, %v1815
      %v1827 = vadd.f32 %v1751, %v1817
      %v1828 = vadd.f32 %v1754, %v1819
      %v1829 = vadd.f32 %v1757, %v1821
      %v1830 = vlaneseq
      %v1831 = vshrl.u32 %v1830, 7
      %v1832 = vsub.s32 0, %v1831
      %v1833 = vrot.slane %v1724, %v1832
      %1835 = vbcast.lane.b32.xlu0 %v1833, 256
      %v1836 = vpop.permute.xlu0 %1835
      %v1837 = vlaneseq
      %v1838 = vshrl.u32 %v1837, 7
      %v1839 = vsub.s32 1, %v1838
      %v1840 = vrot.slane %v1724, %v1839
      %1842 = vbcast.lane.b32.xlu0 %v1840, 256
      %v1843 = vpop.permute.xlu0 %1842
      %v1844 = vlaneseq
      %v1845 = vshrl.u32 %v1844, 7
      %v1846 = vsub.s32 2, %v1845
      %v1847 = vrot.slane %v1724, %v1846
      %1849 = vbcast.lane.b32.xlu0 %v1847, 256
      %v1850 = vpop.permute.xlu0 %1849
      %v1851 = vlaneseq
      %v1852 = vshrl.u32 %v1851, 7
      %v1853 = vsub.s32 3, %v1852
      %v1854 = vrot.slane %v1724, %v1853
      %1856 = vbcast.lane.b32.xlu0 %v1854, 256
      %v1857 = vpop.permute.xlu0 %1856
      %v1858 = vlaneseq
      %v1859 = vshrl.u32 %v1858, 7
      %v1860 = vsub.s32 4, %v1859
      %v1861 = vrot.slane %v1724, %v1860
      %1863 = vbcast.lane.b32.xlu0 %v1861, 256
      %v1864 = vpop.permute.xlu0 %1863
      %v1865 = vlaneseq
      %v1866 = vshrl.u32 %v1865, 7
      %v1867 = vsub.s32 5, %v1866
      %v1868 = vrot.slane %v1724, %v1867
      %1870 = vbcast.lane.b32.xlu0 %v1868, 256
      %v1871 = vpop.permute.xlu0 %1870
      %v1872 = vlaneseq
      %v1873 = vshrl.u32 %v1872, 7
      %v1874 = vsub.s32 6, %v1873
      %v1875 = vrot.slane %v1724, %v1874
      %1877 = vbcast.lane.b32.xlu0 %v1875, 256
      %v1878 = vpop.permute.xlu0 %1877
      %v1879 = vlaneseq
      %v1880 = vshrl.u32 %v1879, 7
      %v1881 = vsub.s32 7, %v1880
      %v1882 = vrot.slane %v1724, %v1881
      %1884 = vbcast.lane.b32.xlu0 %v1882, 256
      %v1885 = vpop.permute.xlu0 %1884
      %vm1886 = vcmp.eq.s32.totalorder %v1710, %v1836
      %vm1887 = vcmp.eq.s32.totalorder %v1710, %v1843
      %vm1888 = vcmp.eq.s32.totalorder %v1710, %v1850
      %vm1889 = vcmp.eq.s32.totalorder %v1710, %v1857
      %vm1890 = vcmp.eq.s32.totalorder %v1710, %v1864
      %vm1891 = vcmp.eq.s32.totalorder %v1710, %v1871
      %vm1892 = vcmp.eq.s32.totalorder %v1710, %v1878
      %vm1893 = vcmp.eq.s32.totalorder %v1710, %v1885
      %v1894 = vsel %vm1886, %v1725, 0.0
      %v1895 = vsel %vm1887, %v1726, 0.0
      %v1896 = vsel %vm1888, %v1727, 0.0
      %v1897 = vsel %vm1889, %v1728, 0.0
      %v1898 = vsel %vm1890, %v1729, 0.0
      %v1899 = vsel %vm1891, %v1730, 0.0
      %v1900 = vsel %vm1892, %v1731, 0.0
      %v1901 = vsel %vm1893, %v1732, 0.0
      %v1902 = vsel %vm1733, %v1894, 0.0
      %1903 = vadd.xlane.f32.xlu0 %v1902
      %v1904 = vpop.xlane.xlu0 %1903
      %v1905 = vsel %vm1733, %v1895, 0.0
      %1906 = vadd.xlane.f32.xlu0 %v1905
      %v1907 = vpop.xlane.xlu0 %1906
      %v1908 = vsel %vm1733, %v1896, 0.0
      %1909 = vadd.xlane.f32.xlu0 %v1908
      %v1910 = vpop.xlane.xlu0 %1909
      %v1911 = vsel %vm1733, %v1897, 0.0
      %1912 = vadd.xlane.f32.xlu0 %v1911
      %v1913 = vpop.xlane.xlu0 %1912
      %v1914 = vsel %vm1733, %v1898, 0.0
      %1915 = vadd.xlane.f32.xlu0 %v1914
      %v1916 = vpop.xlane.xlu0 %1915
      %v1917 = vsel %vm1733, %v1899, 0.0
      %1918 = vadd.xlane.f32.xlu0 %v1917
      %v1919 = vpop.xlane.xlu0 %1918
      %v1920 = vsel %vm1733, %v1900, 0.0
      %1921 = vadd.xlane.f32.xlu0 %v1920
      %v1922 = vpop.xlane.xlu0 %1921
      %v1923 = vsel %vm1733, %v1901, 0.0
      %1924 = vadd.xlane.f32.xlu0 %v1923
      %v1925 = vpop.xlane.xlu0 %1924
      %v1926 = vsub.f32 %v1822, %v1904
      %v1927 = vsub.f32 %v1823, %v1907
      %v1928 = vsub.f32 %v1824, %v1910
      %v1929 = vsub.f32 %v1825, %v1913
      %v1930 = vsub.f32 %v1826, %v1916
      %v1931 = vsub.f32 %v1827, %v1919
      %v1932 = vsub.f32 %v1828, %v1922
      %v1933 = vsub.f32 %v1829, %v1925
      %v1934 = vld [vmem:[%s325] sm:$0x1]
      %v1936 = vlaneseq
      %v1937 = vshrl.u32 %v1936, 7
      %v1938 = vsub.s32 0, %v1937
      %v1939 = vrot.slane %v1934, %v1938
      %1941 = vbcast.lane.b32.xlu0 %v1939, 256
      %v1942 = vpop.permute.xlu0 %1941
      %v1944 = vmul.f32 %v1926, %v1942
      %v1945 = vmul.f32 %v1927, %v1942
      %v1946 = vmul.f32 %v1928, %v1942
      %v1947 = vmul.f32 %v1929, %v1942
      %v1948 = vmul.f32 %v1930, %v1942
      %v1949 = vmul.f32 %v1931, %v1942
      %v1950 = vmul.f32 %v1932, %v1942
      %v1951 = vmul.f32 %v1933, %v1942
      %1960 = vset.pattern.permute.xlu0 0
      %1961 = vperm.xlu0 %1960, %v1944
      %v1962 = vpop.permute.xlu0 %1961
      %1963 = vset.pattern.permute.xlu0 0
      %1964 = vperm.xlu0 %1963, %v1945
      %v1965 = vpop.permute.xlu0 %1964
      %1966 = vset.pattern.permute.xlu0 0
      %1967 = vperm.xlu0 %1966, %v1946
      %v1968 = vpop.permute.xlu0 %1967
      %1969 = vset.pattern.permute.xlu0 0
      %1970 = vperm.xlu0 %1969, %v1947
      %v1971 = vpop.permute.xlu0 %1970
      %1972 = vset.pattern.permute.xlu0 0
      %1973 = vperm.xlu0 %1972, %v1948
      %v1974 = vpop.permute.xlu0 %1973
      %1975 = vset.pattern.permute.xlu0 0
      %1976 = vperm.xlu0 %1975, %v1949
      %v1977 = vpop.permute.xlu0 %1976
      %1978 = vset.pattern.permute.xlu0 0
      %1979 = vperm.xlu0 %1978, %v1950
      %v1980 = vpop.permute.xlu0 %1979
      %1981 = vset.pattern.permute.xlu0 0
      %1982 = vperm.xlu0 %1981, %v1951
      %v1983 = vpop.permute.xlu0 %1982
      %v1984 = vlaneseq
      %v1985 = vshrl.u32 %v1984, 7
      %v1986 = vsub.s32 %v1710, %v1985
      %v1987 = vrot.slane %v1962, %v1986
      %v1988 = vlaneseq
      %v1989 = vshrl.u32 %v1988, 7
      %v1990 = vsub.s32 %v1710, %v1989
      %v1991 = vrot.slane %v1965, %v1990
      %v1992 = vlaneseq
      %v1993 = vshrl.u32 %v1992, 7
      %v1994 = vsub.s32 %v1710, %v1993
      %v1995 = vrot.slane %v1968, %v1994
      %v1996 = vlaneseq
      %v1997 = vshrl.u32 %v1996, 7
      %v1998 = vsub.s32 %v1710, %v1997
      %v1999 = vrot.slane %v1971, %v1998
      %v2000 = vlaneseq
      %v2001 = vshrl.u32 %v2000, 7
      %v2002 = vsub.s32 %v1710, %v2001
      %v2003 = vrot.slane %v1974, %v2002
      %v2004 = vlaneseq
      %v2005 = vshrl.u32 %v2004, 7
      %v2006 = vsub.s32 %v1710, %v2005
      %v2007 = vrot.slane %v1977, %v2006
      %v2008 = vlaneseq
      %v2009 = vshrl.u32 %v2008, 7
      %v2010 = vsub.s32 %v1710, %v2009
      %v2011 = vrot.slane %v1980, %v2010
      %v2012 = vlaneseq
      %v2013 = vshrl.u32 %v2012, 7
      %v2014 = vsub.s32 %v1710, %v2013
      %v2015 = vrot.slane %v1983, %v2014
      %vm2016 = vcmask 1041409
      %v2017 = vsel %vm2016, %v1991, %v1987
      %vm2018 = vcmask 1042434
      %v2019 = vsel %vm2018, %v1995, %v2017
      %vm2020 = vcmask 1043459
      %v2021 = vsel %vm2020, %v1999, %v2019
      %vm2022 = vcmask 1044484
      %v2023 = vsel %vm2022, %v2003, %v2021
      %vm2024 = vcmask 1045509
      %v2025 = vsel %vm2024, %v2007, %v2023
      %vm2026 = vcmask 1046534
      %v2027 = vsel %vm2026, %v2011, %v2025
      %vm2028 = vcmask 1047559
      %v2029 = vsel %vm2028, %v2015, %v2027
      %v2031 = vsel %vm347, %v2029, 0.0
      %2032 = vadd.xlane.f32.xlu0 %v2031
      %v2033 = vpop.xlane.xlu0 %2032
      %v2034 = vld [vmem:[%s338] sm:$0x1]
      %v2035 = vld [vmem:[%s322] sm:$0xff]
      %v2036 = vmul.f32 %v2033, %v2035
      %vm2037 = vcmask 7168
      %v2038 = vsel %vm2037, %v2036, 0.0
      %v2039 = vrot.slane %v2038, 4
      %v2040 = vadd.f32 %v2038, %v2039
      %v2041 = vrot.slane %v2040, 2
      %v2042 = vadd.f32 %v2040, %v2041
      %v2043 = vrot.slane %v2042, 1
      %v2044 = vadd.f32 %v2042, %v2043
      %v2045 = vadd.f32 %v2034, %v2044
      %vm2046 = vcmask 0
      %2047 = vst.msk [vmem:[%s338] sm:$0x1] %vm2046, %v2045
      %p2048 = scmp.lt.s32.totalorder %s20, 1
      %s2049 = scalar_select %p2048, %s20, 1
      %s2050 = scalar_lea.vmem %s5, %s2049
      // Predicated region
      $region45: #{rhofold_loss.5} parent=39 // pred_check
        %p2051 = pneg %p182
      $region46: #{rhofold_loss.5} parent=39 // pred_check_branch
        %2053 = sbr.rel (%p2051) target = $region48
      $region47: #{rhofold_loss.5} parent=39 // pred_region
        _
      $region48: #{rhofold_loss.5} parent=39 // pred_fallthru
        _
    $region40: #{rhofold_loss.5} parent=5 // pred_fallthru
      _
    %p2054 = scmp.le.s32.totalorder 2, %s11
    // Predicated region
    $region49: #{rhofold_loss.5} parent=5 // pred_check
      %p2055 = pneg %p2054
    $region50: #{rhofold_loss.5} parent=5 // pred_check_branch
      %2057 = sbr.rel (%p2055) target = $region52
    $region51: #{rhofold_loss.5} parent=5 // pred_region
      %s2058 = ssub.s32 %s11, 2
      // Predicated region
      $region53: #{rhofold_loss.5} parent=51 // pred_check
        %p2059 = pneg %p188
      $region54: #{rhofold_loss.5} parent=51 // pred_check_branch
        %2061 = sbr.rel (%p2059) target = $region56
      $region55: #{rhofold_loss.5} parent=51 // pred_region
        %p2062 = scmp.lt.s32.totalorder %s22, 1
        %s2063 = scalar_select %p2062, %s22, 1
        %s2064 = scalar_lea.vmem %s5, %s2063
      $region56: #{rhofold_loss.5} parent=51 // pred_fallthru
        _
    $region52: #{rhofold_loss.5} parent=5 // pred_fallthru
      _
  $region6: #{rhofold_loss.5} parent=0 // loop_footer
    %s15 = sadd.s32 1, %s11
  $region7: #{rhofold_loss.5} parent=0 // loop_footer_branch
    %10 = sbr.rel target = $region3
  $region8: #{rhofold_loss.5} parent=0 // loop_exit
    _

// kernel: rhofold_loss.4
$region0: #{rhofold_loss.4}
  #allocation0 [shape = 'u32[]', space=smem, size = 0x4, offset = 0x4, fixed_abs, tag = 'smem constant byte address 0x4 - core index']
  #allocation1 [shape = 'u32[144,128]{1,0:T(1,128)}', space=vmem, size = 0x12000, scoped, tag = 'internal scratch']
  %s0 = inlined_call_operand.vmem [shape: f32[2,8,3], index: 0, kind: input, shape index: {}]
  %s1 = inlined_call_operand.vmem [shape: f32[2,3,8], index: 1, kind: input, shape index: {}]
  %s2 = inlined_call_operand.vmem [shape: f32[2,8,3], index: 2, kind: input, shape index: {}]
  %s3 = inlined_call_operand.vmem [shape: f32[2,3,8], index: 3, kind: input, shape index: {}]
  %s4 = inlined_call_operand.vmem [shape: f32[2,8,1], index: 4, kind: input, shape index: {}]
  %s5 = inlined_call_operand.vmem [shape: f32[2,1,8], index: 5, kind: input, shape index: {}]
  %s6 = inlined_call_operand.vmem [shape: f32[2,8,50], index: 6, kind: input, shape index: {}]
  %s7 = inlined_call_operand.vmem [shape: f32[2,8,1], index: 7, kind: output, shape index: {0}]
  %s8 = inlined_call_operand.vmem [shape: f32[2,8,1], index: 8, kind: output, shape index: {1}]
  %s9 = inlined_call_operand.vmem [shape: f32[2,8,1], index: 9, kind: output, shape index: {2}]
  %10 = xla_tuple %s7, %s8, %s9
  %s11 = sld [smem:[#allocation0]]
  $region77: #{rhofold_loss.4} parent=0
    _
  %s13 = ssub.s32 1, %s11
  %s14 = scalar_select 0, %s13, %s11
  loop: start=0, step=1, limit=4
  $region2: #{rhofold_loss.4} parent=0 // loop_pre_header
    _
  $region3: #{rhofold_loss.4} parent=0 // loop_header
    %s16 = sphi 0, %s20
    %p17 = scmp.ge.s32.totalorder %s16, 4
    %s23 = sphi 0, %s35
    %s24 = sphi 0, %s31
    %s25 = sphi 0, %s23
    %s26 = sphi 0, %s24
    %s27 = sphi 0, %s25
    %s28 = sphi 0, %s26
    %s40 = sphi 0, %s42
    %s43 = sphi 0, %s40
    %s44 = sphi 0, %s43
    %s60 = sphi 0, %s44
    %s66 = sphi 0, %s68
    %s69 = sphi 0, %s66
    %s70 = sphi 0, %s69
    %s86 = sphi 0, %s70
    %s94 = sphi 0, %s96
    %s97 = sphi 0, %s94
    %s98 = sphi 0, %s97
    %s114 = sphi 0, %s98
    %s120 = sphi 0, %s122
    %s123 = sphi 0, %s120
    %s124 = sphi 0, %s123
    %s140 = sphi 0, %s124
    %s148 = sphi 0, %s150
    %s151 = sphi 0, %s148
    %s152 = sphi 0, %s151
    %s168 = sphi 0, %s152
    %s174 = sphi 0, %s176
    %s177 = sphi 0, %s174
    %s178 = sphi 0, %s177
    %s194 = sphi 0, %s178
    %s202 = sphi 0, %s204
    %s205 = sphi 0, %s202
    %s206 = sphi 0, %s205
    %s222 = sphi 0, %s206
    %s230 = sphi 0, %s232
    %s233 = sphi 0, %s230
    %s234 = sphi 0, %s233
    %s250 = sphi 0, %s234
    %s258 = sphi 0, %s260
    %s261 = sphi 0, %s258
    %s262 = sphi 0, %s261
    %s278 = sphi 0, %s262
    %s286 = sphi 0, %s288
    %s289 = sphi 0, %s286
    %s290 = sphi 0, %s289
    %s306 = sphi 0, %s290
  $region4: #{rhofold_loss.4} parent=0 // loop_header_branch
    %19 = sbr.rel (%p17) target = $region8
  $region5: #{rhofold_loss.4} parent=0 // loop_body
    %s21 = ssub.s32 %s16, 1
    %s22 = ssub.s32 %s16, 2
    %s29 = sadd.s32 1, %s24
    %p30 = scmp.ge.s32.totalorder %s29, 1
    %s31 = scalar_select %p30, 0, %s29
    %s32 = sadd.s32 1, %s23
    %s33 = scalar_select %p30, %s32, %s23
    %p34 = scmp.ge.s32.totalorder %s33, 2
    %s35 = scalar_select %p34, 0, %s33
    %s36 = ssub.s32 %s23, %s35
    %s37 = ssub.s32 %s24, %s31
    %s38 = sor.u32 %s36, %s37
    %p39 = scmp.eq.s32.totalorder %s38, 0
    %s41 = sadd.s32 %s40, 1
    %s42 = scalar_select %p39, %s40, %s41
    %p45 = pneg %p39
    %p46 = scmp.eq.s32.totalorder %s16, 1
    %p47 = por %p45, %p46
    %p48 = scmp.ne.s32.totalorder %s40, %s43
    %p49 = scmp.eq.s32.totalorder %s16, 0
    %p50 = por %p48, %p49
    %p51 = scmp.ne.s32.totalorder %s40, %s43
    %p52 = scmp.eq.s32.totalorder %s21, 1
    %p53 = por %p51, %p52
    %p54 = scmp.ne.s32.totalorder %s43, %s44
    %p55 = scmp.eq.s32.totalorder %s21, 0
    %p56 = por %p54, %p55
    %p57 = scmp.ne.s32.totalorder %s43, %s44
    %p58 = scmp.eq.s32.totalorder %s22, 1
    %p59 = por %p57, %p58
    %p61 = scmp.ne.s32.totalorder %s44, %s60
    %p62 = scmp.eq.s32.totalorder %s22, 0
    %p63 = por %p61, %p62
    %s64 = ssub.s32 %s23, %s35
    %p65 = scmp.eq.s32.totalorder %s64, 0
    %s67 = sadd.s32 %s66, 1
    %s68 = scalar_select %p65, %s66, %s67
    %p71 = pneg %p65
    %p72 = scmp.eq.s32.totalorder %s16, 1
    %p73 = por %p71, %p72
    %p74 = scmp.ne.s32.totalorder %s66, %s69
    %p75 = scmp.eq.s32.totalorder %s16, 0
    %p76 = por %p74, %p75
    %p77 = scmp.ne.s32.totalorder %s66, %s69
    %p78 = scmp.eq.s32.totalorder %s21, 1
    %p79 = por %p77, %p78
    %p80 = scmp.ne.s32.totalorder %s69, %s70
    %p81 = scmp.eq.s32.totalorder %s21, 0
    %p82 = por %p80, %p81
    %p83 = scmp.ne.s32.totalorder %s69, %s70
    %p84 = scmp.eq.s32.totalorder %s22, 1
    %p85 = por %p83, %p84
    %p87 = scmp.ne.s32.totalorder %s70, %s86
    %p88 = scmp.eq.s32.totalorder %s22, 0
    %p89 = por %p87, %p88
    %s90 = ssub.s32 %s23, %s35
    %s91 = ssub.s32 %s24, %s31
    %s92 = sor.u32 %s90, %s91
    %p93 = scmp.eq.s32.totalorder %s92, 0
    %s95 = sadd.s32 %s94, 1
    %s96 = scalar_select %p93, %s94, %s95
    %p99 = pneg %p93
    %p100 = scmp.eq.s32.totalorder %s16, 1
    %p101 = por %p99, %p100
    %p102 = scmp.ne.s32.totalorder %s94, %s97
    %p103 = scmp.eq.s32.totalorder %s16, 0
    %p104 = por %p102, %p103
    %p105 = scmp.ne.s32.totalorder %s94, %s97
    %p106 = scmp.eq.s32.totalorder %s21, 1
    %p107 = por %p105, %p106
    %p108 = scmp.ne.s32.totalorder %s97, %s98
    %p109 = scmp.eq.s32.totalorder %s21, 0
    %p110 = por %p108, %p109
    %p111 = scmp.ne.s32.totalorder %s97, %s98
    %p112 = scmp.eq.s32.totalorder %s22, 1
    %p113 = por %p111, %p112
    %p115 = scmp.ne.s32.totalorder %s98, %s114
    %p116 = scmp.eq.s32.totalorder %s22, 0
    %p117 = por %p115, %p116
    %s118 = ssub.s32 %s23, %s35
    %p119 = scmp.eq.s32.totalorder %s118, 0
    %s121 = sadd.s32 %s120, 1
    %s122 = scalar_select %p119, %s120, %s121
    %p125 = pneg %p119
    %p126 = scmp.eq.s32.totalorder %s16, 1
    %p127 = por %p125, %p126
    %p128 = scmp.ne.s32.totalorder %s120, %s123
    %p129 = scmp.eq.s32.totalorder %s16, 0
    %p130 = por %p128, %p129
    %p131 = scmp.ne.s32.totalorder %s120, %s123
    %p132 = scmp.eq.s32.totalorder %s21, 1
    %p133 = por %p131, %p132
    %p134 = scmp.ne.s32.totalorder %s123, %s124
    %p135 = scmp.eq.s32.totalorder %s21, 0
    %p136 = por %p134, %p135
    %p137 = scmp.ne.s32.totalorder %s123, %s124
    %p138 = scmp.eq.s32.totalorder %s22, 1
    %p139 = por %p137, %p138
    %p141 = scmp.ne.s32.totalorder %s124, %s140
    %p142 = scmp.eq.s32.totalorder %s22, 0
    %p143 = por %p141, %p142
    %s144 = ssub.s32 %s23, %s35
    %s145 = ssub.s32 %s24, %s31
    %s146 = sor.u32 %s144, %s145
    %p147 = scmp.eq.s32.totalorder %s146, 0
    %s149 = sadd.s32 %s148, 1
    %s150 = scalar_select %p147, %s148, %s149
    %p153 = pneg %p147
    %p154 = scmp.eq.s32.totalorder %s16, 1
    %p155 = por %p153, %p154
    %p156 = scmp.ne.s32.totalorder %s148, %s151
    %p157 = scmp.eq.s32.totalorder %s16, 0
    %p158 = por %p156, %p157
    %p159 = scmp.ne.s32.totalorder %s148, %s151
    %p160 = scmp.eq.s32.totalorder %s21, 1
    %p161 = por %p159, %p160
    %p162 = scmp.ne.s32.totalorder %s151, %s152
    %p163 = scmp.eq.s32.totalorder %s21, 0
    %p164 = por %p162, %p163
    %p165 = scmp.ne.s32.totalorder %s151, %s152
    %p166 = scmp.eq.s32.totalorder %s22, 1
    %p167 = por %p165, %p166
    %p169 = scmp.ne.s32.totalorder %s152, %s168
    %p170 = scmp.eq.s32.totalorder %s22, 0
    %p171 = por %p169, %p170
    %s172 = ssub.s32 %s23, %s35
    %p173 = scmp.eq.s32.totalorder %s172, 0
    %s175 = sadd.s32 %s174, 1
    %s176 = scalar_select %p173, %s174, %s175
    %p179 = pneg %p173
    %p180 = scmp.eq.s32.totalorder %s16, 1
    %p181 = por %p179, %p180
    %p182 = scmp.ne.s32.totalorder %s174, %s177
    %p183 = scmp.eq.s32.totalorder %s16, 0
    %p184 = por %p182, %p183
    %p185 = scmp.ne.s32.totalorder %s174, %s177
    %p186 = scmp.eq.s32.totalorder %s21, 1
    %p187 = por %p185, %p186
    %p188 = scmp.ne.s32.totalorder %s177, %s178
    %p189 = scmp.eq.s32.totalorder %s21, 0
    %p190 = por %p188, %p189
    %p191 = scmp.ne.s32.totalorder %s177, %s178
    %p192 = scmp.eq.s32.totalorder %s22, 1
    %p193 = por %p191, %p192
    %p195 = scmp.ne.s32.totalorder %s178, %s194
    %p196 = scmp.eq.s32.totalorder %s22, 0
    %p197 = por %p195, %p196
    %s198 = ssub.s32 %s23, %s35
    %s199 = ssub.s32 %s24, %s31
    %s200 = sor.u32 %s198, %s199
    %p201 = scmp.eq.s32.totalorder %s200, 0
    %s203 = sadd.s32 %s202, 1
    %s204 = scalar_select %p201, %s202, %s203
    %p207 = pneg %p201
    %p208 = scmp.eq.s32.totalorder %s16, 1
    %p209 = por %p207, %p208
    %p210 = scmp.ne.s32.totalorder %s202, %s205
    %p211 = scmp.eq.s32.totalorder %s16, 0
    %p212 = por %p210, %p211
    %p213 = scmp.ne.s32.totalorder %s202, %s205
    %p214 = scmp.eq.s32.totalorder %s21, 1
    %p215 = por %p213, %p214
    %p216 = scmp.ne.s32.totalorder %s205, %s206
    %p217 = scmp.eq.s32.totalorder %s21, 0
    %p218 = por %p216, %p217
    %p219 = scmp.ne.s32.totalorder %s205, %s206
    %p220 = scmp.eq.s32.totalorder %s22, 1
    %p221 = por %p219, %p220
    %p223 = scmp.ne.s32.totalorder %s206, %s222
    %p224 = scmp.eq.s32.totalorder %s22, 0
    %p225 = por %p223, %p224
    %s226 = ssub.s32 %s23, %s35
    %s227 = ssub.s32 %s24, %s31
    %s228 = sor.u32 %s226, %s227
    %p229 = scmp.eq.s32.totalorder %s228, 0
    %s231 = sadd.s32 %s230, 1
    %s232 = scalar_select %p229, %s230, %s231
    %p235 = pneg %p229
    %p236 = scmp.eq.s32.totalorder %s16, 1
    %p237 = por %p235, %p236
    %p238 = scmp.ne.s32.totalorder %s230, %s233
    %p239 = scmp.eq.s32.totalorder %s16, 0
    %p240 = por %p238, %p239
    %p241 = scmp.ne.s32.totalorder %s230, %s233
    %p242 = scmp.eq.s32.totalorder %s21, 1
    %p243 = por %p241, %p242
    %p244 = scmp.ne.s32.totalorder %s233, %s234
    %p245 = scmp.eq.s32.totalorder %s21, 0
    %p246 = por %p244, %p245
    %p247 = scmp.ne.s32.totalorder %s233, %s234
    %p248 = scmp.eq.s32.totalorder %s22, 1
    %p249 = por %p247, %p248
    %p251 = scmp.ne.s32.totalorder %s234, %s250
    %p252 = scmp.eq.s32.totalorder %s22, 0
    %p253 = por %p251, %p252
    %s254 = ssub.s32 %s23, %s35
    %s255 = ssub.s32 %s24, %s31
    %s256 = sor.u32 %s254, %s255
    %p257 = scmp.eq.s32.totalorder %s256, 0
    %s259 = sadd.s32 %s258, 1
    %s260 = scalar_select %p257, %s258, %s259
    %p263 = pneg %p257
    %p264 = scmp.eq.s32.totalorder %s16, 1
    %p265 = por %p263, %p264
    %p266 = scmp.ne.s32.totalorder %s258, %s261
    %p267 = scmp.eq.s32.totalorder %s16, 0
    %p268 = por %p266, %p267
    %p269 = scmp.ne.s32.totalorder %s258, %s261
    %p270 = scmp.eq.s32.totalorder %s21, 1
    %p271 = por %p269, %p270
    %p272 = scmp.ne.s32.totalorder %s261, %s262
    %p273 = scmp.eq.s32.totalorder %s21, 0
    %p274 = por %p272, %p273
    %p275 = scmp.ne.s32.totalorder %s261, %s262
    %p276 = scmp.eq.s32.totalorder %s22, 1
    %p277 = por %p275, %p276
    %p279 = scmp.ne.s32.totalorder %s262, %s278
    %p280 = scmp.eq.s32.totalorder %s22, 0
    %p281 = por %p279, %p280
    %s282 = ssub.s32 %s23, %s35
    %s283 = ssub.s32 %s24, %s31
    %s284 = sor.u32 %s282, %s283
    %p285 = scmp.eq.s32.totalorder %s284, 0
    %s287 = sadd.s32 %s286, 1
    %s288 = scalar_select %p285, %s286, %s287
    %p291 = pneg %p285
    %p292 = scmp.eq.s32.totalorder %s16, 1
    %p293 = por %p291, %p292
    %p294 = scmp.ne.s32.totalorder %s286, %s289
    %p295 = scmp.eq.s32.totalorder %s16, 0
    %p296 = por %p294, %p295
    %p297 = scmp.ne.s32.totalorder %s286, %s289
    %p298 = scmp.eq.s32.totalorder %s21, 1
    %p299 = por %p297, %p298
    %p300 = scmp.ne.s32.totalorder %s289, %s290
    %p301 = scmp.eq.s32.totalorder %s21, 0
    %p302 = por %p300, %p301
    %p303 = scmp.ne.s32.totalorder %s289, %s290
    %p304 = scmp.eq.s32.totalorder %s22, 1
    %p305 = por %p303, %p304
    %p307 = scmp.ne.s32.totalorder %s290, %s306
    %p308 = scmp.eq.s32.totalorder %s22, 0
    %p309 = por %p307, %p308
    %p310 = scmp.le.s32.totalorder 1, %s16
    %p311 = scmp.lt.s32.totalorder %s16, 3
    %p312 = pnand %p310, %p311
    %p313 = pneg %p312
    // Predicated region
    $region9: #{rhofold_loss.4} parent=5 // pred_check
      _
    $region10: #{rhofold_loss.4} parent=5 // pred_check_branch
      %315 = sbr.rel (%p312) target = $region12
    $region11: #{rhofold_loss.4} parent=5 // pred_region
      %s316 = ssub.s32 %s16, 1
    $region12: #{rhofold_loss.4} parent=5 // pred_fallthru
      _
    %p317 = scmp.lt.s32.totalorder %s16, 2
    // Predicated region
    $region13: #{rhofold_loss.4} parent=5 // pred_check
      %p318 = pneg %p317
    $region14: #{rhofold_loss.4} parent=5 // pred_check_branch
      %320 = sbr.rel (%p318) target = $region16
    $region15: #{rhofold_loss.4} parent=5 // pred_region
      // Predicated region
      $region17: #{rhofold_loss.4} parent=15 // pred_check
        %p321 = pneg %p50
      $region18: #{rhofold_loss.4} parent=15 // pred_check_branch
        %323 = sbr.rel (%p321) target = $region20
      $region19: #{rhofold_loss.4} parent=15 // pred_region
        %p324 = scmp.lt.s32.totalorder %s23, 1
        %s325 = scalar_select %p324, %s23, 1
        %p326 = scmp.lt.s32.totalorder %s24, 0
        %s327 = scalar_select %p326, %s24, 0
        %s328 = sadd.s32 %s327, %s325
        %s329 = smul.addr %s328, 8
        %s330 = scalar_lea.vmem %s0, %s329
      $region20: #{rhofold_loss.4} parent=15 // pred_fallthru
        _
      // Predicated region
      $region21: #{rhofold_loss.4} parent=15 // pred_check
        %p331 = pneg %p76
      $region22: #{rhofold_loss.4} parent=15 // pred_check_branch
        %333 = sbr.rel (%p331) target = $region24
      $region23: #{rhofold_loss.4} parent=15 // pred_region
        %p334 = scmp.lt.s32.totalorder %s23, 1
        %s335 = scalar_select %p334, %s23, 1
        %s336 = smul.addr %s335, 4
        %s337 = scalar_lea.vmem %s1, %s336
      $region24: #{rhofold_loss.4} parent=15 // pred_fallthru
        _
      // Predicated region
      $region25: #{rhofold_loss.4} parent=15 // pred_check
        %p338 = pneg %p104
      $region26: #{rhofold_loss.4} parent=15 // pred_check_branch
        %340 = sbr.rel (%p338) target = $region28
      $region27: #{rhofold_loss.4} parent=15 // pred_region
        %p341 = scmp.lt.s32.totalorder %s23, 1
        %s342 = scalar_select %p341, %s23, 1
        %p343 = scmp.lt.s32.totalorder %s24, 0
        %s344 = scalar_select %p343, %s24, 0
        %s345 = sadd.s32 %s344, %s342
        %s346 = smul.addr %s345, 8
        %s347 = scalar_lea.vmem %s2, %s346
      $region28: #{rhofold_loss.4} parent=15 // pred_fallthru
        _
      // Predicated region
      $region29: #{rhofold_loss.4} parent=15 // pred_check
        %p348 = pneg %p130
      $region30: #{rhofold_loss.4} parent=15 // pred_check_branch
        %350 = sbr.rel (%p348) target = $region32
      $region31: #{rhofold_loss.4} parent=15 // pred_region
        %p351 = scmp.lt.s32.totalorder %s23, 1
        %s352 = scalar_select %p351, %s23, 1
        %s353 = smul.addr %s352, 4
        %s354 = scalar_lea.vmem %s3, %s353
      $region32: #{rhofold_loss.4} parent=15 // pred_fallthru
        _
      // Predicated region
      $region33: #{rhofold_loss.4} parent=15 // pred_check
        %p355 = pneg %p158
      $region34: #{rhofold_loss.4} parent=15 // pred_check_branch
        %357 = sbr.rel (%p355) target = $region36
      $region35: #{rhofold_loss.4} parent=15 // pred_region
        %p358 = scmp.lt.s32.totalorder %s23, 1
        %s359 = scalar_select %p358, %s23, 1
        %p360 = scmp.lt.s32.totalorder %s24, 0
        %s361 = scalar_select %p360, %s24, 0
        %s362 = sadd.s32 %s361, %s359
        %s363 = smul.addr %s362, 8
        %s364 = scalar_lea.vmem %s4, %s363
      $region36: #{rhofold_loss.4} parent=15 // pred_fallthru
        _
      // Predicated region
      $region37: #{rhofold_loss.4} parent=15 // pred_check
        %p365 = pneg %p184
      $region38: #{rhofold_loss.4} parent=15 // pred_check_branch
        %367 = sbr.rel (%p365) target = $region40
      $region39: #{rhofold_loss.4} parent=15 // pred_region
        %p368 = scmp.lt.s32.totalorder %s23, 1
        %s369 = scalar_select %p368, %s23, 1
        %s370 = scalar_lea.vmem %s5, %s369
      $region40: #{rhofold_loss.4} parent=15 // pred_fallthru
        _
      // Predicated region
      $region41: #{rhofold_loss.4} parent=15 // pred_check
        %p371 = pneg %p212
      $region42: #{rhofold_loss.4} parent=15 // pred_check_branch
        %373 = sbr.rel (%p371) target = $region44
      $region43: #{rhofold_loss.4} parent=15 // pred_region
        %p374 = scmp.lt.s32.totalorder %s23, 1
        %s375 = scalar_select %p374, %s23, 1
        %p376 = scmp.lt.s32.totalorder %s24, 0
        %s377 = scalar_select %p376, %s24, 0
        %s378 = sadd.s32 %s377, %s375
        %s379 = smul.addr %s378, 8
        %s380 = scalar_lea.vmem %s6, %s379
      $region44: #{rhofold_loss.4} parent=15 // pred_fallthru
        _
    $region16: #{rhofold_loss.4} parent=5 // pred_fallthru
      _
    %p381 = scmp.le.s32.totalorder 1, %s16
    %p382 = scmp.lt.s32.totalorder %s16, 3
    %p383 = pnand %p381, %p382
    %p384 = pneg %p383
    // Predicated region
    $region45: #{rhofold_loss.4} parent=5 // pred_check
      _
    $region46: #{rhofold_loss.4} parent=5 // pred_check_branch
      %386 = sbr.rel (%p383) target = $region48
    $region47: #{rhofold_loss.4} parent=5 // pred_region
      %s387 = ssub.s32 %s16, 1
      %p388 = scmp.lt.s32.totalorder %s25, 1
      %s389 = scalar_select %p388, %s25, 1
      %p390 = scmp.lt.s32.totalorder %s26, 0
      %s391 = scalar_select %p390, %s26, 0
      %s392 = sadd.s32 %s391, %s389
      %s393 = smul.addr %s392, 8
      %s394 = scalar_lea.vmem %s0, %s393
      %p395 = pneg %p56
      %p396 = pneg %p53
      %p397 = scmp.lt.s32.totalorder %s25, 1
      %s398 = scalar_select %p397, %s25, 1
      %s399 = smul.addr %s398, 4
      %s400 = scalar_lea.vmem %s1, %s399
      %p401 = pneg %p82
      %p402 = pneg %p79
      %p403 = scmp.lt.s32.totalorder %s25, 1
      %s404 = scalar_select %p403, %s25, 1
      %p405 = scmp.lt.s32.totalorder %s26, 0
      %s406 = scalar_select %p405, %s26, 0
      %s407 = sadd.s32 %s406, %s404
      %s408 = smul.addr %s407, 8
      %s409 = scalar_lea.vmem %s2, %s408
      %p410 = pneg %p110
      %p411 = pneg %p107
      %p412 = scmp.lt.s32.totalorder %s25, 1
      %s413 = scalar_select %p412, %s25, 1
      %s414 = smul.addr %s413, 4
      %s415 = scalar_lea.vmem %s3, %s414
      %p416 = pneg %p136
      %p417 = pneg %p133
      %p418 = scmp.lt.s32.totalorder %s25, 1
      %s419 = scalar_select %p418, %s25, 1
      %p420 = scmp.lt.s32.totalorder %s26, 0
      %s421 = scalar_select %p420, %s26, 0
      %s422 = sadd.s32 %s421, %s419
      %s423 = smul.addr %s422, 8
      %s424 = scalar_lea.vmem %s4, %s423
      %p425 = pneg %p164
      %p426 = pneg %p161
      %p427 = scmp.lt.s32.totalorder %s25, 1
      %s428 = scalar_select %p427, %s25, 1
      %s429 = scalar_lea.vmem %s5, %s428
      %p430 = pneg %p190
      %p431 = pneg %p187
      %p432 = scmp.lt.s32.totalorder %s25, 1
      %s433 = scalar_select %p432, %s25, 1
      %p434 = scmp.lt.s32.totalorder %s26, 0
      %s435 = scalar_select %p434, %s26, 0
      %s436 = sadd.s32 %s435, %s433
      %s437 = smul.addr %s436, 8
      %s438 = scalar_lea.vmem %s6, %s437
      %p439 = pneg %p218
      %p440 = pneg %p215
      %p441 = pneg %p246
      %p442 = pneg %p243
      %p443 = scmp.lt.s32.totalorder %s25, 1
      %s444 = scalar_select %p443, %s25, 1
      %p445 = scmp.lt.s32.totalorder %s26, 0
      %s446 = scalar_select %p445, %s26, 0
      %s447 = sadd.s32 %s446, %s444
      %s448 = smul.addr %s447, 8
      %s449 = scalar_lea.vmem %s7, %s448
      %p450 = pneg %p274
      %p451 = pneg %p271
      %p452 = scmp.lt.s32.totalorder %s25, 1
      %s453 = scalar_select %p452, %s25, 1
      %p454 = scmp.lt.s32.totalorder %s26, 0
      %s455 = scalar_select %p454, %s26, 0
      %s456 = sadd.s32 %s455, %s453
      %s457 = smul.addr %s456, 8
      %s458 = scalar_lea.vmem %s8, %s457
      %p459 = pneg %p302
      %p460 = pneg %p299
      %p461 = scmp.lt.s32.totalorder %s25, 1
      %s462 = scalar_select %p461, %s25, 1
      %p463 = scmp.lt.s32.totalorder %s26, 0
      %s464 = scalar_select %p463, %s26, 0
      %s465 = sadd.s32 %s464, %s462
      %s466 = smul.addr %s465, 8
      %s467 = scalar_lea.vmem %s9, %s466
      %p468 = scmp.lt.s32.totalorder %s25, 1
      %s469 = scalar_select %p468, %s25, 1
      %p470 = scmp.lt.s32.totalorder %s26, 0
      %s471 = scalar_select %p470, %s26, 0
      %s472 = sadd.s32 %s471, %s469
      %s473 = smul.addr %s472, 8
      %s474 = scalar_lea.vmem %s0, %s473
      %p475 = scmp.lt.s32.totalorder %s25, 1
      %s476 = scalar_select %p475, %s25, 1
      %s477 = smul.addr %s476, 4
      %s478 = scalar_lea.vmem %s1, %s477
      %p479 = scmp.lt.s32.totalorder %s25, 1
      %s480 = scalar_select %p479, %s25, 1
      %p481 = scmp.lt.s32.totalorder %s26, 0
      %s482 = scalar_select %p481, %s26, 0
      %s483 = sadd.s32 %s482, %s480
      %s484 = smul.addr %s483, 8
      %s485 = scalar_lea.vmem %s2, %s484
      %p486 = scmp.lt.s32.totalorder %s25, 1
      %s487 = scalar_select %p486, %s25, 1
      %s488 = smul.addr %s487, 4
      %s489 = scalar_lea.vmem %s3, %s488
      %p490 = scmp.lt.s32.totalorder %s25, 1
      %s491 = scalar_select %p490, %s25, 1
      %p492 = scmp.lt.s32.totalorder %s26, 0
      %s493 = scalar_select %p492, %s26, 0
      %s494 = sadd.s32 %s493, %s491
      %s495 = smul.addr %s494, 8
      %s496 = scalar_lea.vmem %s4, %s495
      %p497 = scmp.lt.s32.totalorder %s25, 1
      %s498 = scalar_select %p497, %s25, 1
      %s499 = scalar_lea.vmem %s5, %s498
      %p500 = scmp.lt.s32.totalorder %s25, 1
      %s501 = scalar_select %p500, %s25, 1
      %p502 = scmp.lt.s32.totalorder %s26, 0
      %s503 = scalar_select %p502, %s26, 0
      %s504 = sadd.s32 %s503, %s501
      %s505 = smul.addr %s504, 8
      %s506 = scalar_lea.vmem %s6, %s505
      %p507 = scmp.lt.s32.totalorder %s25, 1
      %s508 = scalar_select %p507, %s25, 1
      %p509 = scmp.lt.s32.totalorder %s26, 0
      %s510 = scalar_select %p509, %s26, 0
      %s511 = sadd.s32 %s510, %s508
      %s512 = smul.addr %s511, 8
      %s513 = scalar_lea.vmem %s7, %s512
      %p514 = scmp.lt.s32.totalorder %s25, 1
      %s515 = scalar_select %p514, %s25, 1
      %p516 = scmp.lt.s32.totalorder %s26, 0
      %s517 = scalar_select %p516, %s26, 0
      %s518 = sadd.s32 %s517, %s515
      %s519 = smul.addr %s518, 8
      %s520 = scalar_lea.vmem %s8, %s519
      %p521 = scmp.lt.s32.totalorder %s25, 1
      %s522 = scalar_select %p521, %s25, 1
      %p523 = scmp.lt.s32.totalorder %s26, 0
      %s524 = scalar_select %p523, %s26, 0
      %s525 = sadd.s32 %s524, %s522
      %s526 = smul.addr %s525, 8
      %s527 = scalar_lea.vmem %s9, %s526
      %v528 = vld [vmem:[%s474] sm:$0xff]
      %v529 = vld [vmem:[%s485] sm:$0xff]
      %v530 = vld [vmem:[%s478] sm:$0x7]
      %v531 = vld [vmem:[%s489] sm:$0x7]
      %v532 = vld [vmem:[%s496] sm:$0xff]
      %v533 = vld [vmem:[%s499] sm:$0x1]
      %v534 = vld [vmem:[%s506] sm:$0xff]
      %vm535 = vcmask 23552
      %v537 = vsel %vm535, %v529, 0
      %vm539 = vcmask 1042432
      %v541 = vsel %vm539, %v531, 0
      %543 = vmatprep.subr.mxu0 0.0
      %544 = vmatpush1.msra.mxu0 0.0
      %545 = vmatprep.subr.mxu0 0.0
      %546 = vmatpush1.msra.mxu0 0.0
      %547 = vmatprep.subr.mxu0 0.0
      %548 = vmatpush1.msra.mxu0 0.0
      %549 = vmatprep.subr.mxu0 0.0
      %550 = vmatpush1.msra.mxu0 0.0
      %551 = vmatprep.subr.mxu0 0.0
      %552 = vmatpush1.msra.mxu0 0.0
      %553 = vmatprep.subr.mxu0 0.0
      %554 = vmatpush1.msra.mxu0 0.0
      %555 = vmatprep.subr.mxu0 0.0
      %556 = vmatpush1.msra.mxu0 0.0
      %557 = vmatprep.subr.mxu0 0.0
      %558 = vmatpush1.msra.mxu0 0.0
      %559 = vmatprep.subr.mxu0 0.0
      %560 = vmatpush1.msra.mxu0 0.0
      %561 = vmatprep.subr.mxu0 0.0
      %562 = vmatpush1.msra.mxu0 0.0
      %563 = vmatprep.subr.mxu0 0.0
      %564 = vmatpush1.msra.mxu0 0.0
      %565 = vmatprep.subr.mxu0 0.0
      %566 = vmatpush1.msra.mxu0 0.0
      %567 = vmatprep.subr.mxu0 0.0
      %568 = vmatpush1.msra.mxu0 0.0
      %569 = vmatprep.subr.mxu0 0.0
      %570 = vmatpush1.msra.mxu0 0.0
      %571 = vmatprep.subr.mxu0 0.0
      %572 = vmatpush1.msra.mxu0 0.0
      %573 = vmatprep.subr.mxu0 0.0
      %v574 = vand.u32 %v541, 4294901760
      %575 = vmatpush1.msra.mxu0 %v574
      %576 = vmatprep.subr.mxu0 0.0
      %577 = vmatpush2.msra.mxu0 0.0
      %578 = vmatprep.subr.mxu0 0.0
      %579 = vmatpush2.msra.mxu0 0.0
      %580 = vmatprep.subr.mxu0 0.0
      %581 = vmatpush2.msra.mxu0 0.0
      %582 = vmatprep.subr.mxu0 0.0
      %583 = vmatpush2.msra.mxu0 0.0
      %584 = vmatprep.subr.mxu0 0.0
      %585 = vmatpush2.msra.mxu0 0.0
      %586 = vmatprep.subr.mxu0 0.0
      %587 = vmatpush2.msra.mxu0 0.0
      %588 = vmatprep.subr.mxu0 0.0
      %589 = vmatpush2.msra.mxu0 0.0
      %590 = vmatprep.subr.mxu0 0.0
      %591 = vmatpush2.msra.mxu0 0.0
      %592 = vmatprep.subr.mxu0 0.0
      %593 = vmatpush2.msra.mxu0 0.0
      %594 = vmatprep.subr.mxu0 0.0
      %595 = vmatpush2.msra.mxu0 0.0
      %596 = vmatprep.subr.mxu0 0.0
      %597 = vmatpush2.msra.mxu0 0.0
      %598 = vmatprep.subr.mxu0 0.0
      %599 = vmatpush2.msra.mxu0 0.0
      %600 = vmatprep.subr.mxu0 0.0
      %601 = vmatpush2.msra.mxu0 0.0
      %602 = vmatprep.subr.mxu0 0.0
      %603 = vmatpush2.msra.mxu0 0.0
      %604 = vmatprep.subr.mxu0 0.0
      %605 = vmatpush2.msra.mxu0 0.0
      %606 = vmatprep.subr.mxu0 0.0
      %607 = vmatpush2.msra.mxu0 0.0
      %608 = vmatprep.mubr.f32.mxu0 0.0
      %v609 = vand.u32 %v537, 4294901760
      %v610 = vsub.f32 %v537, %v609
      %v611 = vand.u32 %v610, 4294901760
      %v612 = vsub.f32 %v610, %v611
      %v613 = vand.u32 %v612, 4294901760
      %614 = vmatmul.mubr.f32.gmra.mxu0 %v613
      %v615 = vpop.f32.mrf.mxu0
      %v616 = vadd.f32 0.0, %v615
      %v617 = vpop.f32.mrf.mxu0
      %618 = vdwg.mxu0
      %619 = vmatprep.subr.mxu0 0.0
      %620 = vmatpush1.msra.mxu0 0.0
      %621 = vmatprep.subr.mxu0 0.0
      %622 = vmatpush1.msra.mxu0 0.0
      %623 = vmatprep.subr.mxu0 0.0
      %624 = vmatpush1.msra.mxu0 0.0
      %625 = vmatprep.subr.mxu0 0.0
      %626 = vmatpush1.msra.mxu0 0.0
      %627 = vmatprep.subr.mxu0 0.0
      %628 = vmatpush1.msra.mxu0 0.0
      %629 = vmatprep.subr.mxu0 0.0
      %630 = vmatpush1.msra.mxu0 0.0
      %631 = vmatprep.subr.mxu0 0.0
      %632 = vmatpush1.msra.mxu0 0.0
      %633 = vmatprep.subr.mxu0 0.0
      %634 = vmatpush1.msra.mxu0 0.0
      %635 = vmatprep.subr.mxu0 0.0
      %636 = vmatpush1.msra.mxu0 0.0
      %637 = vmatprep.subr.mxu0 0.0
      %638 = vmatpush1.msra.mxu0 0.0
      %639 = vmatprep.subr.mxu0 0.0
      %640 = vmatpush1.msra.mxu0 0.0
      %641 = vmatprep.subr.mxu0 0.0
      %642 = vmatpush1.msra.mxu0 0.0
      %643 = vmatprep.subr.mxu0 0.0
      %644 = vmatpush1.msra.mxu0 0.0
      %645 = vmatprep.subr.mxu0 0.0
      %646 = vmatpush1.msra.mxu0 0.0
      %647 = vmatprep.subr.mxu0 0.0
      %648 = vmatpush1.msra.mxu0 0.0
      %649 = vmatprep.subr.mxu0 0.0
      %v650 = vand.u32 %v541, 4294901760
      %v651 = vsub.f32 %v541, %v650
      %v652 = vand.u32 %v651, 4294901760
      %v653 = vsub.f32 %v651, %v652
      %v654 = vand.u32 %v653, 4294901760
      %655 = vmatpush1.msra.mxu0 %v654
      %656 = vmatprep.subr.mxu0 0.0
      %657 = vmatpush2.msra.mxu0 0.0
      %658 = vmatprep.subr.mxu0 0.0
      %659 = vmatpush2.msra.mxu0 0.0
      %660 = vmatprep.subr.mxu0 0.0
      %661 = vmatpush2.msra.mxu0 0.0
      %662 = vmatprep.subr.mxu0 0.0
      %663 = vmatpush2.msra.mxu0 0.0
      %664 = vmatprep.subr.mxu0 0.0
      %665 = vmatpush2.msra.mxu0 0.0
      %666 = vmatprep.subr.mxu0 0.0
      %667 = vmatpush2.msra.mxu0 0.0
      %668 = vmatprep.subr.mxu0 0.0
      %669 = vmatpush2.msra.mxu0 0.0
      %670 = vmatprep.subr.mxu0 0.0
      %671 = vmatpush2.msra.mxu0 0.0
      %672 = vmatprep.subr.mxu0 0.0
      %673 = vmatpush2.msra.mxu0 0.0
      %674 = vmatprep.subr.mxu0 0.0
      %675 = vmatpush2.msra.mxu0 0.0
      %676 = vmatprep.subr.mxu0 0.0
      %677 = vmatpush2.msra.mxu0 0.0
      %678 = vmatprep.subr.mxu0 0.0
      %679 = vmatpush2.msra.mxu0 0.0
      %680 = vmatprep.subr.mxu0 0.0
      %681 = vmatpush2.msra.mxu0 0.0
      %682 = vmatprep.subr.mxu0 0.0
      %683 = vmatpush2.msra.mxu0 0.0
      %684 = vmatprep.subr.mxu0 0.0
      %685 = vmatpush2.msra.mxu0 0.0
      %686 = vmatprep.subr.mxu0 0.0
      %687 = vmatpush2.msra.mxu0 0.0
      %688 = vmatprep.mubr.f32.mxu0 0.0
      %v689 = vand.u32 %v537, 4294901760
      %690 = vmatmul.mubr.f32.gmra.mxu0 %v689
      %v691 = vpop.f32.mrf.mxu0
      %v692 = vadd.f32 %v616, %v691
      %v693 = vpop.f32.mrf.mxu0
      %694 = vdwg.mxu0
      %695 = vmatprep.subr.mxu0 0.0
      %696 = vmatpush1.msra.mxu0 0.0
      %697 = vmatprep.subr.mxu0 0.0
      %698 = vmatpush1.msra.mxu0 0.0
      %699 = vmatprep.subr.mxu0 0.0
      %700 = vmatpush1.msra.mxu0 0.0
      %701 = vmatprep.subr.mxu0 0.0
      %702 = vmatpush1.msra.mxu0 0.0
      %703 = vmatprep.subr.mxu0 0.0
      %704 = vmatpush1.msra.mxu0 0.0
      %705 = vmatprep.subr.mxu0 0.0
      %706 = vmatpush1.msra.mxu0 0.0
      %707 = vmatprep.subr.mxu0 0.0
      %708 = vmatpush1.msra.mxu0 0.0
      %709 = vmatprep.subr.mxu0 0.0
      %710 = vmatpush1.msra.mxu0 0.0
      %711 = vmatprep.subr.mxu0 0.0
      %712 = vmatpush1.msra.mxu0 0.0
      %713 = vmatprep.subr.mxu0 0.0
      %714 = vmatpush1.msra.mxu0 0.0
      %715 = vmatprep.subr.mxu0 0.0
      %716 = vmatpush1.msra.mxu0 0.0
      %717 = vmatprep.subr.mxu0 0.0
      %718 = vmatpush1.msra.mxu0 0.0
      %719 = vmatprep.subr.mxu0 0.0
      %720 = vmatpush1.msra.mxu0 0.0
      %721 = vmatprep.subr.mxu0 0.0
      %722 = vmatpush1.msra.mxu0 0.0
      %723 = vmatprep.subr.mxu0 0.0
      %724 = vmatpush1.msra.mxu0 0.0
      %725 = vmatprep.subr.mxu0 0.0
      %v726 = vand.u32 %v541, 4294901760
      %v727 = vsub.f32 %v541, %v726
      %728 = vmatpush1.msra.mxu0 %v727
      %729 = vmatprep.subr.mxu0 0.0
      %730 = vmatpush2.msra.mxu0 0.0
      %731 = vmatprep.subr.mxu0 0.0
      %732 = vmatpush2.msra.mxu0 0.0
      %733 = vmatprep.subr.mxu0 0.0
      %734 = vmatpush2.msra.mxu0 0.0
      %735 = vmatprep.subr.mxu0 0.0
      %736 = vmatpush2.msra.mxu0 0.0
      %737 = vmatprep.subr.mxu0 0.0
      %738 = vmatpush2.msra.mxu0 0.0
      %739 = vmatprep.subr.mxu0 0.0
      %740 = vmatpush2.msra.mxu0 0.0
      %741 = vmatprep.subr.mxu0 0.0
      %742 = vmatpush2.msra.mxu0 0.0
      %743 = vmatprep.subr.mxu0 0.0
      %744 = vmatpush2.msra.mxu0 0.0
      %745 = vmatprep.subr.mxu0 0.0
      %746 = vmatpush2.msra.mxu0 0.0
      %747 = vmatprep.subr.mxu0 0.0
      %748 = vmatpush2.msra.mxu0 0.0
      %749 = vmatprep.subr.mxu0 0.0
      %750 = vmatpush2.msra.mxu0 0.0
      %751 = vmatprep.subr.mxu0 0.0
      %752 = vmatpush2.msra.mxu0 0.0
      %753 = vmatprep.subr.mxu0 0.0
      %754 = vmatpush2.msra.mxu0 0.0
      %755 = vmatprep.subr.mxu0 0.0
      %756 = vmatpush2.msra.mxu0 0.0
      %757 = vmatprep.subr.mxu0 0.0
      %758 = vmatpush2.msra.mxu0 0.0
      %759 = vmatprep.subr.mxu0 0.0
      %760 = vmatpush2.msra.mxu0 0.0
      %761 = vmatprep.mubr.f32.mxu0 0.0
      %v762 = vand.u32 %v537, 4294901760
      %v763 = vsub.f32 %v537, %v762
      %764 = vmatmul.mubr.f32.gmra.mxu0 %v763
      %v765 = vpop.f32.mrf.mxu0
      %v766 = vadd.f32 %v692, %v765
      %v767 = vpop.f32.mrf.mxu0
      %768 = vdwg.mxu0
      %769 = vmatprep.subr.mxu0 0.0
      %770 = vmatpush1.msra.mxu0 0.0
      %771 = vmatprep.subr.mxu0 0.0
      %772 = vmatpush1.msra.mxu0 0.0
      %773 = vmatprep.subr.mxu0 0.0
      %774 = vmatpush1.msra.mxu0 0.0
      %775 = vmatprep.subr.mxu0 0.0
      %776 = vmatpush1.msra.mxu0 0.0
      %777 = vmatprep.subr.mxu0 0.0
      %778 = vmatpush1.msra.mxu0 0.0
      %779 = vmatprep.subr.mxu0 0.0
      %780 = vmatpush1.msra.mxu0 0.0
      %781 = vmatprep.subr.mxu0 0.0
      %782 = vmatpush1.msra.mxu0 0.0
      %783 = vmatprep.subr.mxu0 0.0
      %784 = vmatpush1.msra.mxu0 0.0
      %785 = vmatprep.subr.mxu0 0.0
      %786 = vmatpush1.msra.mxu0 0.0
      %787 = vmatprep.subr.mxu0 0.0
      %788 = vmatpush1.msra.mxu0 0.0
      %789 = vmatprep.subr.mxu0 0.0
      %790 = vmatpush1.msra.mxu0 0.0
      %791 = vmatprep.subr.mxu0 0.0
      %792 = vmatpush1.msra.mxu0 0.0
      %793 = vmatprep.subr.mxu0 0.0
      %794 = vmatpush1.msra.mxu0 0.0
      %795 = vmatprep.subr.mxu0 0.0
      %796 = vmatpush1.msra.mxu0 0.0
      %797 = vmatprep.subr.mxu0 0.0
      %798 = vmatpush1.msra.mxu0 0.0
      %799 = vmatprep.subr.mxu0 0.0
      %v800 = vand.u32 %v541, 4294901760
      %801 = vmatpush1.msra.mxu0 %v800
      %802 = vmatprep.subr.mxu0 0.0
      %803 = vmatpush2.msra.mxu0 0.0
      %804 = vmatprep.subr.mxu0 0.0
      %805 = vmatpush2.msra.mxu0 0.0
      %806 = vmatprep.subr.mxu0 0.0
      %807 = vmatpush2.msra.mxu0 0.0
      %808 = vmatprep.subr.mxu0 0.0
      %809 = vmatpush2.msra.mxu0 0.0
      %810 = vmatprep.subr.mxu0 0.0
      %811 = vmatpush2.msra.mxu0 0.0
      %812 = vmatprep.subr.mxu0 0.0
      %813 = vmatpush2.msra.mxu0 0.0
      %814 = vmatprep.subr.mxu0 0.0
      %815 = vmatpush2.msra.mxu0 0.0
      %816 = vmatprep.subr.mxu0 0.0
      %817 = vmatpush2.msra.mxu0 0.0
      %818 = vmatprep.subr.mxu0 0.0
      %819 = vmatpush2.msra.mxu0 0.0
      %820 = vmatprep.subr.mxu0 0.0
      %821 = vmatpush2.msra.mxu0 0.0
      %822 = vmatprep.subr.mxu0 0.0
      %823 = vmatpush2.msra.mxu0 0.0
      %824 = vmatprep.subr.mxu0 0.0
      %825 = vmatpush2.msra.mxu0 0.0
      %826 = vmatprep.subr.mxu0 0.0
      %827 = vmatpush2.msra.mxu0 0.0
      %828 = vmatprep.subr.mxu0 0.0
      %829 = vmatpush2.msra.mxu0 0.0
      %830 = vmatprep.subr.mxu0 0.0
      %831 = vmatpush2.msra.mxu0 0.0
      %832 = vmatprep.subr.mxu0 0.0
      %833 = vmatpush2.msra.mxu0 0.0
      %834 = vmatprep.mubr.f32.mxu0 0.0
      %v835 = vand.u32 %v537, 4294901760
      %v836 = vsub.f32 %v537, %v835
      %v837 = vand.u32 %v836, 4294901760
      %838 = vmatmul.mubr.f32.gmra.mxu0 %v837
      %v839 = vpop.f32.mrf.mxu0
      %v840 = vadd.f32 %v766, %v839
      %v841 = vpop.f32.mrf.mxu0
      %842 = vdwg.mxu0
      %843 = vmatprep.subr.mxu0 0.0
      %844 = vmatpush1.msra.mxu0 0.0
      %845 = vmatprep.subr.mxu0 0.0
      %846 = vmatpush1.msra.mxu0 0.0
      %847 = vmatprep.subr.mxu0 0.0
      %848 = vmatpush1.msra.mxu0 0.0
      %849 = vmatprep.subr.mxu0 0.0
      %850 = vmatpush1.msra.mxu0 0.0
      %851 = vmatprep.subr.mxu0 0.0
      %852 = vmatpush1.msra.mxu0 0.0
      %853 = vmatprep.subr.mxu0 0.0
      %854 = vmatpush1.msra.mxu0 0.0
      %855 = vmatprep.subr.mxu0 0.0
      %856 = vmatpush1.msra.mxu0 0.0
      %857 = vmatprep.subr.mxu0 0.0
      %858 = vmatpush1.msra.mxu0 0.0
      %859 = vmatprep.subr.mxu0 0.0
      %860 = vmatpush1.msra.mxu0 0.0
      %861 = vmatprep.subr.mxu0 0.0
      %862 = vmatpush1.msra.mxu0 0.0
      %863 = vmatprep.subr.mxu0 0.0
      %864 = vmatpush1.msra.mxu0 0.0
      %865 = vmatprep.subr.mxu0 0.0
      %866 = vmatpush1.msra.mxu0 0.0
      %867 = vmatprep.subr.mxu0 0.0
      %868 = vmatpush1.msra.mxu0 0.0
      %869 = vmatprep.subr.mxu0 0.0
      %870 = vmatpush1.msra.mxu0 0.0
      %871 = vmatprep.subr.mxu0 0.0
      %872 = vmatpush1.msra.mxu0 0.0
      %873 = vmatprep.subr.mxu0 0.0
      %v874 = vand.u32 %v541, 4294901760
      %v875 = vsub.f32 %v541, %v874
      %v876 = vand.u32 %v875, 4294901760
      %877 = vmatpush1.msra.mxu0 %v876
      %878 = vmatprep.subr.mxu0 0.0
      %879 = vmatpush2.msra.mxu0 0.0
      %880 = vmatprep.subr.mxu0 0.0
      %881 = vmatpush2.msra.mxu0 0.0
      %882 = vmatprep.subr.mxu0 0.0
      %883 = vmatpush2.msra.mxu0 0.0
      %884 = vmatprep.subr.mxu0 0.0
      %885 = vmatpush2.msra.mxu0 0.0
      %886 = vmatprep.subr.mxu0 0.0
      %887 = vmatpush2.msra.mxu0 0.0
      %888 = vmatprep.subr.mxu0 0.0
      %889 = vmatpush2.msra.mxu0 0.0
      %890 = vmatprep.subr.mxu0 0.0
      %891 = vmatpush2.msra.mxu0 0.0
      %892 = vmatprep.subr.mxu0 0.0
      %893 = vmatpush2.msra.mxu0 0.0
      %894 = vmatprep.subr.mxu0 0.0
      %895 = vmatpush2.msra.mxu0 0.0
      %896 = vmatprep.subr.mxu0 0.0
      %897 = vmatpush2.msra.mxu0 0.0
      %898 = vmatprep.subr.mxu0 0.0
      %899 = vmatpush2.msra.mxu0 0.0
      %900 = vmatprep.subr.mxu0 0.0
      %901 = vmatpush2.msra.mxu0 0.0
      %902 = vmatprep.subr.mxu0 0.0
      %903 = vmatpush2.msra.mxu0 0.0
      %904 = vmatprep.subr.mxu0 0.0
      %905 = vmatpush2.msra.mxu0 0.0
      %906 = vmatprep.subr.mxu0 0.0
      %907 = vmatpush2.msra.mxu0 0.0
      %908 = vmatprep.subr.mxu0 0.0
      %909 = vmatpush2.msra.mxu0 0.0
      %910 = vmatprep.mubr.f32.mxu0 0.0
      %v911 = vand.u32 %v537, 4294901760
      %912 = vmatmul.mubr.f32.gmra.mxu0 %v911
      %v913 = vpop.f32.mrf.mxu0
      %v914 = vadd.f32 %v840, %v913
      %v915 = vpop.f32.mrf.mxu0
      %916 = vdwg.mxu0
      %917 = vmatprep.subr.mxu0 0.0
      %918 = vmatpush1.msra.mxu0 0.0
      %919 = vmatprep.subr.mxu0 0.0
      %920 = vmatpush1.msra.mxu0 0.0
      %921 = vmatprep.subr.mxu0 0.0
      %922 = vmatpush1.msra.mxu0 0.0
      %923 = vmatprep.subr.mxu0 0.0
      %924 = vmatpush1.msra.mxu0 0.0
      %925 = vmatprep.subr.mxu0 0.0
      %926 = vmatpush1.msra.mxu0 0.0
      %927 = vmatprep.subr.mxu0 0.0
      %928 = vmatpush1.msra.mxu0 0.0
      %929 = vmatprep.subr.mxu0 0.0
      %930 = vmatpush1.msra.mxu0 0.0
      %931 = vmatprep.subr.mxu0 0.0
      %932 = vmatpush1.msra.mxu0 0.0
      %933 = vmatprep.subr.mxu0 0.0
      %934 = vmatpush1.msra.mxu0 0.0
      %935 = vmatprep.subr.mxu0 0.0
      %936 = vmatpush1.msra.mxu0 0.0
      %937 = vmatprep.subr.mxu0 0.0
      %938 = vmatpush1.msra.mxu0 0.0
      %939 = vmatprep.subr.mxu0 0.0
      %940 = vmatpush1.msra.mxu0 0.0
      %941 = vmatprep.subr.mxu0 0.0
      %942 = vmatpush1.msra.mxu0 0.0
      %943 = vmatprep.subr.mxu0 0.0
      %944 = vmatpush1.msra.mxu0 0.0
      %945 = vmatprep.subr.mxu0 0.0
      %946 = vmatpush1.msra.mxu0 0.0
      %947 = vmatprep.subr.mxu0 0.0
      %v948 = vand.u32 %v541, 4294901760
      %949 = vmatpush1.msra.mxu0 %v948
      %950 = vmatprep.subr.mxu0 0.0
      %951 = vmatpush2.msra.mxu0 0.0
      %952 = vmatprep.subr.mxu0 0.0
      %953 = vmatpush2.msra.mxu0 0.0
      %954 = vmatprep.subr.mxu0 0.0
      %955 = vmatpush2.msra.mxu0 0.0
      %956 = vmatprep.subr.mxu0 0.0
      %957 = vmatpush2.msra.mxu0 0.0
      %958 = vmatprep.subr.mxu0 0.0
      %959 = vmatpush2.msra.mxu0 0.0
      %960 = vmatprep.subr.mxu0 0.0
      %961 = vmatpush2.msra.mxu0 0.0
      %962 = vmatprep.subr.mxu0 0.0
      %963 = vmatpush2.msra.mxu0 0.0
      %964 = vmatprep.subr.mxu0 0.0
      %965 = vmatpush2.msra.mxu0 0.0
      %966 = vmatprep.subr.mxu0 0.0
      %967 = vmatpush2.msra.mxu0 0.0
      %968 = vmatprep.subr.mxu0 0.0
      %969 = vmatpush2.msra.mxu0 0.0
      %970 = vmatprep.subr.mxu0 0.0
      %971 = vmatpush2.msra.mxu0 0.0
      %972 = vmatprep.subr.mxu0 0.0
      %973 = vmatpush2.msra.mxu0 0.0
      %974 = vmatprep.subr.mxu0 0.0
      %975 = vmatpush2.msra.mxu0 0.0
      %976 = vmatprep.subr.mxu0 0.0
      %977 = vmatpush2.msra.mxu0 0.0
      %978 = vmatprep.subr.mxu0 0.0
      %979 = vmatpush2.msra.mxu0 0.0
      %980 = vmatprep.subr.mxu0 0.0
      %981 = vmatpush2.msra.mxu0 0.0
      %982 = vmatprep.mubr.f32.mxu0 0.0
      %v983 = vand.u32 %v537, 4294901760
      %984 = vmatmul.mubr.f32.gmra.mxu0 %v983
      %v985 = vpop.f32.mrf.mxu0
      %v986 = vadd.f32 %v914, %v985
      %v987 = vpop.f32.mrf.mxu0
      %988 = vdwg.mxu0
      %v989 = vmul.f32 %v529, %v529
      %v990 = vsel %vm535, %v989, 0.0
      %991 = vadd.xlane.f32.xlu0 %v990
      %v992 = vpop.xlane.xlu0 %991
      %v993 = vmul.f32 %v531, %v531
      %vm994 = vcmask 59392
      %v995 = vsel %vm994, %v993, 0.0
      %v996 = vrot.slane %v995, 4
      %v997 = vadd.f32 %v995, %v996
      %v998 = vrot.slane %v997, 2
      %v999 = vadd.f32 %v997, %v998
      %v1000 = vrot.slane %v999, 1
      %v1001 = vadd.f32 %v999, %v1000
      %v1002 = vadd.f32 %v992, %v1001
      %v1003 = vmul.f32 %v986, 2.0
      %v1004 = vsub.f32 %v1002, %v1003
      %v1005 = vmax.f32 %v1004, 0.0
      %v1006 = vadd.f32 %v1005, 1e-10
      %v1007 = vrsqrt.pop %v1006
      %v1008 = vmul.f32 %v1006, %v1007
      %vm1009 = vcmp.eq.f32.partialorder %v1006, inf
      %v1010 = vsel %vm1009, %v1006, %v1008
      %vm1011 = vcmp.eq.f32.partialorder %v1006, 0.0
      %v1012 = vand.u32 %v1006, 2147483648
      %v1013 = vsel %vm1011, %v1012, %v1010
      %v1015 = vsel %vm535, %v528, 0
      %v1018 = vsel %vm539, %v530, 0
      %1020 = vmatprep.subr.mxu0 0.0
      %1021 = vmatpush1.msra.mxu0 0.0
      %1022 = vmatprep.subr.mxu0 0.0
      %1023 = vmatpush1.msra.mxu0 0.0
      %1024 = vmatprep.subr.mxu0 0.0
      %1025 = vmatpush1.msra.mxu0 0.0
      %1026 = vmatprep.subr.mxu0 0.0
      %1027 = vmatpush1.msra.mxu0 0.0
      %1028 = vmatprep.subr.mxu0 0.0
      %1029 = vmatpush1.msra.mxu0 0.0
      %1030 = vmatprep.subr.mxu0 0.0
      %1031 = vmatpush1.msra.mxu0 0.0
      %1032 = vmatprep.subr.mxu0 0.0
      %1033 = vmatpush1.msra.mxu0 0.0
      %1034 = vmatprep.subr.mxu0 0.0
      %1035 = vmatpush1.msra.mxu0 0.0
      %1036 = vmatprep.subr.mxu0 0.0
      %1037 = vmatpush1.msra.mxu0 0.0
      %1038 = vmatprep.subr.mxu0 0.0
      %1039 = vmatpush1.msra.mxu0 0.0
      %1040 = vmatprep.subr.mxu0 0.0
      %1041 = vmatpush1.msra.mxu0 0.0
      %1042 = vmatprep.subr.mxu0 0.0
      %1043 = vmatpush1.msra.mxu0 0.0
      %1044 = vmatprep.subr.mxu0 0.0
      %1045 = vmatpush1.msra.mxu0 0.0
      %1046 = vmatprep.subr.mxu0 0.0
      %1047 = vmatpush1.msra.mxu0 0.0
      %1048 = vmatprep.subr.mxu0 0.0
      %1049 = vmatpush1.msra.mxu0 0.0
      %1050 = vmatprep.subr.mxu0 0.0
      %v1051 = vand.u32 %v1018, 4294901760
      %1052 = vmatpush1.msra.mxu0 %v1051
      %1053 = vmatprep.subr.mxu0 0.0
      %1054 = vmatpush2.msra.mxu0 0.0
      %1055 = vmatprep.subr.mxu0 0.0
      %1056 = vmatpush2.msra.mxu0 0.0
      %1057 = vmatprep.subr.mxu0 0.0
      %1058 = vmatpush2.msra.mxu0 0.0
      %1059 = vmatprep.subr.mxu0 0.0
      %1060 = vmatpush2.msra.mxu0 0.0
      %1061 = vmatprep.subr.mxu0 0.0
      %1062 = vmatpush2.msra.mxu0 0.0
      %1063 = vmatprep.subr.mxu0 0.0
      %1064 = vmatpush2.msra.mxu0 0.0
      %1065 = vmatprep.subr.mxu0 0.0
      %1066 = vmatpush2.msra.mxu0 0.0
      %1067 = vmatprep.subr.mxu0 0.0
      %1068 = vmatpush2.msra.mxu0 0.0
      %1069 = vmatprep.subr.mxu0 0.0
      %1070 = vmatpush2.msra.mxu0 0.0
      %1071 = vmatprep.subr.mxu0 0.0
      %1072 = vmatpush2.msra.mxu0 0.0
      %1073 = vmatprep.subr.mxu0 0.0
      %1074 = vmatpush2.msra.mxu0 0.0
      %1075 = vmatprep.subr.mxu0 0.0
      %1076 = vmatpush2.msra.mxu0 0.0
      %1077 = vmatprep.subr.mxu0 0.0
      %1078 = vmatpush2.msra.mxu0 0.0
      %1079 = vmatprep.subr.mxu0 0.0
      %1080 = vmatpush2.msra.mxu0 0.0
      %1081 = vmatprep.subr.mxu0 0.0
      %1082 = vmatpush2.msra.mxu0 0.0
      %1083 = vmatprep.subr.mxu0 0.0
      %1084 = vmatpush2.msra.mxu0 0.0
      %1085 = vmatprep.mubr.f32.mxu0 0.0
      %v1086 = vand.u32 %v1015, 4294901760
      %v1087 = vsub.f32 %v1015, %v1086
      %v1088 = vand.u32 %v1087, 4294901760
      %v1089 = vsub.f32 %v1087, %v1088
      %v1090 = vand.u32 %v1089, 4294901760
      %1091 = vmatmul.mubr.f32.gmra.mxu0 %v1090
      %v1092 = vpop.f32.mrf.mxu0
      %v1093 = vadd.f32 0.0, %v1092
      %v1094 = vpop.f32.mrf.mxu0
      %1095 = vdwg.mxu0
      %1096 = vmatprep.subr.mxu0 0.0
      %1097 = vmatpush1.msra.mxu0 0.0
      %1098 = vmatprep.subr.mxu0 0.0
      %1099 = vmatpush1.msra.mxu0 0.0
      %1100 = vmatprep.subr.mxu0 0.0
      %1101 = vmatpush1.msra.mxu0 0.0
      %1102 = vmatprep.subr.mxu0 0.0
      %1103 = vmatpush1.msra.mxu0 0.0
      %1104 = vmatprep.subr.mxu0 0.0
      %1105 = vmatpush1.msra.mxu0 0.0
      %1106 = vmatprep.subr.mxu0 0.0
      %1107 = vmatpush1.msra.mxu0 0.0
      %1108 = vmatprep.subr.mxu0 0.0
      %1109 = vmatpush1.msra.mxu0 0.0
      %1110 = vmatprep.subr.mxu0 0.0
      %1111 = vmatpush1.msra.mxu0 0.0
      %1112 = vmatprep.subr.mxu0 0.0
      %1113 = vmatpush1.msra.mxu0 0.0
      %1114 = vmatprep.subr.mxu0 0.0
      %1115 = vmatpush1.msra.mxu0 0.0
      %1116 = vmatprep.subr.mxu0 0.0
      %1117 = vmatpush1.msra.mxu0 0.0
      %1118 = vmatprep.subr.mxu0 0.0
      %1119 = vmatpush1.msra.mxu0 0.0
      %1120 = vmatprep.subr.mxu0 0.0
      %1121 = vmatpush1.msra.mxu0 0.0
      %1122 = vmatprep.subr.mxu0 0.0
      %1123 = vmatpush1.msra.mxu0 0.0
      %1124 = vmatprep.subr.mxu0 0.0
      %1125 = vmatpush1.msra.mxu0 0.0
      %1126 = vmatprep.subr.mxu0 0.0
      %v1127 = vand.u32 %v1018, 4294901760
      %v1128 = vsub.f32 %v1018, %v1127
      %v1129 = vand.u32 %v1128, 4294901760
      %v1130 = vsub.f32 %v1128, %v1129
      %v1131 = vand.u32 %v1130, 4294901760
      %1132 = vmatpush1.msra.mxu0 %v1131
      %1133 = vmatprep.subr.mxu0 0.0
      %1134 = vmatpush2.msra.mxu0 0.0
      %1135 = vmatprep.subr.mxu0 0.0
      %1136 = vmatpush2.msra.mxu0 0.0
      %1137 = vmatprep.subr.mxu0 0.0
      %1138 = vmatpush2.msra.mxu0 0.0
      %1139 = vmatprep.subr.mxu0 0.0
      %1140 = vmatpush2.msra.mxu0 0.0
      %1141 = vmatprep.subr.mxu0 0.0
      %1142 = vmatpush2.msra.mxu0 0.0
      %1143 = vmatprep.subr.mxu0 0.0
      %1144 = vmatpush2.msra.mxu0 0.0
      %1145 = vmatprep.subr.mxu0 0.0
      %1146 = vmatpush2.msra.mxu0 0.0
      %1147 = vmatprep.subr.mxu0 0.0
      %1148 = vmatpush2.msra.mxu0 0.0
      %1149 = vmatprep.subr.mxu0 0.0
      %1150 = vmatpush2.msra.mxu0 0.0
      %1151 = vmatprep.subr.mxu0 0.0
      %1152 = vmatpush2.msra.mxu0 0.0
      %1153 = vmatprep.subr.mxu0 0.0
      %1154 = vmatpush2.msra.mxu0 0.0
      %1155 = vmatprep.subr.mxu0 0.0
      %1156 = vmatpush2.msra.mxu0 0.0
      %1157 = vmatprep.subr.mxu0 0.0
      %1158 = vmatpush2.msra.mxu0 0.0
      %1159 = vmatprep.subr.mxu0 0.0
      %1160 = vmatpush2.msra.mxu0 0.0
      %1161 = vmatprep.subr.mxu0 0.0
      %1162 = vmatpush2.msra.mxu0 0.0
      %1163 = vmatprep.subr.mxu0 0.0
      %1164 = vmatpush2.msra.mxu0 0.0
      %1165 = vmatprep.mubr.f32.mxu0 0.0
      %v1166 = vand.u32 %v1015, 4294901760
      %1167 = vmatmul.mubr.f32.gmra.mxu0 %v1166
      %v1168 = vpop.f32.mrf.mxu0
      %v1169 = vadd.f32 %v1093, %v1168
      %v1170 = vpop.f32.mrf.mxu0
      %1171 = vdwg.mxu0
      %1172 = vmatprep.subr.mxu0 0.0
      %1173 = vmatpush1.msra.mxu0 0.0
      %1174 = vmatprep.subr.mxu0 0.0
      %1175 = vmatpush1.msra.mxu0 0.0
      %1176 = vmatprep.subr.mxu0 0.0
      %1177 = vmatpush1.msra.mxu0 0.0
      %1178 = vmatprep.subr.mxu0 0.0
      %1179 = vmatpush1.msra.mxu0 0.0
      %1180 = vmatprep.subr.mxu0 0.0
      %1181 = vmatpush1.msra.mxu0 0.0
      %1182 = vmatprep.subr.mxu0 0.0
      %1183 = vmatpush1.msra.mxu0 0.0
      %1184 = vmatprep.subr.mxu0 0.0
      %1185 = vmatpush1.msra.mxu0 0.0
      %1186 = vmatprep.subr.mxu0 0.0
      %1187 = vmatpush1.msra.mxu0 0.0
      %1188 = vmatprep.subr.mxu0 0.0
      %1189 = vmatpush1.msra.mxu0 0.0
      %1190 = vmatprep.subr.mxu0 0.0
      %1191 = vmatpush1.msra.mxu0 0.0
      %1192 = vmatprep.subr.mxu0 0.0
      %1193 = vmatpush1.msra.mxu0 0.0
      %1194 = vmatprep.subr.mxu0 0.0
      %1195 = vmatpush1.msra.mxu0 0.0
      %1196 = vmatprep.subr.mxu0 0.0
      %1197 = vmatpush1.msra.mxu0 0.0
      %1198 = vmatprep.subr.mxu0 0.0
      %1199 = vmatpush1.msra.mxu0 0.0
      %1200 = vmatprep.subr.mxu0 0.0
      %1201 = vmatpush1.msra.mxu0 0.0
      %1202 = vmatprep.subr.mxu0 0.0
      %v1203 = vand.u32 %v1018, 4294901760
      %v1204 = vsub.f32 %v1018, %v1203
      %1205 = vmatpush1.msra.mxu0 %v1204
      %1206 = vmatprep.subr.mxu0 0.0
      %1207 = vmatpush2.msra.mxu0 0.0
      %1208 = vmatprep.subr.mxu0 0.0
      %1209 = vmatpush2.msra.mxu0 0.0
      %1210 = vmatprep.subr.mxu0 0.0
      %1211 = vmatpush2.msra.mxu0 0.0
      %1212 = vmatprep.subr.mxu0 0.0
      %1213 = vmatpush2.msra.mxu0 0.0
      %1214 = vmatprep.subr.mxu0 0.0
      %1215 = vmatpush2.msra.mxu0 0.0
      %1216 = vmatprep.subr.mxu0 0.0
      %1217 = vmatpush2.msra.mxu0 0.0
      %1218 = vmatprep.subr.mxu0 0.0
      %1219 = vmatpush2.msra.mxu0 0.0
      %1220 = vmatprep.subr.mxu0 0.0
      %1221 = vmatpush2.msra.mxu0 0.0
      %1222 = vmatprep.subr.mxu0 0.0
      %1223 = vmatpush2.msra.mxu0 0.0
      %1224 = vmatprep.subr.mxu0 0.0
      %1225 = vmatpush2.msra.mxu0 0.0
      %1226 = vmatprep.subr.mxu0 0.0
      %1227 = vmatpush2.msra.mxu0 0.0
      %1228 = vmatprep.subr.mxu0 0.0
      %1229 = vmatpush2.msra.mxu0 0.0
      %1230 = vmatprep.subr.mxu0 0.0
      %1231 = vmatpush2.msra.mxu0 0.0
      %1232 = vmatprep.subr.mxu0 0.0
      %1233 = vmatpush2.msra.mxu0 0.0
      %1234 = vmatprep.subr.mxu0 0.0
      %1235 = vmatpush2.msra.mxu0 0.0
      %1236 = vmatprep.subr.mxu0 0.0
      %1237 = vmatpush2.msra.mxu0 0.0
      %1238 = vmatprep.mubr.f32.mxu0 0.0
      %v1239 = vand.u32 %v1015, 4294901760
      %v1240 = vsub.f32 %v1015, %v1239
      %1241 = vmatmul.mubr.f32.gmra.mxu0 %v1240
      %v1242 = vpop.f32.mrf.mxu0
      %v1243 = vadd.f32 %v1169, %v1242
      %v1244 = vpop.f32.mrf.mxu0
      %1245 = vdwg.mxu0
      %1246 = vmatprep.subr.mxu0 0.0
      %1247 = vmatpush1.msra.mxu0 0.0
      %1248 = vmatprep.subr.mxu0 0.0
      %1249 = vmatpush1.msra.mxu0 0.0
      %1250 = vmatprep.subr.mxu0 0.0
      %1251 = vmatpush1.msra.mxu0 0.0
      %1252 = vmatprep.subr.mxu0 0.0
      %1253 = vmatpush1.msra.mxu0 0.0
      %1254 = vmatprep.subr.mxu0 0.0
      %1255 = vmatpush1.msra.mxu0 0.0
      %1256 = vmatprep.subr.mxu0 0.0
      %1257 = vmatpush1.msra.mxu0 0.0
      %1258 = vmatprep.subr.mxu0 0.0
      %1259 = vmatpush1.msra.mxu0 0.0
      %1260 = vmatprep.subr.mxu0 0.0
      %1261 = vmatpush1.msra.mxu0 0.0
      %1262 = vmatprep.subr.mxu0 0.0
      %1263 = vmatpush1.msra.mxu0 0.0
      %1264 = vmatprep.subr.mxu0 0.0
      %1265 = vmatpush1.msra.mxu0 0.0
      %1266 = vmatprep.subr.mxu0 0.0
      %1267 = vmatpush1.msra.mxu0 0.0
      %1268 = vmatprep.subr.mxu0 0.0
      %1269 = vmatpush1.msra.mxu0 0.0
      %1270 = vmatprep.subr.mxu0 0.0
      %1271 = vmatpush1.msra.mxu0 0.0
      %1272 = vmatprep.subr.mxu0 0.0
      %1273 = vmatpush1.msra.mxu0 0.0
      %1274 = vmatprep.subr.mxu0 0.0
      %1275 = vmatpush1.msra.mxu0 0.0
      %1276 = vmatprep.subr.mxu0 0.0
      %v1277 = vand.u32 %v1018, 4294901760
      %1278 = vmatpush1.msra.mxu0 %v1277
      %1279 = vmatprep.subr.mxu0 0.0
      %1280 = vmatpush2.msra.mxu0 0.0
      %1281 = vmatprep.subr.mxu0 0.0
      %1282 = vmatpush2.msra.mxu0 0.0
      %1283 = vmatprep.subr.mxu0 0.0
      %1284 = vmatpush2.msra.mxu0 0.0
      %1285 = vmatprep.subr.mxu0 0.0
      %1286 = vmatpush2.msra.mxu0 0.0
      %1287 = vmatprep.subr.mxu0 0.0
      %1288 = vmatpush2.msra.mxu0 0.0
      %1289 = vmatprep.subr.mxu0 0.0
      %1290 = vmatpush2.msra.mxu0 0.0
      %1291 = vmatprep.subr.mxu0 0.0
      %1292 = vmatpush2.msra.mxu0 0.0
      %1293 = vmatprep.subr.mxu0 0.0
      %1294 = vmatpush2.msra.mxu0 0.0
      %1295 = vmatprep.subr.mxu0 0.0
      %1296 = vmatpush2.msra.mxu0 0.0
      %1297 = vmatprep.subr.mxu0 0.0
      %1298 = vmatpush2.msra.mxu0 0.0
      %1299 = vmatprep.subr.mxu0 0.0
      %1300 = vmatpush2.msra.mxu0 0.0
      %1301 = vmatprep.subr.mxu0 0.0
      %1302 = vmatpush2.msra.mxu0 0.0
      %1303 = vmatprep.subr.mxu0 0.0
      %1304 = vmatpush2.msra.mxu0 0.0
      %1305 = vmatprep.subr.mxu0 0.0
      %1306 = vmatpush2.msra.mxu0 0.0
      %1307 = vmatprep.subr.mxu0 0.0
      %1308 = vmatpush2.msra.mxu0 0.0
      %1309 = vmatprep.subr.mxu0 0.0
      %1310 = vmatpush2.msra.mxu0 0.0
      %1311 = vmatprep.mubr.f32.mxu0 0.0
      %v1312 = vand.u32 %v1015, 4294901760
      %v1313 = vsub.f32 %v1015, %v1312
      %v1314 = vand.u32 %v1313, 4294901760
      %1315 = vmatmul.mubr.f32.gmra.mxu0 %v1314
      %v1316 = vpop.f32.mrf.mxu0
      %v1317 = vadd.f32 %v1243, %v1316
      %v1318 = vpop.f32.mrf.mxu0
      %1319 = vdwg.mxu0
      %1320 = vmatprep.subr.mxu0 0.0
      %1321 = vmatpush1.msra.mxu0 0.0
      %1322 = vmatprep.subr.mxu0 0.0
      %1323 = vmatpush1.msra.mxu0 0.0
      %1324 = vmatprep.subr.mxu0 0.0
      %1325 = vmatpush1.msra.mxu0 0.0
      %1326 = vmatprep.subr.mxu0 0.0
      %1327 = vmatpush1.msra.mxu0 0.0
      %1328 = vmatprep.subr.mxu0 0.0
      %1329 = vmatpush1.msra.mxu0 0.0
      %1330 = vmatprep.subr.mxu0 0.0
      %1331 = vmatpush1.msra.mxu0 0.0
      %1332 = vmatprep.subr.mxu0 0.0
      %1333 = vmatpush1.msra.mxu0 0.0
      %1334 = vmatprep.subr.mxu0 0.0
      %1335 = vmatpush1.msra.mxu0 0.0
      %1336 = vmatprep.subr.mxu0 0.0
      %1337 = vmatpush1.msra.mxu0 0.0
      %1338 = vmatprep.subr.mxu0 0.0
      %1339 = vmatpush1.msra.mxu0 0.0
      %1340 = vmatprep.subr.mxu0 0.0
      %1341 = vmatpush1.msra.mxu0 0.0
      %1342 = vmatprep.subr.mxu0 0.0
      %1343 = vmatpush1.msra.mxu0 0.0
      %1344 = vmatprep.subr.mxu0 0.0
      %1345 = vmatpush1.msra.mxu0 0.0
      %1346 = vmatprep.subr.mxu0 0.0
      %1347 = vmatpush1.msra.mxu0 0.0
      %1348 = vmatprep.subr.mxu0 0.0
      %1349 = vmatpush1.msra.mxu0 0.0
      %1350 = vmatprep.subr.mxu0 0.0
      %v1351 = vand.u32 %v1018, 4294901760
      %v1352 = vsub.f32 %v1018, %v1351
      %v1353 = vand.u32 %v1352, 4294901760
      %1354 = vmatpush1.msra.mxu0 %v1353
      %1355 = vmatprep.subr.mxu0 0.0
      %1356 = vmatpush2.msra.mxu0 0.0
      %1357 = vmatprep.subr.mxu0 0.0
      %1358 = vmatpush2.msra.mxu0 0.0
      %1359 = vmatprep.subr.mxu0 0.0
      %1360 = vmatpush2.msra.mxu0 0.0
      %1361 = vmatprep.subr.mxu0 0.0
      %1362 = vmatpush2.msra.mxu0 0.0
      %1363 = vmatprep.subr.mxu0 0.0
      %1364 = vmatpush2.msra.mxu0 0.0
      %1365 = vmatprep.subr.mxu0 0.0
      %1366 = vmatpush2.msra.mxu0 0.0
      %1367 = vmatprep.subr.mxu0 0.0
      %1368 = vmatpush2.msra.mxu0 0.0
      %1369 = vmatprep.subr.mxu0 0.0
      %1370 = vmatpush2.msra.mxu0 0.0
      %1371 = vmatprep.subr.mxu0 0.0
      %1372 = vmatpush2.msra.mxu0 0.0
      %1373 = vmatprep.subr.mxu0 0.0
      %1374 = vmatpush2.msra.mxu0 0.0
      %1375 = vmatprep.subr.mxu0 0.0
      %1376 = vmatpush2.msra.mxu0 0.0
      %1377 = vmatprep.subr.mxu0 0.0
      %1378 = vmatpush2.msra.mxu0 0.0
      %1379 = vmatprep.subr.mxu0 0.0
      %1380 = vmatpush2.msra.mxu0 0.0
      %1381 = vmatprep.subr.mxu0 0.0
      %1382 = vmatpush2.msra.mxu0 0.0
      %1383 = vmatprep.subr.mxu0 0.0
      %1384 = vmatpush2.msra.mxu0 0.0
      %1385 = vmatprep.subr.mxu0 0.0
      %1386 = vmatpush2.msra.mxu0 0.0
      %1387 = vmatprep.mubr.f32.mxu0 0.0
      %v1388 = vand.u32 %v1015, 4294901760
      %1389 = vmatmul.mubr.f32.gmra.mxu0 %v1388
      %v1390 = vpop.f32.mrf.mxu0
      %v1391 = vadd.f32 %v1317, %v1390
      %v1392 = vpop.f32.mrf.mxu0
      %1393 = vdwg.mxu0
      %1394 = vmatprep.subr.mxu0 0.0
      %1395 = vmatpush1.msra.mxu0 0.0
      %1396 = vmatprep.subr.mxu0 0.0
      %1397 = vmatpush1.msra.mxu0 0.0
      %1398 = vmatprep.subr.mxu0 0.0
      %1399 = vmatpush1.msra.mxu0 0.0
      %1400 = vmatprep.subr.mxu0 0.0
      %1401 = vmatpush1.msra.mxu0 0.0
      %1402 = vmatprep.subr.mxu0 0.0
      %1403 = vmatpush1.msra.mxu0 0.0
      %1404 = vmatprep.subr.mxu0 0.0
      %1405 = vmatpush1.msra.mxu0 0.0
      %1406 = vmatprep.subr.mxu0 0.0
      %1407 = vmatpush1.msra.mxu0 0.0
      %1408 = vmatprep.subr.mxu0 0.0
      %1409 = vmatpush1.msra.mxu0 0.0
      %1410 = vmatprep.subr.mxu0 0.0
      %1411 = vmatpush1.msra.mxu0 0.0
      %1412 = vmatprep.subr.mxu0 0.0
      %1413 = vmatpush1.msra.mxu0 0.0
      %1414 = vmatprep.subr.mxu0 0.0
      %1415 = vmatpush1.msra.mxu0 0.0
      %1416 = vmatprep.subr.mxu0 0.0
      %1417 = vmatpush1.msra.mxu0 0.0
      %1418 = vmatprep.subr.mxu0 0.0
      %1419 = vmatpush1.msra.mxu0 0.0
      %1420 = vmatprep.subr.mxu0 0.0
      %1421 = vmatpush1.msra.mxu0 0.0
      %1422 = vmatprep.subr.mxu0 0.0
      %1423 = vmatpush1.msra.mxu0 0.0
      %1424 = vmatprep.subr.mxu0 0.0
      %v1425 = vand.u32 %v1018, 4294901760
      %1426 = vmatpush1.msra.mxu0 %v1425
      %1427 = vmatprep.subr.mxu0 0.0
      %1428 = vmatpush2.msra.mxu0 0.0
      %1429 = vmatprep.subr.mxu0 0.0
      %1430 = vmatpush2.msra.mxu0 0.0
      %1431 = vmatprep.subr.mxu0 0.0
      %1432 = vmatpush2.msra.mxu0 0.0
      %1433 = vmatprep.subr.mxu0 0.0
      %1434 = vmatpush2.msra.mxu0 0.0
      %1435 = vmatprep.subr.mxu0 0.0
      %1436 = vmatpush2.msra.mxu0 0.0
      %1437 = vmatprep.subr.mxu0 0.0
      %1438 = vmatpush2.msra.mxu0 0.0
      %1439 = vmatprep.subr.mxu0 0.0
      %1440 = vmatpush2.msra.mxu0 0.0
      %1441 = vmatprep.subr.mxu0 0.0
      %1442 = vmatpush2.msra.mxu0 0.0
      %1443 = vmatprep.subr.mxu0 0.0
      %1444 = vmatpush2.msra.mxu0 0.0
      %1445 = vmatprep.subr.mxu0 0.0
      %1446 = vmatpush2.msra.mxu0 0.0
      %1447 = vmatprep.subr.mxu0 0.0
      %1448 = vmatpush2.msra.mxu0 0.0
      %1449 = vmatprep.subr.mxu0 0.0
      %1450 = vmatpush2.msra.mxu0 0.0
      %1451 = vmatprep.subr.mxu0 0.0
      %1452 = vmatpush2.msra.mxu0 0.0
      %1453 = vmatprep.subr.mxu0 0.0
      %1454 = vmatpush2.msra.mxu0 0.0
      %1455 = vmatprep.subr.mxu0 0.0
      %1456 = vmatpush2.msra.mxu0 0.0
      %1457 = vmatprep.subr.mxu0 0.0
      %1458 = vmatpush2.msra.mxu0 0.0
      %1459 = vmatprep.mubr.f32.mxu0 0.0
      %v1460 = vand.u32 %v1015, 4294901760
      %1461 = vmatmul.mubr.f32.gmra.mxu0 %v1460
      %v1462 = vpop.f32.mrf.mxu0
      %v1463 = vadd.f32 %v1391, %v1462
      %v1464 = vpop.f32.mrf.mxu0
      %1465 = vdwg.mxu0
      %v1466 = vmul.f32 %v528, %v528
      %v1467 = vsel %vm535, %v1466, 0.0
      %1468 = vadd.xlane.f32.xlu0 %v1467
      %v1469 = vpop.xlane.xlu0 %1468
      %v1470 = vmul.f32 %v530, %v530
      %v1471 = vsel %vm994, %v1470, 0.0
      %v1472 = vrot.slane %v1471, 4
      %v1473 = vadd.f32 %v1471, %v1472
      %v1474 = vrot.slane %v1473, 2
      %v1475 = vadd.f32 %v1473, %v1474
      %v1476 = vrot.slane %v1475, 1
      %v1477 = vadd.f32 %v1475, %v1476
      %v1478 = vadd.f32 %v1469, %v1477
      %v1479 = vmul.f32 %v1463, 2.0
      %v1480 = vsub.f32 %v1478, %v1479
      %v1481 = vmax.f32 %v1480, 0.0
      %v1482 = vadd.f32 %v1481, 1e-10
      %v1483 = vrsqrt.pop %v1482
      %v1484 = vmul.f32 %v1482, %v1483
      %vm1485 = vcmp.eq.f32.partialorder %v1482, inf
      %v1486 = vsel %vm1485, %v1482, %v1484
      %vm1487 = vcmp.eq.f32.partialorder %v1482, 0.0
      %v1488 = vand.u32 %v1482, 2147483648
      %v1489 = vsel %vm1487, %v1488, %v1486
      %s1490 = smul.u32 %s26, 8
      %v1491 = vlaneseq
      %v1492 = vshrl.u32 %v1491, 7
      %v1493 = vstv %s1490
      %v1494 = vadd.s32 %v1493, %v1492
      %v1495 = vlaneseq
      %v1496 = vand.u32 %v1495, 127
      %vm1497 = vcmp.ne.s32.totalorder %v1494, %v1496
      %v1498 = vsel %vm1497, 1, 0
      %v1499 = vcvt.s32.f32 %v1498
      %vm1500 = vcmp.lt.f32.partialorder %v1013, 15.0
      %v1501 = vsel %vm1500, 1, 0
      %v1502 = vcvt.s32.f32 %v1501
      %1504 = vset.pattern.permute.xlu0 0
      %1505 = vperm.xlu0 %1504, %v532
      %v1506 = vpop.permute.xlu0 %1505
      %v1508 = vmul.f32 %v1502, %v1506
      %v1510 = vlaneseq
      %v1511 = vshrl.u32 %v1510, 7
      %v1512 = vsub.s32 0, %v1511
      %v1513 = vrot.slane %v533, %v1512
      %v1515 = vmul.f32 %v1508, %v1513
      %v1516 = vmul.f32 %v1515, %v1499
      %v1517 = vsub.f32 %v1013, %v1489
      %v1518 = vand.u32 2147483647, %v1517
      %vm1519 = vcmp.lt.f32.partialorder %v1518, 0.5
      %v1520 = vsel %vm1519, 1, 0
      %v1521 = vcvt.s32.f32 %v1520
      %vm1522 = vcmp.lt.f32.partialorder %v1518, 1.0
      %v1523 = vsel %vm1522, 1, 0
      %v1524 = vcvt.s32.f32 %v1523
      %v1525 = vadd.f32 %v1521, %v1524
      %vm1526 = vcmp.lt.f32.partialorder %v1518, 2.0
      %v1527 = vsel %vm1526, 1, 0
      %v1528 = vcvt.s32.f32 %v1527
      %v1529 = vadd.f32 %v1525, %v1528
      %vm1530 = vcmp.lt.f32.partialorder %v1518, 4.0
      %v1531 = vsel %vm1530, 1, 0
      %v1532 = vcvt.s32.f32 %v1531
      %v1533 = vadd.f32 %v1529, %v1532
      %v1534 = vmul.f32 %v1533, 0.25
      %vm1535 = vcmask 64512
      %v1536 = vsel %vm1535, %v1516, 0.0
      %1537 = vadd.xlane.f32.xlu0 %v1536
      %v1538 = vpop.xlane.xlu0 %1537
      %v1539 = vadd.f32 %v1538, 1e-10
      %v1540 = vrcp.pop %v1539
      %v1541 = vmul.f32 1.0, %v1540
      %v1542 = vmul.f32 %v1516, %v1534
      %v1543 = vsel %vm1535, %v1542, 0.0
      %1544 = vadd.xlane.f32.xlu0 %v1543
      %v1545 = vpop.xlane.xlu0 %1544
      %v1546 = vmul.f32 %v1541, %v1545
      %v1547 = vmul.f32 %v1546, 50.0
      %v1548 = vfloor.f32 %v1547
      %v1549 = vmin.f32 %v1548, 49.0
      %v1550 = vcvt.f32.s32.to.zero.pseudo %v1549
      %vm1551 = vcmask 408576
      %v1552 = vsel %vm1551, %v534, -inf
      %1553 = vmax.xlane.f32.xlu0 %v1552
      %v1554 = vpop.xlane.xlu0 %1553
      %v1555 = vsub.f32 %v534, %v1554
      %v1556 = vmul.f32 %v1555, 1.442695
      %v1557 = vpow.pop %v1556
      %v1558 = vsel %vm1551, %v1557, 0.0
      %1559 = vadd.xlane.f32.xlu0 %v1558
      %v1560 = vpop.xlane.xlu0 %1559
      %v1561 = vlog2.pop %v1560
      %v1562 = vmul.f32 %v1561, 0.6931472
      %v1563 = vadd.f32 %v1554, %v1562
      %vm1564 = vcmp.eq.s32.totalorder %v1496, %v1550
      %v1565 = vsel %vm1564, %v534, 0.0
      %v1566 = vsel %vm1551, %v1565, 0.0
      %1567 = vadd.xlane.f32.xlu0 %v1566
      %v1568 = vpop.xlane.xlu0 %1567
      %v1569 = vsub.f32 %v1563, %v1568
      %v1570 = vcvt.s32.f32 %v1496
      %v1571 = vadd.f32 %v1570, 0.5
      %v1572 = vrcp.pop 50.0
      %v1573 = vmul.f32 %v1571, %v1572
      %v1574 = vsub.f32 %v534, %v1563
      %v1575 = vmul.f32 %v1574, 1.442695
      %v1576 = vpow.pop %v1575
      %v1577 = vmul.f32 %v1576, %v1573
      %v1578 = vsel %vm1551, %v1577, 0.0
      %1579 = vadd.xlane.f32.xlu0 %v1578
      %v1580 = vpop.xlane.xlu0 %1579
      %vm1581 = vcmask 7168
      %1582 = vst.msk [vmem:[%s513] sm:$0xff] %vm1581, %v1546
      %1583 = vst.msk [vmem:[%s520] sm:$0xff] %vm1581, %v1569
      %1584 = vst.msk [vmem:[%s527] sm:$0xff] %vm1581, %v1580
      %p1585 = scmp.lt.s32.totalorder %s25, 1
      %s1586 = scalar_select %p1585, %s25, 1
      %p1587 = scmp.lt.s32.totalorder %s26, 0
      %s1588 = scalar_select %p1587, %s26, 0
      %s1589 = sadd.s32 %s1588, %s1586
      %s1590 = smul.addr %s1589, 8
      %s1591 = scalar_lea.vmem %s7, %s1590
      %p1592 = scmp.lt.s32.totalorder %s25, 1
      %s1593 = scalar_select %p1592, %s25, 1
      %p1594 = scmp.lt.s32.totalorder %s26, 0
      %s1595 = scalar_select %p1594, %s26, 0
      %s1596 = sadd.s32 %s1595, %s1593
      %s1597 = smul.addr %s1596, 8
      %s1598 = scalar_lea.vmem %s8, %s1597
      %p1599 = scmp.lt.s32.totalorder %s25, 1
      %s1600 = scalar_select %p1599, %s25, 1
      %p1601 = scmp.lt.s32.totalorder %s26, 0
      %s1602 = scalar_select %p1601, %s26, 0
      %s1603 = sadd.s32 %s1602, %s1600
      %s1604 = smul.addr %s1603, 8
      %s1605 = scalar_lea.vmem %s9, %s1604
      // Predicated region
      $region49: #{rhofold_loss.4} parent=47 // pred_check
        %p1606 = pneg %p243
      $region50: #{rhofold_loss.4} parent=47 // pred_check_branch
        %1608 = sbr.rel (%p1606) target = $region52
      $region51: #{rhofold_loss.4} parent=47 // pred_region
        _
      $region52: #{rhofold_loss.4} parent=47 // pred_fallthru
        _
      // Predicated region
      $region53: #{rhofold_loss.4} parent=47 // pred_check
        %p1609 = pneg %p271
      $region54: #{rhofold_loss.4} parent=47 // pred_check_branch
        %1611 = sbr.rel (%p1609) target = $region56
      $region55: #{rhofold_loss.4} parent=47 // pred_region
        _
      $region56: #{rhofold_loss.4} parent=47 // pred_fallthru
        _
      // Predicated region
      $region57: #{rhofold_loss.4} parent=47 // pred_check
        %p1612 = pneg %p299
      $region58: #{rhofold_loss.4} parent=47 // pred_check_branch
        %1614 = sbr.rel (%p1612) target = $region60
      $region59: #{rhofold_loss.4} parent=47 // pred_region
        _
      $region60: #{rhofold_loss.4} parent=47 // pred_fallthru
        _
    $region48: #{rhofold_loss.4} parent=5 // pred_fallthru
      _
    %p1615 = scmp.le.s32.totalorder 2, %s16
    // Predicated region
    $region61: #{rhofold_loss.4} parent=5 // pred_check
      %p1616 = pneg %p1615
    $region62: #{rhofold_loss.4} parent=5 // pred_check_branch
      %1618 = sbr.rel (%p1616) target = $region64
    $region63: #{rhofold_loss.4} parent=5 // pred_region
      %s1619 = ssub.s32 %s16, 2
      // Predicated region
      $region65: #{rhofold_loss.4} parent=63 // pred_check
        %p1620 = pneg %p249
      $region66: #{rhofold_loss.4} parent=63 // pred_check_branch
        %1622 = sbr.rel (%p1620) target = $region68
      $region67: #{rhofold_loss.4} parent=63 // pred_region
        %p1623 = scmp.lt.s32.totalorder %s27, 1
        %s1624 = scalar_select %p1623, %s27, 1
        %p1625 = scmp.lt.s32.totalorder %s28, 0
        %s1626 = scalar_select %p1625, %s28, 0
        %s1627 = sadd.s32 %s1626, %s1624
        %s1628 = smul.addr %s1627, 8
        %s1629 = scalar_lea.vmem %s7, %s1628
      $region68: #{rhofold_loss.4} parent=63 // pred_fallthru
        _
      // Predicated region
      $region69: #{rhofold_loss.4} parent=63 // pred_check
        %p1630 = pneg %p277
      $region70: #{rhofold_loss.4} parent=63 // pred_check_branch
        %1632 = sbr.rel (%p1630) target = $region72
      $region71: #{rhofold_loss.4} parent=63 // pred_region
        %p1633 = scmp.lt.s32.totalorder %s27, 1
        %s1634 = scalar_select %p1633, %s27, 1
        %p1635 = scmp.lt.s32.totalorder %s28, 0
        %s1636 = scalar_select %p1635, %s28, 0
        %s1637 = sadd.s32 %s1636, %s1634
        %s1638 = smul.addr %s1637, 8
        %s1639 = scalar_lea.vmem %s8, %s1638
      $region72: #{rhofold_loss.4} parent=63 // pred_fallthru
        _
      // Predicated region
      $region73: #{rhofold_loss.4} parent=63 // pred_check
        %p1640 = pneg %p305
      $region74: #{rhofold_loss.4} parent=63 // pred_check_branch
        %1642 = sbr.rel (%p1640) target = $region76
      $region75: #{rhofold_loss.4} parent=63 // pred_region
        %p1643 = scmp.lt.s32.totalorder %s27, 1
        %s1644 = scalar_select %p1643, %s27, 1
        %p1645 = scmp.lt.s32.totalorder %s28, 0
        %s1646 = scalar_select %p1645, %s28, 0
        %s1647 = sadd.s32 %s1646, %s1644
        %s1648 = smul.addr %s1647, 8
        %s1649 = scalar_lea.vmem %s9, %s1648
      $region76: #{rhofold_loss.4} parent=63 // pred_fallthru
        _
    $region64: #{rhofold_loss.4} parent=5 // pred_fallthru
      _
  $region6: #{rhofold_loss.4} parent=0 // loop_footer
    %s20 = sadd.s32 1, %s16
  $region7: #{rhofold_loss.4} parent=0 // loop_footer_branch
    %15 = sbr.rel target = $region3
  $region8: #{rhofold_loss.4} parent=0 // loop_exit
    _

</llo_original>
